<compile_context>
chip_gen: v5e
topology: v5e:2x2
jax: 0.10.0
libtpu: 0.0.40
codegen_flags: <defaults>
</compile_context>

<pallas_src>
import functools
import math

import jax
import jax.numpy as jnp
from jax import lax
from jax.experimental import pallas as pl
from jax.experimental.pallas import tpu as pltpu

_BF16 = jnp.bfloat16


# --------------------------- in-kernel building blocks ---------------------------

def _mha(x_q, x_kv, wq, bq, wkv, bkv, wo, bo, mask, *, H):
    """Multi-head attention on a single-batch (L, D) slab.  Returns (L, D) f32.

    q/k/v projections are bf16 matmuls with f32 accumulation; the 1/sqrt(Dh) scale
    is folded into q once.  Heads are static feature-axis slices; per-head context
    vectors stay in registers and are concatenated (no VMEM scratch / masked stores).
    """
    D = x_q.shape[-1]
    Dh = D // H
    scale = 1.0 / math.sqrt(Dh)
    q = (jnp.dot(x_q.astype(_BF16), wq, preferred_element_type=jnp.float32) + bq) * scale
    kv = jnp.dot(x_kv.astype(_BF16), wkv, preferred_element_type=jnp.float32) + bkv
    k = kv[:, :D]
    v = kv[:, D:]
    # TODO(synk): switch to lax.fori_loop / a grid axis at production L,H to bound
    #             vreg live ranges; at these demo shapes unrolling is free.
    heads = []
    for h in range(H):
        cols = slice(h * Dh, (h + 1) * Dh)
        qh = q[:, cols].astype(_BF16)          # (L, Dh)
        kh = k[:, cols].astype(_BF16)          # (L, Dh)
        vh = v[:, cols].astype(_BF16)          # (L, Dh)
        # scores: contract the Dh axis of both operands (no explicit k.T transpose).
        s = lax.dot_general(qh, kh, (((1,), (1,)), ((), ())),
                            preferred_element_type=jnp.float32)      # (L, L) f32
        if mask is not None:
            s = jnp.where(mask == 0, -1e9, s)  # exact torch masked_fill semantics
        s = s - jnp.max(s, axis=-1, keepdims=True)
        e = jnp.exp(s)
        p = e * pl.reciprocal(jnp.sum(e, axis=-1, keepdims=True), approx=True)
        heads.append(jnp.dot(p.astype(_BF16), vh, preferred_element_type=jnp.float32))
    z = jnp.concatenate(heads, axis=-1)        # (L, D) register assembly
    return jnp.dot(z.astype(_BF16), wo, preferred_element_type=jnp.float32) + bo


def _add_layernorm(x, res, g, b, *, eps):
    """LayerNorm(x + res) matching the PyTorch module: unbiased std, eps added to std.

    Exact division (no approx reciprocal) so the error does not compound across the
    4+ stacked LayerNorms.
    """
    y = x + res
    d = y.shape[-1]
    mean = jnp.mean(y, axis=-1, keepdims=True)
    ym = y - mean
    var = jnp.sum(ym * ym, axis=-1, keepdims=True) * (1.0 / (d - 1))
    return g * ym / (jnp.sqrt(var) + eps) + b


def _ffn(x, w1, b1, w2, b2):
    h = jnp.dot(x.astype(_BF16), w1, preferred_element_type=jnp.float32) + b1
    h = jnp.maximum(h, 0.0)
    return jnp.dot(h.astype(_BF16), w2, preferred_element_type=jnp.float32) + b2


# --------------------------- fused stack kernels ---------------------------

def _encoder_stack_kernel(x_ref,
                          wq_ref, bq_ref, wkv_ref, bkv_ref, wo_ref, bo_ref,
                          g1_ref, be1_ref,
                          w1_ref, b1_ref, w2_ref, b2_ref,
                          g2_ref, be2_ref,
                          o_ref, *, H, eps):
    layer = pl.program_id(1)

    @pl.when(layer == 0)
    def _():
        o_ref[...] = x_ref[...]            # seed the VMEM-resident activation carry

    x = o_ref[...]
    a = _mha(x, x, wq_ref[...], bq_ref[...], wkv_ref[...], bkv_ref[...],
             wo_ref[...], bo_ref[...], None, H=H)
    x1 = _add_layernorm(x, a, g1_ref[...], be1_ref[...], eps=eps)
    f = _ffn(x1, w1_ref[...], b1_ref[...], w2_ref[...], b2_ref[...])
    o_ref[...] = _add_layernorm(x1, f, g2_ref[...], be2_ref[...], eps=eps)


def _decoder_stack_kernel(y_ref, mem_ref, mask_ref,
                          wq1_ref, bq1_ref, wkv1_ref, bkv1_ref, wo1_ref, bo1_ref,
                          g1_ref, be1_ref,
                          wq2_ref, bq2_ref, wkv2_ref, bkv2_ref, wo2_ref, bo2_ref,
                          g2_ref, be2_ref,
                          w1_ref, b1_ref, w2_ref, b2_ref,
                          g3_ref, be3_ref,
                          o_ref, *, H, eps):
    layer = pl.program_id(1)

    @pl.when(layer == 0)
    def _():
        o_ref[...] = y_ref[...]            # seed the VMEM-resident activation carry

    y = o_ref[...]
    mem = mem_ref[...]
    mask = mask_ref[...]
    # masked self-attention
    a = _mha(y, y, wq1_ref[...], bq1_ref[...], wkv1_ref[...], bkv1_ref[...],
             wo1_ref[...], bo1_ref[...], mask, H=H)
    y1 = _add_layernorm(y, a, g1_ref[...], be1_ref[...], eps=eps)
    # cross-attention over encoder memory (no mask)
    c = _mha(y1, mem, wq2_ref[...], bq2_ref[...], wkv2_ref[...], bkv2_ref[...],
             wo2_ref[...], bo2_ref[...], None, H=H)
    y2 = _add_layernorm(y1, c, g2_ref[...], be2_ref[...], eps=eps)
    f = _ffn(y2, w1_ref[...], b1_ref[...], w2_ref[...], b2_ref[...])
    o_ref[...] = _add_layernorm(y2, f, g3_ref[...], be3_ref[...], eps=eps)


# --------------------------- kernel wrappers ---------------------------

def _layer_spec(w):
    """BlockSpec for a (n_layers, ...) stacked parameter: one layer slice per grid step,
    constant across the batch axis (no re-DMA when only the batch index changes last)."""
    tail = w.shape[1:]
    zeros = (0,) * len(tail)
    return pl.BlockSpec((None,) + tail, lambda b, l: (l,) + zeros)


_ENC_KEYS = ("wq", "bq", "wkv", "bkv", "wo", "bo",
             "g1", "be1",
             "w1", "b1", "w2", "b2",
             "g2", "be2")

_DEC_KEYS = ("wq1", "bq1", "wkv1", "bkv1", "wo1", "bo1",
             "g1", "be1",
             "wq2", "bq2", "wkv2", "bkv2", "wo2", "bo2",
             "g2", "be2",
             "w1", "b1", "w2", "b2",
             "g3", "be3")


def encoder_stack(x_emb, p, *, H, eps=1e-6):
    B, L, D = x_emb.shape
    n_layers = p["wq"].shape[0]
    weights = tuple(p[k] for k in _ENC_KEYS)
    act_spec = pl.BlockSpec((None, L, D), lambda b, l: (b, 0, 0))
    return pl.pallas_call(
        functools.partial(_encoder_stack_kernel, H=H, eps=eps),
        out_shape=jax.ShapeDtypeStruct((B, L, D), jnp.float32),
        grid=(B, n_layers),
        in_specs=[act_spec] + [_layer_spec(w) for w in weights],
        out_specs=act_spec,
        compiler_params=pltpu.CompilerParams(
            dimension_semantics=("parallel", "arbitrary")),
    )(x_emb, *weights)


def decoder_stack(y_emb, memory, mask, p, *, H, eps=1e-6):
    B, L, D = y_emb.shape
    n_layers = p["wq1"].shape[0]
    weights = tuple(p[k] for k in _DEC_KEYS)
    act_spec = pl.BlockSpec((None, L, D), lambda b, l: (b, 0, 0))
    mem_spec = pl.BlockSpec((None, L, D), lambda b, l: (b, 0, 0))
    mask_spec = pl.BlockSpec((L, L), lambda b, l: (0, 0))
    return pl.pallas_call(
        functools.partial(_decoder_stack_kernel, H=H, eps=eps),
        out_shape=jax.ShapeDtypeStruct((B, L, D), jnp.float32),
        grid=(B, n_layers),
        in_specs=[act_spec, mem_spec, mask_spec] + [_layer_spec(w) for w in weights],
        out_specs=act_spec,
        compiler_params=pltpu.CompilerParams(
            dimension_semantics=("parallel", "arbitrary")),
    )(y_emb, memory, mask, *weights)


def encoder_decoder_forward(params, x_emb, y_emb, mask, *, h_enc, h_dec):
    memory = encoder_stack(x_emb, params["enc"], H=h_enc)
    return decoder_stack(y_emb, memory, mask.astype(jnp.float32), params["dec"], H=h_dec)


# --------------------------- parameter init (stacked per layer) ---------------------------

def _init_linear(key, n, d_in, d_out):
    k1, k2 = jax.random.split(key)
    w = (jax.random.normal(k1, (n, d_in, d_out), jnp.float32) / math.sqrt(d_in)).astype(_BF16)
    b = jax.random.normal(k2, (n, 1, d_out), jnp.float32) * 0.01
    return w, b


def _init_mha(key, n, d):
    kq, kk, kv, ko = jax.random.split(key, 4)
    wq, bq = _init_linear(kq, n, d, d)
    wk, bk = _init_linear(kk, n, d, d)
    wv, bv = _init_linear(kv, n, d, d)
    wo, bo = _init_linear(ko, n, d, d)
    # fuse the k/v projections into a single (d, 2d) weight / (1, 2d) bias per layer
    return dict(wq=wq, bq=bq,
                wkv=jnp.concatenate([wk, wv], axis=-1),
                bkv=jnp.concatenate([bk, bv], axis=-1),
                wo=wo, bo=bo)


def _init_ln(n, d):
    return jnp.ones((n, 1, d), jnp.float32), jnp.zeros((n, 1, d), jnp.float32)


def init_params(key, d_model, n_enc, n_dec, hid_dim=2048):
    k_ea, k_ef1, k_ef2, k_da1, k_da2, k_df1, k_df2 = jax.random.split(key, 7)

    enc = dict(_init_mha(k_ea, n_enc, d_model))
    enc["g1"], enc["be1"] = _init_ln(n_enc, d_model)
    enc["w1"], enc["b1"] = _init_linear(k_ef1, n_enc, d_model, hid_dim)
    enc["w2"], enc["b2"] = _init_linear(k_ef2, n_enc, hid_dim, d_model)
    enc["g2"], enc["be2"] = _init_ln(n_enc, d_model)

    dec = {}
    dec.update({k + "1": v for k, v in _init_mha(k_da1, n_dec, d_model).items()})
    dec.update({k + "2": v for k, v in _init_mha(k_da2, n_dec, d_model).items()})
    dec["g1"], dec["be1"] = _init_ln(n_dec, d_model)
    dec["g2"], dec["be2"] = _init_ln(n_dec, d_model)
    dec["g3"], dec["be3"] = _init_ln(n_dec, d_model)
    dec["w1"], dec["b1"] = _init_linear(k_df1, n_dec, d_model, hid_dim)
    dec["w2"], dec["b2"] = _init_linear(k_df2, n_dec, hid_dim, d_model)

    return {"enc": enc, "dec": dec}


# --------------------------- main ---------------------------

if __name__ == "__main__":
    B, L, d_model = 2, 8, 32
    N_enc, N_dec, h_enc, h_dec = 2, 2, 4, 4
    hid_dim = 2048  # FeedForward default in the PyTorch module

    key = jax.random.PRNGKey(0)
    kp, kx, ky = jax.random.split(key, 3)
    params = init_params(kp, d_model, N_enc, N_dec, hid_dim)

    x_emb = jax.random.normal(kx, (B, L, d_model), jnp.float32)
    y_emb = jax.random.normal(ky, (B, L, d_model), jnp.float32)
    mask = jnp.tril(jnp.ones((L, L), jnp.float32))  # causal decoder mask (1=keep, 0=mask)

    fwd = jax.jit(functools.partial(encoder_decoder_forward, h_enc=h_enc, h_dec=h_dec))
    out = fwd(params, x_emb, y_emb, mask)
    jax.block_until_ready(out)
    assert out.shape == (B, L, d_model)
    assert bool(jnp.all(jnp.isfinite(out)))
    print("KERNEL_OK")
</pallas_src>

<mosaic_0001>
module attributes {stable_mosaic.version = 11 : i64} {
  func.func @_encoder_stack_kernel(%arg0: i32, %arg1: i32, %arg2: memref<1x8x32xf32, #tpu.memory_space<vmem>>, %arg3: memref<1x32x32xbf16, #tpu.memory_space<vmem>>, %arg4: memref<1x1x32xf32, #tpu.memory_space<vmem>>, %arg5: memref<1x32x64xbf16, #tpu.memory_space<vmem>>, %arg6: memref<1x1x64xf32, #tpu.memory_space<vmem>>, %arg7: memref<1x32x32xbf16, #tpu.memory_space<vmem>>, %arg8: memref<1x1x32xf32, #tpu.memory_space<vmem>>, %arg9: memref<1x1x32xf32, #tpu.memory_space<vmem>>, %arg10: memref<1x1x32xf32, #tpu.memory_space<vmem>>, %arg11: memref<1x32x2048xbf16, #tpu.memory_space<vmem>>, %arg12: memref<1x1x2048xf32, #tpu.memory_space<vmem>>, %arg13: memref<1x2048x32xbf16, #tpu.memory_space<vmem>>, %arg14: memref<1x1x32xf32, #tpu.memory_space<vmem>>, %arg15: memref<1x1x32xf32, #tpu.memory_space<vmem>>, %arg16: memref<1x1x32xf32, #tpu.memory_space<vmem>>, %arg17: memref<1x8x32xf32, #tpu.memory_space<vmem>>) attributes {dimension_semantics = [#tpu.dimension_semantics<parallel>, #tpu.dimension_semantics<arbitrary>], iteration_bounds = array<i64: 2, 2>, scalar_prefetch = 0 : i64, scratch_operands = 0 : i64, tpu.core_type = #tpu.core_type<tc>, window_params = [{transform_indices = @transform_0, window_bounds = array<i64: 1, 8, 32>}, {transform_indices = @transform_1, window_bounds = array<i64: 1, 32, 32>}, {transform_indices = @transform_2, window_bounds = array<i64: 1, 1, 32>}, {transform_indices = @transform_3, window_bounds = array<i64: 1, 32, 64>}, {transform_indices = @transform_4, window_bounds = array<i64: 1, 1, 64>}, {transform_indices = @transform_5, window_bounds = array<i64: 1, 32, 32>}, {transform_indices = @transform_6, window_bounds = array<i64: 1, 1, 32>}, {transform_indices = @transform_7, window_bounds = array<i64: 1, 1, 32>}, {transform_indices = @transform_8, window_bounds = array<i64: 1, 1, 32>}, {transform_indices = @transform_9, window_bounds = array<i64: 1, 32, 2048>}, {transform_indices = @transform_10, window_bounds = array<i64: 1, 1, 2048>}, {transform_indices = @transform_11, window_bounds = array<i64: 1, 2048, 32>}, {transform_indices = @transform_12, window_bounds = array<i64: 1, 1, 32>}, {transform_indices = @transform_13, window_bounds = array<i64: 1, 1, 32>}, {transform_indices = @transform_14, window_bounds = array<i64: 1, 1, 32>}, {transform_indices = @transform_15, window_bounds = array<i64: 1, 8, 32>}]} {
    %c0_i32 = arith.constant 0 : i32
    %0 = arith.cmpi eq, %arg1, %c0_i32 : i32
    %1 = arith.extui %0 : i1 to i32
    %c0_i32_0 = arith.constant 0 : i32
    %2 = arith.cmpi ne, %1, %c0_i32_0 : i32
    scf.if %2 {
      %c0_80 = arith.constant 0 : index
      %c0_81 = arith.constant 0 : index
      %c0_82 = arith.constant 0 : index
      %181 = vector.load %arg2[%c0_80, %c0_81, %c0_82] : memref<1x8x32xf32, #tpu.memory_space<vmem>>, vector<1x8x32xf32>
      %182 = vector.shape_cast %181 : vector<1x8x32xf32> to vector<8x32xf32>
      %c0_83 = arith.constant 0 : index
      %c0_84 = arith.constant 0 : index
      %c0_85 = arith.constant 0 : index
      %183 = vector.load %arg17[%c0_83, %c0_84, %c0_85] : memref<1x8x32xf32, #tpu.memory_space<vmem>>, vector<1x8x32xf32>
      %184 = vector.shape_cast %183 : vector<1x8x32xf32> to vector<8x32xf32>
      %185 = vector.shape_cast %182 : vector<8x32xf32> to vector<1x8x32xf32>
      tpu.vector_store %arg17[%c0_83, %c0_84, %c0_85], %185 {strides = array<i32>} : memref<1x8x32xf32, #tpu.memory_space<vmem>>, vector<1x8x32xf32>,
    } else {
    }
    %c0 = arith.constant 0 : index
    %c0_1 = arith.constant 0 : index
    %c0_2 = arith.constant 0 : index
    %3 = vector.load %arg17[%c0, %c0_1, %c0_2] : memref<1x8x32xf32, #tpu.memory_space<vmem>>, vector<1x8x32xf32>
    %4 = vector.shape_cast %3 : vector<1x8x32xf32> to vector<8x32xf32>
    %c0_3 = arith.constant 0 : index
    %c0_4 = arith.constant 0 : index
    %c0_5 = arith.constant 0 : index
    %5 = vector.load %arg3[%c0_3, %c0_4, %c0_5] : memref<1x32x32xbf16, #tpu.memory_space<vmem>>, vector<1x32x32xbf16>
    %6 = vector.shape_cast %5 : vector<1x32x32xbf16> to vector<32x32xbf16>
    %c0_6 = arith.constant 0 : index
    %c0_7 = arith.constant 0 : index
    %c0_8 = arith.constant 0 : index
    %7 = vector.load %arg4[%c0_6, %c0_7, %c0_8] : memref<1x1x32xf32, #tpu.memory_space<vmem>>, vector<1x1x32xf32>
    %8 = vector.shape_cast %7 : vector<1x1x32xf32> to vector<1x32xf32>
    %c0_9 = arith.constant 0 : index
    %c0_10 = arith.constant 0 : index
    %c0_11 = arith.constant 0 : index
    %9 = vector.load %arg5[%c0_9, %c0_10, %c0_11] : memref<1x32x64xbf16, #tpu.memory_space<vmem>>, vector<1x32x64xbf16>
    %10 = vector.shape_cast %9 : vector<1x32x64xbf16> to vector<32x64xbf16>
    %c0_12 = arith.constant 0 : index
    %c0_13 = arith.constant 0 : index
    %c0_14 = arith.constant 0 : index
    %11 = vector.load %arg6[%c0_12, %c0_13, %c0_14] : memref<1x1x64xf32, #tpu.memory_space<vmem>>, vector<1x1x64xf32>
    %12 = vector.shape_cast %11 : vector<1x1x64xf32> to vector<1x64xf32>
    %c0_15 = arith.constant 0 : index
    %c0_16 = arith.constant 0 : index
    %c0_17 = arith.constant 0 : index
    %13 = vector.load %arg7[%c0_15, %c0_16, %c0_17] : memref<1x32x32xbf16, #tpu.memory_space<vmem>>, vector<1x32x32xbf16>
    %14 = vector.shape_cast %13 : vector<1x32x32xbf16> to vector<32x32xbf16>
    %c0_18 = arith.constant 0 : index
    %c0_19 = arith.constant 0 : index
    %c0_20 = arith.constant 0 : index
    %15 = vector.load %arg8[%c0_18, %c0_19, %c0_20] : memref<1x1x32xf32, #tpu.memory_space<vmem>>, vector<1x1x32xf32>
    %16 = vector.shape_cast %15 : vector<1x1x32xf32> to vector<1x32xf32>
    %17 = arith.truncf %4 : vector<8x32xf32> to vector<8x32xbf16>
    %cst = arith.constant dense<0.000000e+00> : vector<8x32xf32>
    %18 = tpu.matmul %17, %6, %cst {dimension_numbers = #tpu.dot_dimension_numbers<[1], [0], [0], [1], [0, 0, 1, 1], [], []>} : vector<8x32xbf16>, vector<32x32xbf16>, vector<8x32xf32> -> vector<8x32xf32>
    %19 = vector.broadcast %8 : vector<1x32xf32> to vector<8x32xf32>
    %20 = arith.addf %18, %19 : vector<8x32xf32>
    %cst_21 = arith.constant 0.353553385 : f32
    %21 = vector.broadcast %cst_21 : f32 to vector<8x32xf32>
    %22 = arith.mulf %20, %21 : vector<8x32xf32>
    %23 = arith.truncf %4 : vector<8x32xf32> to vector<8x32xbf16>
    %cst_22 = arith.constant dense<0.000000e+00> : vector<8x64xf32>
    %24 = tpu.matmul %23, %10, %cst_22 {dimension_numbers = #tpu.dot_dimension_numbers<[1], [0], [0], [1], [0, 0, 1, 1], [], []>} : vector<8x32xbf16>, vector<32x64xbf16>, vector<8x64xf32> -> vector<8x64xf32>
    %25 = vector.broadcast %12 : vector<1x64xf32> to vector<8x64xf32>
    %26 = arith.addf %24, %25 : vector<8x64xf32>
    %27 = vector.extract_strided_slice %26 {offsets = [0, 0], sizes = [8, 32], strides = [1, 1]} : vector<8x64xf32> to vector<8x32xf32>
    %28 = vector.extract_strided_slice %26 {offsets = [0, 32], sizes = [8, 32], strides = [1, 1]} : vector<8x64xf32> to vector<8x32xf32>
    %29 = vector.extract_strided_slice %22 {offsets = [0, 0], sizes = [8, 8], strides = [1, 1]} : vector<8x32xf32> to vector<8x8xf32>
    %30 = arith.truncf %29 : vector<8x8xf32> to vector<8x8xbf16>
    %31 = vector.extract_strided_slice %27 {offsets = [0, 0], sizes = [8, 8], strides = [1, 1]} : vector<8x32xf32> to vector<8x8xf32>
    %32 = arith.truncf %31 : vector<8x8xf32> to vector<8x8xbf16>
    %33 = vector.extract_strided_slice %28 {offsets = [0, 0], sizes = [8, 8], strides = [1, 1]} : vector<8x32xf32> to vector<8x8xf32>
    %34 = arith.truncf %33 : vector<8x8xf32> to vector<8x8xbf16>
    %cst_23 = arith.constant dense<0.000000e+00> : vector<8x8xf32>
    %35 = tpu.matmul %30, %32, %cst_23 {dimension_numbers = #tpu.dot_dimension_numbers<[1], [1], [0], [0], [0, 0, 1, 0], [], []>} : vector<8x8xbf16>, vector<8x8xbf16>, vector<8x8xf32> -> vector<8x8xf32>
    %cst_24 = arith.constant dense<0xFF800000> : vector<8xf32>
    %36 = vector.multi_reduction <maximumf>, %35, %cst_24 [1] : vector<8x8xf32> to vector<8xf32>
    %37 = vector.shape_cast %36 : vector<8xf32> to vector<8x1xf32>
    %38 = vector.broadcast %37 : vector<8x1xf32> to vector<8x8xf32>
    %39 = arith.subf %35, %38 : vector<8x8xf32>
    %40 = math.exp %39 : vector<8x8xf32>
    %cst_25 = arith.constant dense<0.000000e+00> : vector<8xf32>
    %41 = vector.multi_reduction <add>, %40, %cst_25 [1] : vector<8x8xf32> to vector<8xf32>
    %42 = vector.shape_cast %41 : vector<8xf32> to vector<8x1xf32>
    %43 = tpu.reciprocal %42 {approx = true} : vector<8x1xf32> -> vector<8x1xf32>
    %44 = vector.broadcast %43 : vector<8x1xf32> to vector<8x8xf32>
    %45 = arith.mulf %40, %44 : vector<8x8xf32>
    %46 = arith.truncf %45 : vector<8x8xf32> to vector<8x8xbf16>
    %cst_26 = arith.constant dense<0.000000e+00> : vector<8x8xf32>
    %47 = tpu.matmul %46, %34, %cst_26 {dimension_numbers = #tpu.dot_dimension_numbers<[1], [0], [0], [1], [0, 0, 1, 1], [], []>} : vector<8x8xbf16>, vector<8x8xbf16>, vector<8x8xf32> -> vector<8x8xf32>
    %48 = vector.extract_strided_slice %22 {offsets = [0, 8], sizes = [8, 8], strides = [1, 1]} : vector<8x32xf32> to vector<8x8xf32>
    %49 = arith.truncf %48 : vector<8x8xf32> to vector<8x8xbf16>
    %50 = vector.extract_strided_slice %27 {offsets = [0, 8], sizes = [8, 8], strides = [1, 1]} : vector<8x32xf32> to vector<8x8xf32>
    %51 = arith.truncf %50 : vector<8x8xf32> to vector<8x8xbf16>
    %52 = vector.extract_strided_slice %28 {offsets = [0, 8], sizes = [8, 8], strides = [1, 1]} : vector<8x32xf32> to vector<8x8xf32>
    %53 = arith.truncf %52 : vector<8x8xf32> to vector<8x8xbf16>
    %cst_27 = arith.constant dense<0.000000e+00> : vector<8x8xf32>
    %54 = tpu.matmul %49, %51, %cst_27 {dimension_numbers = #tpu.dot_dimension_numbers<[1], [1], [0], [0], [0, 0, 1, 0], [], []>} : vector<8x8xbf16>, vector<8x8xbf16>, vector<8x8xf32> -> vector<8x8xf32>
    %cst_28 = arith.constant dense<0xFF800000> : vector<8xf32>
    %55 = vector.multi_reduction <maximumf>, %54, %cst_28 [1] : vector<8x8xf32> to vector<8xf32>
    %56 = vector.shape_cast %55 : vector<8xf32> to vector<8x1xf32>
    %57 = vector.broadcast %56 : vector<8x1xf32> to vector<8x8xf32>
    %58 = arith.subf %54, %57 : vector<8x8xf32>
    %59 = math.exp %58 : vector<8x8xf32>
    %cst_29 = arith.constant dense<0.000000e+00> : vector<8xf32>
    %60 = vector.multi_reduction <add>, %59, %cst_29 [1] : vector<8x8xf32> to vector<8xf32>
    %61 = vector.shape_cast %60 : vector<8xf32> to vector<8x1xf32>
    %62 = tpu.reciprocal %61 {approx = true} : vector<8x1xf32> -> vector<8x1xf32>
    %63 = vector.broadcast %62 : vector<8x1xf32> to vector<8x8xf32>
    %64 = arith.mulf %59, %63 : vector<8x8xf32>
    %65 = arith.truncf %64 : vector<8x8xf32> to vector<8x8xbf16>
    %cst_30 = arith.constant dense<0.000000e+00> : vector<8x8xf32>
    %66 = tpu.matmul %65, %53, %cst_30 {dimension_numbers = #tpu.dot_dimension_numbers<[1], [0], [0], [1], [0, 0, 1, 1], [], []>} : vector<8x8xbf16>, vector<8x8xbf16>, vector<8x8xf32> -> vector<8x8xf32>
    %67 = vector.extract_strided_slice %22 {offsets = [0, 16], sizes = [8, 8], strides = [1, 1]} : vector<8x32xf32> to vector<8x8xf32>
    %68 = arith.truncf %67 : vector<8x8xf32> to vector<8x8xbf16>
    %69 = vector.extract_strided_slice %27 {offsets = [0, 16], sizes = [8, 8], strides = [1, 1]} : vector<8x32xf32> to vector<8x8xf32>
    %70 = arith.truncf %69 : vector<8x8xf32> to vector<8x8xbf16>
    %71 = vector.extract_strided_slice %28 {offsets = [0, 16], sizes = [8, 8], strides = [1, 1]} : vector<8x32xf32> to vector<8x8xf32>
    %72 = arith.truncf %71 : vector<8x8xf32> to vector<8x8xbf16>
    %cst_31 = arith.constant dense<0.000000e+00> : vector<8x8xf32>
    %73 = tpu.matmul %68, %70, %cst_31 {dimension_numbers = #tpu.dot_dimension_numbers<[1], [1], [0], [0], [0, 0, 1, 0], [], []>} : vector<8x8xbf16>, vector<8x8xbf16>, vector<8x8xf32> -> vector<8x8xf32>
    %cst_32 = arith.constant dense<0xFF800000> : vector<8xf32>
    %74 = vector.multi_reduction <maximumf>, %73, %cst_32 [1] : vector<8x8xf32> to vector<8xf32>
    %75 = vector.shape_cast %74 : vector<8xf32> to vector<8x1xf32>
    %76 = vector.broadcast %75 : vector<8x1xf32> to vector<8x8xf32>
    %77 = arith.subf %73, %76 : vector<8x8xf32>
    %78 = math.exp %77 : vector<8x8xf32>
    %cst_33 = arith.constant dense<0.000000e+00> : vector<8xf32>
    %79 = vector.multi_reduction <add>, %78, %cst_33 [1] : vector<8x8xf32> to vector<8xf32>
    %80 = vector.shape_cast %79 : vector<8xf32> to vector<8x1xf32>
    %81 = tpu.reciprocal %80 {approx = true} : vector<8x1xf32> -> vector<8x1xf32>
    %82 = vector.broadcast %81 : vector<8x1xf32> to vector<8x8xf32>
    %83 = arith.mulf %78, %82 : vector<8x8xf32>
    %84 = arith.truncf %83 : vector<8x8xf32> to vector<8x8xbf16>
    %cst_34 = arith.constant dense<0.000000e+00> : vector<8x8xf32>
    %85 = tpu.matmul %84, %72, %cst_34 {dimension_numbers = #tpu.dot_dimension_numbers<[1], [0], [0], [1], [0, 0, 1, 1], [], []>} : vector<8x8xbf16>, vector<8x8xbf16>, vector<8x8xf32> -> vector<8x8xf32>
    %86 = vector.extract_strided_slice %22 {offsets = [0, 24], sizes = [8, 8], strides = [1, 1]} : vector<8x32xf32> to vector<8x8xf32>
    %87 = arith.truncf %86 : vector<8x8xf32> to vector<8x8xbf16>
    %88 = vector.extract_strided_slice %27 {offsets = [0, 24], sizes = [8, 8], strides = [1, 1]} : vector<8x32xf32> to vector<8x8xf32>
    %89 = arith.truncf %88 : vector<8x8xf32> to vector<8x8xbf16>
    %90 = vector.extract_strided_slice %28 {offsets = [0, 24], sizes = [8, 8], strides = [1, 1]} : vector<8x32xf32> to vector<8x8xf32>
    %91 = arith.truncf %90 : vector<8x8xf32> to vector<8x8xbf16>
    %cst_35 = arith.constant dense<0.000000e+00> : vector<8x8xf32>
    %92 = tpu.matmul %87, %89, %cst_35 {dimension_numbers = #tpu.dot_dimension_numbers<[1], [1], [0], [0], [0, 0, 1, 0], [], []>} : vector<8x8xbf16>, vector<8x8xbf16>, vector<8x8xf32> -> vector<8x8xf32>
    %cst_36 = arith.constant dense<0xFF800000> : vector<8xf32>
    %93 = vector.multi_reduction <maximumf>, %92, %cst_36 [1] : vector<8x8xf32> to vector<8xf32>
    %94 = vector.shape_cast %93 : vector<8xf32> to vector<8x1xf32>
    %95 = vector.broadcast %94 : vector<8x1xf32> to vector<8x8xf32>
    %96 = arith.subf %92, %95 : vector<8x8xf32>
    %97 = math.exp %96 : vector<8x8xf32>
    %cst_37 = arith.constant dense<0.000000e+00> : vector<8xf32>
    %98 = vector.multi_reduction <add>, %97, %cst_37 [1] : vector<8x8xf32> to vector<8xf32>
    %99 = vector.shape_cast %98 : vector<8xf32> to vector<8x1xf32>
    %100 = tpu.reciprocal %99 {approx = true} : vector<8x1xf32> -> vector<8x1xf32>
    %101 = vector.broadcast %100 : vector<8x1xf32> to vector<8x8xf32>
    %102 = arith.mulf %97, %101 : vector<8x8xf32>
    %103 = arith.truncf %102 : vector<8x8xf32> to vector<8x8xbf16>
    %cst_38 = arith.constant dense<0.000000e+00> : vector<8x8xf32>
    %104 = tpu.matmul %103, %91, %cst_38 {dimension_numbers = #tpu.dot_dimension_numbers<[1], [0], [0], [1], [0, 0, 1, 1], [], []>} : vector<8x8xbf16>, vector<8x8xbf16>, vector<8x8xf32> -> vector<8x8xf32>
    %105 = tpu.concatenate %47, %66, %85, %104 in 1 : vector<8x8xf32>, vector<8x8xf32>, vector<8x8xf32>, vector<8x8xf32> -> vector<8x32xf32>
    %106 = arith.truncf %105 : vector<8x32xf32> to vector<8x32xbf16>
    %cst_39 = arith.constant dense<0.000000e+00> : vector<8x32xf32>
    %107 = tpu.matmul %106, %14, %cst_39 {dimension_numbers = #tpu.dot_dimension_numbers<[1], [0], [0], [1], [0, 0, 1, 1], [], []>} : vector<8x32xbf16>, vector<32x32xbf16>, vector<8x32xf32> -> vector<8x32xf32>
    %108 = vector.broadcast %16 : vector<1x32xf32> to vector<8x32xf32>
    %109 = arith.addf %107, %108 : vector<8x32xf32>
    %c0_40 = arith.constant 0 : index
    %c0_41 = arith.constant 0 : index
    %c0_42 = arith.constant 0 : index
    %110 = vector.load %arg9[%c0_40, %c0_41, %c0_42] : memref<1x1x32xf32, #tpu.memory_space<vmem>>, vector<1x1x32xf32>
    %111 = vector.shape_cast %110 : vector<1x1x32xf32> to vector<1x32xf32>
    %c0_43 = arith.constant 0 : index
    %c0_44 = arith.constant 0 : index
    %c0_45 = arith.constant 0 : index
    %112 = vector.load %arg10[%c0_43, %c0_44, %c0_45] : memref<1x1x32xf32, #tpu.memory_space<vmem>>, vector<1x1x32xf32>
    %113 = vector.shape_cast %112 : vector<1x1x32xf32> to vector<1x32xf32>
    %114 = arith.addf %4, %109 : vector<8x32xf32>
    %cst_46 = arith.constant dense<0.000000e+00> : vector<8xf32>
    %115 = vector.multi_reduction <add>, %114, %cst_46 [1] : vector<8x32xf32> to vector<8xf32>
    %116 = vector.shape_cast %115 : vector<8xf32> to vector<8x1xf32>
    %cst_47 = arith.constant 3.200000e+01 : f32
    %117 = vector.broadcast %cst_47 : f32 to vector<8x1xf32>
    %118 = arith.divf %116, %117 : vector<8x1xf32>
    %119 = vector.broadcast %118 : vector<8x1xf32> to vector<8x32xf32>
    %120 = arith.subf %114, %119 : vector<8x32xf32>
    %121 = arith.mulf %120, %120 : vector<8x32xf32>
    %cst_48 = arith.constant dense<0.000000e+00> : vector<8xf32>
    %122 = vector.multi_reduction <add>, %121, %cst_48 [1] : vector<8x32xf32> to vector<8xf32>
    %123 = vector.shape_cast %122 : vector<8xf32> to vector<8x1xf32>
    %cst_49 = arith.constant 0.0322580636 : f32
    %124 = vector.broadcast %cst_49 : f32 to vector<8x1xf32>
    %125 = arith.mulf %123, %124 : vector<8x1xf32>
    %126 = vector.broadcast %111 : vector<1x32xf32> to vector<8x32xf32>
    %127 = arith.mulf %126, %120 : vector<8x32xf32>
    %128 = math.sqrt %125 : vector<8x1xf32>
    %cst_50 = arith.constant 9.99999997E-7 : f32
    %129 = vector.broadcast %cst_50 : f32 to vector<8x1xf32>
    %130 = arith.addf %128, %129 : vector<8x1xf32>
    %131 = vector.broadcast %130 : vector<8x1xf32> to vector<8x32xf32>
    %132 = arith.divf %127, %131 : vector<8x32xf32>
    %133 = vector.broadcast %113 : vector<1x32xf32> to vector<8x32xf32>
    %134 = arith.addf %132, %133 : vector<8x32xf32>
    %c0_51 = arith.constant 0 : index
    %c0_52 = arith.constant 0 : index
    %c0_53 = arith.constant 0 : index
    %135 = vector.load %arg11[%c0_51, %c0_52, %c0_53] : memref<1x32x2048xbf16, #tpu.memory_space<vmem>>, vector<1x32x2048xbf16>
    %136 = vector.shape_cast %135 : vector<1x32x2048xbf16> to vector<32x2048xbf16>
    %c0_54 = arith.constant 0 : index
    %c0_55 = arith.constant 0 : index
    %c0_56 = arith.constant 0 : index
    %137 = vector.load %arg12[%c0_54, %c0_55, %c0_56] : memref<1x1x2048xf32, #tpu.memory_space<vmem>>, vector<1x1x2048xf32>
    %138 = vector.shape_cast %137 : vector<1x1x2048xf32> to vector<1x2048xf32>
    %c0_57 = arith.constant 0 : index
    %c0_58 = arith.constant 0 : index
    %c0_59 = arith.constant 0 : index
    %139 = vector.load %arg13[%c0_57, %c0_58, %c0_59] : memref<1x2048x32xbf16, #tpu.memory_space<vmem>>, vector<1x2048x32xbf16>
    %140 = vector.shape_cast %139 : vector<1x2048x32xbf16> to vector<2048x32xbf16>
    %c0_60 = arith.constant 0 : index
    %c0_61 = arith.constant 0 : index
    %c0_62 = arith.constant 0 : index
    %141 = vector.load %arg14[%c0_60, %c0_61, %c0_62] : memref<1x1x32xf32, #tpu.memory_space<vmem>>, vector<1x1x32xf32>
    %142 = vector.shape_cast %141 : vector<1x1x32xf32> to vector<1x32xf32>
    %143 = arith.truncf %134 : vector<8x32xf32> to vector<8x32xbf16>
    %cst_63 = arith.constant dense<0.000000e+00> : vector<8x2048xf32>
    %144 = tpu.matmul %143, %136, %cst_63 {dimension_numbers = #tpu.dot_dimension_numbers<[1], [0], [0], [1], [0, 0, 1, 1], [], []>} : vector<8x32xbf16>, vector<32x2048xbf16>, vector<8x2048xf32> -> vector<8x2048xf32>
    %145 = vector.broadcast %138 : vector<1x2048xf32> to vector<8x2048xf32>
    %146 = arith.addf %144, %145 : vector<8x2048xf32>
    %cst_64 = arith.constant 0.000000e+00 : f32
    %147 = vector.broadcast %cst_64 : f32 to vector<8x2048xf32>
    %148 = arith.maximumf %146, %147 : vector<8x2048xf32>
    %149 = arith.truncf %148 : vector<8x2048xf32> to vector<8x2048xbf16>
    %cst_65 = arith.constant dense<0.000000e+00> : vector<8x32xf32>
    %150 = tpu.matmul %149, %140, %cst_65 {dimension_numbers = #tpu.dot_dimension_numbers<[1], [0], [0], [1], [0, 0, 1, 1], [], []>} : vector<8x2048xbf16>, vector<2048x32xbf16>, vector<8x32xf32> -> vector<8x32xf32>
    %151 = vector.broadcast %142 : vector<1x32xf32> to vector<8x32xf32>
    %152 = arith.addf %150, %151 : vector<8x32xf32>
    %c0_66 = arith.constant 0 : index
    %c0_67 = arith.constant 0 : index
    %c0_68 = arith.constant 0 : index
    %153 = vector.load %arg15[%c0_66, %c0_67, %c0_68] : memref<1x1x32xf32, #tpu.memory_space<vmem>>, vector<1x1x32xf32>
    %154 = vector.shape_cast %153 : vector<1x1x32xf32> to vector<1x32xf32>
    %c0_69 = arith.constant 0 : index
    %c0_70 = arith.constant 0 : index
    %c0_71 = arith.constant 0 : index
    %155 = vector.load %arg16[%c0_69, %c0_70, %c0_71] : memref<1x1x32xf32, #tpu.memory_space<vmem>>, vector<1x1x32xf32>
    %156 = vector.shape_cast %155 : vector<1x1x32xf32> to vector<1x32xf32>
    %157 = arith.addf %134, %152 : vector<8x32xf32>
    %cst_72 = arith.constant dense<0.000000e+00> : vector<8xf32>
    %158 = vector.multi_reduction <add>, %157, %cst_72 [1] : vector<8x32xf32> to vector<8xf32>
    %159 = vector.shape_cast %158 : vector<8xf32> to vector<8x1xf32>
    %cst_73 = arith.constant 3.200000e+01 : f32
    %160 = vector.broadcast %cst_73 : f32 to vector<8x1xf32>
    %161 = arith.divf %159, %160 : vector<8x1xf32>
    %162 = vector.broadcast %161 : vector<8x1xf32> to vector<8x32xf32>
    %163 = arith.subf %157, %162 : vector<8x32xf32>
    %164 = arith.mulf %163, %163 : vector<8x32xf32>
    %cst_74 = arith.constant dense<0.000000e+00> : vector<8xf32>
    %165 = vector.multi_reduction <add>, %164, %cst_74 [1] : vector<8x32xf32> to vector<8xf32>
    %166 = vector.shape_cast %165 : vector<8xf32> to vector<8x1xf32>
    %cst_75 = arith.constant 0.0322580636 : f32
    %167 = vector.broadcast %cst_75 : f32 to vector<8x1xf32>
    %168 = arith.mulf %166, %167 : vector<8x1xf32>
    %169 = vector.broadcast %154 : vector<1x32xf32> to vector<8x32xf32>
    %170 = arith.mulf %169, %163 : vector<8x32xf32>
    %171 = math.sqrt %168 : vector<8x1xf32>
    %cst_76 = arith.constant 9.99999997E-7 : f32
    %172 = vector.broadcast %cst_76 : f32 to vector<8x1xf32>
    %173 = arith.addf %171, %172 : vector<8x1xf32>
    %174 = vector.broadcast %173 : vector<8x1xf32> to vector<8x32xf32>
    %175 = arith.divf %170, %174 : vector<8x32xf32>
    %176 = vector.broadcast %156 : vector<1x32xf32> to vector<8x32xf32>
    %177 = arith.addf %175, %176 : vector<8x32xf32>
    %c0_77 = arith.constant 0 : index
    %c0_78 = arith.constant 0 : index
    %c0_79 = arith.constant 0 : index
    %178 = vector.load %arg17[%c0_77, %c0_78, %c0_79] : memref<1x8x32xf32, #tpu.memory_space<vmem>>, vector<1x8x32xf32>
    %179 = vector.shape_cast %178 : vector<1x8x32xf32> to vector<8x32xf32>
    %180 = vector.shape_cast %177 : vector<8x32xf32> to vector<1x8x32xf32>
    tpu.vector_store %arg17[%c0_77, %c0_78, %c0_79], %180 {strides = array<i32>} : memref<1x8x32xf32, #tpu.memory_space<vmem>>, vector<1x8x32xf32>,
    return
  }
  func.func @transform_0(%arg0: i32, %arg1: i32) -> (i32, i32, i32) {
    %c0_i32 = arith.constant 0 : i32
    %c0_i32_0 = arith.constant 0 : i32
    %c0_i32_1 = arith.constant 0 : i32
    return %arg0, %c0_i32, %c0_i32_0 : i32, i32, i32
  }
  func.func @transform_1(%arg0: i32, %arg1: i32) -> (i32, i32, i32) {
    %c0_i32 = arith.constant 0 : i32
    %c0_i32_0 = arith.constant 0 : i32
    %c0_i32_1 = arith.constant 0 : i32
    return %arg1, %c0_i32, %c0_i32_0 : i32, i32, i32
  }
  func.func @transform_2(%arg0: i32, %arg1: i32) -> (i32, i32, i32) {
    %c0_i32 = arith.constant 0 : i32
    %c0_i32_0 = arith.constant 0 : i32
    %c0_i32_1 = arith.constant 0 : i32
    return %arg1, %c0_i32, %c0_i32_0 : i32, i32, i32
  }
  func.func @transform_3(%arg0: i32, %arg1: i32) -> (i32, i32, i32) {
    %c0_i32 = arith.constant 0 : i32
    %c0_i32_0 = arith.constant 0 : i32
    %c0_i32_1 = arith.constant 0 : i32
    return %arg1, %c0_i32, %c0_i32_0 : i32, i32, i32
  }
  func.func @transform_4(%arg0: i32, %arg1: i32) -> (i32, i32, i32) {
    %c0_i32 = arith.constant 0 : i32
    %c0_i32_0 = arith.constant 0 : i32
    %c0_i32_1 = arith.constant 0 : i32
    return %arg1, %c0_i32, %c0_i32_0 : i32, i32, i32
  }
  func.func @transform_5(%arg0: i32, %arg1: i32) -> (i32, i32, i32) {
    %c0_i32 = arith.constant 0 : i32
    %c0_i32_0 = arith.constant 0 : i32
    %c0_i32_1 = arith.constant 0 : i32
    return %arg1, %c0_i32, %c0_i32_0 : i32, i32, i32
  }
  func.func @transform_6(%arg0: i32, %arg1: i32) -> (i32, i32, i32) {
    %c0_i32 = arith.constant 0 : i32
    %c0_i32_0 = arith.constant 0 : i32
    %c0_i32_1 = arith.constant 0 : i32
    return %arg1, %c0_i32, %c0_i32_0 : i32, i32, i32
  }
  func.func @transform_7(%arg0: i32, %arg1: i32) -> (i32, i32, i32) {
    %c0_i32 = arith.constant 0 : i32
    %c0_i32_0 = arith.constant 0 : i32
    %c0_i32_1 = arith.constant 0 : i32
    return %arg1, %c0_i32, %c0_i32_0 : i32, i32, i32
  }
  func.func @transform_8(%arg0: i32, %arg1: i32) -> (i32, i32, i32) {
    %c0_i32 = arith.constant 0 : i32
    %c0_i32_0 = arith.constant 0 : i32
    %c0_i32_1 = arith.constant 0 : i32
    return %arg1, %c0_i32, %c0_i32_0 : i32, i32, i32
  }
  func.func @transform_9(%arg0: i32, %arg1: i32) -> (i32, i32, i32) {
    %c0_i32 = arith.constant 0 : i32
    %c0_i32_0 = arith.constant 0 : i32
    %c0_i32_1 = arith.constant 0 : i32
    return %arg1, %c0_i32, %c0_i32_0 : i32, i32, i32
  }
  func.func @transform_10(%arg0: i32, %arg1: i32) -> (i32, i32, i32) {
    %c0_i32 = arith.constant 0 : i32
    %c0_i32_0 = arith.constant 0 : i32
    %c0_i32_1 = arith.constant 0 : i32
    return %arg1, %c0_i32, %c0_i32_0 : i32, i32, i32
  }
  func.func @transform_11(%arg0: i32, %arg1: i32) -> (i32, i32, i32) {
    %c0_i32 = arith.constant 0 : i32
    %c0_i32_0 = arith.constant 0 : i32
    %c0_i32_1 = arith.constant 0 : i32
    return %arg1, %c0_i32, %c0_i32_0 : i32, i32, i32
  }
  func.func @transform_12(%arg0: i32, %arg1: i32) -> (i32, i32, i32) {
    %c0_i32 = arith.constant 0 : i32
    %c0_i32_0 = arith.constant 0 : i32
    %c0_i32_1 = arith.constant 0 : i32
    return %arg1, %c0_i32, %c0_i32_0 : i32, i32, i32
  }
  func.func @transform_13(%arg0: i32, %arg1: i32) -> (i32, i32, i32) {
    %c0_i32 = arith.constant 0 : i32
    %c0_i32_0 = arith.constant 0 : i32
    %c0_i32_1 = arith.constant 0 : i32
    return %arg1, %c0_i32, %c0_i32_0 : i32, i32, i32
  }
  func.func @transform_14(%arg0: i32, %arg1: i32) -> (i32, i32, i32) {
    %c0_i32 = arith.constant 0 : i32
    %c0_i32_0 = arith.constant 0 : i32
    %c0_i32_1 = arith.constant 0 : i32
    return %arg1, %c0_i32, %c0_i32_0 : i32, i32, i32
  }
  func.func @transform_15(%arg0: i32, %arg1: i32) -> (i32, i32, i32) {
    %c0_i32 = arith.constant 0 : i32
    %c0_i32_0 = arith.constant 0 : i32
    %c0_i32_1 = arith.constant 0 : i32
    return %arg0, %c0_i32, %c0_i32_0 : i32, i32, i32
  }
}

module attributes {stable_mosaic.version = 11 : i64} {
  func.func @_decoder_stack_kernel(%arg0: i32, %arg1: i32, %arg2: memref<1x8x32xf32, #tpu.memory_space<vmem>>, %arg3: memref<1x8x32xf32, #tpu.memory_space<vmem>>, %arg4: memref<8x8xf32, #tpu.memory_space<vmem>>, %arg5: memref<1x32x32xbf16, #tpu.memory_space<vmem>>, %arg6: memref<1x1x32xf32, #tpu.memory_space<vmem>>, %arg7: memref<1x32x64xbf16, #tpu.memory_space<vmem>>, %arg8: memref<1x1x64xf32, #tpu.memory_space<vmem>>, %arg9: memref<1x32x32xbf16, #tpu.memory_space<vmem>>, %arg10: memref<1x1x32xf32, #tpu.memory_space<vmem>>, %arg11: memref<1x1x32xf32, #tpu.memory_space<vmem>>, %arg12: memref<1x1x32xf32, #tpu.memory_space<vmem>>, %arg13: memref<1x32x32xbf16, #tpu.memory_space<vmem>>, %arg14: memref<1x1x32xf32, #tpu.memory_space<vmem>>, %arg15: memref<1x32x64xbf16, #tpu.memory_space<vmem>>, %arg16: memref<1x1x64xf32, #tpu.memory_space<vmem>>, %arg17: memref<1x32x32xbf16, #tpu.memory_space<vmem>>, %arg18: memref<1x1x32xf32, #tpu.memory_space<vmem>>, %arg19: memref<1x1x32xf32, #tpu.memory_space<vmem>>, %arg20: memref<1x1x32xf32, #tpu.memory_space<vmem>>, %arg21: memref<1x32x2048xbf16, #tpu.memory_space<vmem>>, %arg22: memref<1x1x2048xf32, #tpu.memory_space<vmem>>, %arg23: memref<1x2048x32xbf16, #tpu.memory_space<vmem>>, %arg24: memref<1x1x32xf32, #tpu.memory_space<vmem>>, %arg25: memref<1x1x32xf32, #tpu.memory_space<vmem>>, %arg26: memref<1x1x32xf32, #tpu.memory_space<vmem>>, %arg27: memref<1x8x32xf32, #tpu.memory_space<vmem>>) attributes {dimension_semantics = [#tpu.dimension_semantics<parallel>, #tpu.dimension_semantics<arbitrary>], iteration_bounds = array<i64: 2, 2>, scalar_prefetch = 0 : i64, scratch_operands = 0 : i64, tpu.core_type = #tpu.core_type<tc>, window_params = [{transform_indices = @transform_0, window_bounds = array<i64: 1, 8, 32>}, {transform_indices = @transform_1, window_bounds = array<i64: 1, 8, 32>}, {pipeline_mode = #tpu.pipeline_mode<synchronous>, transform_indices = @transform_2, window_bounds = array<i64: 8, 8>}, {transform_indices = @transform_3, window_bounds = array<i64: 1, 32, 32>}, {transform_indices = @transform_4, window_bounds = array<i64: 1, 1, 32>}, {transform_indices = @transform_5, window_bounds = array<i64: 1, 32, 64>}, {transform_indices = @transform_6, window_bounds = array<i64: 1, 1, 64>}, {transform_indices = @transform_7, window_bounds = array<i64: 1, 32, 32>}, {transform_indices = @transform_8, window_bounds = array<i64: 1, 1, 32>}, {transform_indices = @transform_9, window_bounds = array<i64: 1, 1, 32>}, {transform_indices = @transform_10, window_bounds = array<i64: 1, 1, 32>}, {transform_indices = @transform_11, window_bounds = array<i64: 1, 32, 32>}, {transform_indices = @transform_12, window_bounds = array<i64: 1, 1, 32>}, {transform_indices = @transform_13, window_bounds = array<i64: 1, 32, 64>}, {transform_indices = @transform_14, window_bounds = array<i64: 1, 1, 64>}, {transform_indices = @transform_15, window_bounds = array<i64: 1, 32, 32>}, {transform_indices = @transform_16, window_bounds = array<i64: 1, 1, 32>}, {transform_indices = @transform_17, window_bounds = array<i64: 1, 1, 32>}, {transform_indices = @transform_18, window_bounds = array<i64: 1, 1, 32>}, {transform_indices = @transform_19, window_bounds = array<i64: 1, 32, 2048>}, {transform_indices = @transform_20, window_bounds = array<i64: 1, 1, 2048>}, {transform_indices = @transform_21, window_bounds = array<i64: 1, 2048, 32>}, {transform_indices = @transform_22, window_bounds = array<i64: 1, 1, 32>}, {transform_indices = @transform_23, window_bounds = array<i64: 1, 1, 32>}, {transform_indices = @transform_24, window_bounds = array<i64: 1, 1, 32>}, {transform_indices = @transform_25, window_bounds = array<i64: 1, 8, 32>}]} {
    %c0_i32 = arith.constant 0 : i32
    %0 = arith.cmpi eq, %arg1, %c0_i32 : i32
    %1 = arith.extui %0 : i1 to i32
    %c0_i32_0 = arith.constant 0 : i32
    %2 = arith.cmpi ne, %1, %c0_i32_0 : i32
    scf.if %2 {
      %c0_142 = arith.constant 0 : index
      %c0_143 = arith.constant 0 : index
      %c0_144 = arith.constant 0 : index
      %330 = vector.load %arg2[%c0_142, %c0_143, %c0_144] : memref<1x8x32xf32, #tpu.memory_space<vmem>>, vector<1x8x32xf32>
      %331 = vector.shape_cast %330 : vector<1x8x32xf32> to vector<8x32xf32>
      %c0_145 = arith.constant 0 : index
      %c0_146 = arith.constant 0 : index
      %c0_147 = arith.constant 0 : index
      %332 = vector.load %arg27[%c0_145, %c0_146, %c0_147] : memref<1x8x32xf32, #tpu.memory_space<vmem>>, vector<1x8x32xf32>
      %333 = vector.shape_cast %332 : vector<1x8x32xf32> to vector<8x32xf32>
      %334 = vector.shape_cast %331 : vector<8x32xf32> to vector<1x8x32xf32>
      tpu.vector_store %arg27[%c0_145, %c0_146, %c0_147], %334 {strides = array<i32>} : memref<1x8x32xf32, #tpu.memory_space<vmem>>, vector<1x8x32xf32>,
    } else {
    }
    %c0 = arith.constant 0 : index
    %c0_1 = arith.constant 0 : index
    %c0_2 = arith.constant 0 : index
    %3 = vector.load %arg27[%c0, %c0_1, %c0_2] : memref<1x8x32xf32, #tpu.memory_space<vmem>>, vector<1x8x32xf32>
    %4 = vector.shape_cast %3 : vector<1x8x32xf32> to vector<8x32xf32>
    %c0_3 = arith.constant 0 : index
    %c0_4 = arith.constant 0 : index
    %c0_5 = arith.constant 0 : index
    %5 = vector.load %arg3[%c0_3, %c0_4, %c0_5] : memref<1x8x32xf32, #tpu.memory_space<vmem>>, vector<1x8x32xf32>
    %6 = vector.shape_cast %5 : vector<1x8x32xf32> to vector<8x32xf32>
    %c0_6 = arith.constant 0 : index
    %c0_7 = arith.constant 0 : index
    %7 = vector.load %arg4[%c0_6, %c0_7] : memref<8x8xf32, #tpu.memory_space<vmem>>, vector<8x8xf32>
    %c0_8 = arith.constant 0 : index
    %c0_9 = arith.constant 0 : index
    %c0_10 = arith.constant 0 : index
    %8 = vector.load %arg5[%c0_8, %c0_9, %c0_10] : memref<1x32x32xbf16, #tpu.memory_space<vmem>>, vector<1x32x32xbf16>
    %9 = vector.shape_cast %8 : vector<1x32x32xbf16> to vector<32x32xbf16>
    %c0_11 = arith.constant 0 : index
    %c0_12 = arith.constant 0 : index
    %c0_13 = arith.constant 0 : index
    %10 = vector.load %arg6[%c0_11, %c0_12, %c0_13] : memref<1x1x32xf32, #tpu.memory_space<vmem>>, vector<1x1x32xf32>
    %11 = vector.shape_cast %10 : vector<1x1x32xf32> to vector<1x32xf32>
    %c0_14 = arith.constant 0 : index
    %c0_15 = arith.constant 0 : index
    %c0_16 = arith.constant 0 : index
    %12 = vector.load %arg7[%c0_14, %c0_15, %c0_16] : memref<1x32x64xbf16, #tpu.memory_space<vmem>>, vector<1x32x64xbf16>
    %13 = vector.shape_cast %12 : vector<1x32x64xbf16> to vector<32x64xbf16>
    %c0_17 = arith.constant 0 : index
    %c0_18 = arith.constant 0 : index
    %c0_19 = arith.constant 0 : index
    %14 = vector.load %arg8[%c0_17, %c0_18, %c0_19] : memref<1x1x64xf32, #tpu.memory_space<vmem>>, vector<1x1x64xf32>
    %15 = vector.shape_cast %14 : vector<1x1x64xf32> to vector<1x64xf32>
    %c0_20 = arith.constant 0 : index
    %c0_21 = arith.constant 0 : index
    %c0_22 = arith.constant 0 : index
    %16 = vector.load %arg9[%c0_20, %c0_21, %c0_22] : memref<1x32x32xbf16, #tpu.memory_space<vmem>>, vector<1x32x32xbf16>
    %17 = vector.shape_cast %16 : vector<1x32x32xbf16> to vector<32x32xbf16>
    %c0_23 = arith.constant 0 : index
    %c0_24 = arith.constant 0 : index
    %c0_25 = arith.constant 0 : index
    %18 = vector.load %arg10[%c0_23, %c0_24, %c0_25] : memref<1x1x32xf32, #tpu.memory_space<vmem>>, vector<1x1x32xf32>
    %19 = vector.shape_cast %18 : vector<1x1x32xf32> to vector<1x32xf32>
    %20 = arith.truncf %4 : vector<8x32xf32> to vector<8x32xbf16>
    %cst = arith.constant dense<0.000000e+00> : vector<8x32xf32>
    %21 = tpu.matmul %20, %9, %cst {dimension_numbers = #tpu.dot_dimension_numbers<[1], [0], [0], [1], [0, 0, 1, 1], [], []>} : vector<8x32xbf16>, vector<32x32xbf16>, vector<8x32xf32> -> vector<8x32xf32>
    %22 = vector.broadcast %11 : vector<1x32xf32> to vector<8x32xf32>
    %23 = arith.addf %21, %22 : vector<8x32xf32>
    %cst_26 = arith.constant 0.353553385 : f32
    %24 = vector.broadcast %cst_26 : f32 to vector<8x32xf32>
    %25 = arith.mulf %23, %24 : vector<8x32xf32>
    %26 = arith.truncf %4 : vector<8x32xf32> to vector<8x32xbf16>
    %cst_27 = arith.constant dense<0.000000e+00> : vector<8x64xf32>
    %27 = tpu.matmul %26, %13, %cst_27 {dimension_numbers = #tpu.dot_dimension_numbers<[1], [0], [0], [1], [0, 0, 1, 1], [], []>} : vector<8x32xbf16>, vector<32x64xbf16>, vector<8x64xf32> -> vector<8x64xf32>
    %28 = vector.broadcast %15 : vector<1x64xf32> to vector<8x64xf32>
    %29 = arith.addf %27, %28 : vector<8x64xf32>
    %30 = vector.extract_strided_slice %29 {offsets = [0, 0], sizes = [8, 32], strides = [1, 1]} : vector<8x64xf32> to vector<8x32xf32>
    %31 = vector.extract_strided_slice %29 {offsets = [0, 32], sizes = [8, 32], strides = [1, 1]} : vector<8x64xf32> to vector<8x32xf32>
    %32 = vector.extract_strided_slice %25 {offsets = [0, 0], sizes = [8, 8], strides = [1, 1]} : vector<8x32xf32> to vector<8x8xf32>
    %33 = arith.truncf %32 : vector<8x8xf32> to vector<8x8xbf16>
    %34 = vector.extract_strided_slice %30 {offsets = [0, 0], sizes = [8, 8], strides = [1, 1]} : vector<8x32xf32> to vector<8x8xf32>
    %35 = arith.truncf %34 : vector<8x8xf32> to vector<8x8xbf16>
    %36 = vector.extract_strided_slice %31 {offsets = [0, 0], sizes = [8, 8], strides = [1, 1]} : vector<8x32xf32> to vector<8x8xf32>
    %37 = arith.truncf %36 : vector<8x8xf32> to vector<8x8xbf16>
    %cst_28 = arith.constant dense<0.000000e+00> : vector<8x8xf32>
    %38 = tpu.matmul %33, %35, %cst_28 {dimension_numbers = #tpu.dot_dimension_numbers<[1], [1], [0], [0], [0, 0, 1, 0], [], []>} : vector<8x8xbf16>, vector<8x8xbf16>, vector<8x8xf32> -> vector<8x8xf32>
    %cst_29 = arith.constant 0.000000e+00 : f32
    %39 = vector.broadcast %cst_29 : f32 to vector<8x8xf32>
    %40 = arith.cmpf oeq, %7, %39 : vector<8x8xf32>
    %cst_30 = arith.constant -1.000000e+09 : f32
    %41 = vector.broadcast %cst_30 : f32 to vector<8x8xf32>
    %42 = arith.select %40, %41, %38 : vector<8x8xi1>, vector<8x8xf32>
    %cst_31 = arith.constant dense<0xFF800000> : vector<8xf32>
    %43 = vector.multi_reduction <maximumf>, %42, %cst_31 [1] : vector<8x8xf32> to vector<8xf32>
    %44 = vector.shape_cast %43 : vector<8xf32> to vector<8x1xf32>
    %45 = vector.broadcast %44 : vector<8x1xf32> to vector<8x8xf32>
    %46 = arith.subf %42, %45 : vector<8x8xf32>
    %47 = math.exp %46 : vector<8x8xf32>
    %cst_32 = arith.constant dense<0.000000e+00> : vector<8xf32>
    %48 = vector.multi_reduction <add>, %47, %cst_32 [1] : vector<8x8xf32> to vector<8xf32>
    %49 = vector.shape_cast %48 : vector<8xf32> to vector<8x1xf32>
    %50 = tpu.reciprocal %49 {approx = true} : vector<8x1xf32> -> vector<8x1xf32>
    %51 = vector.broadcast %50 : vector<8x1xf32> to vector<8x8xf32>
    %52 = arith.mulf %47, %51 : vector<8x8xf32>
    %53 = arith.truncf %52 : vector<8x8xf32> to vector<8x8xbf16>
    %cst_33 = arith.constant dense<0.000000e+00> : vector<8x8xf32>
    %54 = tpu.matmul %53, %37, %cst_33 {dimension_numbers = #tpu.dot_dimension_numbers<[1], [0], [0], [1], [0, 0, 1, 1], [], []>} : vector<8x8xbf16>, vector<8x8xbf16>, vector<8x8xf32> -> vector<8x8xf32>
    %55 = vector.extract_strided_slice %25 {offsets = [0, 8], sizes = [8, 8], strides = [1, 1]} : vector<8x32xf32> to vector<8x8xf32>
    %56 = arith.truncf %55 : vector<8x8xf32> to vector<8x8xbf16>
    %57 = vector.extract_strided_slice %30 {offsets = [0, 8], sizes = [8, 8], strides = [1, 1]} : vector<8x32xf32> to vector<8x8xf32>
    %58 = arith.truncf %57 : vector<8x8xf32> to vector<8x8xbf16>
    %59 = vector.extract_strided_slice %31 {offsets = [0, 8], sizes = [8, 8], strides = [1, 1]} : vector<8x32xf32> to vector<8x8xf32>
    %60 = arith.truncf %59 : vector<8x8xf32> to vector<8x8xbf16>
    %cst_34 = arith.constant dense<0.000000e+00> : vector<8x8xf32>
    %61 = tpu.matmul %56, %58, %cst_34 {dimension_numbers = #tpu.dot_dimension_numbers<[1], [1], [0], [0], [0, 0, 1, 0], [], []>} : vector<8x8xbf16>, vector<8x8xbf16>, vector<8x8xf32> -> vector<8x8xf32>
    %cst_35 = arith.constant 0.000000e+00 : f32
    %62 = vector.broadcast %cst_35 : f32 to vector<8x8xf32>
    %63 = arith.cmpf oeq, %7, %62 : vector<8x8xf32>
    %cst_36 = arith.constant -1.000000e+09 : f32
    %64 = vector.broadcast %cst_36 : f32 to vector<8x8xf32>
    %65 = arith.select %63, %64, %61 : vector<8x8xi1>, vector<8x8xf32>
    %cst_37 = arith.constant dense<0xFF800000> : vector<8xf32>
    %66 = vector.multi_reduction <maximumf>, %65, %cst_37 [1] : vector<8x8xf32> to vector<8xf32>
    %67 = vector.shape_cast %66 : vector<8xf32> to vector<8x1xf32>
    %68 = vector.broadcast %67 : vector<8x1xf32> to vector<8x8xf32>
    %69 = arith.subf %65, %68 : vector<8x8xf32>
    %70 = math.exp %69 : vector<8x8xf32>
    %cst_38 = arith.constant dense<0.000000e+00> : vector<8xf32>
    %71 = vector.multi_reduction <add>, %70, %cst_38 [1] : vector<8x8xf32> to vector<8xf32>
    %72 = vector.shape_cast %71 : vector<8xf32> to vector<8x1xf32>
    %73 = tpu.reciprocal %72 {approx = true} : vector<8x1xf32> -> vector<8x1xf32>
    %74 = vector.broadcast %73 : vector<8x1xf32> to vector<8x8xf32>
    %75 = arith.mulf %70, %74 : vector<8x8xf32>
    %76 = arith.truncf %75 : vector<8x8xf32> to vector<8x8xbf16>
    %cst_39 = arith.constant dense<0.000000e+00> : vector<8x8xf32>
    %77 = tpu.matmul %76, %60, %cst_39 {dimension_numbers = #tpu.dot_dimension_numbers<[1], [0], [0], [1], [0, 0, 1, 1], [], []>} : vector<8x8xbf16>, vector<8x8xbf16>, vector<8x8xf32> -> vector<8x8xf32>
    %78 = vector.extract_strided_slice %25 {offsets = [0, 16], sizes = [8, 8], strides = [1, 1]} : vector<8x32xf32> to vector<8x8xf32>
    %79 = arith.truncf %78 : vector<8x8xf32> to vector<8x8xbf16>
    %80 = vector.extract_strided_slice %30 {offsets = [0, 16], sizes = [8, 8], strides = [1, 1]} : vector<8x32xf32> to vector<8x8xf32>
    %81 = arith.truncf %80 : vector<8x8xf32> to vector<8x8xbf16>
    %82 = vector.extract_strided_slice %31 {offsets = [0, 16], sizes = [8, 8], strides = [1, 1]} : vector<8x32xf32> to vector<8x8xf32>
    %83 = arith.truncf %82 : vector<8x8xf32> to vector<8x8xbf16>
    %cst_40 = arith.constant dense<0.000000e+00> : vector<8x8xf32>
    %84 = tpu.matmul %79, %81, %cst_40 {dimension_numbers = #tpu.dot_dimension_numbers<[1], [1], [0], [0], [0, 0, 1, 0], [], []>} : vector<8x8xbf16>, vector<8x8xbf16>, vector<8x8xf32> -> vector<8x8xf32>
    %cst_41 = arith.constant 0.000000e+00 : f32
    %85 = vector.broadcast %cst_41 : f32 to vector<8x8xf32>
    %86 = arith.cmpf oeq, %7, %85 : vector<8x8xf32>
    %cst_42 = arith.constant -1.000000e+09 : f32
    %87 = vector.broadcast %cst_42 : f32 to vector<8x8xf32>
    %88 = arith.select %86, %87, %84 : vector<8x8xi1>, vector<8x8xf32>
    %cst_43 = arith.constant dense<0xFF800000> : vector<8xf32>
    %89 = vector.multi_reduction <maximumf>, %88, %cst_43 [1] : vector<8x8xf32> to vector<8xf32>
    %90 = vector.shape_cast %89 : vector<8xf32> to vector<8x1xf32>
    %91 = vector.broadcast %90 : vector<8x1xf32> to vector<8x8xf32>
    %92 = arith.subf %88, %91 : vector<8x8xf32>
    %93 = math.exp %92 : vector<8x8xf32>
    %cst_44 = arith.constant dense<0.000000e+00> : vector<8xf32>
    %94 = vector.multi_reduction <add>, %93, %cst_44 [1] : vector<8x8xf32> to vector<8xf32>
    %95 = vector.shape_cast %94 : vector<8xf32> to vector<8x1xf32>
    %96 = tpu.reciprocal %95 {approx = true} : vector<8x1xf32> -> vector<8x1xf32>
    %97 = vector.broadcast %96 : vector<8x1xf32> to vector<8x8xf32>
    %98 = arith.mulf %93, %97 : vector<8x8xf32>
    %99 = arith.truncf %98 : vector<8x8xf32> to vector<8x8xbf16>
    %cst_45 = arith.constant dense<0.000000e+00> : vector<8x8xf32>
    %100 = tpu.matmul %99, %83, %cst_45 {dimension_numbers = #tpu.dot_dimension_numbers<[1], [0], [0], [1], [0, 0, 1, 1], [], []>} : vector<8x8xbf16>, vector<8x8xbf16>, vector<8x8xf32> -> vector<8x8xf32>
    %101 = vector.extract_strided_slice %25 {offsets = [0, 24], sizes = [8, 8], strides = [1, 1]} : vector<8x32xf32> to vector<8x8xf32>
    %102 = arith.truncf %101 : vector<8x8xf32> to vector<8x8xbf16>
    %103 = vector.extract_strided_slice %30 {offsets = [0, 24], sizes = [8, 8], strides = [1, 1]} : vector<8x32xf32> to vector<8x8xf32>
    %104 = arith.truncf %103 : vector<8x8xf32> to vector<8x8xbf16>
    %105 = vector.extract_strided_slice %31 {offsets = [0, 24], sizes = [8, 8], strides = [1, 1]} : vector<8x32xf32> to vector<8x8xf32>
    %106 = arith.truncf %105 : vector<8x8xf32> to vector<8x8xbf16>
    %cst_46 = arith.constant dense<0.000000e+00> : vector<8x8xf32>
    %107 = tpu.matmul %102, %104, %cst_46 {dimension_numbers = #tpu.dot_dimension_numbers<[1], [1], [0], [0], [0, 0, 1, 0], [], []>} : vector<8x8xbf16>, vector<8x8xbf16>, vector<8x8xf32> -> vector<8x8xf32>
    %cst_47 = arith.constant 0.000000e+00 : f32
    %108 = vector.broadcast %cst_47 : f32 to vector<8x8xf32>
    %109 = arith.cmpf oeq, %7, %108 : vector<8x8xf32>
    %cst_48 = arith.constant -1.000000e+09 : f32
    %110 = vector.broadcast %cst_48 : f32 to vector<8x8xf32>
    %111 = arith.select %109, %110, %107 : vector<8x8xi1>, vector<8x8xf32>
    %cst_49 = arith.constant dense<0xFF800000> : vector<8xf32>
    %112 = vector.multi_reduction <maximumf>, %111, %cst_49 [1] : vector<8x8xf32> to vector<8xf32>
    %113 = vector.shape_cast %112 : vector<8xf32> to vector<8x1xf32>
    %114 = vector.broadcast %113 : vector<8x1xf32> to vector<8x8xf32>
    %115 = arith.subf %111, %114 : vector<8x8xf32>
    %116 = math.exp %115 : vector<8x8xf32>
    %cst_50 = arith.constant dense<0.000000e+00> : vector<8xf32>
    %117 = vector.multi_reduction <add>, %116, %cst_50 [1] : vector<8x8xf32> to vector<8xf32>
    %118 = vector.shape_cast %117 : vector<8xf32> to vector<8x1xf32>
    %119 = tpu.reciprocal %118 {approx = true} : vector<8x1xf32> -> vector<8x1xf32>
    %120 = vector.broadcast %119 : vector<8x1xf32> to vector<8x8xf32>
    %121 = arith.mulf %116, %120 : vector<8x8xf32>
    %122 = arith.truncf %121 : vector<8x8xf32> to vector<8x8xbf16>
    %cst_51 = arith.constant dense<0.000000e+00> : vector<8x8xf32>
    %123 = tpu.matmul %122, %106, %cst_51 {dimension_numbers = #tpu.dot_dimension_numbers<[1], [0], [0], [1], [0, 0, 1, 1], [], []>} : vector<8x8xbf16>, vector<8x8xbf16>, vector<8x8xf32> -> vector<8x8xf32>
    %124 = tpu.concatenate %54, %77, %100, %123 in 1 : vector<8x8xf32>, vector<8x8xf32>, vector<8x8xf32>, vector<8x8xf32> -> vector<8x32xf32>
    %125 = arith.truncf %124 : vector<8x32xf32> to vector<8x32xbf16>
    %cst_52 = arith.constant dense<0.000000e+00> : vector<8x32xf32>
    %126 = tpu.matmul %125, %17, %cst_52 {dimension_numbers = #tpu.dot_dimension_numbers<[1], [0], [0], [1], [0, 0, 1, 1], [], []>} : vector<8x32xbf16>, vector<32x32xbf16>, vector<8x32xf32> -> vector<8x32xf32>
    %127 = vector.broadcast %19 : vector<1x32xf32> to vector<8x32xf32>
    %128 = arith.addf %126, %127 : vector<8x32xf32>
    %c0_53 = arith.constant 0 : index
    %c0_54 = arith.constant 0 : index
    %c0_55 = arith.constant 0 : index
    %129 = vector.load %arg11[%c0_53, %c0_54, %c0_55] : memref<1x1x32xf32, #tpu.memory_space<vmem>>, vector<1x1x32xf32>
    %130 = vector.shape_cast %129 : vector<1x1x32xf32> to vector<1x32xf32>
    %c0_56 = arith.constant 0 : index
    %c0_57 = arith.constant 0 : index
    %c0_58 = arith.constant 0 : index
    %131 = vector.load %arg12[%c0_56, %c0_57, %c0_58] : memref<1x1x32xf32, #tpu.memory_space<vmem>>, vector<1x1x32xf32>
    %132 = vector.shape_cast %131 : vector<1x1x32xf32> to vector<1x32xf32>
    %133 = arith.addf %4, %128 : vector<8x32xf32>
    %cst_59 = arith.constant dense<0.000000e+00> : vector<8xf32>
    %134 = vector.multi_reduction <add>, %133, %cst_59 [1] : vector<8x32xf32> to vector<8xf32>
    %135 = vector.shape_cast %134 : vector<8xf32> to vector<8x1xf32>
    %cst_60 = arith.constant 3.200000e+01 : f32
    %136 = vector.broadcast %cst_60 : f32 to vector<8x1xf32>
    %137 = arith.divf %135, %136 : vector<8x1xf32>
    %138 = vector.broadcast %137 : vector<8x1xf32> to vector<8x32xf32>
    %139 = arith.subf %133, %138 : vector<8x32xf32>
    %140 = arith.mulf %139, %139 : vector<8x32xf32>
    %cst_61 = arith.constant dense<0.000000e+00> : vector<8xf32>
    %141 = vector.multi_reduction <add>, %140, %cst_61 [1] : vector<8x32xf32> to vector<8xf32>
    %142 = vector.shape_cast %141 : vector<8xf32> to vector<8x1xf32>
    %cst_62 = arith.constant 0.0322580636 : f32
    %143 = vector.broadcast %cst_62 : f32 to vector<8x1xf32>
    %144 = arith.mulf %142, %143 : vector<8x1xf32>
    %145 = vector.broadcast %130 : vector<1x32xf32> to vector<8x32xf32>
    %146 = arith.mulf %145, %139 : vector<8x32xf32>
    %147 = math.sqrt %144 : vector<8x1xf32>
    %cst_63 = arith.constant 9.99999997E-7 : f32
    %148 = vector.broadcast %cst_63 : f32 to vector<8x1xf32>
    %149 = arith.addf %147, %148 : vector<8x1xf32>
    %150 = vector.broadcast %149 : vector<8x1xf32> to vector<8x32xf32>
    %151 = arith.divf %146, %150 : vector<8x32xf32>
    %152 = vector.broadcast %132 : vector<1x32xf32> to vector<8x32xf32>
    %153 = arith.addf %151, %152 : vector<8x32xf32>
    %c0_64 = arith.constant 0 : index
    %c0_65 = arith.constant 0 : index
    %c0_66 = arith.constant 0 : index
    %154 = vector.load %arg13[%c0_64, %c0_65, %c0_66] : memref<1x32x32xbf16, #tpu.memory_space<vmem>>, vector<1x32x32xbf16>
    %155 = vector.shape_cast %154 : vector<1x32x32xbf16> to vector<32x32xbf16>
    %c0_67 = arith.constant 0 : index
    %c0_68 = arith.constant 0 : index
    %c0_69 = arith.constant 0 : index
    %156 = vector.load %arg14[%c0_67, %c0_68, %c0_69] : memref<1x1x32xf32, #tpu.memory_space<vmem>>, vector<1x1x32xf32>
    %157 = vector.shape_cast %156 : vector<1x1x32xf32> to vector<1x32xf32>
    %c0_70 = arith.constant 0 : index
    %c0_71 = arith.constant 0 : index
    %c0_72 = arith.constant 0 : index
    %158 = vector.load %arg15[%c0_70, %c0_71, %c0_72] : memref<1x32x64xbf16, #tpu.memory_space<vmem>>, vector<1x32x64xbf16>
    %159 = vector.shape_cast %158 : vector<1x32x64xbf16> to vector<32x64xbf16>
    %c0_73 = arith.constant 0 : index
    %c0_74 = arith.constant 0 : index
    %c0_75 = arith.constant 0 : index
    %160 = vector.load %arg16[%c0_73, %c0_74, %c0_75] : memref<1x1x64xf32, #tpu.memory_space<vmem>>, vector<1x1x64xf32>
    %161 = vector.shape_cast %160 : vector<1x1x64xf32> to vector<1x64xf32>
    %c0_76 = arith.constant 0 : index
    %c0_77 = arith.constant 0 : index
    %c0_78 = arith.constant 0 : index
    %162 = vector.load %arg17[%c0_76, %c0_77, %c0_78] : memref<1x32x32xbf16, #tpu.memory_space<vmem>>, vector<1x32x32xbf16>
    %163 = vector.shape_cast %162 : vector<1x32x32xbf16> to vector<32x32xbf16>
    %c0_79 = arith.constant 0 : index
    %c0_80 = arith.constant 0 : index
    %c0_81 = arith.constant 0 : index
    %164 = vector.load %arg18[%c0_79, %c0_80, %c0_81] : memref<1x1x32xf32, #tpu.memory_space<vmem>>, vector<1x1x32xf32>
    %165 = vector.shape_cast %164 : vector<1x1x32xf32> to vector<1x32xf32>
    %166 = arith.truncf %153 : vector<8x32xf32> to vector<8x32xbf16>
    %cst_82 = arith.constant dense<0.000000e+00> : vector<8x32xf32>
    %167 = tpu.matmul %166, %155, %cst_82 {dimension_numbers = #tpu.dot_dimension_numbers<[1], [0], [0], [1], [0, 0, 1, 1], [], []>} : vector<8x32xbf16>, vector<32x32xbf16>, vector<8x32xf32> -> vector<8x32xf32>
    %168 = vector.broadcast %157 : vector<1x32xf32> to vector<8x32xf32>
    %169 = arith.addf %167, %168 : vector<8x32xf32>
    %cst_83 = arith.constant 0.353553385 : f32
    %170 = vector.broadcast %cst_83 : f32 to vector<8x32xf32>
    %171 = arith.mulf %169, %170 : vector<8x32xf32>
    %172 = arith.truncf %6 : vector<8x32xf32> to vector<8x32xbf16>
    %cst_84 = arith.constant dense<0.000000e+00> : vector<8x64xf32>
    %173 = tpu.matmul %172, %159, %cst_84 {dimension_numbers = #tpu.dot_dimension_numbers<[1], [0], [0], [1], [0, 0, 1, 1], [], []>} : vector<8x32xbf16>, vector<32x64xbf16>, vector<8x64xf32> -> vector<8x64xf32>
    %174 = vector.broadcast %161 : vector<1x64xf32> to vector<8x64xf32>
    %175 = arith.addf %173, %174 : vector<8x64xf32>
    %176 = vector.extract_strided_slice %175 {offsets = [0, 0], sizes = [8, 32], strides = [1, 1]} : vector<8x64xf32> to vector<8x32xf32>
    %177 = vector.extract_strided_slice %175 {offsets = [0, 32], sizes = [8, 32], strides = [1, 1]} : vector<8x64xf32> to vector<8x32xf32>
    %178 = vector.extract_strided_slice %171 {offsets = [0, 0], sizes = [8, 8], strides = [1, 1]} : vector<8x32xf32> to vector<8x8xf32>
    %179 = arith.truncf %178 : vector<8x8xf32> to vector<8x8xbf16>
    %180 = vector.extract_strided_slice %176 {offsets = [0, 0], sizes = [8, 8], strides = [1, 1]} : vector<8x32xf32> to vector<8x8xf32>
    %181 = arith.truncf %180 : vector<8x8xf32> to vector<8x8xbf16>
    %182 = vector.extract_strided_slice %177 {offsets = [0, 0], sizes = [8, 8], strides = [1, 1]} : vector<8x32xf32> to vector<8x8xf32>
    %183 = arith.truncf %182 : vector<8x8xf32> to vector<8x8xbf16>
    %cst_85 = arith.constant dense<0.000000e+00> : vector<8x8xf32>
    %184 = tpu.matmul %179, %181, %cst_85 {dimension_numbers = #tpu.dot_dimension_numbers<[1], [1], [0], [0], [0, 0, 1, 0], [], []>} : vector<8x8xbf16>, vector<8x8xbf16>, vector<8x8xf32> -> vector<8x8xf32>
    %cst_86 = arith.constant dense<0xFF800000> : vector<8xf32>
    %185 = vector.multi_reduction <maximumf>, %184, %cst_86 [1] : vector<8x8xf32> to vector<8xf32>
    %186 = vector.shape_cast %185 : vector<8xf32> to vector<8x1xf32>
    %187 = vector.broadcast %186 : vector<8x1xf32> to vector<8x8xf32>
    %188 = arith.subf %184, %187 : vector<8x8xf32>
    %189 = math.exp %188 : vector<8x8xf32>
    %cst_87 = arith.constant dense<0.000000e+00> : vector<8xf32>
    %190 = vector.multi_reduction <add>, %189, %cst_87 [1] : vector<8x8xf32> to vector<8xf32>
    %191 = vector.shape_cast %190 : vector<8xf32> to vector<8x1xf32>
    %192 = tpu.reciprocal %191 {approx = true} : vector<8x1xf32> -> vector<8x1xf32>
    %193 = vector.broadcast %192 : vector<8x1xf32> to vector<8x8xf32>
    %194 = arith.mulf %189, %193 : vector<8x8xf32>
    %195 = arith.truncf %194 : vector<8x8xf32> to vector<8x8xbf16>
    %cst_88 = arith.constant dense<0.000000e+00> : vector<8x8xf32>
    %196 = tpu.matmul %195, %183, %cst_88 {dimension_numbers = #tpu.dot_dimension_numbers<[1], [0], [0], [1], [0, 0, 1, 1], [], []>} : vector<8x8xbf16>, vector<8x8xbf16>, vector<8x8xf32> -> vector<8x8xf32>
    %197 = vector.extract_strided_slice %171 {offsets = [0, 8], sizes = [8, 8], strides = [1, 1]} : vector<8x32xf32> to vector<8x8xf32>
    %198 = arith.truncf %197 : vector<8x8xf32> to vector<8x8xbf16>
    %199 = vector.extract_strided_slice %176 {offsets = [0, 8], sizes = [8, 8], strides = [1, 1]} : vector<8x32xf32> to vector<8x8xf32>
    %200 = arith.truncf %199 : vector<8x8xf32> to vector<8x8xbf16>
    %201 = vector.extract_strided_slice %177 {offsets = [0, 8], sizes = [8, 8], strides = [1, 1]} : vector<8x32xf32> to vector<8x8xf32>
    %202 = arith.truncf %201 : vector<8x8xf32> to vector<8x8xbf16>
    %cst_89 = arith.constant dense<0.000000e+00> : vector<8x8xf32>
    %203 = tpu.matmul %198, %200, %cst_89 {dimension_numbers = #tpu.dot_dimension_numbers<[1], [1], [0], [0], [0, 0, 1, 0], [], []>} : vector<8x8xbf16>, vector<8x8xbf16>, vector<8x8xf32> -> vector<8x8xf32>
    %cst_90 = arith.constant dense<0xFF800000> : vector<8xf32>
    %204 = vector.multi_reduction <maximumf>, %203, %cst_90 [1] : vector<8x8xf32> to vector<8xf32>
    %205 = vector.shape_cast %204 : vector<8xf32> to vector<8x1xf32>
    %206 = vector.broadcast %205 : vector<8x1xf32> to vector<8x8xf32>
    %207 = arith.subf %203, %206 : vector<8x8xf32>
    %208 = math.exp %207 : vector<8x8xf32>
    %cst_91 = arith.constant dense<0.000000e+00> : vector<8xf32>
    %209 = vector.multi_reduction <add>, %208, %cst_91 [1] : vector<8x8xf32> to vector<8xf32>
    %210 = vector.shape_cast %209 : vector<8xf32> to vector<8x1xf32>
    %211 = tpu.reciprocal %210 {approx = true} : vector<8x1xf32> -> vector<8x1xf32>
    %212 = vector.broadcast %211 : vector<8x1xf32> to vector<8x8xf32>
    %213 = arith.mulf %208, %212 : vector<8x8xf32>
    %214 = arith.truncf %213 : vector<8x8xf32> to vector<8x8xbf16>
    %cst_92 = arith.constant dense<0.000000e+00> : vector<8x8xf32>
    %215 = tpu.matmul %214, %202, %cst_92 {dimension_numbers = #tpu.dot_dimension_numbers<[1], [0], [0], [1], [0, 0, 1, 1], [], []>} : vector<8x8xbf16>, vector<8x8xbf16>, vector<8x8xf32> -> vector<8x8xf32>
    %216 = vector.extract_strided_slice %171 {offsets = [0, 16], sizes = [8, 8], strides = [1, 1]} : vector<8x32xf32> to vector<8x8xf32>
    %217 = arith.truncf %216 : vector<8x8xf32> to vector<8x8xbf16>
    %218 = vector.extract_strided_slice %176 {offsets = [0, 16], sizes = [8, 8], strides = [1, 1]} : vector<8x32xf32> to vector<8x8xf32>
    %219 = arith.truncf %218 : vector<8x8xf32> to vector<8x8xbf16>
    %220 = vector.extract_strided_slice %177 {offsets = [0, 16], sizes = [8, 8], strides = [1, 1]} : vector<8x32xf32> to vector<8x8xf32>
    %221 = arith.truncf %220 : vector<8x8xf32> to vector<8x8xbf16>
    %cst_93 = arith.constant dense<0.000000e+00> : vector<8x8xf32>
    %222 = tpu.matmul %217, %219, %cst_93 {dimension_numbers = #tpu.dot_dimension_numbers<[1], [1], [0], [0], [0, 0, 1, 0], [], []>} : vector<8x8xbf16>, vector<8x8xbf16>, vector<8x8xf32> -> vector<8x8xf32>
    %cst_94 = arith.constant dense<0xFF800000> : vector<8xf32>
    %223 = vector.multi_reduction <maximumf>, %222, %cst_94 [1] : vector<8x8xf32> to vector<8xf32>
    %224 = vector.shape_cast %223 : vector<8xf32> to vector<8x1xf32>
    %225 = vector.broadcast %224 : vector<8x1xf32> to vector<8x8xf32>
    %226 = arith.subf %222, %225 : vector<8x8xf32>
    %227 = math.exp %226 : vector<8x8xf32>
    %cst_95 = arith.constant dense<0.000000e+00> : vector<8xf32>
    %228 = vector.multi_reduction <add>, %227, %cst_95 [1] : vector<8x8xf32> to vector<8xf32>
    %229 = vector.shape_cast %228 : vector<8xf32> to vector<8x1xf32>
    %230 = tpu.reciprocal %229 {approx = true} : vector<8x1xf32> -> vector<8x1xf32>
    %231 = vector.broadcast %230 : vector<8x1xf32> to vector<8x8xf32>
    %232 = arith.mulf %227, %231 : vector<8x8xf32>
    %233 = arith.truncf %232 : vector<8x8xf32> to vector<8x8xbf16>
    %cst_96 = arith.constant dense<0.000000e+00> : vector<8x8xf32>
    %234 = tpu.matmul %233, %221, %cst_96 {dimension_numbers = #tpu.dot_dimension_numbers<[1], [0], [0], [1], [0, 0, 1, 1], [], []>} : vector<8x8xbf16>, vector<8x8xbf16>, vector<8x8xf32> -> vector<8x8xf32>
    %235 = vector.extract_strided_slice %171 {offsets = [0, 24], sizes = [8, 8], strides = [1, 1]} : vector<8x32xf32> to vector<8x8xf32>
    %236 = arith.truncf %235 : vector<8x8xf32> to vector<8x8xbf16>
    %237 = vector.extract_strided_slice %176 {offsets = [0, 24], sizes = [8, 8], strides = [1, 1]} : vector<8x32xf32> to vector<8x8xf32>
    %238 = arith.truncf %237 : vector<8x8xf32> to vector<8x8xbf16>
    %239 = vector.extract_strided_slice %177 {offsets = [0, 24], sizes = [8, 8], strides = [1, 1]} : vector<8x32xf32> to vector<8x8xf32>
    %240 = arith.truncf %239 : vector<8x8xf32> to vector<8x8xbf16>
    %cst_97 = arith.constant dense<0.000000e+00> : vector<8x8xf32>
    %241 = tpu.matmul %236, %238, %cst_97 {dimension_numbers = #tpu.dot_dimension_numbers<[1], [1], [0], [0], [0, 0, 1, 0], [], []>} : vector<8x8xbf16>, vector<8x8xbf16>, vector<8x8xf32> -> vector<8x8xf32>
    %cst_98 = arith.constant dense<0xFF800000> : vector<8xf32>
    %242 = vector.multi_reduction <maximumf>, %241, %cst_98 [1] : vector<8x8xf32> to vector<8xf32>
    %243 = vector.shape_cast %242 : vector<8xf32> to vector<8x1xf32>
    %244 = vector.broadcast %243 : vector<8x1xf32> to vector<8x8xf32>
    %245 = arith.subf %241, %244 : vector<8x8xf32>
    %246 = math.exp %245 : vector<8x8xf32>
    %cst_99 = arith.constant dense<0.000000e+00> : vector<8xf32>
    %247 = vector.multi_reduction <add>, %246, %cst_99 [1] : vector<8x8xf32> to vector<8xf32>
    %248 = vector.shape_cast %247 : vector<8xf32> to vector<8x1xf32>
    %249 = tpu.reciprocal %248 {approx = true} : vector<8x1xf32> -> vector<8x1xf32>
    %250 = vector.broadcast %249 : vector<8x1xf32> to vector<8x8xf32>
    %251 = arith.mulf %246, %250 : vector<8x8xf32>
    %252 = arith.truncf %251 : vector<8x8xf32> to vector<8x8xbf16>
    %cst_100 = arith.constant dense<0.000000e+00> : vector<8x8xf32>
    %253 = tpu.matmul %252, %240, %cst_100 {dimension_numbers = #tpu.dot_dimension_numbers<[1], [0], [0], [1], [0, 0, 1, 1], [], []>} : vector<8x8xbf16>, vector<8x8xbf16>, vector<8x8xf32> -> vector<8x8xf32>
    %254 = tpu.concatenate %196, %215, %234, %253 in 1 : vector<8x8xf32>, vector<8x8xf32>, vector<8x8xf32>, vector<8x8xf32> -> vector<8x32xf32>
    %255 = arith.truncf %254 : vector<8x32xf32> to vector<8x32xbf16>
    %cst_101 = arith.constant dense<0.000000e+00> : vector<8x32xf32>
    %256 = tpu.matmul %255, %163, %cst_101 {dimension_numbers = #tpu.dot_dimension_numbers<[1], [0], [0], [1], [0, 0, 1, 1], [], []>} : vector<8x32xbf16>, vector<32x32xbf16>, vector<8x32xf32> -> vector<8x32xf32>
    %257 = vector.broadcast %165 : vector<1x32xf32> to vector<8x32xf32>
    %258 = arith.addf %256, %257 : vector<8x32xf32>
    %c0_102 = arith.constant 0 : index
    %c0_103 = arith.constant 0 : index
    %c0_104 = arith.constant 0 : index
    %259 = vector.load %arg19[%c0_102, %c0_103, %c0_104] : memref<1x1x32xf32, #tpu.memory_space<vmem>>, vector<1x1x32xf32>
    %260 = vector.shape_cast %259 : vector<1x1x32xf32> to vector<1x32xf32>
    %c0_105 = arith.constant 0 : index
    %c0_106 = arith.constant 0 : index
    %c0_107 = arith.constant 0 : index
    %261 = vector.load %arg20[%c0_105, %c0_106, %c0_107] : memref<1x1x32xf32, #tpu.memory_space<vmem>>, vector<1x1x32xf32>
    %262 = vector.shape_cast %261 : vector<1x1x32xf32> to vector<1x32xf32>
    %263 = arith.addf %153, %258 : vector<8x32xf32>
    %cst_108 = arith.constant dense<0.000000e+00> : vector<8xf32>
    %264 = vector.multi_reduction <add>, %263, %cst_108 [1] : vector<8x32xf32> to vector<8xf32>
    %265 = vector.shape_cast %264 : vector<8xf32> to vector<8x1xf32>
    %cst_109 = arith.constant 3.200000e+01 : f32
    %266 = vector.broadcast %cst_109 : f32 to vector<8x1xf32>
    %267 = arith.divf %265, %266 : vector<8x1xf32>
    %268 = vector.broadcast %267 : vector<8x1xf32> to vector<8x32xf32>
    %269 = arith.subf %263, %268 : vector<8x32xf32>
    %270 = arith.mulf %269, %269 : vector<8x32xf32>
    %cst_110 = arith.constant dense<0.000000e+00> : vector<8xf32>
    %271 = vector.multi_reduction <add>, %270, %cst_110 [1] : vector<8x32xf32> to vector<8xf32>
    %272 = vector.shape_cast %271 : vector<8xf32> to vector<8x1xf32>
    %cst_111 = arith.constant 0.0322580636 : f32
    %273 = vector.broadcast %cst_111 : f32 to vector<8x1xf32>
    %274 = arith.mulf %272, %273 : vector<8x1xf32>
    %275 = vector.broadcast %260 : vector<1x32xf32> to vector<8x32xf32>
    %276 = arith.mulf %275, %269 : vector<8x32xf32>
    %277 = math.sqrt %274 : vector<8x1xf32>
    %cst_112 = arith.constant 9.99999997E-7 : f32
    %278 = vector.broadcast %cst_112 : f32 to vector<8x1xf32>
    %279 = arith.addf %277, %278 : vector<8x1xf32>
    %280 = vector.broadcast %279 : vector<8x1xf32> to vector<8x32xf32>
    %281 = arith.divf %276, %280 : vector<8x32xf32>
    %282 = vector.broadcast %262 : vector<1x32xf32> to vector<8x32xf32>
    %283 = arith.addf %281, %282 : vector<8x32xf32>
    %c0_113 = arith.constant 0 : index
    %c0_114 = arith.constant 0 : index
    %c0_115 = arith.constant 0 : index
    %284 = vector.load %arg21[%c0_113, %c0_114, %c0_115] : memref<1x32x2048xbf16, #tpu.memory_space<vmem>>, vector<1x32x2048xbf16>
    %285 = vector.shape_cast %284 : vector<1x32x2048xbf16> to vector<32x2048xbf16>
    %c0_116 = arith.constant 0 : index
    %c0_117 = arith.constant 0 : index
    %c0_118 = arith.constant 0 : index
    %286 = vector.load %arg22[%c0_116, %c0_117, %c0_118] : memref<1x1x2048xf32, #tpu.memory_space<vmem>>, vector<1x1x2048xf32>
    %287 = vector.shape_cast %286 : vector<1x1x2048xf32> to vector<1x2048xf32>
    %c0_119 = arith.constant 0 : index
    %c0_120 = arith.constant 0 : index
    %c0_121 = arith.constant 0 : index
    %288 = vector.load %arg23[%c0_119, %c0_120, %c0_121] : memref<1x2048x32xbf16, #tpu.memory_space<vmem>>, vector<1x2048x32xbf16>
    %289 = vector.shape_cast %288 : vector<1x2048x32xbf16> to vector<2048x32xbf16>
    %c0_122 = arith.constant 0 : index
    %c0_123 = arith.constant 0 : index
    %c0_124 = arith.constant 0 : index
    %290 = vector.load %arg24[%c0_122, %c0_123, %c0_124] : memref<1x1x32xf32, #tpu.memory_space<vmem>>, vector<1x1x32xf32>
    %291 = vector.shape_cast %290 : vector<1x1x32xf32> to vector<1x32xf32>
    %292 = arith.truncf %283 : vector<8x32xf32> to vector<8x32xbf16>
    %cst_125 = arith.constant dense<0.000000e+00> : vector<8x2048xf32>
    %293 = tpu.matmul %292, %285, %cst_125 {dimension_numbers = #tpu.dot_dimension_numbers<[1], [0], [0], [1], [0, 0, 1, 1], [], []>} : vector<8x32xbf16>, vector<32x2048xbf16>, vector<8x2048xf32> -> vector<8x2048xf32>
    %294 = vector.broadcast %287 : vector<1x2048xf32> to vector<8x2048xf32>
    %295 = arith.addf %293, %294 : vector<8x2048xf32>
    %cst_126 = arith.constant 0.000000e+00 : f32
    %296 = vector.broadcast %cst_126 : f32 to vector<8x2048xf32>
    %297 = arith.maximumf %295, %296 : vector<8x2048xf32>
    %298 = arith.truncf %297 : vector<8x2048xf32> to vector<8x2048xbf16>
    %cst_127 = arith.constant dense<0.000000e+00> : vector<8x32xf32>
    %299 = tpu.matmul %298, %289, %cst_127 {dimension_numbers = #tpu.dot_dimension_numbers<[1], [0], [0], [1], [0, 0, 1, 1], [], []>} : vector<8x2048xbf16>, vector<2048x32xbf16>, vector<8x32xf32> -> vector<8x32xf32>
    %300 = vector.broadcast %291 : vector<1x32xf32> to vector<8x32xf32>
    %301 = arith.addf %299, %300 : vector<8x32xf32>
    %c0_128 = arith.constant 0 : index
    %c0_129 = arith.constant 0 : index
    %c0_130 = arith.constant 0 : index
    %302 = vector.load %arg25[%c0_128, %c0_129, %c0_130] : memref<1x1x32xf32, #tpu.memory_space<vmem>>, vector<1x1x32xf32>
    %303 = vector.shape_cast %302 : vector<1x1x32xf32> to vector<1x32xf32>
    %c0_131 = arith.constant 0 : index
    %c0_132 = arith.constant 0 : index
    %c0_133 = arith.constant 0 : index
    %304 = vector.load %arg26[%c0_131, %c0_132, %c0_133] : memref<1x1x32xf32, #tpu.memory_space<vmem>>, vector<1x1x32xf32>
    %305 = vector.shape_cast %304 : vector<1x1x32xf32> to vector<1x32xf32>
    %306 = arith.addf %283, %301 : vector<8x32xf32>
    %cst_134 = arith.constant dense<0.000000e+00> : vector<8xf32>
    %307 = vector.multi_reduction <add>, %306, %cst_134 [1] : vector<8x32xf32> to vector<8xf32>
    %308 = vector.shape_cast %307 : vector<8xf32> to vector<8x1xf32>
    %cst_135 = arith.constant 3.200000e+01 : f32
    %309 = vector.broadcast %cst_135 : f32 to vector<8x1xf32>
    %310 = arith.divf %308, %309 : vector<8x1xf32>
    %311 = vector.broadcast %310 : vector<8x1xf32> to vector<8x32xf32>
    %312 = arith.subf %306, %311 : vector<8x32xf32>
    %313 = arith.mulf %312, %312 : vector<8x32xf32>
    %cst_136 = arith.constant dense<0.000000e+00> : vector<8xf32>
    %314 = vector.multi_reduction <add>, %313, %cst_136 [1] : vector<8x32xf32> to vector<8xf32>
    %315 = vector.shape_cast %314 : vector<8xf32> to vector<8x1xf32>
    %cst_137 = arith.constant 0.0322580636 : f32
    %316 = vector.broadcast %cst_137 : f32 to vector<8x1xf32>
    %317 = arith.mulf %315, %316 : vector<8x1xf32>
    %318 = vector.broadcast %303 : vector<1x32xf32> to vector<8x32xf32>
    %319 = arith.mulf %318, %312 : vector<8x32xf32>
    %320 = math.sqrt %317 : vector<8x1xf32>
    %cst_138 = arith.constant 9.99999997E-7 : f32
    %321 = vector.broadcast %cst_138 : f32 to vector<8x1xf32>
    %322 = arith.addf %320, %321 : vector<8x1xf32>
    %323 = vector.broadcast %322 : vector<8x1xf32> to vector<8x32xf32>
    %324 = arith.divf %319, %323 : vector<8x32xf32>
    %325 = vector.broadcast %305 : vector<1x32xf32> to vector<8x32xf32>
    %326 = arith.addf %324, %325 : vector<8x32xf32>
    %c0_139 = arith.constant 0 : index
    %c0_140 = arith.constant 0 : index
    %c0_141 = arith.constant 0 : index
    %327 = vector.load %arg27[%c0_139, %c0_140, %c0_141] : memref<1x8x32xf32, #tpu.memory_space<vmem>>, vector<1x8x32xf32>
    %328 = vector.shape_cast %327 : vector<1x8x32xf32> to vector<8x32xf32>
    %329 = vector.shape_cast %326 : vector<8x32xf32> to vector<1x8x32xf32>
    tpu.vector_store %arg27[%c0_139, %c0_140, %c0_141], %329 {strides = array<i32>} : memref<1x8x32xf32, #tpu.memory_space<vmem>>, vector<1x8x32xf32>,
    return
  }
  func.func @transform_0(%arg0: i32, %arg1: i32) -> (i32, i32, i32) {
    %c0_i32 = arith.constant 0 : i32
    %c0_i32_0 = arith.constant 0 : i32
    %c0_i32_1 = arith.constant 0 : i32
    return %arg0, %c0_i32, %c0_i32_0 : i32, i32, i32
  }
  func.func @transform_1(%arg0: i32, %arg1: i32) -> (i32, i32, i32) {
    %c0_i32 = arith.constant 0 : i32
    %c0_i32_0 = arith.constant 0 : i32
    %c0_i32_1 = arith.constant 0 : i32
    return %arg0, %c0_i32, %c0_i32_0 : i32, i32, i32
  }
  func.func @transform_2(%arg0: i32, %arg1: i32) -> (i32, i32) {
    %c0_i32 = arith.constant 0 : i32
    %c0_i32_0 = arith.constant 0 : i32
    %c0_i32_1 = arith.constant 0 : i32
    return %c0_i32, %c0_i32_0 : i32, i32
  }
  func.func @transform_3(%arg0: i32, %arg1: i32) -> (i32, i32, i32) {
    %c0_i32 = arith.constant 0 : i32
    %c0_i32_0 = arith.constant 0 : i32
    %c0_i32_1 = arith.constant 0 : i32
    return %arg1, %c0_i32, %c0_i32_0 : i32, i32, i32
  }
  func.func @transform_4(%arg0: i32, %arg1: i32) -> (i32, i32, i32) {
    %c0_i32 = arith.constant 0 : i32
    %c0_i32_0 = arith.constant 0 : i32
    %c0_i32_1 = arith.constant 0 : i32
    return %arg1, %c0_i32, %c0_i32_0 : i32, i32, i32
  }
  func.func @transform_5(%arg0: i32, %arg1: i32) -> (i32, i32, i32) {
    %c0_i32 = arith.constant 0 : i32
    %c0_i32_0 = arith.constant 0 : i32
    %c0_i32_1 = arith.constant 0 : i32
    return %arg1, %c0_i32, %c0_i32_0 : i32, i32, i32
  }
  func.func @transform_6(%arg0: i32, %arg1: i32) -> (i32, i32, i32) {
    %c0_i32 = arith.constant 0 : i32
    %c0_i32_0 = arith.constant 0 : i32
    %c0_i32_1 = arith.constant 0 : i32
    return %arg1, %c0_i32, %c0_i32_0 : i32, i32, i32
  }
  func.func @transform_7(%arg0: i32, %arg1: i32) -> (i32, i32, i32) {
    %c0_i32 = arith.constant 0 : i32
    %c0_i32_0 = arith.constant 0 : i32
    %c0_i32_1 = arith.constant 0 : i32
    return %arg1, %c0_i32, %c0_i32_0 : i32, i32, i32
  }
  func.func @transform_8(%arg0: i32, %arg1: i32) -> (i32, i32, i32) {
    %c0_i32 = arith.constant 0 : i32
    %c0_i32_0 = arith.constant 0 : i32
    %c0_i32_1 = arith.constant 0 : i32
    return %arg1, %c0_i32, %c0_i32_0 : i32, i32, i32
  }
  func.func @transform_9(%arg0: i32, %arg1: i32) -> (i32, i32, i32) {
    %c0_i32 = arith.constant 0 : i32
    %c0_i32_0 = arith.constant 0 : i32
    %c0_i32_1 = arith.constant 0 : i32
    return %arg1, %c0_i32, %c0_i32_0 : i32, i32, i32
  }
  func.func @transform_10(%arg0: i32, %arg1: i32) -> (i32, i32, i32) {
    %c0_i32 = arith.constant 0 : i32
    %c0_i32_0 = arith.constant 0 : i32
    %c0_i32_1 = arith.constant 0 : i32
    return %arg1, %c0_i32, %c0_i32_0 : i32, i32, i32
  }
  func.func @transform_11(%arg0: i32, %arg1: i32) -> (i32, i32, i32) {
    %c0_i32 = arith.constant 0 : i32
    %c0_i32_0 = arith.constant 0 : i32
    %c0_i32_1 = arith.constant 0 : i32
    return %arg1, %c0_i32, %c0_i32_0 : i32, i32, i32
  }
  func.func @transform_12(%arg0: i32, %arg1: i32) -> (i32, i32, i32) {
    %c0_i32 = arith.constant 0 : i32
    %c0_i32_0 = arith.constant 0 : i32
    %c0_i32_1 = arith.constant 0 : i32
    return %arg1, %c0_i32, %c0_i32_0 : i32, i32, i32
  }
  func.func @transform_13(%arg0: i32, %arg1: i32) -> (i32, i32, i32) {
    %c0_i32 = arith.constant 0 : i32
    %c0_i32_0 = arith.constant 0 : i32
    %c0_i32_1 = arith.constant 0 : i32
    return %arg1, %c0_i32, %c0_i32_0 : i32, i32, i32
  }
  func.func @transform_14(%arg0: i32, %arg1: i32) -> (i32, i32, i32) {
    %c0_i32 = arith.constant 0 : i32
    %c0_i32_0 = arith.constant 0 : i32
    %c0_i32_1 = arith.constant 0 : i32
    return %arg1, %c0_i32, %c0_i32_0 : i32, i32, i32
  }
  func.func @transform_15(%arg0: i32, %arg1: i32) -> (i32, i32, i32) {
    %c0_i32 = arith.constant 0 : i32
    %c0_i32_0 = arith.constant 0 : i32
    %c0_i32_1 = arith.constant 0 : i32
    return %arg1, %c0_i32, %c0_i32_0 : i32, i32, i32
  }
  func.func @transform_16(%arg0: i32, %arg1: i32) -> (i32, i32, i32) {
    %c0_i32 = arith.constant 0 : i32
    %c0_i32_0 = arith.constant 0 : i32
    %c0_i32_1 = arith.constant 0 : i32
    return %arg1, %c0_i32, %c0_i32_0 : i32, i32, i32
  }
  func.func @transform_17(%arg0: i32, %arg1: i32) -> (i32, i32, i32) {
    %c0_i32 = arith.constant 0 : i32
    %c0_i32_0 = arith.constant 0 : i32
    %c0_i32_1 = arith.constant 0 : i32
    return %arg1, %c0_i32, %c0_i32_0 : i32, i32, i32
  }
  func.func @transform_18(%arg0: i32, %arg1: i32) -> (i32, i32, i32) {
    %c0_i32 = arith.constant 0 : i32
    %c0_i32_0 = arith.constant 0 : i32
    %c0_i32_1 = arith.constant 0 : i32
    return %arg1, %c0_i32, %c0_i32_0 : i32, i32, i32
  }
  func.func @transform_19(%arg0: i32, %arg1: i32) -> (i32, i32, i32) {
    %c0_i32 = arith.constant 0 : i32
    %c0_i32_0 = arith.constant 0 : i32
    %c0_i32_1 = arith.constant 0 : i32
    return %arg1, %c0_i32, %c0_i32_0 : i32, i32, i32
  }
  func.func @transform_20(%arg0: i32, %arg1: i32) -> (i32, i32, i32) {
    %c0_i32 = arith.constant 0 : i32
    %c0_i32_0 = arith.constant 0 : i32
    %c0_i32_1 = arith.constant 0 : i32
    return %arg1, %c0_i32, %c0_i32_0 : i32, i32, i32
  }
  func.func @transform_21(%arg0: i32, %arg1: i32) -> (i32, i32, i32) {
    %c0_i32 = arith.constant 0 : i32
    %c0_i32_0 = arith.constant 0 : i32
    %c0_i32_1 = arith.constant 0 : i32
    return %arg1, %c0_i32, %c0_i32_0 : i32, i32, i32
  }
  func.func @transform_22(%arg0: i32, %arg1: i32) -> (i32, i32, i32) {
    %c0_i32 = arith.constant 0 : i32
    %c0_i32_0 = arith.constant 0 : i32
    %c0_i32_1 = arith.constant 0 : i32
    return %arg1, %c0_i32, %c0_i32_0 : i32, i32, i32
  }
  func.func @transform_23(%arg0: i32, %arg1: i32) -> (i32, i32, i32) {
    %c0_i32 = arith.constant 0 : i32
    %c0_i32_0 = arith.constant 0 : i32
    %c0_i32_1 = arith.constant 0 : i32
    return %arg1, %c0_i32, %c0_i32_0 : i32, i32, i32
  }
  func.func @transform_24(%arg0: i32, %arg1: i32) -> (i32, i32, i32) {
    %c0_i32 = arith.constant 0 : i32
    %c0_i32_0 = arith.constant 0 : i32
    %c0_i32_1 = arith.constant 0 : i32
    return %arg1, %c0_i32, %c0_i32_0 : i32, i32, i32
  }
  func.func @transform_25(%arg0: i32, %arg1: i32) -> (i32, i32, i32) {
    %c0_i32 = arith.constant 0 : i32
    %c0_i32_0 = arith.constant 0 : i32
    %c0_i32_1 = arith.constant 0 : i32
    return %arg0, %c0_i32, %c0_i32_0 : i32, i32, i32
  }
}

</mosaic_0001>

<llo_original>
// kernel: encoder_decoder_forward.2
$region0: #{encoder_decoder_forward.2}
  #allocation0 [shape = 'u32[]', space=smem, size = 0x4, offset = 0x4, fixed_abs, tag = 'smem constant byte address 0x4 - core index']
  #allocation1 [shape = 'u32[72,128]{1,0:T(1,128)}', space=vmem, size = 0x9000, scoped, tag = 'internal scratch']
  %s0 = inlined_call_operand.vmem [shape: f32[2,8,32], index: 0, kind: input, shape index: {}]
  %s1 = inlined_call_operand.vmem [shape: bf16[2,32,32], index: 1, kind: input, shape index: {}]
  %s2 = inlined_call_operand.vmem [shape: f32[2,1,32], index: 2, kind: input, shape index: {}]
  %s3 = inlined_call_operand.vmem [shape: bf16[2,32,64], index: 3, kind: input, shape index: {}]
  %s4 = inlined_call_operand.vmem [shape: f32[2,1,64], index: 4, kind: input, shape index: {}]
  %s5 = inlined_call_operand.vmem [shape: bf16[2,32,32], index: 5, kind: input, shape index: {}]
  %s6 = inlined_call_operand.vmem [shape: f32[2,1,32], index: 6, kind: input, shape index: {}]
  %s7 = inlined_call_operand.vmem [shape: f32[2,1,32], index: 7, kind: input, shape index: {}]
  %s8 = inlined_call_operand.vmem [shape: f32[2,1,32], index: 8, kind: input, shape index: {}]
  %s9 = inlined_call_operand.vmem [shape: bf16[2,32,2048], index: 9, kind: input, shape index: {}]
  %s10 = inlined_call_operand.vmem [shape: f32[2,1,2048], index: 10, kind: input, shape index: {}]
  %s11 = inlined_call_operand.vmem [shape: bf16[2,2048,32], index: 11, kind: input, shape index: {}]
  %s12 = inlined_call_operand.vmem [shape: f32[2,1,32], index: 12, kind: input, shape index: {}]
  %s13 = inlined_call_operand.vmem [shape: f32[2,1,32], index: 13, kind: input, shape index: {}]
  %s14 = inlined_call_operand.vmem [shape: f32[2,1,32], index: 14, kind: input, shape index: {}]
  %s15 = inlined_call_operand.vmem [shape: f32[2,8,32], index: 15, kind: output, shape index: {}]
  %s16 = sld [smem:[#allocation0]]
  $region97: #{encoder_decoder_forward.2} parent=0
    _
  %s18 = ssub.s32 1, %s16
  %s19 = scalar_select 0, %s18, %s16
  loop: start=0, step=1, limit=6
  $region2: #{encoder_decoder_forward.2} parent=0 // loop_pre_header
    _
  $region3: #{encoder_decoder_forward.2} parent=0 // loop_header
    %s21 = sphi 0, %s25
    %p22 = scmp.ge.s32.totalorder %s21, 6
    %s28 = sphi 0, %s40
    %s29 = sphi 0, %s36
    %s30 = sphi 0, %s28
    %s31 = sphi 0, %s29
    %s32 = sphi 0, %s30
    %s33 = sphi 0, %s31
    %s43 = sphi 0, %s45
    %s46 = sphi 0, %s43
    %s47 = sphi 0, %s46
    %s63 = sphi 0, %s47
    %s69 = sphi 0, %s71
    %s72 = sphi 0, %s69
    %s73 = sphi 0, %s72
    %s89 = sphi 0, %s73
    %s95 = sphi 0, %s97
    %s98 = sphi 0, %s95
    %s99 = sphi 0, %s98
    %s115 = sphi 0, %s99
    %s121 = sphi 0, %s123
    %s124 = sphi 0, %s121
    %s125 = sphi 0, %s124
    %s141 = sphi 0, %s125
    %s147 = sphi 0, %s149
    %s150 = sphi 0, %s147
    %s151 = sphi 0, %s150
    %s167 = sphi 0, %s151
    %s173 = sphi 0, %s175
    %s176 = sphi 0, %s173
    %s177 = sphi 0, %s176
    %s193 = sphi 0, %s177
    %s199 = sphi 0, %s201
    %s202 = sphi 0, %s199
    %s203 = sphi 0, %s202
    %s219 = sphi 0, %s203
    %s225 = sphi 0, %s227
    %s228 = sphi 0, %s225
    %s229 = sphi 0, %s228
    %s245 = sphi 0, %s229
    %s251 = sphi 0, %s253
    %s254 = sphi 0, %s251
    %s255 = sphi 0, %s254
    %s271 = sphi 0, %s255
    %s277 = sphi 0, %s279
    %s280 = sphi 0, %s277
    %s281 = sphi 0, %s280
    %s297 = sphi 0, %s281
    %s303 = sphi 0, %s305
    %s306 = sphi 0, %s303
    %s307 = sphi 0, %s306
    %s323 = sphi 0, %s307
    %s329 = sphi 0, %s331
    %s332 = sphi 0, %s329
    %s333 = sphi 0, %s332
    %s349 = sphi 0, %s333
    %s355 = sphi 0, %s357
    %s358 = sphi 0, %s355
    %s359 = sphi 0, %s358
    %s375 = sphi 0, %s359
    %s381 = sphi 0, %s383
    %s384 = sphi 0, %s381
    %s385 = sphi 0, %s384
    %s401 = sphi 0, %s385
    %s407 = sphi 0, %s409
    %s410 = sphi 0, %s407
    %s411 = sphi 0, %s410
    %s427 = sphi 0, %s411
    %s433 = sphi 0, %s435
    %s436 = sphi 0, %s433
    %s437 = sphi 0, %s436
    %s453 = sphi 0, %s437
  $region4: #{encoder_decoder_forward.2} parent=0 // loop_header_branch
    %24 = sbr.rel (%p22) target = $region8
  $region5: #{encoder_decoder_forward.2} parent=0 // loop_body
    %s26 = ssub.s32 %s21, 1
    %s27 = ssub.s32 %s21, 2
    %s34 = sadd.s32 1, %s29
    %p35 = scmp.ge.s32.totalorder %s34, 2
    %s36 = scalar_select %p35, 0, %s34
    %s37 = sadd.s32 1, %s28
    %s38 = scalar_select %p35, %s37, %s28
    %p39 = scmp.ge.s32.totalorder %s38, 2
    %s40 = scalar_select %p39, 0, %s38
    %s41 = ssub.s32 %s28, %s40
    %p42 = scmp.eq.s32.totalorder %s41, 0
    %s44 = sadd.s32 %s43, 1
    %s45 = scalar_select %p42, %s43, %s44
    %p48 = pneg %p42
    %p49 = scmp.eq.s32.totalorder %s21, 3
    %p50 = por %p48, %p49
    %p51 = scmp.ne.s32.totalorder %s43, %s46
    %p52 = scmp.eq.s32.totalorder %s21, 0
    %p53 = por %p51, %p52
    %p54 = scmp.ne.s32.totalorder %s43, %s46
    %p55 = scmp.eq.s32.totalorder %s26, 3
    %p56 = por %p54, %p55
    %p57 = scmp.ne.s32.totalorder %s46, %s47
    %p58 = scmp.eq.s32.totalorder %s26, 0
    %p59 = por %p57, %p58
    %p60 = scmp.ne.s32.totalorder %s46, %s47
    %p61 = scmp.eq.s32.totalorder %s27, 3
    %p62 = por %p60, %p61
    %p64 = scmp.ne.s32.totalorder %s47, %s63
    %p65 = scmp.eq.s32.totalorder %s27, 0
    %p66 = por %p64, %p65
    %s67 = ssub.s32 %s29, %s36
    %p68 = scmp.eq.s32.totalorder %s67, 0
    %s70 = sadd.s32 %s69, 1
    %s71 = scalar_select %p68, %s69, %s70
    %p74 = pneg %p68
    %p75 = scmp.eq.s32.totalorder %s21, 3
    %p76 = por %p74, %p75
    %p77 = scmp.ne.s32.totalorder %s69, %s72
    %p78 = scmp.eq.s32.totalorder %s21, 0
    %p79 = por %p77, %p78
    %p80 = scmp.ne.s32.totalorder %s69, %s72
    %p81 = scmp.eq.s32.totalorder %s26, 3
    %p82 = por %p80, %p81
    %p83 = scmp.ne.s32.totalorder %s72, %s73
    %p84 = scmp.eq.s32.totalorder %s26, 0
    %p85 = por %p83, %p84
    %p86 = scmp.ne.s32.totalorder %s72, %s73
    %p87 = scmp.eq.s32.totalorder %s27, 3
    %p88 = por %p86, %p87
    %p90 = scmp.ne.s32.totalorder %s73, %s89
    %p91 = scmp.eq.s32.totalorder %s27, 0
    %p92 = por %p90, %p91
    %s93 = ssub.s32 %s29, %s36
    %p94 = scmp.eq.s32.totalorder %s93, 0
    %s96 = sadd.s32 %s95, 1
    %s97 = scalar_select %p94, %s95, %s96
    %p100 = pneg %p94
    %p101 = scmp.eq.s32.totalorder %s21, 3
    %p102 = por %p100, %p101
    %p103 = scmp.ne.s32.totalorder %s95, %s98
    %p104 = scmp.eq.s32.totalorder %s21, 0
    %p105 = por %p103, %p104
    %p106 = scmp.ne.s32.totalorder %s95, %s98
    %p107 = scmp.eq.s32.totalorder %s26, 3
    %p108 = por %p106, %p107
    %p109 = scmp.ne.s32.totalorder %s98, %s99
    %p110 = scmp.eq.s32.totalorder %s26, 0
    %p111 = por %p109, %p110
    %p112 = scmp.ne.s32.totalorder %s98, %s99
    %p113 = scmp.eq.s32.totalorder %s27, 3
    %p114 = por %p112, %p113
    %p116 = scmp.ne.s32.totalorder %s99, %s115
    %p117 = scmp.eq.s32.totalorder %s27, 0
    %p118 = por %p116, %p117
    %s119 = ssub.s32 %s29, %s36
    %p120 = scmp.eq.s32.totalorder %s119, 0
    %s122 = sadd.s32 %s121, 1
    %s123 = scalar_select %p120, %s121, %s122
    %p126 = pneg %p120
    %p127 = scmp.eq.s32.totalorder %s21, 3
    %p128 = por %p126, %p127
    %p129 = scmp.ne.s32.totalorder %s121, %s124
    %p130 = scmp.eq.s32.totalorder %s21, 0
    %p131 = por %p129, %p130
    %p132 = scmp.ne.s32.totalorder %s121, %s124
    %p133 = scmp.eq.s32.totalorder %s26, 3
    %p134 = por %p132, %p133
    %p135 = scmp.ne.s32.totalorder %s124, %s125
    %p136 = scmp.eq.s32.totalorder %s26, 0
    %p137 = por %p135, %p136
    %p138 = scmp.ne.s32.totalorder %s124, %s125
    %p139 = scmp.eq.s32.totalorder %s27, 3
    %p140 = por %p138, %p139
    %p142 = scmp.ne.s32.totalorder %s125, %s141
    %p143 = scmp.eq.s32.totalorder %s27, 0
    %p144 = por %p142, %p143
    %s145 = ssub.s32 %s29, %s36
    %p146 = scmp.eq.s32.totalorder %s145, 0
    %s148 = sadd.s32 %s147, 1
    %s149 = scalar_select %p146, %s147, %s148
    %p152 = pneg %p146
    %p153 = scmp.eq.s32.totalorder %s21, 3
    %p154 = por %p152, %p153
    %p155 = scmp.ne.s32.totalorder %s147, %s150
    %p156 = scmp.eq.s32.totalorder %s21, 0
    %p157 = por %p155, %p156
    %p158 = scmp.ne.s32.totalorder %s147, %s150
    %p159 = scmp.eq.s32.totalorder %s26, 3
    %p160 = por %p158, %p159
    %p161 = scmp.ne.s32.totalorder %s150, %s151
    %p162 = scmp.eq.s32.totalorder %s26, 0
    %p163 = por %p161, %p162
    %p164 = scmp.ne.s32.totalorder %s150, %s151
    %p165 = scmp.eq.s32.totalorder %s27, 3
    %p166 = por %p164, %p165
    %p168 = scmp.ne.s32.totalorder %s151, %s167
    %p169 = scmp.eq.s32.totalorder %s27, 0
    %p170 = por %p168, %p169
    %s171 = ssub.s32 %s29, %s36
    %p172 = scmp.eq.s32.totalorder %s171, 0
    %s174 = sadd.s32 %s173, 1
    %s175 = scalar_select %p172, %s173, %s174
    %p178 = pneg %p172
    %p179 = scmp.eq.s32.totalorder %s21, 3
    %p180 = por %p178, %p179
    %p181 = scmp.ne.s32.totalorder %s173, %s176
    %p182 = scmp.eq.s32.totalorder %s21, 0
    %p183 = por %p181, %p182
    %p184 = scmp.ne.s32.totalorder %s173, %s176
    %p185 = scmp.eq.s32.totalorder %s26, 3
    %p186 = por %p184, %p185
    %p187 = scmp.ne.s32.totalorder %s176, %s177
    %p188 = scmp.eq.s32.totalorder %s26, 0
    %p189 = por %p187, %p188
    %p190 = scmp.ne.s32.totalorder %s176, %s177
    %p191 = scmp.eq.s32.totalorder %s27, 3
    %p192 = por %p190, %p191
    %p194 = scmp.ne.s32.totalorder %s177, %s193
    %p195 = scmp.eq.s32.totalorder %s27, 0
    %p196 = por %p194, %p195
    %s197 = ssub.s32 %s29, %s36
    %p198 = scmp.eq.s32.totalorder %s197, 0
    %s200 = sadd.s32 %s199, 1
    %s201 = scalar_select %p198, %s199, %s200
    %p204 = pneg %p198
    %p205 = scmp.eq.s32.totalorder %s21, 3
    %p206 = por %p204, %p205
    %p207 = scmp.ne.s32.totalorder %s199, %s202
    %p208 = scmp.eq.s32.totalorder %s21, 0
    %p209 = por %p207, %p208
    %p210 = scmp.ne.s32.totalorder %s199, %s202
    %p211 = scmp.eq.s32.totalorder %s26, 3
    %p212 = por %p210, %p211
    %p213 = scmp.ne.s32.totalorder %s202, %s203
    %p214 = scmp.eq.s32.totalorder %s26, 0
    %p215 = por %p213, %p214
    %p216 = scmp.ne.s32.totalorder %s202, %s203
    %p217 = scmp.eq.s32.totalorder %s27, 3
    %p218 = por %p216, %p217
    %p220 = scmp.ne.s32.totalorder %s203, %s219
    %p221 = scmp.eq.s32.totalorder %s27, 0
    %p222 = por %p220, %p221
    %s223 = ssub.s32 %s29, %s36
    %p224 = scmp.eq.s32.totalorder %s223, 0
    %s226 = sadd.s32 %s225, 1
    %s227 = scalar_select %p224, %s225, %s226
    %p230 = pneg %p224
    %p231 = scmp.eq.s32.totalorder %s21, 3
    %p232 = por %p230, %p231
    %p233 = scmp.ne.s32.totalorder %s225, %s228
    %p234 = scmp.eq.s32.totalorder %s21, 0
    %p235 = por %p233, %p234
    %p236 = scmp.ne.s32.totalorder %s225, %s228
    %p237 = scmp.eq.s32.totalorder %s26, 3
    %p238 = por %p236, %p237
    %p239 = scmp.ne.s32.totalorder %s228, %s229
    %p240 = scmp.eq.s32.totalorder %s26, 0
    %p241 = por %p239, %p240
    %p242 = scmp.ne.s32.totalorder %s228, %s229
    %p243 = scmp.eq.s32.totalorder %s27, 3
    %p244 = por %p242, %p243
    %p246 = scmp.ne.s32.totalorder %s229, %s245
    %p247 = scmp.eq.s32.totalorder %s27, 0
    %p248 = por %p246, %p247
    %s249 = ssub.s32 %s29, %s36
    %p250 = scmp.eq.s32.totalorder %s249, 0
    %s252 = sadd.s32 %s251, 1
    %s253 = scalar_select %p250, %s251, %s252
    %p256 = pneg %p250
    %p257 = scmp.eq.s32.totalorder %s21, 3
    %p258 = por %p256, %p257
    %p259 = scmp.ne.s32.totalorder %s251, %s254
    %p260 = scmp.eq.s32.totalorder %s21, 0
    %p261 = por %p259, %p260
    %p262 = scmp.ne.s32.totalorder %s251, %s254
    %p263 = scmp.eq.s32.totalorder %s26, 3
    %p264 = por %p262, %p263
    %p265 = scmp.ne.s32.totalorder %s254, %s255
    %p266 = scmp.eq.s32.totalorder %s26, 0
    %p267 = por %p265, %p266
    %p268 = scmp.ne.s32.totalorder %s254, %s255
    %p269 = scmp.eq.s32.totalorder %s27, 3
    %p270 = por %p268, %p269
    %p272 = scmp.ne.s32.totalorder %s255, %s271
    %p273 = scmp.eq.s32.totalorder %s27, 0
    %p274 = por %p272, %p273
    %s275 = ssub.s32 %s29, %s36
    %p276 = scmp.eq.s32.totalorder %s275, 0
    %s278 = sadd.s32 %s277, 1
    %s279 = scalar_select %p276, %s277, %s278
    %p282 = pneg %p276
    %p283 = scmp.eq.s32.totalorder %s21, 3
    %p284 = por %p282, %p283
    %p285 = scmp.ne.s32.totalorder %s277, %s280
    %p286 = scmp.eq.s32.totalorder %s21, 0
    %p287 = por %p285, %p286
    %p288 = scmp.ne.s32.totalorder %s277, %s280
    %p289 = scmp.eq.s32.totalorder %s26, 3
    %p290 = por %p288, %p289
    %p291 = scmp.ne.s32.totalorder %s280, %s281
    %p292 = scmp.eq.s32.totalorder %s26, 0
    %p293 = por %p291, %p292
    %p294 = scmp.ne.s32.totalorder %s280, %s281
    %p295 = scmp.eq.s32.totalorder %s27, 3
    %p296 = por %p294, %p295
    %p298 = scmp.ne.s32.totalorder %s281, %s297
    %p299 = scmp.eq.s32.totalorder %s27, 0
    %p300 = por %p298, %p299
    %s301 = ssub.s32 %s29, %s36
    %p302 = scmp.eq.s32.totalorder %s301, 0
    %s304 = sadd.s32 %s303, 1
    %s305 = scalar_select %p302, %s303, %s304
    %p308 = pneg %p302
    %p309 = scmp.eq.s32.totalorder %s21, 3
    %p310 = por %p308, %p309
    %p311 = scmp.ne.s32.totalorder %s303, %s306
    %p312 = scmp.eq.s32.totalorder %s21, 0
    %p313 = por %p311, %p312
    %p314 = scmp.ne.s32.totalorder %s303, %s306
    %p315 = scmp.eq.s32.totalorder %s26, 3
    %p316 = por %p314, %p315
    %p317 = scmp.ne.s32.totalorder %s306, %s307
    %p318 = scmp.eq.s32.totalorder %s26, 0
    %p319 = por %p317, %p318
    %p320 = scmp.ne.s32.totalorder %s306, %s307
    %p321 = scmp.eq.s32.totalorder %s27, 3
    %p322 = por %p320, %p321
    %p324 = scmp.ne.s32.totalorder %s307, %s323
    %p325 = scmp.eq.s32.totalorder %s27, 0
    %p326 = por %p324, %p325
    %s327 = ssub.s32 %s29, %s36
    %p328 = scmp.eq.s32.totalorder %s327, 0
    %s330 = sadd.s32 %s329, 1
    %s331 = scalar_select %p328, %s329, %s330
    %p334 = pneg %p328
    %p335 = scmp.eq.s32.totalorder %s21, 3
    %p336 = por %p334, %p335
    %p337 = scmp.ne.s32.totalorder %s329, %s332
    %p338 = scmp.eq.s32.totalorder %s21, 0
    %p339 = por %p337, %p338
    %p340 = scmp.ne.s32.totalorder %s329, %s332
    %p341 = scmp.eq.s32.totalorder %s26, 3
    %p342 = por %p340, %p341
    %p343 = scmp.ne.s32.totalorder %s332, %s333
    %p344 = scmp.eq.s32.totalorder %s26, 0
    %p345 = por %p343, %p344
    %p346 = scmp.ne.s32.totalorder %s332, %s333
    %p347 = scmp.eq.s32.totalorder %s27, 3
    %p348 = por %p346, %p347
    %p350 = scmp.ne.s32.totalorder %s333, %s349
    %p351 = scmp.eq.s32.totalorder %s27, 0
    %p352 = por %p350, %p351
    %s353 = ssub.s32 %s29, %s36
    %p354 = scmp.eq.s32.totalorder %s353, 0
    %s356 = sadd.s32 %s355, 1
    %s357 = scalar_select %p354, %s355, %s356
    %p360 = pneg %p354
    %p361 = scmp.eq.s32.totalorder %s21, 3
    %p362 = por %p360, %p361
    %p363 = scmp.ne.s32.totalorder %s355, %s358
    %p364 = scmp.eq.s32.totalorder %s21, 0
    %p365 = por %p363, %p364
    %p366 = scmp.ne.s32.totalorder %s355, %s358
    %p367 = scmp.eq.s32.totalorder %s26, 3
    %p368 = por %p366, %p367
    %p369 = scmp.ne.s32.totalorder %s358, %s359
    %p370 = scmp.eq.s32.totalorder %s26, 0
    %p371 = por %p369, %p370
    %p372 = scmp.ne.s32.totalorder %s358, %s359
    %p373 = scmp.eq.s32.totalorder %s27, 3
    %p374 = por %p372, %p373
    %p376 = scmp.ne.s32.totalorder %s359, %s375
    %p377 = scmp.eq.s32.totalorder %s27, 0
    %p378 = por %p376, %p377
    %s379 = ssub.s32 %s29, %s36
    %p380 = scmp.eq.s32.totalorder %s379, 0
    %s382 = sadd.s32 %s381, 1
    %s383 = scalar_select %p380, %s381, %s382
    %p386 = pneg %p380
    %p387 = scmp.eq.s32.totalorder %s21, 3
    %p388 = por %p386, %p387
    %p389 = scmp.ne.s32.totalorder %s381, %s384
    %p390 = scmp.eq.s32.totalorder %s21, 0
    %p391 = por %p389, %p390
    %p392 = scmp.ne.s32.totalorder %s381, %s384
    %p393 = scmp.eq.s32.totalorder %s26, 3
    %p394 = por %p392, %p393
    %p395 = scmp.ne.s32.totalorder %s384, %s385
    %p396 = scmp.eq.s32.totalorder %s26, 0
    %p397 = por %p395, %p396
    %p398 = scmp.ne.s32.totalorder %s384, %s385
    %p399 = scmp.eq.s32.totalorder %s27, 3
    %p400 = por %p398, %p399
    %p402 = scmp.ne.s32.totalorder %s385, %s401
    %p403 = scmp.eq.s32.totalorder %s27, 0
    %p404 = por %p402, %p403
    %s405 = ssub.s32 %s29, %s36
    %p406 = scmp.eq.s32.totalorder %s405, 0
    %s408 = sadd.s32 %s407, 1
    %s409 = scalar_select %p406, %s407, %s408
    %p412 = pneg %p406
    %p413 = scmp.eq.s32.totalorder %s21, 3
    %p414 = por %p412, %p413
    %p415 = scmp.ne.s32.totalorder %s407, %s410
    %p416 = scmp.eq.s32.totalorder %s21, 0
    %p417 = por %p415, %p416
    %p418 = scmp.ne.s32.totalorder %s407, %s410
    %p419 = scmp.eq.s32.totalorder %s26, 3
    %p420 = por %p418, %p419
    %p421 = scmp.ne.s32.totalorder %s410, %s411
    %p422 = scmp.eq.s32.totalorder %s26, 0
    %p423 = por %p421, %p422
    %p424 = scmp.ne.s32.totalorder %s410, %s411
    %p425 = scmp.eq.s32.totalorder %s27, 3
    %p426 = por %p424, %p425
    %p428 = scmp.ne.s32.totalorder %s411, %s427
    %p429 = scmp.eq.s32.totalorder %s27, 0
    %p430 = por %p428, %p429
    %s431 = ssub.s32 %s28, %s40
    %p432 = scmp.eq.s32.totalorder %s431, 0
    %s434 = sadd.s32 %s433, 1
    %s435 = scalar_select %p432, %s433, %s434
    %p438 = pneg %p432
    %p439 = scmp.eq.s32.totalorder %s21, 3
    %p440 = por %p438, %p439
    %p441 = scmp.ne.s32.totalorder %s433, %s436
    %p442 = scmp.eq.s32.totalorder %s21, 0
    %p443 = por %p441, %p442
    %p444 = scmp.ne.s32.totalorder %s433, %s436
    %p445 = scmp.eq.s32.totalorder %s26, 3
    %p446 = por %p444, %p445
    %p447 = scmp.ne.s32.totalorder %s436, %s437
    %p448 = scmp.eq.s32.totalorder %s26, 0
    %p449 = por %p447, %p448
    %p450 = scmp.ne.s32.totalorder %s436, %s437
    %p451 = scmp.eq.s32.totalorder %s27, 3
    %p452 = por %p450, %p451
    %p454 = scmp.ne.s32.totalorder %s437, %s453
    %p455 = scmp.eq.s32.totalorder %s27, 0
    %p456 = por %p454, %p455
    %p457 = scmp.le.s32.totalorder 1, %s21
    %p458 = scmp.lt.s32.totalorder %s21, 5
    %p459 = pnand %p457, %p458
    %p460 = pneg %p459
    // Predicated region
    $region9: #{encoder_decoder_forward.2} parent=5 // pred_check
      _
    $region10: #{encoder_decoder_forward.2} parent=5 // pred_check_branch
      %462 = sbr.rel (%p459) target = $region12
    $region11: #{encoder_decoder_forward.2} parent=5 // pred_region
      %s463 = ssub.s32 %s21, 1
    $region12: #{encoder_decoder_forward.2} parent=5 // pred_fallthru
      _
    %p464 = scmp.lt.s32.totalorder %s21, 4
    // Predicated region
    $region13: #{encoder_decoder_forward.2} parent=5 // pred_check
      %p465 = pneg %p464
    $region14: #{encoder_decoder_forward.2} parent=5 // pred_check_branch
      %467 = sbr.rel (%p465) target = $region16
    $region15: #{encoder_decoder_forward.2} parent=5 // pred_region
      // Predicated region
      $region17: #{encoder_decoder_forward.2} parent=15 // pred_check
        %p468 = pneg %p53
      $region18: #{encoder_decoder_forward.2} parent=15 // pred_check_branch
        %470 = sbr.rel (%p468) target = $region20
      $region19: #{encoder_decoder_forward.2} parent=15 // pred_region
        %p471 = scmp.lt.s32.totalorder %s28, 1
        %s472 = scalar_select %p471, %s28, 1
        %s473 = smul.addr %s472, 8
        %s474 = scalar_lea.vmem %s0, %s473
      $region20: #{encoder_decoder_forward.2} parent=15 // pred_fallthru
        _
      // Predicated region
      $region21: #{encoder_decoder_forward.2} parent=15 // pred_check
        %p475 = pneg %p79
      $region22: #{encoder_decoder_forward.2} parent=15 // pred_check_branch
        %477 = sbr.rel (%p475) target = $region24
      $region23: #{encoder_decoder_forward.2} parent=15 // pred_region
        %p478 = scmp.lt.s32.totalorder %s29, 1
        %s479 = scalar_select %p478, %s29, 1
        %s480 = smul.addr %s479, 4
        %s481 = smul.addr %s480, 4
        %s482 = scalar_lea.vmem %s1, %s481
      $region24: #{encoder_decoder_forward.2} parent=15 // pred_fallthru
        _
      // Predicated region
      $region25: #{encoder_decoder_forward.2} parent=15 // pred_check
        %p483 = pneg %p105
      $region26: #{encoder_decoder_forward.2} parent=15 // pred_check_branch
        %485 = sbr.rel (%p483) target = $region28
      $region27: #{encoder_decoder_forward.2} parent=15 // pred_region
        %p486 = scmp.lt.s32.totalorder %s29, 1
        %s487 = scalar_select %p486, %s29, 1
        %s488 = scalar_lea.vmem %s2, %s487
      $region28: #{encoder_decoder_forward.2} parent=15 // pred_fallthru
        _
      // Predicated region
      $region29: #{encoder_decoder_forward.2} parent=15 // pred_check
        %p489 = pneg %p131
      $region30: #{encoder_decoder_forward.2} parent=15 // pred_check_branch
        %491 = sbr.rel (%p489) target = $region32
      $region31: #{encoder_decoder_forward.2} parent=15 // pred_region
        %p492 = scmp.lt.s32.totalorder %s29, 1
        %s493 = scalar_select %p492, %s29, 1
        %s494 = smul.addr %s493, 4
        %s495 = smul.addr %s494, 4
        %s496 = scalar_lea.vmem %s3, %s495
      $region32: #{encoder_decoder_forward.2} parent=15 // pred_fallthru
        _
      // Predicated region
      $region33: #{encoder_decoder_forward.2} parent=15 // pred_check
        %p497 = pneg %p157
      $region34: #{encoder_decoder_forward.2} parent=15 // pred_check_branch
        %499 = sbr.rel (%p497) target = $region36
      $region35: #{encoder_decoder_forward.2} parent=15 // pred_region
        %p500 = scmp.lt.s32.totalorder %s29, 1
        %s501 = scalar_select %p500, %s29, 1
        %s502 = scalar_lea.vmem %s4, %s501
      $region36: #{encoder_decoder_forward.2} parent=15 // pred_fallthru
        _
      // Predicated region
      $region37: #{encoder_decoder_forward.2} parent=15 // pred_check
        %p503 = pneg %p183
      $region38: #{encoder_decoder_forward.2} parent=15 // pred_check_branch
        %505 = sbr.rel (%p503) target = $region40
      $region39: #{encoder_decoder_forward.2} parent=15 // pred_region
        %p506 = scmp.lt.s32.totalorder %s29, 1
        %s507 = scalar_select %p506, %s29, 1
        %s508 = smul.addr %s507, 4
        %s509 = smul.addr %s508, 4
        %s510 = scalar_lea.vmem %s5, %s509
      $region40: #{encoder_decoder_forward.2} parent=15 // pred_fallthru
        _
      // Predicated region
      $region41: #{encoder_decoder_forward.2} parent=15 // pred_check
        %p511 = pneg %p209
      $region42: #{encoder_decoder_forward.2} parent=15 // pred_check_branch
        %513 = sbr.rel (%p511) target = $region44
      $region43: #{encoder_decoder_forward.2} parent=15 // pred_region
        %p514 = scmp.lt.s32.totalorder %s29, 1
        %s515 = scalar_select %p514, %s29, 1
        %s516 = scalar_lea.vmem %s6, %s515
      $region44: #{encoder_decoder_forward.2} parent=15 // pred_fallthru
        _
      // Predicated region
      $region45: #{encoder_decoder_forward.2} parent=15 // pred_check
        %p517 = pneg %p235
      $region46: #{encoder_decoder_forward.2} parent=15 // pred_check_branch
        %519 = sbr.rel (%p517) target = $region48
      $region47: #{encoder_decoder_forward.2} parent=15 // pred_region
        %p520 = scmp.lt.s32.totalorder %s29, 1
        %s521 = scalar_select %p520, %s29, 1
        %s522 = scalar_lea.vmem %s7, %s521
      $region48: #{encoder_decoder_forward.2} parent=15 // pred_fallthru
        _
      // Predicated region
      $region49: #{encoder_decoder_forward.2} parent=15 // pred_check
        %p523 = pneg %p261
      $region50: #{encoder_decoder_forward.2} parent=15 // pred_check_branch
        %525 = sbr.rel (%p523) target = $region52
      $region51: #{encoder_decoder_forward.2} parent=15 // pred_region
        %p526 = scmp.lt.s32.totalorder %s29, 1
        %s527 = scalar_select %p526, %s29, 1
        %s528 = scalar_lea.vmem %s8, %s527
      $region52: #{encoder_decoder_forward.2} parent=15 // pred_fallthru
        _
      // Predicated region
      $region53: #{encoder_decoder_forward.2} parent=15 // pred_check
        %p529 = pneg %p287
      $region54: #{encoder_decoder_forward.2} parent=15 // pred_check_branch
        %531 = sbr.rel (%p529) target = $region56
      $region55: #{encoder_decoder_forward.2} parent=15 // pred_region
        %p532 = scmp.lt.s32.totalorder %s29, 1
        %s533 = scalar_select %p532, %s29, 1
        %s534 = smul.addr %s533, 64
        %s535 = smul.addr %s534, 4
        %s536 = scalar_lea.vmem %s9, %s535
      $region56: #{encoder_decoder_forward.2} parent=15 // pred_fallthru
        _
      // Predicated region
      $region57: #{encoder_decoder_forward.2} parent=15 // pred_check
        %p537 = pneg %p313
      $region58: #{encoder_decoder_forward.2} parent=15 // pred_check_branch
        %539 = sbr.rel (%p537) target = $region60
      $region59: #{encoder_decoder_forward.2} parent=15 // pred_region
        %p540 = scmp.lt.s32.totalorder %s29, 1
        %s541 = scalar_select %p540, %s29, 1
        %s542 = smul.addr %s541, 16
        %s543 = scalar_lea.vmem %s10, %s542
      $region60: #{encoder_decoder_forward.2} parent=15 // pred_fallthru
        _
      // Predicated region
      $region61: #{encoder_decoder_forward.2} parent=15 // pred_check
        %p544 = pneg %p339
      $region62: #{encoder_decoder_forward.2} parent=15 // pred_check_branch
        %546 = sbr.rel (%p544) target = $region64
      $region63: #{encoder_decoder_forward.2} parent=15 // pred_region
        %p547 = scmp.lt.s32.totalorder %s29, 1
        %s548 = scalar_select %p547, %s29, 1
        %s549 = smul.addr %s548, 256
        %s550 = smul.addr %s549, 4
        %s551 = scalar_lea.vmem %s11, %s550
      $region64: #{encoder_decoder_forward.2} parent=15 // pred_fallthru
        _
      // Predicated region
      $region65: #{encoder_decoder_forward.2} parent=15 // pred_check
        %p552 = pneg %p365
      $region66: #{encoder_decoder_forward.2} parent=15 // pred_check_branch
        %554 = sbr.rel (%p552) target = $region68
      $region67: #{encoder_decoder_forward.2} parent=15 // pred_region
        %p555 = scmp.lt.s32.totalorder %s29, 1
        %s556 = scalar_select %p555, %s29, 1
        %s557 = scalar_lea.vmem %s12, %s556
      $region68: #{encoder_decoder_forward.2} parent=15 // pred_fallthru
        _
      // Predicated region
      $region69: #{encoder_decoder_forward.2} parent=15 // pred_check
        %p558 = pneg %p391
      $region70: #{encoder_decoder_forward.2} parent=15 // pred_check_branch
        %560 = sbr.rel (%p558) target = $region72
      $region71: #{encoder_decoder_forward.2} parent=15 // pred_region
        %p561 = scmp.lt.s32.totalorder %s29, 1
        %s562 = scalar_select %p561, %s29, 1
        %s563 = scalar_lea.vmem %s13, %s562
      $region72: #{encoder_decoder_forward.2} parent=15 // pred_fallthru
        _
      // Predicated region
      $region73: #{encoder_decoder_forward.2} parent=15 // pred_check
        %p564 = pneg %p417
      $region74: #{encoder_decoder_forward.2} parent=15 // pred_check_branch
        %566 = sbr.rel (%p564) target = $region76
      $region75: #{encoder_decoder_forward.2} parent=15 // pred_region
        %p567 = scmp.lt.s32.totalorder %s29, 1
        %s568 = scalar_select %p567, %s29, 1
        %s569 = scalar_lea.vmem %s14, %s568
      $region76: #{encoder_decoder_forward.2} parent=15 // pred_fallthru
        _
    $region16: #{encoder_decoder_forward.2} parent=5 // pred_fallthru
      _
    %p570 = scmp.le.s32.totalorder 1, %s21
    %p571 = scmp.lt.s32.totalorder %s21, 5
    %p572 = pnand %p570, %p571
    %p573 = pneg %p572
    // Predicated region
    $region77: #{encoder_decoder_forward.2} parent=5 // pred_check
      _
    $region78: #{encoder_decoder_forward.2} parent=5 // pred_check_branch
      %575 = sbr.rel (%p572) target = $region80
    $region79: #{encoder_decoder_forward.2} parent=5 // pred_region
      %s576 = ssub.s32 %s21, 1
      %p577 = scmp.lt.s32.totalorder %s30, 1
      %s578 = scalar_select %p577, %s30, 1
      %s579 = smul.addr %s578, 8
      %s580 = scalar_lea.vmem %s0, %s579
      %p581 = pneg %p59
      %p582 = pneg %p56
      %p583 = scmp.lt.s32.totalorder %s31, 1
      %s584 = scalar_select %p583, %s31, 1
      %s585 = smul.addr %s584, 4
      %s586 = smul.addr %s585, 4
      %s587 = scalar_lea.vmem %s1, %s586
      %p588 = pneg %p85
      %p589 = pneg %p82
      %p590 = scmp.lt.s32.totalorder %s31, 1
      %s591 = scalar_select %p590, %s31, 1
      %s592 = scalar_lea.vmem %s2, %s591
      %p593 = pneg %p111
      %p594 = pneg %p108
      %p595 = scmp.lt.s32.totalorder %s31, 1
      %s596 = scalar_select %p595, %s31, 1
      %s597 = smul.addr %s596, 4
      %s598 = smul.addr %s597, 4
      %s599 = scalar_lea.vmem %s3, %s598
      %p600 = pneg %p137
      %p601 = pneg %p134
      %p602 = scmp.lt.s32.totalorder %s31, 1
      %s603 = scalar_select %p602, %s31, 1
      %s604 = scalar_lea.vmem %s4, %s603
      %p605 = pneg %p163
      %p606 = pneg %p160
      %p607 = scmp.lt.s32.totalorder %s31, 1
      %s608 = scalar_select %p607, %s31, 1
      %s609 = smul.addr %s608, 4
      %s610 = smul.addr %s609, 4
      %s611 = scalar_lea.vmem %s5, %s610
      %p612 = pneg %p189
      %p613 = pneg %p186
      %p614 = scmp.lt.s32.totalorder %s31, 1
      %s615 = scalar_select %p614, %s31, 1
      %s616 = scalar_lea.vmem %s6, %s615
      %p617 = pneg %p215
      %p618 = pneg %p212
      %p619 = scmp.lt.s32.totalorder %s31, 1
      %s620 = scalar_select %p619, %s31, 1
      %s621 = scalar_lea.vmem %s7, %s620
      %p622 = pneg %p241
      %p623 = pneg %p238
      %p624 = scmp.lt.s32.totalorder %s31, 1
      %s625 = scalar_select %p624, %s31, 1
      %s626 = scalar_lea.vmem %s8, %s625
      %p627 = pneg %p267
      %p628 = pneg %p264
      %p629 = scmp.lt.s32.totalorder %s31, 1
      %s630 = scalar_select %p629, %s31, 1
      %s631 = smul.addr %s630, 64
      %s632 = smul.addr %s631, 4
      %s633 = scalar_lea.vmem %s9, %s632
      %p634 = pneg %p293
      %p635 = pneg %p290
      %p636 = scmp.lt.s32.totalorder %s31, 1
      %s637 = scalar_select %p636, %s31, 1
      %s638 = smul.addr %s637, 16
      %s639 = scalar_lea.vmem %s10, %s638
      %p640 = pneg %p319
      %p641 = pneg %p316
      %p642 = scmp.lt.s32.totalorder %s31, 1
      %s643 = scalar_select %p642, %s31, 1
      %s644 = smul.addr %s643, 256
      %s645 = smul.addr %s644, 4
      %s646 = scalar_lea.vmem %s11, %s645
      %p647 = pneg %p345
      %p648 = pneg %p342
      %p649 = scmp.lt.s32.totalorder %s31, 1
      %s650 = scalar_select %p649, %s31, 1
      %s651 = scalar_lea.vmem %s12, %s650
      %p652 = pneg %p371
      %p653 = pneg %p368
      %p654 = scmp.lt.s32.totalorder %s31, 1
      %s655 = scalar_select %p654, %s31, 1
      %s656 = scalar_lea.vmem %s13, %s655
      %p657 = pneg %p397
      %p658 = pneg %p394
      %p659 = scmp.lt.s32.totalorder %s31, 1
      %s660 = scalar_select %p659, %s31, 1
      %s661 = scalar_lea.vmem %s14, %s660
      %p662 = pneg %p423
      %p663 = pneg %p420
      %p664 = pneg %p449
      %p665 = pneg %p446
      %p666 = scmp.lt.s32.totalorder %s30, 1
      %s667 = scalar_select %p666, %s30, 1
      %s668 = smul.addr %s667, 8
      %s669 = scalar_lea.vmem %s15, %s668
      %p670 = scmp.lt.s32.totalorder %s30, 1
      %s671 = scalar_select %p670, %s30, 1
      %s672 = smul.addr %s671, 8
      %s673 = scalar_lea.vmem %s0, %s672
      %p674 = scmp.lt.s32.totalorder %s31, 1
      %s675 = scalar_select %p674, %s31, 1
      %s676 = smul.addr %s675, 4
      %s677 = smul.addr %s676, 4
      %s678 = scalar_lea.vmem %s1, %s677
      %p679 = scmp.lt.s32.totalorder %s31, 1
      %s680 = scalar_select %p679, %s31, 1
      %s681 = scalar_lea.vmem %s2, %s680
      %p682 = scmp.lt.s32.totalorder %s31, 1
      %s683 = scalar_select %p682, %s31, 1
      %s684 = smul.addr %s683, 4
      %s685 = smul.addr %s684, 4
      %s686 = scalar_lea.vmem %s3, %s685
      %p687 = scmp.lt.s32.totalorder %s31, 1
      %s688 = scalar_select %p687, %s31, 1
      %s689 = scalar_lea.vmem %s4, %s688
      %p690 = scmp.lt.s32.totalorder %s31, 1
      %s691 = scalar_select %p690, %s31, 1
      %s692 = smul.addr %s691, 4
      %s693 = smul.addr %s692, 4
      %s694 = scalar_lea.vmem %s5, %s693
      %p695 = scmp.lt.s32.totalorder %s31, 1
      %s696 = scalar_select %p695, %s31, 1
      %s697 = scalar_lea.vmem %s6, %s696
      %p698 = scmp.lt.s32.totalorder %s31, 1
      %s699 = scalar_select %p698, %s31, 1
      %s700 = scalar_lea.vmem %s7, %s699
      %p701 = scmp.lt.s32.totalorder %s31, 1
      %s702 = scalar_select %p701, %s31, 1
      %s703 = scalar_lea.vmem %s8, %s702
      %p704 = scmp.lt.s32.totalorder %s31, 1
      %s705 = scalar_select %p704, %s31, 1
      %s706 = smul.addr %s705, 64
      %s707 = smul.addr %s706, 4
      %s708 = scalar_lea.vmem %s9, %s707
      %p709 = scmp.lt.s32.totalorder %s31, 1
      %s710 = scalar_select %p709, %s31, 1
      %s711 = smul.addr %s710, 16
      %s712 = scalar_lea.vmem %s10, %s711
      %p713 = scmp.lt.s32.totalorder %s31, 1
      %s714 = scalar_select %p713, %s31, 1
      %s715 = smul.addr %s714, 256
      %s716 = smul.addr %s715, 4
      %s717 = scalar_lea.vmem %s11, %s716
      %p718 = scmp.lt.s32.totalorder %s31, 1
      %s719 = scalar_select %p718, %s31, 1
      %s720 = scalar_lea.vmem %s12, %s719
      %p721 = scmp.lt.s32.totalorder %s31, 1
      %s722 = scalar_select %p721, %s31, 1
      %s723 = scalar_lea.vmem %s13, %s722
      %p724 = scmp.lt.s32.totalorder %s31, 1
      %s725 = scalar_select %p724, %s31, 1
      %s726 = scalar_lea.vmem %s14, %s725
      %p727 = scmp.lt.s32.totalorder %s30, 1
      %s728 = scalar_select %p727, %s30, 1
      %s729 = smul.addr %s728, 8
      %s730 = scalar_lea.vmem %s15, %s729
      %p732 = scmp.eq.s32.totalorder %s31, 0
      // Predicated region
      $region81: #{encoder_decoder_forward.2} parent=79 // pred_check
        %p733 = pneg %p732
      $region82: #{encoder_decoder_forward.2} parent=79 // pred_check_branch
        %735 = sbr.rel (%p733) target = $region84
      $region83: #{encoder_decoder_forward.2} parent=79 // pred_region
        %v736 = vld [vmem:[%s673] sm:$0xff]
        %vm737 = vcmask 261120
        %738 = vst.msk [vmem:[%s730] sm:$0xff] %vm737, %v736
      $region84: #{encoder_decoder_forward.2} parent=79 // pred_fallthru
        _
      %v739 = vld [vmem:[%s730] sm:$0xff]
      %v740 = vld [vmem:[%s678] sm:$0xf]
      %v741 = vld [vmem:[%s678 + $0x4] sm:$0xf]
      %v742 = vld [vmem:[%s678 + $0x8] sm:$0xf]
      %v743 = vld [vmem:[%s678 + $0xc] sm:$0xf]
      %v744 = vld [vmem:[%s681] sm:$0x1]
      %v745 = vld [vmem:[%s686] sm:$0xf]
      %v746 = vld [vmem:[%s686 + $0x4] sm:$0xf]
      %v747 = vld [vmem:[%s686 + $0x8] sm:$0xf]
      %v748 = vld [vmem:[%s686 + $0xc] sm:$0xf]
      %v749 = vld [vmem:[%s689] sm:$0x1]
      %v750 = vld [vmem:[%s694] sm:$0xf]
      %v751 = vld [vmem:[%s694 + $0x4] sm:$0xf]
      %v752 = vld [vmem:[%s694 + $0x8] sm:$0xf]
      %v753 = vld [vmem:[%s694 + $0xc] sm:$0xf]
      %v754 = vld [vmem:[%s697] sm:$0x1]
      %v755 = vpack.c.bf16 %v739, %v739
      %v757 = vperm.slane %v744, 0
      %v763 = vunpack.c.l.b16 %v740
      %v764 = vunpack.c.l.b16 %v741
      %v765 = vunpack.c.l.b16 %v742
      %v766 = vunpack.c.l.b16 %v743
      %v767 = vpack.c.b16 %v764, %v763
      %v768 = vpack.c.b16 %v766, %v765
      %vm771 = vcmask 261120
      %v773 = vsel %vm771, %v755, 0
      %775 = vmatpush.bf16.msra.mxu0 0
      %776 = vmatpush.bf16.msra.mxu0 0
      %777 = vmatpush.bf16.msra.mxu0 0
      %778 = vmatpush.bf16.msra.mxu0 0
      %779 = vmatpush.bf16.msra.mxu0 0
      %780 = vmatpush.bf16.msra.mxu0 0
      %781 = vmatpush.bf16.msra.mxu0 %v768
      %782 = vmatpush.bf16.msra.mxu0 %v767
      %783 = vmatmul.bf16.gmra.mxu0 %v773
      %v784 = vpop.f32.mrf.mxu0
      %v785 = vadd.f32 %v757, %v784
      %v786 = vpop.f32.mrf.mxu0
      %787 = vdwg.mxu0
      %v788 = vmul.f32 %v785, 0.35355338
      %v790 = vperm.slane %v749, 0
      %v796 = vunpack.c.l.b16 %v745
      %v797 = vunpack.c.l.b16 %v746
      %v798 = vunpack.c.l.b16 %v747
      %v799 = vunpack.c.l.b16 %v748
      %v800 = vpack.c.b16 %v797, %v796
      %v801 = vpack.c.b16 %v799, %v798
      %804 = vmatpush.bf16.msra.mxu0 0
      %805 = vmatpush.bf16.msra.mxu0 0
      %806 = vmatpush.bf16.msra.mxu0 0
      %807 = vmatpush.bf16.msra.mxu0 0
      %808 = vmatpush.bf16.msra.mxu0 0
      %809 = vmatpush.bf16.msra.mxu0 0
      %810 = vmatpush.bf16.msra.mxu0 %v801
      %811 = vmatpush.bf16.msra.mxu0 %v800
      %812 = vmatmul.bf16.gmra.mxu0 %v773
      %v813 = vpop.f32.mrf.mxu0
      %v814 = vadd.f32 %v790, %v813
      %v815 = vpop.f32.mrf.mxu0
      %816 = vdwg.mxu0
      %v817 = vpack.c.bf16 %v788, %v788
      %v818 = vpack.c.bf16 %v814, %v814
      %vm819 = vcmask 64512
      %v821 = vsel %vm819, %v817, 0
      %v824 = vsel %vm819, %v818, 0
      %826 = vmatpush.bf16.xpose.msra.mxu0 0
      %827 = vmatpush.bf16.xpose.msra.mxu0 0
      %828 = vmatpush.bf16.xpose.msra.mxu0 0
      %829 = vmatpush.bf16.xpose.msra.mxu0 0
      %830 = vmatpush.bf16.xpose.msra.mxu0 0
      %831 = vmatpush.bf16.xpose.msra.mxu0 0
      %832 = vmatpush.bf16.xpose.msra.mxu0 0
      %833 = vmatpush.bf16.xpose.msra.mxu0 %v824
      %834 = vmatmul.bf16.gmra.mxu0 %v821
      %v835 = vpop.f32.mrf.mxu0
      %v836 = vadd.f32 0.0, %v835
      %v837 = vpop.f32.mrf.mxu0
      %838 = vdwg.mxu0
      %v839 = vsel %vm819, %v836, -inf
      %840 = vmax.xlane.f32.xlu0 %v839
      %v841 = vpop.xlane.xlu0 %840
      %v842 = vsub.f32 %v836, %v841
      %v843 = vmul.f32 %v842, 1.442695
      %v844 = vpow.pop %v843
      %v845 = vsel %vm819, %v844, 0.0
      %846 = vadd.xlane.f32.xlu0 %v845
      %v847 = vpop.xlane.xlu0 %846
      %v848 = vrcp.pop %v847
      %v849 = vmul.f32 %v844, %v848
      %v850 = vpack.c.bf16 %v849, %v849
      %852 = vrot.lane.b32.xlu0 %v818, 96
      %v853 = vpop.permute.xlu0 %852
      %v855 = vsel %vm819, %v850, 0
      %vm857 = vcmask 1043456
      %v859 = vsel %vm857, %v853, 0
      %861 = vmatpush.bf16.msra.mxu0 0
      %862 = vmatpush.bf16.msra.mxu0 0
      %863 = vmatpush.bf16.msra.mxu0 0
      %864 = vmatpush.bf16.msra.mxu0 0
      %865 = vmatpush.bf16.msra.mxu0 0
      %866 = vmatpush.bf16.msra.mxu0 0
      %867 = vmatpush.bf16.msra.mxu0 0
      %868 = vmatpush.bf16.msra.mxu0 %v859
      %869 = vmatmul.bf16.gmra.mxu0 %v855
      %v870 = vpop.f32.mrf.mxu0
      %v871 = vadd.f32 0.0, %v870
      %v872 = vpop.f32.mrf.mxu0
      %873 = vdwg.mxu0
      %875 = vrot.lane.b32.xlu0 %v817, 120
      %v876 = vpop.permute.xlu0 %875
      %877 = vrot.lane.b32.xlu0 %v818, 120
      %v878 = vpop.permute.xlu0 %877
      %v880 = vsel %vm819, %v876, 0
      %v883 = vsel %vm819, %v878, 0
      %885 = vmatpush.bf16.xpose.msra.mxu0 0
      %886 = vmatpush.bf16.xpose.msra.mxu0 0
      %887 = vmatpush.bf16.xpose.msra.mxu0 0
      %888 = vmatpush.bf16.xpose.msra.mxu0 0
      %889 = vmatpush.bf16.xpose.msra.mxu0 0
      %890 = vmatpush.bf16.xpose.msra.mxu0 0
      %891 = vmatpush.bf16.xpose.msra.mxu0 0
      %892 = vmatpush.bf16.xpose.msra.mxu0 %v883
      %893 = vmatmul.bf16.gmra.mxu0 %v880
      %v894 = vpop.f32.mrf.mxu0
      %v895 = vadd.f32 0.0, %v894
      %v896 = vpop.f32.mrf.mxu0
      %897 = vdwg.mxu0
      %v898 = vsel %vm819, %v895, -inf
      %899 = vmax.xlane.f32.xlu0 %v898
      %v900 = vpop.xlane.xlu0 %899
      %v901 = vsub.f32 %v895, %v900
      %v902 = vmul.f32 %v901, 1.442695
      %v903 = vpow.pop %v902
      %v904 = vsel %vm819, %v903, 0.0
      %905 = vadd.xlane.f32.xlu0 %v904
      %v906 = vpop.xlane.xlu0 %905
      %v907 = vrcp.pop %v906
      %v908 = vmul.f32 %v903, %v907
      %v909 = vpack.c.bf16 %v908, %v908
      %910 = vrot.lane.b32.xlu0 %v818, 88
      %v911 = vpop.permute.xlu0 %910
      %v913 = vsel %vm819, %v909, 0
      %v916 = vsel %vm857, %v911, 0
      %918 = vmatpush.bf16.msra.mxu0 0
      %919 = vmatpush.bf16.msra.mxu0 0
      %920 = vmatpush.bf16.msra.mxu0 0
      %921 = vmatpush.bf16.msra.mxu0 0
      %922 = vmatpush.bf16.msra.mxu0 0
      %923 = vmatpush.bf16.msra.mxu0 0
      %924 = vmatpush.bf16.msra.mxu0 0
      %925 = vmatpush.bf16.msra.mxu0 %v916
      %926 = vmatmul.bf16.gmra.mxu0 %v913
      %v927 = vpop.f32.mrf.mxu0
      %v928 = vadd.f32 0.0, %v927
      %v929 = vpop.f32.mrf.mxu0
      %930 = vdwg.mxu0
      %931 = vrot.lane.b32.xlu0 %v817, 112
      %v932 = vpop.permute.xlu0 %931
      %933 = vrot.lane.b32.xlu0 %v818, 112
      %v934 = vpop.permute.xlu0 %933
      %v936 = vsel %vm819, %v932, 0
      %v939 = vsel %vm819, %v934, 0
      %941 = vmatpush.bf16.xpose.msra.mxu0 0
      %942 = vmatpush.bf16.xpose.msra.mxu0 0
      %943 = vmatpush.bf16.xpose.msra.mxu0 0
      %944 = vmatpush.bf16.xpose.msra.mxu0 0
      %945 = vmatpush.bf16.xpose.msra.mxu0 0
      %946 = vmatpush.bf16.xpose.msra.mxu0 0
      %947 = vmatpush.bf16.xpose.msra.mxu0 0
      %948 = vmatpush.bf16.xpose.msra.mxu0 %v939
      %949 = vmatmul.bf16.gmra.mxu0 %v936
      %v950 = vpop.f32.mrf.mxu0
      %v951 = vadd.f32 0.0, %v950
      %v952 = vpop.f32.mrf.mxu0
      %953 = vdwg.mxu0
      %v954 = vsel %vm819, %v951, -inf
      %955 = vmax.xlane.f32.xlu0 %v954
      %v956 = vpop.xlane.xlu0 %955
      %v957 = vsub.f32 %v951, %v956
      %v958 = vmul.f32 %v957, 1.442695
      %v959 = vpow.pop %v958
      %v960 = vsel %vm819, %v959, 0.0
      %961 = vadd.xlane.f32.xlu0 %v960
      %v962 = vpop.xlane.xlu0 %961
      %v963 = vrcp.pop %v962
      %v964 = vmul.f32 %v959, %v963
      %v965 = vpack.c.bf16 %v964, %v964
      %966 = vrot.lane.b32.xlu0 %v818, 80
      %v967 = vpop.permute.xlu0 %966
      %v969 = vsel %vm819, %v965, 0
      %v972 = vsel %vm857, %v967, 0
      %974 = vmatpush.bf16.msra.mxu0 0
      %975 = vmatpush.bf16.msra.mxu0 0
      %976 = vmatpush.bf16.msra.mxu0 0
      %977 = vmatpush.bf16.msra.mxu0 0
      %978 = vmatpush.bf16.msra.mxu0 0
      %979 = vmatpush.bf16.msra.mxu0 0
      %980 = vmatpush.bf16.msra.mxu0 0
      %981 = vmatpush.bf16.msra.mxu0 %v972
      %982 = vmatmul.bf16.gmra.mxu0 %v969
      %v983 = vpop.f32.mrf.mxu0
      %v984 = vadd.f32 0.0, %v983
      %v985 = vpop.f32.mrf.mxu0
      %986 = vdwg.mxu0
      %987 = vrot.lane.b32.xlu0 %v817, 104
      %v988 = vpop.permute.xlu0 %987
      %989 = vrot.lane.b32.xlu0 %v818, 104
      %v990 = vpop.permute.xlu0 %989
      %v992 = vsel %vm819, %v988, 0
      %v995 = vsel %vm819, %v990, 0
      %997 = vmatpush.bf16.xpose.msra.mxu0 0
      %998 = vmatpush.bf16.xpose.msra.mxu0 0
      %999 = vmatpush.bf16.xpose.msra.mxu0 0
      %1000 = vmatpush.bf16.xpose.msra.mxu0 0
      %1001 = vmatpush.bf16.xpose.msra.mxu0 0
      %1002 = vmatpush.bf16.xpose.msra.mxu0 0
      %1003 = vmatpush.bf16.xpose.msra.mxu0 0
      %1004 = vmatpush.bf16.xpose.msra.mxu0 %v995
      %1005 = vmatmul.bf16.gmra.mxu0 %v992
      %v1006 = vpop.f32.mrf.mxu0
      %v1007 = vadd.f32 0.0, %v1006
      %v1008 = vpop.f32.mrf.mxu0
      %1009 = vdwg.mxu0
      %v1010 = vsel %vm819, %v1007, -inf
      %1011 = vmax.xlane.f32.xlu0 %v1010
      %v1012 = vpop.xlane.xlu0 %1011
      %v1013 = vsub.f32 %v1007, %v1012
      %v1014 = vmul.f32 %v1013, 1.442695
      %v1015 = vpow.pop %v1014
      %v1016 = vsel %vm819, %v1015, 0.0
      %1017 = vadd.xlane.f32.xlu0 %v1016
      %v1018 = vpop.xlane.xlu0 %1017
      %v1019 = vrcp.pop %v1018
      %v1020 = vmul.f32 %v1015, %v1019
      %v1021 = vpack.c.bf16 %v1020, %v1020
      %1022 = vrot.lane.b32.xlu0 %v818, 72
      %v1023 = vpop.permute.xlu0 %1022
      %v1025 = vsel %vm819, %v1021, 0
      %v1028 = vsel %vm857, %v1023, 0
      %1030 = vmatpush.bf16.msra.mxu0 0
      %1031 = vmatpush.bf16.msra.mxu0 0
      %1032 = vmatpush.bf16.msra.mxu0 0
      %1033 = vmatpush.bf16.msra.mxu0 0
      %1034 = vmatpush.bf16.msra.mxu0 0
      %1035 = vmatpush.bf16.msra.mxu0 0
      %1036 = vmatpush.bf16.msra.mxu0 0
      %1037 = vmatpush.bf16.msra.mxu0 %v1028
      %1038 = vmatmul.bf16.gmra.mxu0 %v1025
      %v1039 = vpop.f32.mrf.mxu0
      %v1040 = vadd.f32 0.0, %v1039
      %v1041 = vpop.f32.mrf.mxu0
      %1042 = vdwg.mxu0
      %1044 = vrot.lane.b32.xlu0 %v928, 8
      %v1045 = vpop.permute.xlu0 %1044
      %1048 = vrot.lane.b32.xlu0 %v984, 16
      %v1049 = vpop.permute.xlu0 %1048
      %1052 = vrot.lane.b32.xlu0 %v1040, 24
      %v1053 = vpop.permute.xlu0 %1052
      %v1055 = vsel %vm819, %v871, %v1045
      %vm1056 = vcmask 130048
      %v1057 = vsel %vm1056, %v1055, %v1049
      %vm1058 = vcmask 195584
      %v1059 = vsel %vm1058, %v1057, %v1053
      %v1060 = vpack.c.bf16 %v1059, %v1059
      %v1062 = vperm.slane %v754, 0
      %v1068 = vunpack.c.l.b16 %v750
      %v1069 = vunpack.c.l.b16 %v751
      %v1070 = vunpack.c.l.b16 %v752
      %v1071 = vunpack.c.l.b16 %v753
      %v1072 = vpack.c.b16 %v1069, %v1068
      %v1073 = vpack.c.b16 %v1071, %v1070
      %v1077 = vsel %vm771, %v1060, 0
      %1079 = vmatpush.bf16.msra.mxu0 0
      %1080 = vmatpush.bf16.msra.mxu0 0
      %1081 = vmatpush.bf16.msra.mxu0 0
      %1082 = vmatpush.bf16.msra.mxu0 0
      %1083 = vmatpush.bf16.msra.mxu0 0
      %1084 = vmatpush.bf16.msra.mxu0 0
      %1085 = vmatpush.bf16.msra.mxu0 %v1073
      %1086 = vmatpush.bf16.msra.mxu0 %v1072
      %1087 = vmatmul.bf16.gmra.mxu0 %v1077
      %v1088 = vpop.f32.mrf.mxu0
      %v1089 = vadd.f32 %v1062, %v1088
      %v1090 = vpop.f32.mrf.mxu0
      %1091 = vdwg.mxu0
      %v1092 = vld [vmem:[%s700] sm:$0x1]
      %v1093 = vld [vmem:[%s703] sm:$0x1]
      %v1094 = vadd.f32 %v739, %v1089
      %v1095 = vsel %vm771, %v1094, 0.0
      %1096 = vadd.xlane.f32.xlu0 %v1095
      %v1097 = vpop.xlane.xlu0 %1096
      %v1098 = vrcp.pop 32.0
      %v1099 = vmul.f32 32.0, %v1098
      %v1100 = vsub.f32 1.0, %v1099
      %v1101 = vmul.f32 %v1098, %v1100
      %v1102 = vadd.f32 %v1098, %v1101
      %vm1103 = vweird.f32 %v1098
      %v1104 = vsel %vm1103, %v1098, %v1102
      %v1105 = vmul.f32 %v1097, %v1104
      %v1106 = vsub.f32 %v1094, %v1105
      %v1107 = vmul.f32 %v1106, %v1106
      %v1108 = vsel %vm771, %v1107, 0.0
      %1109 = vadd.xlane.f32.xlu0 %v1108
      %v1110 = vpop.xlane.xlu0 %1109
      %v1111 = vmul.f32 %v1110, 0.032258064
      %v1113 = vperm.slane %v1092, 0
      %v1115 = vmul.f32 %v1113, %v1106
      %v1116 = vrsqrt.pop %v1111
      %v1117 = vmul.f32 %v1116, %v1111
      %v1118 = vmul.f32 %v1117, %v1116
      %v1119 = vmul.f32 0.5, %v1118
      %v1120 = vsub.f32 1.5, %v1119
      %v1121 = vmul.f32 %v1116, %v1120
      %v1122 = vmul.f32 %v1111, %v1121
      %vm1123 = vcmp.eq.f32.partialorder %v1111, inf
      %v1124 = vsel %vm1123, %v1111, %v1122
      %vm1125 = vcmp.eq.f32.partialorder %v1111, 0.0
      %v1126 = vand.u32 %v1111, 2147483648
      %v1127 = vsel %vm1125, %v1126, %v1124
      %v1128 = vadd.f32 %v1127, 1e-06
      %v1129 = vrcp.pop %v1128
      %v1130 = vmul.f32 %v1128, %v1129
      %v1131 = vsub.f32 1.0, %v1130
      %v1132 = vmul.f32 %v1129, %v1131
      %v1133 = vadd.f32 %v1129, %v1132
      %vm1134 = vweird.f32 %v1128
      %vm1135 = vweird.f32 %v1129
      %vm1136 = vmor %vm1134, %vm1135
      %v1137 = vsel %vm1136, %v1129, %v1133
      %v1138 = vand.u32 2147483647, %v1128
      %vm1139 = vcmp.eq.f32.partialorder %v1138, 8.507059e+37
      %v1140 = vand.u32 %v1128, 2147483648
      %v1141 = vor.u32 1.1754944e-38, %v1140
      %v1142 = vsel %vm1139, %v1141, %v1137
      %v1143 = vmul.f32 %v1115, %v1142
      %v1145 = vperm.slane %v1093, 0
      %v1147 = vadd.f32 %v1143, %v1145
      %v1148 = vld [vmem:[%s708] sm:$0xff]
      %v1149 = vld [vmem:[%s708 + $0x8] sm:$0xff]
      %v1150 = vld [vmem:[%s708 + $0x10] sm:$0xff]
      %v1151 = vld [vmem:[%s708 + $0x18] sm:$0xff]
      %v1152 = vld [vmem:[%s708 + $0x20] sm:$0xff]
      %v1153 = vld [vmem:[%s708 + $0x28] sm:$0xff]
      %v1154 = vld [vmem:[%s708 + $0x30] sm:$0xff]
      %v1155 = vld [vmem:[%s708 + $0x38] sm:$0xff]
      %v1156 = vld [vmem:[%s708 + $0x40] sm:$0xff]
      %v1157 = vld [vmem:[%s708 + $0x48] sm:$0xff]
      %v1158 = vld [vmem:[%s708 + $0x50] sm:$0xff]
      %v1159 = vld [vmem:[%s708 + $0x58] sm:$0xff]
      %v1160 = vld [vmem:[%s708 + $0x60] sm:$0xff]
      %v1161 = vld [vmem:[%s708 + $0x68] sm:$0xff]
      %v1162 = vld [vmem:[%s708 + $0x70] sm:$0xff]
      %v1163 = vld [vmem:[%s708 + $0x78] sm:$0xff]
      %v1164 = vld [vmem:[%s708 + $0x80] sm:$0xff]
      %v1165 = vld [vmem:[%s708 + $0x88] sm:$0xff]
      %v1166 = vld [vmem:[%s708 + $0x90] sm:$0xff]
      %v1167 = vld [vmem:[%s708 + $0x98] sm:$0xff]
      %v1168 = vld [vmem:[%s708 + $0xa0] sm:$0xff]
      %v1169 = vld [vmem:[%s708 + $0xa8] sm:$0xff]
      %v1170 = vld [vmem:[%s708 + $0xb0] sm:$0xff]
      %v1171 = vld [vmem:[%s708 + $0xb8] sm:$0xff]
      %v1172 = vld [vmem:[%s708 + $0xc0] sm:$0xff]
      %v1173 = vld [vmem:[%s708 + $0xc8] sm:$0xff]
      %v1174 = vld [vmem:[%s708 + $0xd0] sm:$0xff]
      %v1175 = vld [vmem:[%s708 + $0xd8] sm:$0xff]
      %v1176 = vld [vmem:[%s708 + $0xe0] sm:$0xff]
      %v1177 = vld [vmem:[%s708 + $0xe8] sm:$0xff]
      %v1178 = vld [vmem:[%s708 + $0xf0] sm:$0xff]
      %v1179 = vld [vmem:[%s708 + $0xf8] sm:$0xff]
      %v1180 = vld [vmem:[%s712] sm:$0xff]
      %v1181 = vld [vmem:[%s712 + $0x8] sm:$0xff]
      %v1182 = vld [vmem:[%s717] sm:$0xf]
      %v1183 = vld [vmem:[%s717 + $0x4] sm:$0xf]
      %v1184 = vld [vmem:[%s717 + $0x8] sm:$0xf]
      %v1185 = vld [vmem:[%s717 + $0xc] sm:$0xf]
      %v1186 = vld [vmem:[%s717 + $0x10] sm:$0xf]
      %v1187 = vld [vmem:[%s717 + $0x14] sm:$0xf]
      %v1188 = vld [vmem:[%s717 + $0x18] sm:$0xf]
      %v1189 = vld [vmem:[%s717 + $0x1c] sm:$0xf]
      %v1190 = vld [vmem:[%s717 + $0x20] sm:$0xf]
      %v1191 = vld [vmem:[%s717 + $0x24] sm:$0xf]
      %v1192 = vld [vmem:[%s717 + $0x28] sm:$0xf]
      %v1193 = vld [vmem:[%s717 + $0x2c] sm:$0xf]
      %v1194 = vld [vmem:[%s717 + $0x30] sm:$0xf]
      %v1195 = vld [vmem:[%s717 + $0x34] sm:$0xf]
      %v1196 = vld [vmem:[%s717 + $0x38] sm:$0xf]
      %v1197 = vld [vmem:[%s717 + $0x3c] sm:$0xf]
      %v1198 = vld [vmem:[%s717 + $0x40] sm:$0xf]
      %v1199 = vld [vmem:[%s717 + $0x44] sm:$0xf]
      %v1200 = vld [vmem:[%s717 + $0x48] sm:$0xf]
      %v1201 = vld [vmem:[%s717 + $0x4c] sm:$0xf]
      %v1202 = vld [vmem:[%s717 + $0x50] sm:$0xf]
      %v1203 = vld [vmem:[%s717 + $0x54] sm:$0xf]
      %v1204 = vld [vmem:[%s717 + $0x58] sm:$0xf]
      %v1205 = vld [vmem:[%s717 + $0x5c] sm:$0xf]
      %v1206 = vld [vmem:[%s717 + $0x60] sm:$0xf]
      %v1207 = vld [vmem:[%s717 + $0x64] sm:$0xf]
      %v1208 = vld [vmem:[%s717 + $0x68] sm:$0xf]
      %v1209 = vld [vmem:[%s717 + $0x6c] sm:$0xf]
      %v1210 = vld [vmem:[%s717 + $0x70] sm:$0xf]
      %v1211 = vld [vmem:[%s717 + $0x74] sm:$0xf]
      %v1212 = vld [vmem:[%s717 + $0x78] sm:$0xf]
      %v1213 = vld [vmem:[%s717 + $0x7c] sm:$0xf]
      %v1214 = vld [vmem:[%s717 + $0x80] sm:$0xf]
      %v1215 = vld [vmem:[%s717 + $0x84] sm:$0xf]
      %v1216 = vld [vmem:[%s717 + $0x88] sm:$0xf]
      %v1217 = vld [vmem:[%s717 + $0x8c] sm:$0xf]
      %v1218 = vld [vmem:[%s717 + $0x90] sm:$0xf]
      %v1219 = vld [vmem:[%s717 + $0x94] sm:$0xf]
      %v1220 = vld [vmem:[%s717 + $0x98] sm:$0xf]
      %v1221 = vld [vmem:[%s717 + $0x9c] sm:$0xf]
      %v1222 = vld [vmem:[%s717 + $0xa0] sm:$0xf]
      %v1223 = vld [vmem:[%s717 + $0xa4] sm:$0xf]
      %v1224 = vld [vmem:[%s717 + $0xa8] sm:$0xf]
      %v1225 = vld [vmem:[%s717 + $0xac] sm:$0xf]
      %v1226 = vld [vmem:[%s717 + $0xb0] sm:$0xf]
      %v1227 = vld [vmem:[%s717 + $0xb4] sm:$0xf]
      %v1228 = vld [vmem:[%s717 + $0xb8] sm:$0xf]
      %v1229 = vld [vmem:[%s717 + $0xbc] sm:$0xf]
      %v1230 = vld [vmem:[%s717 + $0xc0] sm:$0xf]
      %v1231 = vld [vmem:[%s717 + $0xc4] sm:$0xf]
      %v1232 = vld [vmem:[%s717 + $0xc8] sm:$0xf]
      %v1233 = vld [vmem:[%s717 + $0xcc] sm:$0xf]
      %v1234 = vld [vmem:[%s717 + $0xd0] sm:$0xf]
      %v1235 = vld [vmem:[%s717 + $0xd4] sm:$0xf]
      %v1236 = vld [vmem:[%s717 + $0xd8] sm:$0xf]
      %v1237 = vld [vmem:[%s717 + $0xdc] sm:$0xf]
      %v1238 = vld [vmem:[%s717 + $0xe0] sm:$0xf]
      %v1239 = vld [vmem:[%s717 + $0xe4] sm:$0xf]
      %v1240 = vld [vmem:[%s717 + $0xe8] sm:$0xf]
      %v1241 = vld [vmem:[%s717 + $0xec] sm:$0xf]
      %v1242 = vld [vmem:[%s717 + $0xf0] sm:$0xf]
      %v1243 = vld [vmem:[%s717 + $0xf4] sm:$0xf]
      %v1244 = vld [vmem:[%s717 + $0xf8] sm:$0xf]
      %v1245 = vld [vmem:[%s717 + $0xfc] sm:$0xf]
      %v1246 = vld [vmem:[%s717 + $0x100] sm:$0xf]
      %v1247 = vld [vmem:[%s717 + $0x104] sm:$0xf]
      %v1248 = vld [vmem:[%s717 + $0x108] sm:$0xf]
      %v1249 = vld [vmem:[%s717 + $0x10c] sm:$0xf]
      %v1250 = vld [vmem:[%s717 + $0x110] sm:$0xf]
      %v1251 = vld [vmem:[%s717 + $0x114] sm:$0xf]
      %v1252 = vld [vmem:[%s717 + $0x118] sm:$0xf]
      %v1253 = vld [vmem:[%s717 + $0x11c] sm:$0xf]
      %v1254 = vld [vmem:[%s717 + $0x120] sm:$0xf]
      %v1255 = vld [vmem:[%s717 + $0x124] sm:$0xf]
      %v1256 = vld [vmem:[%s717 + $0x128] sm:$0xf]
      %v1257 = vld [vmem:[%s717 + $0x12c] sm:$0xf]
      %v1258 = vld [vmem:[%s717 + $0x130] sm:$0xf]
      %v1259 = vld [vmem:[%s717 + $0x134] sm:$0xf]
      %v1260 = vld [vmem:[%s717 + $0x138] sm:$0xf]
      %v1261 = vld [vmem:[%s717 + $0x13c] sm:$0xf]
      %v1262 = vld [vmem:[%s717 + $0x140] sm:$0xf]
      %v1263 = vld [vmem:[%s717 + $0x144] sm:$0xf]
      %v1264 = vld [vmem:[%s717 + $0x148] sm:$0xf]
      %v1265 = vld [vmem:[%s717 + $0x14c] sm:$0xf]
      %v1266 = vld [vmem:[%s717 + $0x150] sm:$0xf]
      %v1267 = vld [vmem:[%s717 + $0x154] sm:$0xf]
      %v1268 = vld [vmem:[%s717 + $0x158] sm:$0xf]
      %v1269 = vld [vmem:[%s717 + $0x15c] sm:$0xf]
      %v1270 = vld [vmem:[%s717 + $0x160] sm:$0xf]
      %v1271 = vld [vmem:[%s717 + $0x164] sm:$0xf]
      %v1272 = vld [vmem:[%s717 + $0x168] sm:$0xf]
      %v1273 = vld [vmem:[%s717 + $0x16c] sm:$0xf]
      %v1274 = vld [vmem:[%s717 + $0x170] sm:$0xf]
      %v1275 = vld [vmem:[%s717 + $0x174] sm:$0xf]
      %v1276 = vld [vmem:[%s717 + $0x178] sm:$0xf]
      %v1277 = vld [vmem:[%s717 + $0x17c] sm:$0xf]
      %v1278 = vld [vmem:[%s717 + $0x180] sm:$0xf]
      %v1279 = vld [vmem:[%s717 + $0x184] sm:$0xf]
      %v1280 = vld [vmem:[%s717 + $0x188] sm:$0xf]
      %v1281 = vld [vmem:[%s717 + $0x18c] sm:$0xf]
      %v1282 = vld [vmem:[%s717 + $0x190] sm:$0xf]
      %v1283 = vld [vmem:[%s717 + $0x194] sm:$0xf]
      %v1284 = vld [vmem:[%s717 + $0x198] sm:$0xf]
      %v1285 = vld [vmem:[%s717 + $0x19c] sm:$0xf]
      %v1286 = vld [vmem:[%s717 + $0x1a0] sm:$0xf]
      %v1287 = vld [vmem:[%s717 + $0x1a4] sm:$0xf]
      %v1288 = vld [vmem:[%s717 + $0x1a8] sm:$0xf]
      %v1289 = vld [vmem:[%s717 + $0x1ac] sm:$0xf]
      %v1290 = vld [vmem:[%s717 + $0x1b0] sm:$0xf]
      %v1291 = vld [vmem:[%s717 + $0x1b4] sm:$0xf]
      %v1292 = vld [vmem:[%s717 + $0x1b8] sm:$0xf]
      %v1293 = vld [vmem:[%s717 + $0x1bc] sm:$0xf]
      %v1294 = vld [vmem:[%s717 + $0x1c0] sm:$0xf]
      %v1295 = vld [vmem:[%s717 + $0x1c4] sm:$0xf]
      %v1296 = vld [vmem:[%s717 + $0x1c8] sm:$0xf]
      %v1297 = vld [vmem:[%s717 + $0x1cc] sm:$0xf]
      %v1298 = vld [vmem:[%s717 + $0x1d0] sm:$0xf]
      %v1299 = vld [vmem:[%s717 + $0x1d4] sm:$0xf]
      %v1300 = vld [vmem:[%s717 + $0x1d8] sm:$0xf]
      %v1301 = vld [vmem:[%s717 + $0x1dc] sm:$0xf]
      %v1302 = vld [vmem:[%s717 + $0x1e0] sm:$0xf]
      %v1303 = vld [vmem:[%s717 + $0x1e4] sm:$0xf]
      %v1304 = vld [vmem:[%s717 + $0x1e8] sm:$0xf]
      %v1305 = vld [vmem:[%s717 + $0x1ec] sm:$0xf]
      %v1306 = vld [vmem:[%s717 + $0x1f0] sm:$0xf]
      %v1307 = vld [vmem:[%s717 + $0x1f4] sm:$0xf]
      %v1308 = vld [vmem:[%s717 + $0x1f8] sm:$0xf]
      %v1309 = vld [vmem:[%s717 + $0x1fc] sm:$0xf]
      %v1310 = vld [vmem:[%s717 + $0x200] sm:$0xf]
      %v1311 = vld [vmem:[%s717 + $0x204] sm:$0xf]
      %v1312 = vld [vmem:[%s717 + $0x208] sm:$0xf]
      %v1313 = vld [vmem:[%s717 + $0x20c] sm:$0xf]
      %v1314 = vld [vmem:[%s717 + $0x210] sm:$0xf]
      %v1315 = vld [vmem:[%s717 + $0x214] sm:$0xf]
      %v1316 = vld [vmem:[%s717 + $0x218] sm:$0xf]
      %v1317 = vld [vmem:[%s717 + $0x21c] sm:$0xf]
      %v1318 = vld [vmem:[%s717 + $0x220] sm:$0xf]
      %v1319 = vld [vmem:[%s717 + $0x224] sm:$0xf]
      %v1320 = vld [vmem:[%s717 + $0x228] sm:$0xf]
      %v1321 = vld [vmem:[%s717 + $0x22c] sm:$0xf]
      %v1322 = vld [vmem:[%s717 + $0x230] sm:$0xf]
      %v1323 = vld [vmem:[%s717 + $0x234] sm:$0xf]
      %v1324 = vld [vmem:[%s717 + $0x238] sm:$0xf]
      %v1325 = vld [vmem:[%s717 + $0x23c] sm:$0xf]
      %v1326 = vld [vmem:[%s717 + $0x240] sm:$0xf]
      %v1327 = vld [vmem:[%s717 + $0x244] sm:$0xf]
      %v1328 = vld [vmem:[%s717 + $0x248] sm:$0xf]
      %v1329 = vld [vmem:[%s717 + $0x24c] sm:$0xf]
      %v1330 = vld [vmem:[%s717 + $0x250] sm:$0xf]
      %v1331 = vld [vmem:[%s717 + $0x254] sm:$0xf]
      %v1332 = vld [vmem:[%s717 + $0x258] sm:$0xf]
      %v1333 = vld [vmem:[%s717 + $0x25c] sm:$0xf]
      %v1334 = vld [vmem:[%s717 + $0x260] sm:$0xf]
      %v1335 = vld [vmem:[%s717 + $0x264] sm:$0xf]
      %v1336 = vld [vmem:[%s717 + $0x268] sm:$0xf]
      %v1337 = vld [vmem:[%s717 + $0x26c] sm:$0xf]
      %v1338 = vld [vmem:[%s717 + $0x270] sm:$0xf]
      %v1339 = vld [vmem:[%s717 + $0x274] sm:$0xf]
      %v1340 = vld [vmem:[%s717 + $0x278] sm:$0xf]
      %v1341 = vld [vmem:[%s717 + $0x27c] sm:$0xf]
      %v1342 = vld [vmem:[%s717 + $0x280] sm:$0xf]
      %v1343 = vld [vmem:[%s717 + $0x284] sm:$0xf]
      %v1344 = vld [vmem:[%s717 + $0x288] sm:$0xf]
      %v1345 = vld [vmem:[%s717 + $0x28c] sm:$0xf]
      %v1346 = vld [vmem:[%s717 + $0x290] sm:$0xf]
      %v1347 = vld [vmem:[%s717 + $0x294] sm:$0xf]
      %v1348 = vld [vmem:[%s717 + $0x298] sm:$0xf]
      %v1349 = vld [vmem:[%s717 + $0x29c] sm:$0xf]
      %v1350 = vld [vmem:[%s717 + $0x2a0] sm:$0xf]
      %v1351 = vld [vmem:[%s717 + $0x2a4] sm:$0xf]
      %v1352 = vld [vmem:[%s717 + $0x2a8] sm:$0xf]
      %v1353 = vld [vmem:[%s717 + $0x2ac] sm:$0xf]
      %v1354 = vld [vmem:[%s717 + $0x2b0] sm:$0xf]
      %v1355 = vld [vmem:[%s717 + $0x2b4] sm:$0xf]
      %v1356 = vld [vmem:[%s717 + $0x2b8] sm:$0xf]
      %v1357 = vld [vmem:[%s717 + $0x2bc] sm:$0xf]
      %v1358 = vld [vmem:[%s717 + $0x2c0] sm:$0xf]
      %v1359 = vld [vmem:[%s717 + $0x2c4] sm:$0xf]
      %v1360 = vld [vmem:[%s717 + $0x2c8] sm:$0xf]
      %v1361 = vld [vmem:[%s717 + $0x2cc] sm:$0xf]
      %v1362 = vld [vmem:[%s717 + $0x2d0] sm:$0xf]
      %v1363 = vld [vmem:[%s717 + $0x2d4] sm:$0xf]
      %v1364 = vld [vmem:[%s717 + $0x2d8] sm:$0xf]
      %v1365 = vld [vmem:[%s717 + $0x2dc] sm:$0xf]
      %v1366 = vld [vmem:[%s717 + $0x2e0] sm:$0xf]
      %v1367 = vld [vmem:[%s717 + $0x2e4] sm:$0xf]
      %v1368 = vld [vmem:[%s717 + $0x2e8] sm:$0xf]
      %v1369 = vld [vmem:[%s717 + $0x2ec] sm:$0xf]
      %v1370 = vld [vmem:[%s717 + $0x2f0] sm:$0xf]
      %v1371 = vld [vmem:[%s717 + $0x2f4] sm:$0xf]
      %v1372 = vld [vmem:[%s717 + $0x2f8] sm:$0xf]
      %v1373 = vld [vmem:[%s717 + $0x2fc] sm:$0xf]
      %v1374 = vld [vmem:[%s717 + $0x300] sm:$0xf]
      %v1375 = vld [vmem:[%s717 + $0x304] sm:$0xf]
      %v1376 = vld [vmem:[%s717 + $0x308] sm:$0xf]
      %v1377 = vld [vmem:[%s717 + $0x30c] sm:$0xf]
      %v1378 = vld [vmem:[%s717 + $0x310] sm:$0xf]
      %v1379 = vld [vmem:[%s717 + $0x314] sm:$0xf]
      %v1380 = vld [vmem:[%s717 + $0x318] sm:$0xf]
      %v1381 = vld [vmem:[%s717 + $0x31c] sm:$0xf]
      %v1382 = vld [vmem:[%s717 + $0x320] sm:$0xf]
      %v1383 = vld [vmem:[%s717 + $0x324] sm:$0xf]
      %v1384 = vld [vmem:[%s717 + $0x328] sm:$0xf]
      %v1385 = vld [vmem:[%s717 + $0x32c] sm:$0xf]
      %v1386 = vld [vmem:[%s717 + $0x330] sm:$0xf]
      %v1387 = vld [vmem:[%s717 + $0x334] sm:$0xf]
      %v1388 = vld [vmem:[%s717 + $0x338] sm:$0xf]
      %v1389 = vld [vmem:[%s717 + $0x33c] sm:$0xf]
      %v1390 = vld [vmem:[%s717 + $0x340] sm:$0xf]
      %v1391 = vld [vmem:[%s717 + $0x344] sm:$0xf]
      %v1392 = vld [vmem:[%s717 + $0x348] sm:$0xf]
      %v1393 = vld [vmem:[%s717 + $0x34c] sm:$0xf]
      %v1394 = vld [vmem:[%s717 + $0x350] sm:$0xf]
      %v1395 = vld [vmem:[%s717 + $0x354] sm:$0xf]
      %v1396 = vld [vmem:[%s717 + $0x358] sm:$0xf]
      %v1397 = vld [vmem:[%s717 + $0x35c] sm:$0xf]
      %v1398 = vld [vmem:[%s717 + $0x360] sm:$0xf]
      %v1399 = vld [vmem:[%s717 + $0x364] sm:$0xf]
      %v1400 = vld [vmem:[%s717 + $0x368] sm:$0xf]
      %v1401 = vld [vmem:[%s717 + $0x36c] sm:$0xf]
      %v1402 = vld [vmem:[%s717 + $0x370] sm:$0xf]
      %v1403 = vld [vmem:[%s717 + $0x374] sm:$0xf]
      %v1404 = vld [vmem:[%s717 + $0x378] sm:$0xf]
      %v1405 = vld [vmem:[%s717 + $0x37c] sm:$0xf]
      %v1406 = vld [vmem:[%s717 + $0x380] sm:$0xf]
      %v1407 = vld [vmem:[%s717 + $0x384] sm:$0xf]
      %v1408 = vld [vmem:[%s717 + $0x388] sm:$0xf]
      %v1409 = vld [vmem:[%s717 + $0x38c] sm:$0xf]
      %v1410 = vld [vmem:[%s717 + $0x390] sm:$0xf]
      %v1411 = vld [vmem:[%s717 + $0x394] sm:$0xf]
      %v1412 = vld [vmem:[%s717 + $0x398] sm:$0xf]
      %v1413 = vld [vmem:[%s717 + $0x39c] sm:$0xf]
      %v1414 = vld [vmem:[%s717 + $0x3a0] sm:$0xf]
      %v1415 = vld [vmem:[%s717 + $0x3a4] sm:$0xf]
      %v1416 = vld [vmem:[%s717 + $0x3a8] sm:$0xf]
      %v1417 = vld [vmem:[%s717 + $0x3ac] sm:$0xf]
      %v1418 = vld [vmem:[%s717 + $0x3b0] sm:$0xf]
      %v1419 = vld [vmem:[%s717 + $0x3b4] sm:$0xf]
      %v1420 = vld [vmem:[%s717 + $0x3b8] sm:$0xf]
      %v1421 = vld [vmem:[%s717 + $0x3bc] sm:$0xf]
      %v1422 = vld [vmem:[%s717 + $0x3c0] sm:$0xf]
      %v1423 = vld [vmem:[%s717 + $0x3c4] sm:$0xf]
      %v1424 = vld [vmem:[%s717 + $0x3c8] sm:$0xf]
      %v1425 = vld [vmem:[%s717 + $0x3cc] sm:$0xf]
      %v1426 = vld [vmem:[%s717 + $0x3d0] sm:$0xf]
      %v1427 = vld [vmem:[%s717 + $0x3d4] sm:$0xf]
      %v1428 = vld [vmem:[%s717 + $0x3d8] sm:$0xf]
      %v1429 = vld [vmem:[%s717 + $0x3dc] sm:$0xf]
      %v1430 = vld [vmem:[%s717 + $0x3e0] sm:$0xf]
      %v1431 = vld [vmem:[%s717 + $0x3e4] sm:$0xf]
      %v1432 = vld [vmem:[%s717 + $0x3e8] sm:$0xf]
      %v1433 = vld [vmem:[%s717 + $0x3ec] sm:$0xf]
      %v1434 = vld [vmem:[%s717 + $0x3f0] sm:$0xf]
      %v1435 = vld [vmem:[%s717 + $0x3f4] sm:$0xf]
      %v1436 = vld [vmem:[%s717 + $0x3f8] sm:$0xf]
      %v1437 = vld [vmem:[%s717 + $0x3fc] sm:$0xf]
      %v1438 = vld [vmem:[%s720] sm:$0x1]
      %v1439 = vpack.c.bf16 %v1147, %v1147
      %v1442 = vperm.slane %v1180, 0
      %v1443 = vperm.slane %v1180, 1
      %v1444 = vperm.slane %v1180, 2
      %v1445 = vperm.slane %v1180, 3
      %v1446 = vperm.slane %v1180, 4
      %v1447 = vperm.slane %v1180, 5
      %v1448 = vperm.slane %v1180, 6
      %v1449 = vperm.slane %v1180, 7
      %v1450 = vperm.slane %v1181, 0
      %v1451 = vperm.slane %v1181, 1
      %v1452 = vperm.slane %v1181, 2
      %v1453 = vperm.slane %v1181, 3
      %v1454 = vperm.slane %v1181, 4
      %v1455 = vperm.slane %v1181, 5
      %v1456 = vperm.slane %v1181, 6
      %v1457 = vperm.slane %v1181, 7
      %v1506 = vunpack.c.l.b16 %v1148
      %v1507 = vunpack.c.h.b16 %v1148
      %v1508 = vunpack.c.l.b16 %v1149
      %v1509 = vunpack.c.h.b16 %v1149
      %v1510 = vunpack.c.l.b16 %v1150
      %v1511 = vunpack.c.h.b16 %v1150
      %v1512 = vunpack.c.l.b16 %v1151
      %v1513 = vunpack.c.h.b16 %v1151
      %v1514 = vunpack.c.l.b16 %v1152
      %v1515 = vunpack.c.h.b16 %v1152
      %v1516 = vunpack.c.l.b16 %v1153
      %v1517 = vunpack.c.h.b16 %v1153
      %v1518 = vunpack.c.l.b16 %v1154
      %v1519 = vunpack.c.h.b16 %v1154
      %v1520 = vunpack.c.l.b16 %v1155
      %v1521 = vunpack.c.h.b16 %v1155
      %v1522 = vunpack.c.l.b16 %v1156
      %v1523 = vunpack.c.h.b16 %v1156
      %v1524 = vunpack.c.l.b16 %v1157
      %v1525 = vunpack.c.h.b16 %v1157
      %v1526 = vunpack.c.l.b16 %v1158
      %v1527 = vunpack.c.h.b16 %v1158
      %v1528 = vunpack.c.l.b16 %v1159
      %v1529 = vunpack.c.h.b16 %v1159
      %v1530 = vunpack.c.l.b16 %v1160
      %v1531 = vunpack.c.h.b16 %v1160
      %v1532 = vunpack.c.l.b16 %v1161
      %v1533 = vunpack.c.h.b16 %v1161
      %v1534 = vunpack.c.l.b16 %v1162
      %v1535 = vunpack.c.h.b16 %v1162
      %v1536 = vunpack.c.l.b16 %v1163
      %v1537 = vunpack.c.h.b16 %v1163
      %v1538 = vunpack.c.l.b16 %v1164
      %v1539 = vunpack.c.h.b16 %v1164
      %v1540 = vunpack.c.l.b16 %v1165
      %v1541 = vunpack.c.h.b16 %v1165
      %v1542 = vunpack.c.l.b16 %v1166
      %v1543 = vunpack.c.h.b16 %v1166
      %v1544 = vunpack.c.l.b16 %v1167
      %v1545 = vunpack.c.h.b16 %v1167
      %v1546 = vunpack.c.l.b16 %v1168
      %v1547 = vunpack.c.h.b16 %v1168
      %v1548 = vunpack.c.l.b16 %v1169
      %v1549 = vunpack.c.h.b16 %v1169
      %v1550 = vunpack.c.l.b16 %v1170
      %v1551 = vunpack.c.h.b16 %v1170
      %v1552 = vunpack.c.l.b16 %v1171
      %v1553 = vunpack.c.h.b16 %v1171
      %v1554 = vunpack.c.l.b16 %v1172
      %v1555 = vunpack.c.h.b16 %v1172
      %v1556 = vunpack.c.l.b16 %v1173
      %v1557 = vunpack.c.h.b16 %v1173
      %v1558 = vunpack.c.l.b16 %v1174
      %v1559 = vunpack.c.h.b16 %v1174
      %v1560 = vunpack.c.l.b16 %v1175
      %v1561 = vunpack.c.h.b16 %v1175
      %v1562 = vunpack.c.l.b16 %v1176
      %v1563 = vunpack.c.h.b16 %v1176
      %v1564 = vunpack.c.l.b16 %v1177
      %v1565 = vunpack.c.h.b16 %v1177
      %v1566 = vunpack.c.l.b16 %v1178
      %v1567 = vunpack.c.h.b16 %v1178
      %v1568 = vunpack.c.l.b16 %v1179
      %v1569 = vunpack.c.h.b16 %v1179
      %v1570 = vpack.c.b16 %v1522, %v1506
      %v1571 = vpack.c.b16 %v1523, %v1507
      %v1572 = vpack.c.b16 %v1524, %v1508
      %v1573 = vpack.c.b16 %v1525, %v1509
      %v1574 = vpack.c.b16 %v1526, %v1510
      %v1575 = vpack.c.b16 %v1527, %v1511
      %v1576 = vpack.c.b16 %v1528, %v1512
      %v1577 = vpack.c.b16 %v1529, %v1513
      %v1578 = vpack.c.b16 %v1530, %v1514
      %v1579 = vpack.c.b16 %v1531, %v1515
      %v1580 = vpack.c.b16 %v1532, %v1516
      %v1581 = vpack.c.b16 %v1533, %v1517
      %v1582 = vpack.c.b16 %v1534, %v1518
      %v1583 = vpack.c.b16 %v1535, %v1519
      %v1584 = vpack.c.b16 %v1536, %v1520
      %v1585 = vpack.c.b16 %v1537, %v1521
      %v1586 = vpack.c.b16 %v1554, %v1538
      %v1587 = vpack.c.b16 %v1555, %v1539
      %v1588 = vpack.c.b16 %v1556, %v1540
      %v1589 = vpack.c.b16 %v1557, %v1541
      %v1590 = vpack.c.b16 %v1558, %v1542
      %v1591 = vpack.c.b16 %v1559, %v1543
      %v1592 = vpack.c.b16 %v1560, %v1544
      %v1593 = vpack.c.b16 %v1561, %v1545
      %v1594 = vpack.c.b16 %v1562, %v1546
      %v1595 = vpack.c.b16 %v1563, %v1547
      %v1596 = vpack.c.b16 %v1564, %v1548
      %v1597 = vpack.c.b16 %v1565, %v1549
      %v1598 = vpack.c.b16 %v1566, %v1550
      %v1599 = vpack.c.b16 %v1567, %v1551
      %v1600 = vpack.c.b16 %v1568, %v1552
      %v1601 = vpack.c.b16 %v1569, %v1553
      %v1635 = vsel %vm771, %v1439, 0
      %1637 = vmatpush.bf16.msra.mxu0 0
      %1638 = vmatpush.bf16.msra.mxu0 0
      %1639 = vmatpush.bf16.msra.mxu0 0
      %1640 = vmatpush.bf16.msra.mxu0 0
      %1641 = vmatpush.bf16.msra.mxu0 0
      %1642 = vmatpush.bf16.msra.mxu0 0
      %1643 = vmatpush.bf16.msra.mxu0 %v1586
      %1644 = vmatpush.bf16.msra.mxu0 %v1570
      %1645 = vmatmul.bf16.gmra.mxu0 %v1635
      %v1646 = vpop.f32.mrf.mxu0
      %v1647 = vadd.f32 %v1442, %v1646
      %v1648 = vpop.f32.mrf.mxu0
      %1649 = vdwg.mxu0
      %1650 = vmatpush.bf16.msra.mxu0 0
      %1651 = vmatpush.bf16.msra.mxu0 0
      %1652 = vmatpush.bf16.msra.mxu0 0
      %1653 = vmatpush.bf16.msra.mxu0 0
      %1654 = vmatpush.bf16.msra.mxu0 0
      %1655 = vmatpush.bf16.msra.mxu0 0
      %1656 = vmatpush.bf16.msra.mxu0 %v1587
      %1657 = vmatpush.bf16.msra.mxu0 %v1571
      %1658 = vmatmul.bf16.gmra.mxu0 %v1635
      %v1659 = vpop.f32.mrf.mxu0
      %v1660 = vadd.f32 %v1443, %v1659
      %v1661 = vpop.f32.mrf.mxu0
      %1662 = vdwg.mxu0
      %1663 = vmatpush.bf16.msra.mxu0 0
      %1664 = vmatpush.bf16.msra.mxu0 0
      %1665 = vmatpush.bf16.msra.mxu0 0
      %1666 = vmatpush.bf16.msra.mxu0 0
      %1667 = vmatpush.bf16.msra.mxu0 0
      %1668 = vmatpush.bf16.msra.mxu0 0
      %1669 = vmatpush.bf16.msra.mxu0 %v1588
      %1670 = vmatpush.bf16.msra.mxu0 %v1572
      %1671 = vmatmul.bf16.gmra.mxu0 %v1635
      %v1672 = vpop.f32.mrf.mxu0
      %v1673 = vadd.f32 %v1444, %v1672
      %v1674 = vpop.f32.mrf.mxu0
      %1675 = vdwg.mxu0
      %1676 = vmatpush.bf16.msra.mxu0 0
      %1677 = vmatpush.bf16.msra.mxu0 0
      %1678 = vmatpush.bf16.msra.mxu0 0
      %1679 = vmatpush.bf16.msra.mxu0 0
      %1680 = vmatpush.bf16.msra.mxu0 0
      %1681 = vmatpush.bf16.msra.mxu0 0
      %1682 = vmatpush.bf16.msra.mxu0 %v1589
      %1683 = vmatpush.bf16.msra.mxu0 %v1573
      %1684 = vmatmul.bf16.gmra.mxu0 %v1635
      %v1685 = vpop.f32.mrf.mxu0
      %v1686 = vadd.f32 %v1445, %v1685
      %v1687 = vpop.f32.mrf.mxu0
      %1688 = vdwg.mxu0
      %1689 = vmatpush.bf16.msra.mxu0 0
      %1690 = vmatpush.bf16.msra.mxu0 0
      %1691 = vmatpush.bf16.msra.mxu0 0
      %1692 = vmatpush.bf16.msra.mxu0 0
      %1693 = vmatpush.bf16.msra.mxu0 0
      %1694 = vmatpush.bf16.msra.mxu0 0
      %1695 = vmatpush.bf16.msra.mxu0 %v1590
      %1696 = vmatpush.bf16.msra.mxu0 %v1574
      %1697 = vmatmul.bf16.gmra.mxu0 %v1635
      %v1698 = vpop.f32.mrf.mxu0
      %v1699 = vadd.f32 %v1446, %v1698
      %v1700 = vpop.f32.mrf.mxu0
      %1701 = vdwg.mxu0
      %1702 = vmatpush.bf16.msra.mxu0 0
      %1703 = vmatpush.bf16.msra.mxu0 0
      %1704 = vmatpush.bf16.msra.mxu0 0
      %1705 = vmatpush.bf16.msra.mxu0 0
      %1706 = vmatpush.bf16.msra.mxu0 0
      %1707 = vmatpush.bf16.msra.mxu0 0
      %1708 = vmatpush.bf16.msra.mxu0 %v1591
      %1709 = vmatpush.bf16.msra.mxu0 %v1575
      %1710 = vmatmul.bf16.gmra.mxu0 %v1635
      %v1711 = vpop.f32.mrf.mxu0
      %v1712 = vadd.f32 %v1447, %v1711
      %v1713 = vpop.f32.mrf.mxu0
      %1714 = vdwg.mxu0
      %1715 = vmatpush.bf16.msra.mxu0 0
      %1716 = vmatpush.bf16.msra.mxu0 0
      %1717 = vmatpush.bf16.msra.mxu0 0
      %1718 = vmatpush.bf16.msra.mxu0 0
      %1719 = vmatpush.bf16.msra.mxu0 0
      %1720 = vmatpush.bf16.msra.mxu0 0
      %1721 = vmatpush.bf16.msra.mxu0 %v1592
      %1722 = vmatpush.bf16.msra.mxu0 %v1576
      %1723 = vmatmul.bf16.gmra.mxu0 %v1635
      %v1724 = vpop.f32.mrf.mxu0
      %v1725 = vadd.f32 %v1448, %v1724
      %v1726 = vpop.f32.mrf.mxu0
      %1727 = vdwg.mxu0
      %1728 = vmatpush.bf16.msra.mxu0 0
      %1729 = vmatpush.bf16.msra.mxu0 0
      %1730 = vmatpush.bf16.msra.mxu0 0
      %1731 = vmatpush.bf16.msra.mxu0 0
      %1732 = vmatpush.bf16.msra.mxu0 0
      %1733 = vmatpush.bf16.msra.mxu0 0
      %1734 = vmatpush.bf16.msra.mxu0 %v1593
      %1735 = vmatpush.bf16.msra.mxu0 %v1577
      %1736 = vmatmul.bf16.gmra.mxu0 %v1635
      %v1737 = vpop.f32.mrf.mxu0
      %v1738 = vadd.f32 %v1449, %v1737
      %v1739 = vpop.f32.mrf.mxu0
      %1740 = vdwg.mxu0
      %1741 = vmatpush.bf16.msra.mxu0 0
      %1742 = vmatpush.bf16.msra.mxu0 0
      %1743 = vmatpush.bf16.msra.mxu0 0
      %1744 = vmatpush.bf16.msra.mxu0 0
      %1745 = vmatpush.bf16.msra.mxu0 0
      %1746 = vmatpush.bf16.msra.mxu0 0
      %1747 = vmatpush.bf16.msra.mxu0 %v1594
      %1748 = vmatpush.bf16.msra.mxu0 %v1578
      %1749 = vmatmul.bf16.gmra.mxu0 %v1635
      %v1750 = vpop.f32.mrf.mxu0
      %v1751 = vadd.f32 %v1450, %v1750
      %v1752 = vpop.f32.mrf.mxu0
      %1753 = vdwg.mxu0
      %1754 = vmatpush.bf16.msra.mxu0 0
      %1755 = vmatpush.bf16.msra.mxu0 0
      %1756 = vmatpush.bf16.msra.mxu0 0
      %1757 = vmatpush.bf16.msra.mxu0 0
      %1758 = vmatpush.bf16.msra.mxu0 0
      %1759 = vmatpush.bf16.msra.mxu0 0
      %1760 = vmatpush.bf16.msra.mxu0 %v1595
      %1761 = vmatpush.bf16.msra.mxu0 %v1579
      %1762 = vmatmul.bf16.gmra.mxu0 %v1635
      %v1763 = vpop.f32.mrf.mxu0
      %v1764 = vadd.f32 %v1451, %v1763
      %v1765 = vpop.f32.mrf.mxu0
      %1766 = vdwg.mxu0
      %1767 = vmatpush.bf16.msra.mxu0 0
      %1768 = vmatpush.bf16.msra.mxu0 0
      %1769 = vmatpush.bf16.msra.mxu0 0
      %1770 = vmatpush.bf16.msra.mxu0 0
      %1771 = vmatpush.bf16.msra.mxu0 0
      %1772 = vmatpush.bf16.msra.mxu0 0
      %1773 = vmatpush.bf16.msra.mxu0 %v1596
      %1774 = vmatpush.bf16.msra.mxu0 %v1580
      %1775 = vmatmul.bf16.gmra.mxu0 %v1635
      %v1776 = vpop.f32.mrf.mxu0
      %v1777 = vadd.f32 %v1452, %v1776
      %v1778 = vpop.f32.mrf.mxu0
      %1779 = vdwg.mxu0
      %1780 = vmatpush.bf16.msra.mxu0 0
      %1781 = vmatpush.bf16.msra.mxu0 0
      %1782 = vmatpush.bf16.msra.mxu0 0
      %1783 = vmatpush.bf16.msra.mxu0 0
      %1784 = vmatpush.bf16.msra.mxu0 0
      %1785 = vmatpush.bf16.msra.mxu0 0
      %1786 = vmatpush.bf16.msra.mxu0 %v1597
      %1787 = vmatpush.bf16.msra.mxu0 %v1581
      %1788 = vmatmul.bf16.gmra.mxu0 %v1635
      %v1789 = vpop.f32.mrf.mxu0
      %v1790 = vadd.f32 %v1453, %v1789
      %v1791 = vpop.f32.mrf.mxu0
      %1792 = vdwg.mxu0
      %1793 = vmatpush.bf16.msra.mxu0 0
      %1794 = vmatpush.bf16.msra.mxu0 0
      %1795 = vmatpush.bf16.msra.mxu0 0
      %1796 = vmatpush.bf16.msra.mxu0 0
      %1797 = vmatpush.bf16.msra.mxu0 0
      %1798 = vmatpush.bf16.msra.mxu0 0
      %1799 = vmatpush.bf16.msra.mxu0 %v1598
      %1800 = vmatpush.bf16.msra.mxu0 %v1582
      %1801 = vmatmul.bf16.gmra.mxu0 %v1635
      %v1802 = vpop.f32.mrf.mxu0
      %v1803 = vadd.f32 %v1454, %v1802
      %v1804 = vpop.f32.mrf.mxu0
      %1805 = vdwg.mxu0
      %1806 = vmatpush.bf16.msra.mxu0 0
      %1807 = vmatpush.bf16.msra.mxu0 0
      %1808 = vmatpush.bf16.msra.mxu0 0
      %1809 = vmatpush.bf16.msra.mxu0 0
      %1810 = vmatpush.bf16.msra.mxu0 0
      %1811 = vmatpush.bf16.msra.mxu0 0
      %1812 = vmatpush.bf16.msra.mxu0 %v1599
      %1813 = vmatpush.bf16.msra.mxu0 %v1583
      %1814 = vmatmul.bf16.gmra.mxu0 %v1635
      %v1815 = vpop.f32.mrf.mxu0
      %v1816 = vadd.f32 %v1455, %v1815
      %v1817 = vpop.f32.mrf.mxu0
      %1818 = vdwg.mxu0
      %1819 = vmatpush.bf16.msra.mxu0 0
      %1820 = vmatpush.bf16.msra.mxu0 0
      %1821 = vmatpush.bf16.msra.mxu0 0
      %1822 = vmatpush.bf16.msra.mxu0 0
      %1823 = vmatpush.bf16.msra.mxu0 0
      %1824 = vmatpush.bf16.msra.mxu0 0
      %1825 = vmatpush.bf16.msra.mxu0 %v1600
      %1826 = vmatpush.bf16.msra.mxu0 %v1584
      %1827 = vmatmul.bf16.gmra.mxu0 %v1635
      %v1828 = vpop.f32.mrf.mxu0
      %v1829 = vadd.f32 %v1456, %v1828
      %v1830 = vpop.f32.mrf.mxu0
      %1831 = vdwg.mxu0
      %1832 = vmatpush.bf16.msra.mxu0 0
      %1833 = vmatpush.bf16.msra.mxu0 0
      %1834 = vmatpush.bf16.msra.mxu0 0
      %1835 = vmatpush.bf16.msra.mxu0 0
      %1836 = vmatpush.bf16.msra.mxu0 0
      %1837 = vmatpush.bf16.msra.mxu0 0
      %1838 = vmatpush.bf16.msra.mxu0 %v1601
      %1839 = vmatpush.bf16.msra.mxu0 %v1585
      %1840 = vmatmul.bf16.gmra.mxu0 %v1635
      %v1841 = vpop.f32.mrf.mxu0
      %v1842 = vadd.f32 %v1457, %v1841
      %v1843 = vpop.f32.mrf.mxu0
      %1844 = vdwg.mxu0
      %v1845 = vmax.f32 %v1647, 0.0
      %v1846 = vmax.f32 %v1660, 0.0
      %v1847 = vmax.f32 %v1673, 0.0
      %v1848 = vmax.f32 %v1686, 0.0
      %v1849 = vmax.f32 %v1699, 0.0
      %v1850 = vmax.f32 %v1712, 0.0
      %v1851 = vmax.f32 %v1725, 0.0
      %v1852 = vmax.f32 %v1738, 0.0
      %v1853 = vmax.f32 %v1751, 0.0
      %v1854 = vmax.f32 %v1764, 0.0
      %v1855 = vmax.f32 %v1777, 0.0
      %v1856 = vmax.f32 %v1790, 0.0
      %v1857 = vmax.f32 %v1803, 0.0
      %v1858 = vmax.f32 %v1816, 0.0
      %v1859 = vmax.f32 %v1829, 0.0
      %v1860 = vmax.f32 %v1842, 0.0
      %v1861 = vpack.c.bf16 %v1845, %v1845
      %v1862 = vpack.c.bf16 %v1846, %v1846
      %v1863 = vpack.c.bf16 %v1847, %v1847
      %v1864 = vpack.c.bf16 %v1848, %v1848
      %v1865 = vpack.c.bf16 %v1849, %v1849
      %v1866 = vpack.c.bf16 %v1850, %v1850
      %v1867 = vpack.c.bf16 %v1851, %v1851
      %v1868 = vpack.c.bf16 %v1852, %v1852
      %v1869 = vpack.c.bf16 %v1853, %v1853
      %v1870 = vpack.c.bf16 %v1854, %v1854
      %v1871 = vpack.c.bf16 %v1855, %v1855
      %v1872 = vpack.c.bf16 %v1856, %v1856
      %v1873 = vpack.c.bf16 %v1857, %v1857
      %v1874 = vpack.c.bf16 %v1858, %v1858
      %v1875 = vpack.c.bf16 %v1859, %v1859
      %v1876 = vpack.c.bf16 %v1860, %v1860
      %v1878 = vperm.slane %v1438, 0
      %v2136 = vunpack.c.l.b16 %v1182
      %v2137 = vunpack.c.l.b16 %v1183
      %v2138 = vunpack.c.l.b16 %v1184
      %v2139 = vunpack.c.l.b16 %v1185
      %v2140 = vunpack.c.l.b16 %v1186
      %v2141 = vunpack.c.l.b16 %v1187
      %v2142 = vunpack.c.l.b16 %v1188
      %v2143 = vunpack.c.l.b16 %v1189
      %v2144 = vunpack.c.l.b16 %v1190
      %v2145 = vunpack.c.l.b16 %v1191
      %v2146 = vunpack.c.l.b16 %v1192
      %v2147 = vunpack.c.l.b16 %v1193
      %v2148 = vunpack.c.l.b16 %v1194
      %v2149 = vunpack.c.l.b16 %v1195
      %v2150 = vunpack.c.l.b16 %v1196
      %v2151 = vunpack.c.l.b16 %v1197
      %v2152 = vunpack.c.l.b16 %v1198
      %v2153 = vunpack.c.l.b16 %v1199
      %v2154 = vunpack.c.l.b16 %v1200
      %v2155 = vunpack.c.l.b16 %v1201
      %v2156 = vunpack.c.l.b16 %v1202
      %v2157 = vunpack.c.l.b16 %v1203
      %v2158 = vunpack.c.l.b16 %v1204
      %v2159 = vunpack.c.l.b16 %v1205
      %v2160 = vunpack.c.l.b16 %v1206
      %v2161 = vunpack.c.l.b16 %v1207
      %v2162 = vunpack.c.l.b16 %v1208
      %v2163 = vunpack.c.l.b16 %v1209
      %v2164 = vunpack.c.l.b16 %v1210
      %v2165 = vunpack.c.l.b16 %v1211
      %v2166 = vunpack.c.l.b16 %v1212
      %v2167 = vunpack.c.l.b16 %v1213
      %v2168 = vunpack.c.l.b16 %v1214
      %v2169 = vunpack.c.l.b16 %v1215
      %v2170 = vunpack.c.l.b16 %v1216
      %v2171 = vunpack.c.l.b16 %v1217
      %v2172 = vunpack.c.l.b16 %v1218
      %v2173 = vunpack.c.l.b16 %v1219
      %v2174 = vunpack.c.l.b16 %v1220
      %v2175 = vunpack.c.l.b16 %v1221
      %v2176 = vunpack.c.l.b16 %v1222
      %v2177 = vunpack.c.l.b16 %v1223
      %v2178 = vunpack.c.l.b16 %v1224
      %v2179 = vunpack.c.l.b16 %v1225
      %v2180 = vunpack.c.l.b16 %v1226
      %v2181 = vunpack.c.l.b16 %v1227
      %v2182 = vunpack.c.l.b16 %v1228
      %v2183 = vunpack.c.l.b16 %v1229
      %v2184 = vunpack.c.l.b16 %v1230
      %v2185 = vunpack.c.l.b16 %v1231
      %v2186 = vunpack.c.l.b16 %v1232
      %v2187 = vunpack.c.l.b16 %v1233
      %v2188 = vunpack.c.l.b16 %v1234
      %v2189 = vunpack.c.l.b16 %v1235
      %v2190 = vunpack.c.l.b16 %v1236
      %v2191 = vunpack.c.l.b16 %v1237
      %v2192 = vunpack.c.l.b16 %v1238
      %v2193 = vunpack.c.l.b16 %v1239
      %v2194 = vunpack.c.l.b16 %v1240
      %v2195 = vunpack.c.l.b16 %v1241
      %v2196 = vunpack.c.l.b16 %v1242
      %v2197 = vunpack.c.l.b16 %v1243
      %v2198 = vunpack.c.l.b16 %v1244
      %v2199 = vunpack.c.l.b16 %v1245
      %v2200 = vunpack.c.l.b16 %v1246
      %v2201 = vunpack.c.l.b16 %v1247
      %v2202 = vunpack.c.l.b16 %v1248
      %v2203 = vunpack.c.l.b16 %v1249
      %v2204 = vunpack.c.l.b16 %v1250
      %v2205 = vunpack.c.l.b16 %v1251
      %v2206 = vunpack.c.l.b16 %v1252
      %v2207 = vunpack.c.l.b16 %v1253
      %v2208 = vunpack.c.l.b16 %v1254
      %v2209 = vunpack.c.l.b16 %v1255
      %v2210 = vunpack.c.l.b16 %v1256
      %v2211 = vunpack.c.l.b16 %v1257
      %v2212 = vunpack.c.l.b16 %v1258
      %v2213 = vunpack.c.l.b16 %v1259
      %v2214 = vunpack.c.l.b16 %v1260
      %v2215 = vunpack.c.l.b16 %v1261
      %v2216 = vunpack.c.l.b16 %v1262
      %v2217 = vunpack.c.l.b16 %v1263
      %v2218 = vunpack.c.l.b16 %v1264
      %v2219 = vunpack.c.l.b16 %v1265
      %v2220 = vunpack.c.l.b16 %v1266
      %v2221 = vunpack.c.l.b16 %v1267
      %v2222 = vunpack.c.l.b16 %v1268
      %v2223 = vunpack.c.l.b16 %v1269
      %v2224 = vunpack.c.l.b16 %v1270
      %v2225 = vunpack.c.l.b16 %v1271
      %v2226 = vunpack.c.l.b16 %v1272
      %v2227 = vunpack.c.l.b16 %v1273
      %v2228 = vunpack.c.l.b16 %v1274
      %v2229 = vunpack.c.l.b16 %v1275
      %v2230 = vunpack.c.l.b16 %v1276
      %v2231 = vunpack.c.l.b16 %v1277
      %v2232 = vunpack.c.l.b16 %v1278
      %v2233 = vunpack.c.l.b16 %v1279
      %v2234 = vunpack.c.l.b16 %v1280
      %v2235 = vunpack.c.l.b16 %v1281
      %v2236 = vunpack.c.l.b16 %v1282
      %v2237 = vunpack.c.l.b16 %v1283
      %v2238 = vunpack.c.l.b16 %v1284
      %v2239 = vunpack.c.l.b16 %v1285
      %v2240 = vunpack.c.l.b16 %v1286
      %v2241 = vunpack.c.l.b16 %v1287
      %v2242 = vunpack.c.l.b16 %v1288
      %v2243 = vunpack.c.l.b16 %v1289
      %v2244 = vunpack.c.l.b16 %v1290
      %v2245 = vunpack.c.l.b16 %v1291
      %v2246 = vunpack.c.l.b16 %v1292
      %v2247 = vunpack.c.l.b16 %v1293
      %v2248 = vunpack.c.l.b16 %v1294
      %v2249 = vunpack.c.l.b16 %v1295
      %v2250 = vunpack.c.l.b16 %v1296
      %v2251 = vunpack.c.l.b16 %v1297
      %v2252 = vunpack.c.l.b16 %v1298
      %v2253 = vunpack.c.l.b16 %v1299
      %v2254 = vunpack.c.l.b16 %v1300
      %v2255 = vunpack.c.l.b16 %v1301
      %v2256 = vunpack.c.l.b16 %v1302
      %v2257 = vunpack.c.l.b16 %v1303
      %v2258 = vunpack.c.l.b16 %v1304
      %v2259 = vunpack.c.l.b16 %v1305
      %v2260 = vunpack.c.l.b16 %v1306
      %v2261 = vunpack.c.l.b16 %v1307
      %v2262 = vunpack.c.l.b16 %v1308
      %v2263 = vunpack.c.l.b16 %v1309
      %v2264 = vunpack.c.l.b16 %v1310
      %v2265 = vunpack.c.l.b16 %v1311
      %v2266 = vunpack.c.l.b16 %v1312
      %v2267 = vunpack.c.l.b16 %v1313
      %v2268 = vunpack.c.l.b16 %v1314
      %v2269 = vunpack.c.l.b16 %v1315
      %v2270 = vunpack.c.l.b16 %v1316
      %v2271 = vunpack.c.l.b16 %v1317
      %v2272 = vunpack.c.l.b16 %v1318
      %v2273 = vunpack.c.l.b16 %v1319
      %v2274 = vunpack.c.l.b16 %v1320
      %v2275 = vunpack.c.l.b16 %v1321
      %v2276 = vunpack.c.l.b16 %v1322
      %v2277 = vunpack.c.l.b16 %v1323
      %v2278 = vunpack.c.l.b16 %v1324
      %v2279 = vunpack.c.l.b16 %v1325
      %v2280 = vunpack.c.l.b16 %v1326
      %v2281 = vunpack.c.l.b16 %v1327
      %v2282 = vunpack.c.l.b16 %v1328
      %v2283 = vunpack.c.l.b16 %v1329
      %v2284 = vunpack.c.l.b16 %v1330
      %v2285 = vunpack.c.l.b16 %v1331
      %v2286 = vunpack.c.l.b16 %v1332
      %v2287 = vunpack.c.l.b16 %v1333
      %v2288 = vunpack.c.l.b16 %v1334
      %v2289 = vunpack.c.l.b16 %v1335
      %v2290 = vunpack.c.l.b16 %v1336
      %v2291 = vunpack.c.l.b16 %v1337
      %v2292 = vunpack.c.l.b16 %v1338
      %v2293 = vunpack.c.l.b16 %v1339
      %v2294 = vunpack.c.l.b16 %v1340
      %v2295 = vunpack.c.l.b16 %v1341
      %v2296 = vunpack.c.l.b16 %v1342
      %v2297 = vunpack.c.l.b16 %v1343
      %v2298 = vunpack.c.l.b16 %v1344
      %v2299 = vunpack.c.l.b16 %v1345
      %v2300 = vunpack.c.l.b16 %v1346
      %v2301 = vunpack.c.l.b16 %v1347
      %v2302 = vunpack.c.l.b16 %v1348
      %v2303 = vunpack.c.l.b16 %v1349
      %v2304 = vunpack.c.l.b16 %v1350
      %v2305 = vunpack.c.l.b16 %v1351
      %v2306 = vunpack.c.l.b16 %v1352
      %v2307 = vunpack.c.l.b16 %v1353
      %v2308 = vunpack.c.l.b16 %v1354
      %v2309 = vunpack.c.l.b16 %v1355
      %v2310 = vunpack.c.l.b16 %v1356
      %v2311 = vunpack.c.l.b16 %v1357
      %v2312 = vunpack.c.l.b16 %v1358
      %v2313 = vunpack.c.l.b16 %v1359
      %v2314 = vunpack.c.l.b16 %v1360
      %v2315 = vunpack.c.l.b16 %v1361
      %v2316 = vunpack.c.l.b16 %v1362
      %v2317 = vunpack.c.l.b16 %v1363
      %v2318 = vunpack.c.l.b16 %v1364
      %v2319 = vunpack.c.l.b16 %v1365
      %v2320 = vunpack.c.l.b16 %v1366
      %v2321 = vunpack.c.l.b16 %v1367
      %v2322 = vunpack.c.l.b16 %v1368
      %v2323 = vunpack.c.l.b16 %v1369
      %v2324 = vunpack.c.l.b16 %v1370
      %v2325 = vunpack.c.l.b16 %v1371
      %v2326 = vunpack.c.l.b16 %v1372
      %v2327 = vunpack.c.l.b16 %v1373
      %v2328 = vunpack.c.l.b16 %v1374
      %v2329 = vunpack.c.l.b16 %v1375
      %v2330 = vunpack.c.l.b16 %v1376
      %v2331 = vunpack.c.l.b16 %v1377
      %v2332 = vunpack.c.l.b16 %v1378
      %v2333 = vunpack.c.l.b16 %v1379
      %v2334 = vunpack.c.l.b16 %v1380
      %v2335 = vunpack.c.l.b16 %v1381
      %v2336 = vunpack.c.l.b16 %v1382
      %v2337 = vunpack.c.l.b16 %v1383
      %v2338 = vunpack.c.l.b16 %v1384
      %v2339 = vunpack.c.l.b16 %v1385
      %v2340 = vunpack.c.l.b16 %v1386
      %v2341 = vunpack.c.l.b16 %v1387
      %v2342 = vunpack.c.l.b16 %v1388
      %v2343 = vunpack.c.l.b16 %v1389
      %v2344 = vunpack.c.l.b16 %v1390
      %v2345 = vunpack.c.l.b16 %v1391
      %v2346 = vunpack.c.l.b16 %v1392
      %v2347 = vunpack.c.l.b16 %v1393
      %v2348 = vunpack.c.l.b16 %v1394
      %v2349 = vunpack.c.l.b16 %v1395
      %v2350 = vunpack.c.l.b16 %v1396
      %v2351 = vunpack.c.l.b16 %v1397
      %v2352 = vunpack.c.l.b16 %v1398
      %v2353 = vunpack.c.l.b16 %v1399
      %v2354 = vunpack.c.l.b16 %v1400
      %v2355 = vunpack.c.l.b16 %v1401
      %v2356 = vunpack.c.l.b16 %v1402
      %v2357 = vunpack.c.l.b16 %v1403
      %v2358 = vunpack.c.l.b16 %v1404
      %v2359 = vunpack.c.l.b16 %v1405
      %v2360 = vunpack.c.l.b16 %v1406
      %v2361 = vunpack.c.l.b16 %v1407
      %v2362 = vunpack.c.l.b16 %v1408
      %v2363 = vunpack.c.l.b16 %v1409
      %v2364 = vunpack.c.l.b16 %v1410
      %v2365 = vunpack.c.l.b16 %v1411
      %v2366 = vunpack.c.l.b16 %v1412
      %v2367 = vunpack.c.l.b16 %v1413
      %v2368 = vunpack.c.l.b16 %v1414
      %v2369 = vunpack.c.l.b16 %v1415
      %v2370 = vunpack.c.l.b16 %v1416
      %v2371 = vunpack.c.l.b16 %v1417
      %v2372 = vunpack.c.l.b16 %v1418
      %v2373 = vunpack.c.l.b16 %v1419
      %v2374 = vunpack.c.l.b16 %v1420
      %v2375 = vunpack.c.l.b16 %v1421
      %v2376 = vunpack.c.l.b16 %v1422
      %v2377 = vunpack.c.l.b16 %v1423
      %v2378 = vunpack.c.l.b16 %v1424
      %v2379 = vunpack.c.l.b16 %v1425
      %v2380 = vunpack.c.l.b16 %v1426
      %v2381 = vunpack.c.l.b16 %v1427
      %v2382 = vunpack.c.l.b16 %v1428
      %v2383 = vunpack.c.l.b16 %v1429
      %v2384 = vunpack.c.l.b16 %v1430
      %v2385 = vunpack.c.l.b16 %v1431
      %v2386 = vunpack.c.l.b16 %v1432
      %v2387 = vunpack.c.l.b16 %v1433
      %v2388 = vunpack.c.l.b16 %v1434
      %v2389 = vunpack.c.l.b16 %v1435
      %v2390 = vunpack.c.l.b16 %v1436
      %v2391 = vunpack.c.l.b16 %v1437
      %v2392 = vpack.c.b16 %v2137, %v2136
      %v2393 = vpack.c.b16 %v2139, %v2138
      %v2394 = vpack.c.b16 %v2141, %v2140
      %v2395 = vpack.c.b16 %v2143, %v2142
      %v2396 = vpack.c.b16 %v2145, %v2144
      %v2397 = vpack.c.b16 %v2147, %v2146
      %v2398 = vpack.c.b16 %v2149, %v2148
      %v2399 = vpack.c.b16 %v2151, %v2150
      %v2400 = vpack.c.b16 %v2153, %v2152
      %v2401 = vpack.c.b16 %v2155, %v2154
      %v2402 = vpack.c.b16 %v2157, %v2156
      %v2403 = vpack.c.b16 %v2159, %v2158
      %v2404 = vpack.c.b16 %v2161, %v2160
      %v2405 = vpack.c.b16 %v2163, %v2162
      %v2406 = vpack.c.b16 %v2165, %v2164
      %v2407 = vpack.c.b16 %v2167, %v2166
      %v2408 = vpack.c.b16 %v2169, %v2168
      %v2409 = vpack.c.b16 %v2171, %v2170
      %v2410 = vpack.c.b16 %v2173, %v2172
      %v2411 = vpack.c.b16 %v2175, %v2174
      %v2412 = vpack.c.b16 %v2177, %v2176
      %v2413 = vpack.c.b16 %v2179, %v2178
      %v2414 = vpack.c.b16 %v2181, %v2180
      %v2415 = vpack.c.b16 %v2183, %v2182
      %v2416 = vpack.c.b16 %v2185, %v2184
      %v2417 = vpack.c.b16 %v2187, %v2186
      %v2418 = vpack.c.b16 %v2189, %v2188
      %v2419 = vpack.c.b16 %v2191, %v2190
      %v2420 = vpack.c.b16 %v2193, %v2192
      %v2421 = vpack.c.b16 %v2195, %v2194
      %v2422 = vpack.c.b16 %v2197, %v2196
      %v2423 = vpack.c.b16 %v2199, %v2198
      %v2424 = vpack.c.b16 %v2201, %v2200
      %v2425 = vpack.c.b16 %v2203, %v2202
      %v2426 = vpack.c.b16 %v2205, %v2204
      %v2427 = vpack.c.b16 %v2207, %v2206
      %v2428 = vpack.c.b16 %v2209, %v2208
      %v2429 = vpack.c.b16 %v2211, %v2210
      %v2430 = vpack.c.b16 %v2213, %v2212
      %v2431 = vpack.c.b16 %v2215, %v2214
      %v2432 = vpack.c.b16 %v2217, %v2216
      %v2433 = vpack.c.b16 %v2219, %v2218
      %v2434 = vpack.c.b16 %v2221, %v2220
      %v2435 = vpack.c.b16 %v2223, %v2222
      %v2436 = vpack.c.b16 %v2225, %v2224
      %v2437 = vpack.c.b16 %v2227, %v2226
      %v2438 = vpack.c.b16 %v2229, %v2228
      %v2439 = vpack.c.b16 %v2231, %v2230
      %v2440 = vpack.c.b16 %v2233, %v2232
      %v2441 = vpack.c.b16 %v2235, %v2234
      %v2442 = vpack.c.b16 %v2237, %v2236
      %v2443 = vpack.c.b16 %v2239, %v2238
      %v2444 = vpack.c.b16 %v2241, %v2240
      %v2445 = vpack.c.b16 %v2243, %v2242
      %v2446 = vpack.c.b16 %v2245, %v2244
      %v2447 = vpack.c.b16 %v2247, %v2246
      %v2448 = vpack.c.b16 %v2249, %v2248
      %v2449 = vpack.c.b16 %v2251, %v2250
      %v2450 = vpack.c.b16 %v2253, %v2252
      %v2451 = vpack.c.b16 %v2255, %v2254
      %v2452 = vpack.c.b16 %v2257, %v2256
      %v2453 = vpack.c.b16 %v2259, %v2258
      %v2454 = vpack.c.b16 %v2261, %v2260
      %v2455 = vpack.c.b16 %v2263, %v2262
      %v2456 = vpack.c.b16 %v2265, %v2264
      %v2457 = vpack.c.b16 %v2267, %v2266
      %v2458 = vpack.c.b16 %v2269, %v2268
      %v2459 = vpack.c.b16 %v2271, %v2270
      %v2460 = vpack.c.b16 %v2273, %v2272
      %v2461 = vpack.c.b16 %v2275, %v2274
      %v2462 = vpack.c.b16 %v2277, %v2276
      %v2463 = vpack.c.b16 %v2279, %v2278
      %v2464 = vpack.c.b16 %v2281, %v2280
      %v2465 = vpack.c.b16 %v2283, %v2282
      %v2466 = vpack.c.b16 %v2285, %v2284
      %v2467 = vpack.c.b16 %v2287, %v2286
      %v2468 = vpack.c.b16 %v2289, %v2288
      %v2469 = vpack.c.b16 %v2291, %v2290
      %v2470 = vpack.c.b16 %v2293, %v2292
      %v2471 = vpack.c.b16 %v2295, %v2294
      %v2472 = vpack.c.b16 %v2297, %v2296
      %v2473 = vpack.c.b16 %v2299, %v2298
      %v2474 = vpack.c.b16 %v2301, %v2300
      %v2475 = vpack.c.b16 %v2303, %v2302
      %v2476 = vpack.c.b16 %v2305, %v2304
      %v2477 = vpack.c.b16 %v2307, %v2306
      %v2478 = vpack.c.b16 %v2309, %v2308
      %v2479 = vpack.c.b16 %v2311, %v2310
      %v2480 = vpack.c.b16 %v2313, %v2312
      %v2481 = vpack.c.b16 %v2315, %v2314
      %v2482 = vpack.c.b16 %v2317, %v2316
      %v2483 = vpack.c.b16 %v2319, %v2318
      %v2484 = vpack.c.b16 %v2321, %v2320
      %v2485 = vpack.c.b16 %v2323, %v2322
      %v2486 = vpack.c.b16 %v2325, %v2324
      %v2487 = vpack.c.b16 %v2327, %v2326
      %v2488 = vpack.c.b16 %v2329, %v2328
      %v2489 = vpack.c.b16 %v2331, %v2330
      %v2490 = vpack.c.b16 %v2333, %v2332
      %v2491 = vpack.c.b16 %v2335, %v2334
      %v2492 = vpack.c.b16 %v2337, %v2336
      %v2493 = vpack.c.b16 %v2339, %v2338
      %v2494 = vpack.c.b16 %v2341, %v2340
      %v2495 = vpack.c.b16 %v2343, %v2342
      %v2496 = vpack.c.b16 %v2345, %v2344
      %v2497 = vpack.c.b16 %v2347, %v2346
      %v2498 = vpack.c.b16 %v2349, %v2348
      %v2499 = vpack.c.b16 %v2351, %v2350
      %v2500 = vpack.c.b16 %v2353, %v2352
      %v2501 = vpack.c.b16 %v2355, %v2354
      %v2502 = vpack.c.b16 %v2357, %v2356
      %v2503 = vpack.c.b16 %v2359, %v2358
      %v2504 = vpack.c.b16 %v2361, %v2360
      %v2505 = vpack.c.b16 %v2363, %v2362
      %v2506 = vpack.c.b16 %v2365, %v2364
      %v2507 = vpack.c.b16 %v2367, %v2366
      %v2508 = vpack.c.b16 %v2369, %v2368
      %v2509 = vpack.c.b16 %v2371, %v2370
      %v2510 = vpack.c.b16 %v2373, %v2372
      %v2511 = vpack.c.b16 %v2375, %v2374
      %v2512 = vpack.c.b16 %v2377, %v2376
      %v2513 = vpack.c.b16 %v2379, %v2378
      %v2514 = vpack.c.b16 %v2381, %v2380
      %v2515 = vpack.c.b16 %v2383, %v2382
      %v2516 = vpack.c.b16 %v2385, %v2384
      %v2517 = vpack.c.b16 %v2387, %v2386
      %v2518 = vpack.c.b16 %v2389, %v2388
      %v2519 = vpack.c.b16 %v2391, %v2390
      %2648 = vmatpush.bf16.msra.mxu0 %v2399
      %2649 = vmatpush.bf16.msra.mxu0 %v2398
      %2650 = vmatpush.bf16.msra.mxu0 %v2397
      %2651 = vmatpush.bf16.msra.mxu0 %v2396
      %2652 = vmatpush.bf16.msra.mxu0 %v2395
      %2653 = vmatpush.bf16.msra.mxu0 %v2394
      %2654 = vmatpush.bf16.msra.mxu0 %v2393
      %2655 = vmatpush.bf16.msra.mxu0 %v2392
      %2656 = vmatmul.bf16.gmra.mxu0 %v1861
      %v2657 = vpop.f32.mrf.mxu0
      %v2658 = vadd.f32 %v1878, %v2657
      %v2659 = vpop.f32.mrf.mxu0
      %2660 = vdwg.mxu0
      %2661 = vmatpush.bf16.msra.mxu0 %v2407
      %2662 = vmatpush.bf16.msra.mxu0 %v2406
      %2663 = vmatpush.bf16.msra.mxu0 %v2405
      %2664 = vmatpush.bf16.msra.mxu0 %v2404
      %2665 = vmatpush.bf16.msra.mxu0 %v2403
      %2666 = vmatpush.bf16.msra.mxu0 %v2402
      %2667 = vmatpush.bf16.msra.mxu0 %v2401
      %2668 = vmatpush.bf16.msra.mxu0 %v2400
      %2669 = vmatmul.bf16.gmra.mxu0 %v1862
      %v2670 = vpop.f32.mrf.mxu0
      %v2671 = vadd.f32 %v2658, %v2670
      %v2672 = vpop.f32.mrf.mxu0
      %2673 = vdwg.mxu0
      %2674 = vmatpush.bf16.msra.mxu0 %v2415
      %2675 = vmatpush.bf16.msra.mxu0 %v2414
      %2676 = vmatpush.bf16.msra.mxu0 %v2413
      %2677 = vmatpush.bf16.msra.mxu0 %v2412
      %2678 = vmatpush.bf16.msra.mxu0 %v2411
      %2679 = vmatpush.bf16.msra.mxu0 %v2410
      %2680 = vmatpush.bf16.msra.mxu0 %v2409
      %2681 = vmatpush.bf16.msra.mxu0 %v2408
      %2682 = vmatmul.bf16.gmra.mxu0 %v1863
      %v2683 = vpop.f32.mrf.mxu0
      %v2684 = vadd.f32 %v2671, %v2683
      %v2685 = vpop.f32.mrf.mxu0
      %2686 = vdwg.mxu0
      %2687 = vmatpush.bf16.msra.mxu0 %v2423
      %2688 = vmatpush.bf16.msra.mxu0 %v2422
      %2689 = vmatpush.bf16.msra.mxu0 %v2421
      %2690 = vmatpush.bf16.msra.mxu0 %v2420
      %2691 = vmatpush.bf16.msra.mxu0 %v2419
      %2692 = vmatpush.bf16.msra.mxu0 %v2418
      %2693 = vmatpush.bf16.msra.mxu0 %v2417
      %2694 = vmatpush.bf16.msra.mxu0 %v2416
      %2695 = vmatmul.bf16.gmra.mxu0 %v1864
      %v2696 = vpop.f32.mrf.mxu0
      %v2697 = vadd.f32 %v2684, %v2696
      %v2698 = vpop.f32.mrf.mxu0
      %2699 = vdwg.mxu0
      %2700 = vmatpush.bf16.msra.mxu0 %v2431
      %2701 = vmatpush.bf16.msra.mxu0 %v2430
      %2702 = vmatpush.bf16.msra.mxu0 %v2429
      %2703 = vmatpush.bf16.msra.mxu0 %v2428
      %2704 = vmatpush.bf16.msra.mxu0 %v2427
      %2705 = vmatpush.bf16.msra.mxu0 %v2426
      %2706 = vmatpush.bf16.msra.mxu0 %v2425
      %2707 = vmatpush.bf16.msra.mxu0 %v2424
      %2708 = vmatmul.bf16.gmra.mxu0 %v1865
      %v2709 = vpop.f32.mrf.mxu0
      %v2710 = vadd.f32 %v2697, %v2709
      %v2711 = vpop.f32.mrf.mxu0
      %2712 = vdwg.mxu0
      %2713 = vmatpush.bf16.msra.mxu0 %v2439
      %2714 = vmatpush.bf16.msra.mxu0 %v2438
      %2715 = vmatpush.bf16.msra.mxu0 %v2437
      %2716 = vmatpush.bf16.msra.mxu0 %v2436
      %2717 = vmatpush.bf16.msra.mxu0 %v2435
      %2718 = vmatpush.bf16.msra.mxu0 %v2434
      %2719 = vmatpush.bf16.msra.mxu0 %v2433
      %2720 = vmatpush.bf16.msra.mxu0 %v2432
      %2721 = vmatmul.bf16.gmra.mxu0 %v1866
      %v2722 = vpop.f32.mrf.mxu0
      %v2723 = vadd.f32 %v2710, %v2722
      %v2724 = vpop.f32.mrf.mxu0
      %2725 = vdwg.mxu0
      %2726 = vmatpush.bf16.msra.mxu0 %v2447
      %2727 = vmatpush.bf16.msra.mxu0 %v2446
      %2728 = vmatpush.bf16.msra.mxu0 %v2445
      %2729 = vmatpush.bf16.msra.mxu0 %v2444
      %2730 = vmatpush.bf16.msra.mxu0 %v2443
      %2731 = vmatpush.bf16.msra.mxu0 %v2442
      %2732 = vmatpush.bf16.msra.mxu0 %v2441
      %2733 = vmatpush.bf16.msra.mxu0 %v2440
      %2734 = vmatmul.bf16.gmra.mxu0 %v1867
      %v2735 = vpop.f32.mrf.mxu0
      %v2736 = vadd.f32 %v2723, %v2735
      %v2737 = vpop.f32.mrf.mxu0
      %2738 = vdwg.mxu0
      %2739 = vmatpush.bf16.msra.mxu0 %v2455
      %2740 = vmatpush.bf16.msra.mxu0 %v2454
      %2741 = vmatpush.bf16.msra.mxu0 %v2453
      %2742 = vmatpush.bf16.msra.mxu0 %v2452
      %2743 = vmatpush.bf16.msra.mxu0 %v2451
      %2744 = vmatpush.bf16.msra.mxu0 %v2450
      %2745 = vmatpush.bf16.msra.mxu0 %v2449
      %2746 = vmatpush.bf16.msra.mxu0 %v2448
      %2747 = vmatmul.bf16.gmra.mxu0 %v1868
      %v2748 = vpop.f32.mrf.mxu0
      %v2749 = vadd.f32 %v2736, %v2748
      %v2750 = vpop.f32.mrf.mxu0
      %2751 = vdwg.mxu0
      %2752 = vmatpush.bf16.msra.mxu0 %v2463
      %2753 = vmatpush.bf16.msra.mxu0 %v2462
      %2754 = vmatpush.bf16.msra.mxu0 %v2461
      %2755 = vmatpush.bf16.msra.mxu0 %v2460
      %2756 = vmatpush.bf16.msra.mxu0 %v2459
      %2757 = vmatpush.bf16.msra.mxu0 %v2458
      %2758 = vmatpush.bf16.msra.mxu0 %v2457
      %2759 = vmatpush.bf16.msra.mxu0 %v2456
      %2760 = vmatmul.bf16.gmra.mxu0 %v1869
      %v2761 = vpop.f32.mrf.mxu0
      %v2762 = vadd.f32 %v2749, %v2761
      %v2763 = vpop.f32.mrf.mxu0
      %2764 = vdwg.mxu0
      %2765 = vmatpush.bf16.msra.mxu0 %v2471
      %2766 = vmatpush.bf16.msra.mxu0 %v2470
      %2767 = vmatpush.bf16.msra.mxu0 %v2469
      %2768 = vmatpush.bf16.msra.mxu0 %v2468
      %2769 = vmatpush.bf16.msra.mxu0 %v2467
      %2770 = vmatpush.bf16.msra.mxu0 %v2466
      %2771 = vmatpush.bf16.msra.mxu0 %v2465
      %2772 = vmatpush.bf16.msra.mxu0 %v2464
      %2773 = vmatmul.bf16.gmra.mxu0 %v1870
      %v2774 = vpop.f32.mrf.mxu0
      %v2775 = vadd.f32 %v2762, %v2774
      %v2776 = vpop.f32.mrf.mxu0
      %2777 = vdwg.mxu0
      %2778 = vmatpush.bf16.msra.mxu0 %v2479
      %2779 = vmatpush.bf16.msra.mxu0 %v2478
      %2780 = vmatpush.bf16.msra.mxu0 %v2477
      %2781 = vmatpush.bf16.msra.mxu0 %v2476
      %2782 = vmatpush.bf16.msra.mxu0 %v2475
      %2783 = vmatpush.bf16.msra.mxu0 %v2474
      %2784 = vmatpush.bf16.msra.mxu0 %v2473
      %2785 = vmatpush.bf16.msra.mxu0 %v2472
      %2786 = vmatmul.bf16.gmra.mxu0 %v1871
      %v2787 = vpop.f32.mrf.mxu0
      %v2788 = vadd.f32 %v2775, %v2787
      %v2789 = vpop.f32.mrf.mxu0
      %2790 = vdwg.mxu0
      %2791 = vmatpush.bf16.msra.mxu0 %v2487
      %2792 = vmatpush.bf16.msra.mxu0 %v2486
      %2793 = vmatpush.bf16.msra.mxu0 %v2485
      %2794 = vmatpush.bf16.msra.mxu0 %v2484
      %2795 = vmatpush.bf16.msra.mxu0 %v2483
      %2796 = vmatpush.bf16.msra.mxu0 %v2482
      %2797 = vmatpush.bf16.msra.mxu0 %v2481
      %2798 = vmatpush.bf16.msra.mxu0 %v2480
      %2799 = vmatmul.bf16.gmra.mxu0 %v1872
      %v2800 = vpop.f32.mrf.mxu0
      %v2801 = vadd.f32 %v2788, %v2800
      %v2802 = vpop.f32.mrf.mxu0
      %2803 = vdwg.mxu0
      %2804 = vmatpush.bf16.msra.mxu0 %v2495
      %2805 = vmatpush.bf16.msra.mxu0 %v2494
      %2806 = vmatpush.bf16.msra.mxu0 %v2493
      %2807 = vmatpush.bf16.msra.mxu0 %v2492
      %2808 = vmatpush.bf16.msra.mxu0 %v2491
      %2809 = vmatpush.bf16.msra.mxu0 %v2490
      %2810 = vmatpush.bf16.msra.mxu0 %v2489
      %2811 = vmatpush.bf16.msra.mxu0 %v2488
      %2812 = vmatmul.bf16.gmra.mxu0 %v1873
      %v2813 = vpop.f32.mrf.mxu0
      %v2814 = vadd.f32 %v2801, %v2813
      %v2815 = vpop.f32.mrf.mxu0
      %2816 = vdwg.mxu0
      %2817 = vmatpush.bf16.msra.mxu0 %v2503
      %2818 = vmatpush.bf16.msra.mxu0 %v2502
      %2819 = vmatpush.bf16.msra.mxu0 %v2501
      %2820 = vmatpush.bf16.msra.mxu0 %v2500
      %2821 = vmatpush.bf16.msra.mxu0 %v2499
      %2822 = vmatpush.bf16.msra.mxu0 %v2498
      %2823 = vmatpush.bf16.msra.mxu0 %v2497
      %2824 = vmatpush.bf16.msra.mxu0 %v2496
      %2825 = vmatmul.bf16.gmra.mxu0 %v1874
      %v2826 = vpop.f32.mrf.mxu0
      %v2827 = vadd.f32 %v2814, %v2826
      %v2828 = vpop.f32.mrf.mxu0
      %2829 = vdwg.mxu0
      %2830 = vmatpush.bf16.msra.mxu0 %v2511
      %2831 = vmatpush.bf16.msra.mxu0 %v2510
      %2832 = vmatpush.bf16.msra.mxu0 %v2509
      %2833 = vmatpush.bf16.msra.mxu0 %v2508
      %2834 = vmatpush.bf16.msra.mxu0 %v2507
      %2835 = vmatpush.bf16.msra.mxu0 %v2506
      %2836 = vmatpush.bf16.msra.mxu0 %v2505
      %2837 = vmatpush.bf16.msra.mxu0 %v2504
      %2838 = vmatmul.bf16.gmra.mxu0 %v1875
      %v2839 = vpop.f32.mrf.mxu0
      %v2840 = vadd.f32 %v2827, %v2839
      %v2841 = vpop.f32.mrf.mxu0
      %2842 = vdwg.mxu0
      %2843 = vmatpush.bf16.msra.mxu0 %v2519
      %2844 = vmatpush.bf16.msra.mxu0 %v2518
      %2845 = vmatpush.bf16.msra.mxu0 %v2517
      %2846 = vmatpush.bf16.msra.mxu0 %v2516
      %2847 = vmatpush.bf16.msra.mxu0 %v2515
      %2848 = vmatpush.bf16.msra.mxu0 %v2514
      %2849 = vmatpush.bf16.msra.mxu0 %v2513
      %2850 = vmatpush.bf16.msra.mxu0 %v2512
      %2851 = vmatmul.bf16.gmra.mxu0 %v1876
      %v2852 = vpop.f32.mrf.mxu0
      %v2853 = vadd.f32 %v2840, %v2852
      %v2854 = vpop.f32.mrf.mxu0
      %2855 = vdwg.mxu0
      %v2856 = vld [vmem:[%s723] sm:$0x1]
      %v2857 = vld [vmem:[%s726] sm:$0x1]
      %v2858 = vadd.f32 %v1147, %v2853
      %v2859 = vsel %vm771, %v2858, 0.0
      %2860 = vadd.xlane.f32.xlu0 %v2859
      %v2861 = vpop.xlane.xlu0 %2860
      %v2862 = vmul.f32 %v2861, %v1104
      %v2863 = vsub.f32 %v2858, %v2862
      %v2864 = vmul.f32 %v2863, %v2863
      %v2865 = vsel %vm771, %v2864, 0.0
      %2866 = vadd.xlane.f32.xlu0 %v2865
      %v2867 = vpop.xlane.xlu0 %2866
      %v2868 = vmul.f32 %v2867, 0.032258064
      %v2870 = vperm.slane %v2856, 0
      %v2872 = vmul.f32 %v2870, %v2863
      %v2873 = vrsqrt.pop %v2868
      %v2874 = vmul.f32 %v2873, %v2868
      %v2875 = vmul.f32 %v2874, %v2873
      %v2876 = vmul.f32 0.5, %v2875
      %v2877 = vsub.f32 1.5, %v2876
      %v2878 = vmul.f32 %v2873, %v2877
      %v2879 = vmul.f32 %v2868, %v2878
      %vm2880 = vcmp.eq.f32.partialorder %v2868, inf
      %v2881 = vsel %vm2880, %v2868, %v2879
      %vm2882 = vcmp.eq.f32.partialorder %v2868, 0.0
      %v2883 = vand.u32 %v2868, 2147483648
      %v2884 = vsel %vm2882, %v2883, %v2881
      %v2885 = vadd.f32 %v2884, 1e-06
      %v2886 = vrcp.pop %v2885
      %v2887 = vmul.f32 %v2885, %v2886
      %v2888 = vsub.f32 1.0, %v2887
      %v2889 = vmul.f32 %v2886, %v2888
      %v2890 = vadd.f32 %v2886, %v2889
      %vm2891 = vweird.f32 %v2885
      %vm2892 = vweird.f32 %v2886
      %vm2893 = vmor %vm2891, %vm2892
      %v2894 = vsel %vm2893, %v2886, %v2890
      %v2895 = vand.u32 2147483647, %v2885
      %vm2896 = vcmp.eq.f32.partialorder %v2895, 8.507059e+37
      %v2897 = vand.u32 %v2885, 2147483648
      %v2898 = vor.u32 1.1754944e-38, %v2897
      %v2899 = vsel %vm2896, %v2898, %v2894
      %v2900 = vmul.f32 %v2872, %v2899
      %v2902 = vperm.slane %v2857, 0
      %v2904 = vadd.f32 %v2900, %v2902
      %2905 = vst.msk [vmem:[%s730] sm:$0xff] %vm771, %v2904
      %p2906 = scmp.lt.s32.totalorder %s30, 1
      %s2907 = scalar_select %p2906, %s30, 1
      %s2908 = smul.addr %s2907, 8
      %s2909 = scalar_lea.vmem %s15, %s2908
      // Predicated region
      $region85: #{encoder_decoder_forward.2} parent=79 // pred_check
        %p2910 = pneg %p446
      $region86: #{encoder_decoder_forward.2} parent=79 // pred_check_branch
        %2912 = sbr.rel (%p2910) target = $region88
      $region87: #{encoder_decoder_forward.2} parent=79 // pred_region
        _
      $region88: #{encoder_decoder_forward.2} parent=79 // pred_fallthru
        _
    $region80: #{encoder_decoder_forward.2} parent=5 // pred_fallthru
      _
    %p2913 = scmp.le.s32.totalorder 2, %s21
    // Predicated region
    $region89: #{encoder_decoder_forward.2} parent=5 // pred_check
      %p2914 = pneg %p2913
    $region90: #{encoder_decoder_forward.2} parent=5 // pred_check_branch
      %2916 = sbr.rel (%p2914) target = $region92
    $region91: #{encoder_decoder_forward.2} parent=5 // pred_region
      %s2917 = ssub.s32 %s21, 2
      // Predicated region
      $region93: #{encoder_decoder_forward.2} parent=91 // pred_check
        %p2918 = pneg %p452
      $region94: #{encoder_decoder_forward.2} parent=91 // pred_check_branch
        %2920 = sbr.rel (%p2918) target = $region96
      $region95: #{encoder_decoder_forward.2} parent=91 // pred_region
        %p2921 = scmp.lt.s32.totalorder %s32, 1
        %s2922 = scalar_select %p2921, %s32, 1
        %s2923 = smul.addr %s2922, 8
        %s2924 = scalar_lea.vmem %s15, %s2923
      $region96: #{encoder_decoder_forward.2} parent=91 // pred_fallthru
        _
    $region92: #{encoder_decoder_forward.2} parent=5 // pred_fallthru
      _
  $region6: #{encoder_decoder_forward.2} parent=0 // loop_footer
    %s25 = sadd.s32 1, %s21
  $region7: #{encoder_decoder_forward.2} parent=0 // loop_footer_branch
    %20 = sbr.rel target = $region3
  $region8: #{encoder_decoder_forward.2} parent=0 // loop_exit
    _

// kernel: encoder_decoder_forward.3
$region0: #{encoder_decoder_forward.3}
  #allocation0 [shape = 'u32[]', space=smem, size = 0x4, offset = 0x4, fixed_abs, tag = 'smem constant byte address 0x4 - core index']
  #allocation1 [shape = 'u32[72,128]{1,0:T(1,128)}', space=vmem, size = 0x9000, scoped, tag = 'internal scratch']
  %s0 = inlined_call_operand.vmem [shape: f32[2,8,32], index: 0, kind: input, shape index: {}]
  %s1 = inlined_call_operand.vmem [shape: f32[2,8,32], index: 1, kind: input, shape index: {}]
  %s2 = inlined_call_operand.vmem [shape: f32[8,8], index: 2, kind: input, shape index: {}]
  %s3 = inlined_call_operand.vmem [shape: bf16[2,32,32], index: 3, kind: input, shape index: {}]
  %s4 = inlined_call_operand.vmem [shape: f32[2,1,32], index: 4, kind: input, shape index: {}]
  %s5 = inlined_call_operand.vmem [shape: bf16[2,32,64], index: 5, kind: input, shape index: {}]
  %s6 = inlined_call_operand.vmem [shape: f32[2,1,64], index: 6, kind: input, shape index: {}]
  %s7 = inlined_call_operand.vmem [shape: bf16[2,32,32], index: 7, kind: input, shape index: {}]
  %s8 = inlined_call_operand.vmem [shape: f32[2,1,32], index: 8, kind: input, shape index: {}]
  %s9 = inlined_call_operand.vmem [shape: f32[2,1,32], index: 9, kind: input, shape index: {}]
  %s10 = inlined_call_operand.vmem [shape: f32[2,1,32], index: 10, kind: input, shape index: {}]
  %s11 = inlined_call_operand.vmem [shape: bf16[2,32,32], index: 11, kind: input, shape index: {}]
  %s12 = inlined_call_operand.vmem [shape: f32[2,1,32], index: 12, kind: input, shape index: {}]
  %s13 = inlined_call_operand.vmem [shape: bf16[2,32,64], index: 13, kind: input, shape index: {}]
  %s14 = inlined_call_operand.vmem [shape: f32[2,1,64], index: 14, kind: input, shape index: {}]
  %s15 = inlined_call_operand.vmem [shape: bf16[2,32,32], index: 15, kind: input, shape index: {}]
  %s16 = inlined_call_operand.vmem [shape: f32[2,1,32], index: 16, kind: input, shape index: {}]
  %s17 = inlined_call_operand.vmem [shape: f32[2,1,32], index: 17, kind: input, shape index: {}]
  %s18 = inlined_call_operand.vmem [shape: f32[2,1,32], index: 18, kind: input, shape index: {}]
  %s19 = inlined_call_operand.vmem [shape: bf16[2,32,2048], index: 19, kind: input, shape index: {}]
  %s20 = inlined_call_operand.vmem [shape: f32[2,1,2048], index: 20, kind: input, shape index: {}]
  %s21 = inlined_call_operand.vmem [shape: bf16[2,2048,32], index: 21, kind: input, shape index: {}]
  %s22 = inlined_call_operand.vmem [shape: f32[2,1,32], index: 22, kind: input, shape index: {}]
  %s23 = inlined_call_operand.vmem [shape: f32[2,1,32], index: 23, kind: input, shape index: {}]
  %s24 = inlined_call_operand.vmem [shape: f32[2,1,32], index: 24, kind: input, shape index: {}]
  %s25 = inlined_call_operand.hbm [shape: f32[2,8,32], index: 25, kind: output, shape index: {}]
  %s26 = sld [smem:[#allocation0]]
  $region137: #{encoder_decoder_forward.3} parent=0
    _
  %s28 = ssub.s32 1, %s26
  %s29 = scalar_select 0, %s28, %s26
  $region1: #{encoder_decoder_forward.3} parent=0
    #allocation2 [shape = 'u8[8192]{0}', space=vmem, size = 0x2000, scoped, tag = 'output window, operand 0']
    #allocation3 [shape = 's32[2]{0}', space=sflag, size = 0x8, scoped, tag = 'scoped memory for encoder_decoder_forward.3']
    %30 = vsyncpa [#allocation3], 0
    %s31 = scalar_lea.sflag [#allocation3], 1
    %32 = vsyncpa %s31, 0
    loop: start=0, step=1, limit=6
    $region2: #{encoder_decoder_forward.3} parent=1 // loop_pre_header
      _
    $region3: #{encoder_decoder_forward.3} parent=1 // loop_header
      %s34 = sphi 0, %s38
      %p35 = scmp.ge.s32.totalorder %s34, 6
      %s41 = sphi 0, %s53
      %s42 = sphi 0, %s49
      %s43 = sphi 0, %s41
      %s44 = sphi 0, %s42
      %s45 = sphi 0, %s43
      %s46 = sphi 0, %s44
      %s56 = sphi 0, %s58
      %s59 = sphi 0, %s56
      %s60 = sphi 0, %s59
      %s76 = sphi 0, %s60
      %s82 = sphi 0, %s84
      %s85 = sphi 0, %s82
      %s86 = sphi 0, %s85
      %s102 = sphi 0, %s86
      %s106 = sphi 0, %s106
      %s108 = sphi 0, %s106
      %s109 = sphi 0, %s108
      %s123 = sphi 0, %s109
      %s129 = sphi 0, %s131
      %s132 = sphi 0, %s129
      %s133 = sphi 0, %s132
      %s149 = sphi 0, %s133
      %s155 = sphi 0, %s157
      %s158 = sphi 0, %s155
      %s159 = sphi 0, %s158
      %s175 = sphi 0, %s159
      %s181 = sphi 0, %s183
      %s184 = sphi 0, %s181
      %s185 = sphi 0, %s184
      %s201 = sphi 0, %s185
      %s207 = sphi 0, %s209
      %s210 = sphi 0, %s207
      %s211 = sphi 0, %s210
      %s227 = sphi 0, %s211
      %s233 = sphi 0, %s235
      %s236 = sphi 0, %s233
      %s237 = sphi 0, %s236
      %s253 = sphi 0, %s237
      %s259 = sphi 0, %s261
      %s262 = sphi 0, %s259
      %s263 = sphi 0, %s262
      %s279 = sphi 0, %s263
      %s285 = sphi 0, %s287
      %s288 = sphi 0, %s285
      %s289 = sphi 0, %s288
      %s305 = sphi 0, %s289
      %s311 = sphi 0, %s313
      %s314 = sphi 0, %s311
      %s315 = sphi 0, %s314
      %s331 = sphi 0, %s315
      %s337 = sphi 0, %s339
      %s340 = sphi 0, %s337
      %s341 = sphi 0, %s340
      %s357 = sphi 0, %s341
      %s363 = sphi 0, %s365
      %s366 = sphi 0, %s363
      %s367 = sphi 0, %s366
      %s383 = sphi 0, %s367
      %s389 = sphi 0, %s391
      %s392 = sphi 0, %s389
      %s393 = sphi 0, %s392
      %s409 = sphi 0, %s393
      %s415 = sphi 0, %s417
      %s418 = sphi 0, %s415
      %s419 = sphi 0, %s418
      %s435 = sphi 0, %s419
      %s441 = sphi 0, %s443
      %s444 = sphi 0, %s441
      %s445 = sphi 0, %s444
      %s461 = sphi 0, %s445
      %s467 = sphi 0, %s469
      %s470 = sphi 0, %s467
      %s471 = sphi 0, %s470
      %s487 = sphi 0, %s471
      %s493 = sphi 0, %s495
      %s496 = sphi 0, %s493
      %s497 = sphi 0, %s496
      %s513 = sphi 0, %s497
      %s519 = sphi 0, %s521
      %s522 = sphi 0, %s519
      %s523 = sphi 0, %s522
      %s539 = sphi 0, %s523
      %s545 = sphi 0, %s547
      %s548 = sphi 0, %s545
      %s549 = sphi 0, %s548
      %s565 = sphi 0, %s549
      %s571 = sphi 0, %s573
      %s574 = sphi 0, %s571
      %s575 = sphi 0, %s574
      %s591 = sphi 0, %s575
      %s597 = sphi 0, %s599
      %s600 = sphi 0, %s597
      %s601 = sphi 0, %s600
      %s617 = sphi 0, %s601
      %s623 = sphi 0, %s625
      %s626 = sphi 0, %s623
      %s627 = sphi 0, %s626
      %s643 = sphi 0, %s627
      %s649 = sphi 0, %s651
      %s652 = sphi 0, %s649
      %s653 = sphi 0, %s652
      %s669 = sphi 0, %s653
      %s675 = sphi 0, %s677
      %s678 = sphi 0, %s675
      %s679 = sphi 0, %s678
      %s695 = sphi 0, %s679
      %s701 = sphi 0, %s703
      %s704 = sphi 0, %s701
      %s705 = sphi 0, %s704
      %s721 = sphi 0, %s705
    $region4: #{encoder_decoder_forward.3} parent=1 // loop_header_branch
      %37 = sbr.rel (%p35) target = $region8
    $region5: #{encoder_decoder_forward.3} parent=1 // loop_body
      %s39 = ssub.s32 %s34, 1
      %s40 = ssub.s32 %s34, 2
      %s47 = sadd.s32 1, %s42
      %p48 = scmp.ge.s32.totalorder %s47, 2
      %s49 = scalar_select %p48, 0, %s47
      %s50 = sadd.s32 1, %s41
      %s51 = scalar_select %p48, %s50, %s41
      %p52 = scmp.ge.s32.totalorder %s51, 2
      %s53 = scalar_select %p52, 0, %s51
      %s54 = ssub.s32 %s41, %s53
      %p55 = scmp.eq.s32.totalorder %s54, 0
      %s57 = sadd.s32 %s56, 1
      %s58 = scalar_select %p55, %s56, %s57
      %p61 = pneg %p55
      %p62 = scmp.eq.s32.totalorder %s34, 3
      %p63 = por %p61, %p62
      %p64 = scmp.ne.s32.totalorder %s56, %s59
      %p65 = scmp.eq.s32.totalorder %s34, 0
      %p66 = por %p64, %p65
      %p67 = scmp.ne.s32.totalorder %s56, %s59
      %p68 = scmp.eq.s32.totalorder %s39, 3
      %p69 = por %p67, %p68
      %p70 = scmp.ne.s32.totalorder %s59, %s60
      %p71 = scmp.eq.s32.totalorder %s39, 0
      %p72 = por %p70, %p71
      %p73 = scmp.ne.s32.totalorder %s59, %s60
      %p74 = scmp.eq.s32.totalorder %s40, 3
      %p75 = por %p73, %p74
      %p77 = scmp.ne.s32.totalorder %s60, %s76
      %p78 = scmp.eq.s32.totalorder %s40, 0
      %p79 = por %p77, %p78
      %s80 = ssub.s32 %s41, %s53
      %p81 = scmp.eq.s32.totalorder %s80, 0
      %s83 = sadd.s32 %s82, 1
      %s84 = scalar_select %p81, %s82, %s83
      %p87 = pneg %p81
      %p88 = scmp.eq.s32.totalorder %s34, 3
      %p89 = por %p87, %p88
      %p90 = scmp.ne.s32.totalorder %s82, %s85
      %p91 = scmp.eq.s32.totalorder %s34, 0
      %p92 = por %p90, %p91
      %p93 = scmp.ne.s32.totalorder %s82, %s85
      %p94 = scmp.eq.s32.totalorder %s39, 3
      %p95 = por %p93, %p94
      %p96 = scmp.ne.s32.totalorder %s85, %s86
      %p97 = scmp.eq.s32.totalorder %s39, 0
      %p98 = por %p96, %p97
      %p99 = scmp.ne.s32.totalorder %s85, %s86
      %p100 = scmp.eq.s32.totalorder %s40, 3
      %p101 = por %p99, %p100
      %p103 = scmp.ne.s32.totalorder %s86, %s102
      %p104 = scmp.eq.s32.totalorder %s40, 0
      %p105 = por %p103, %p104
      %s107 = sadd.s32 %s106, 1
      %p110 = scmp.eq.s32.totalorder %s34, 3
      %p111 = scmp.ne.s32.totalorder %s106, %s108
      %p112 = scmp.eq.s32.totalorder %s34, 0
      %p113 = por %p111, %p112
      %p114 = scmp.ne.s32.totalorder %s106, %s108
      %p115 = scmp.eq.s32.totalorder %s39, 3
      %p116 = por %p114, %p115
      %p117 = scmp.ne.s32.totalorder %s108, %s109
      %p118 = scmp.eq.s32.totalorder %s39, 0
      %p119 = por %p117, %p118
      %p120 = scmp.ne.s32.totalorder %s108, %s109
      %p121 = scmp.eq.s32.totalorder %s40, 3
      %p122 = por %p120, %p121
      %p124 = scmp.ne.s32.totalorder %s109, %s123
      %p125 = scmp.eq.s32.totalorder %s40, 0
      %p126 = por %p124, %p125
      %s127 = ssub.s32 %s42, %s49
      %p128 = scmp.eq.s32.totalorder %s127, 0
      %s130 = sadd.s32 %s129, 1
      %s131 = scalar_select %p128, %s129, %s130
      %p134 = pneg %p128
      %p135 = scmp.eq.s32.totalorder %s34, 3
      %p136 = por %p134, %p135
      %p137 = scmp.ne.s32.totalorder %s129, %s132
      %p138 = scmp.eq.s32.totalorder %s34, 0
      %p139 = por %p137, %p138
      %p140 = scmp.ne.s32.totalorder %s129, %s132
      %p141 = scmp.eq.s32.totalorder %s39, 3
      %p142 = por %p140, %p141
      %p143 = scmp.ne.s32.totalorder %s132, %s133
      %p144 = scmp.eq.s32.totalorder %s39, 0
      %p145 = por %p143, %p144
      %p146 = scmp.ne.s32.totalorder %s132, %s133
      %p147 = scmp.eq.s32.totalorder %s40, 3
      %p148 = por %p146, %p147
      %p150 = scmp.ne.s32.totalorder %s133, %s149
      %p151 = scmp.eq.s32.totalorder %s40, 0
      %p152 = por %p150, %p151
      %s153 = ssub.s32 %s42, %s49
      %p154 = scmp.eq.s32.totalorder %s153, 0
      %s156 = sadd.s32 %s155, 1
      %s157 = scalar_select %p154, %s155, %s156
      %p160 = pneg %p154
      %p161 = scmp.eq.s32.totalorder %s34, 3
      %p162 = por %p160, %p161
      %p163 = scmp.ne.s32.totalorder %s155, %s158
      %p164 = scmp.eq.s32.totalorder %s34, 0
      %p165 = por %p163, %p164
      %p166 = scmp.ne.s32.totalorder %s155, %s158
      %p167 = scmp.eq.s32.totalorder %s39, 3
      %p168 = por %p166, %p167
      %p169 = scmp.ne.s32.totalorder %s158, %s159
      %p170 = scmp.eq.s32.totalorder %s39, 0
      %p171 = por %p169, %p170
      %p172 = scmp.ne.s32.totalorder %s158, %s159
      %p173 = scmp.eq.s32.totalorder %s40, 3
      %p174 = por %p172, %p173
      %p176 = scmp.ne.s32.totalorder %s159, %s175
      %p177 = scmp.eq.s32.totalorder %s40, 0
      %p178 = por %p176, %p177
      %s179 = ssub.s32 %s42, %s49
      %p180 = scmp.eq.s32.totalorder %s179, 0
      %s182 = sadd.s32 %s181, 1
      %s183 = scalar_select %p180, %s181, %s182
      %p186 = pneg %p180
      %p187 = scmp.eq.s32.totalorder %s34, 3
      %p188 = por %p186, %p187
      %p189 = scmp.ne.s32.totalorder %s181, %s184
      %p190 = scmp.eq.s32.totalorder %s34, 0
      %p191 = por %p189, %p190
      %p192 = scmp.ne.s32.totalorder %s181, %s184
      %p193 = scmp.eq.s32.totalorder %s39, 3
      %p194 = por %p192, %p193
      %p195 = scmp.ne.s32.totalorder %s184, %s185
      %p196 = scmp.eq.s32.totalorder %s39, 0
      %p197 = por %p195, %p196
      %p198 = scmp.ne.s32.totalorder %s184, %s185
      %p199 = scmp.eq.s32.totalorder %s40, 3
      %p200 = por %p198, %p199
      %p202 = scmp.ne.s32.totalorder %s185, %s201
      %p203 = scmp.eq.s32.totalorder %s40, 0
      %p204 = por %p202, %p203
      %s205 = ssub.s32 %s42, %s49
      %p206 = scmp.eq.s32.totalorder %s205, 0
      %s208 = sadd.s32 %s207, 1
      %s209 = scalar_select %p206, %s207, %s208
      %p212 = pneg %p206
      %p213 = scmp.eq.s32.totalorder %s34, 3
      %p214 = por %p212, %p213
      %p215 = scmp.ne.s32.totalorder %s207, %s210
      %p216 = scmp.eq.s32.totalorder %s34, 0
      %p217 = por %p215, %p216
      %p218 = scmp.ne.s32.totalorder %s207, %s210
      %p219 = scmp.eq.s32.totalorder %s39, 3
      %p220 = por %p218, %p219
      %p221 = scmp.ne.s32.totalorder %s210, %s211
      %p222 = scmp.eq.s32.totalorder %s39, 0
      %p223 = por %p221, %p222
      %p224 = scmp.ne.s32.totalorder %s210, %s211
      %p225 = scmp.eq.s32.totalorder %s40, 3
      %p226 = por %p224, %p225
      %p228 = scmp.ne.s32.totalorder %s211, %s227
      %p229 = scmp.eq.s32.totalorder %s40, 0
      %p230 = por %p228, %p229
      %s231 = ssub.s32 %s42, %s49
      %p232 = scmp.eq.s32.totalorder %s231, 0
      %s234 = sadd.s32 %s233, 1
      %s235 = scalar_select %p232, %s233, %s234
      %p238 = pneg %p232
      %p239 = scmp.eq.s32.totalorder %s34, 3
      %p240 = por %p238, %p239
      %p241 = scmp.ne.s32.totalorder %s233, %s236
      %p242 = scmp.eq.s32.totalorder %s34, 0
      %p243 = por %p241, %p242
      %p244 = scmp.ne.s32.totalorder %s233, %s236
      %p245 = scmp.eq.s32.totalorder %s39, 3
      %p246 = por %p244, %p245
      %p247 = scmp.ne.s32.totalorder %s236, %s237
      %p248 = scmp.eq.s32.totalorder %s39, 0
      %p249 = por %p247, %p248
      %p250 = scmp.ne.s32.totalorder %s236, %s237
      %p251 = scmp.eq.s32.totalorder %s40, 3
      %p252 = por %p250, %p251
      %p254 = scmp.ne.s32.totalorder %s237, %s253
      %p255 = scmp.eq.s32.totalorder %s40, 0
      %p256 = por %p254, %p255
      %s257 = ssub.s32 %s42, %s49
      %p258 = scmp.eq.s32.totalorder %s257, 0
      %s260 = sadd.s32 %s259, 1
      %s261 = scalar_select %p258, %s259, %s260
      %p264 = pneg %p258
      %p265 = scmp.eq.s32.totalorder %s34, 3
      %p266 = por %p264, %p265
      %p267 = scmp.ne.s32.totalorder %s259, %s262
      %p268 = scmp.eq.s32.totalorder %s34, 0
      %p269 = por %p267, %p268
      %p270 = scmp.ne.s32.totalorder %s259, %s262
      %p271 = scmp.eq.s32.totalorder %s39, 3
      %p272 = por %p270, %p271
      %p273 = scmp.ne.s32.totalorder %s262, %s263
      %p274 = scmp.eq.s32.totalorder %s39, 0
      %p275 = por %p273, %p274
      %p276 = scmp.ne.s32.totalorder %s262, %s263
      %p277 = scmp.eq.s32.totalorder %s40, 3
      %p278 = por %p276, %p277
      %p280 = scmp.ne.s32.totalorder %s263, %s279
      %p281 = scmp.eq.s32.totalorder %s40, 0
      %p282 = por %p280, %p281
      %s283 = ssub.s32 %s42, %s49
      %p284 = scmp.eq.s32.totalorder %s283, 0
      %s286 = sadd.s32 %s285, 1
      %s287 = scalar_select %p284, %s285, %s286
      %p290 = pneg %p284
      %p291 = scmp.eq.s32.totalorder %s34, 3
      %p292 = por %p290, %p291
      %p293 = scmp.ne.s32.totalorder %s285, %s288
      %p294 = scmp.eq.s32.totalorder %s34, 0
      %p295 = por %p293, %p294
      %p296 = scmp.ne.s32.totalorder %s285, %s288
      %p297 = scmp.eq.s32.totalorder %s39, 3
      %p298 = por %p296, %p297
      %p299 = scmp.ne.s32.totalorder %s288, %s289
      %p300 = scmp.eq.s32.totalorder %s39, 0
      %p301 = por %p299, %p300
      %p302 = scmp.ne.s32.totalorder %s288, %s289
      %p303 = scmp.eq.s32.totalorder %s40, 3
      %p304 = por %p302, %p303
      %p306 = scmp.ne.s32.totalorder %s289, %s305
      %p307 = scmp.eq.s32.totalorder %s40, 0
      %p308 = por %p306, %p307
      %s309 = ssub.s32 %s42, %s49
      %p310 = scmp.eq.s32.totalorder %s309, 0
      %s312 = sadd.s32 %s311, 1
      %s313 = scalar_select %p310, %s311, %s312
      %p316 = pneg %p310
      %p317 = scmp.eq.s32.totalorder %s34, 3
      %p318 = por %p316, %p317
      %p319 = scmp.ne.s32.totalorder %s311, %s314
      %p320 = scmp.eq.s32.totalorder %s34, 0
      %p321 = por %p319, %p320
      %p322 = scmp.ne.s32.totalorder %s311, %s314
      %p323 = scmp.eq.s32.totalorder %s39, 3
      %p324 = por %p322, %p323
      %p325 = scmp.ne.s32.totalorder %s314, %s315
      %p326 = scmp.eq.s32.totalorder %s39, 0
      %p327 = por %p325, %p326
      %p328 = scmp.ne.s32.totalorder %s314, %s315
      %p329 = scmp.eq.s32.totalorder %s40, 3
      %p330 = por %p328, %p329
      %p332 = scmp.ne.s32.totalorder %s315, %s331
      %p333 = scmp.eq.s32.totalorder %s40, 0
      %p334 = por %p332, %p333
      %s335 = ssub.s32 %s42, %s49
      %p336 = scmp.eq.s32.totalorder %s335, 0
      %s338 = sadd.s32 %s337, 1
      %s339 = scalar_select %p336, %s337, %s338
      %p342 = pneg %p336
      %p343 = scmp.eq.s32.totalorder %s34, 3
      %p344 = por %p342, %p343
      %p345 = scmp.ne.s32.totalorder %s337, %s340
      %p346 = scmp.eq.s32.totalorder %s34, 0
      %p347 = por %p345, %p346
      %p348 = scmp.ne.s32.totalorder %s337, %s340
      %p349 = scmp.eq.s32.totalorder %s39, 3
      %p350 = por %p348, %p349
      %p351 = scmp.ne.s32.totalorder %s340, %s341
      %p352 = scmp.eq.s32.totalorder %s39, 0
      %p353 = por %p351, %p352
      %p354 = scmp.ne.s32.totalorder %s340, %s341
      %p355 = scmp.eq.s32.totalorder %s40, 3
      %p356 = por %p354, %p355
      %p358 = scmp.ne.s32.totalorder %s341, %s357
      %p359 = scmp.eq.s32.totalorder %s40, 0
      %p360 = por %p358, %p359
      %s361 = ssub.s32 %s42, %s49
      %p362 = scmp.eq.s32.totalorder %s361, 0
      %s364 = sadd.s32 %s363, 1
      %s365 = scalar_select %p362, %s363, %s364
      %p368 = pneg %p362
      %p369 = scmp.eq.s32.totalorder %s34, 3
      %p370 = por %p368, %p369
      %p371 = scmp.ne.s32.totalorder %s363, %s366
      %p372 = scmp.eq.s32.totalorder %s34, 0
      %p373 = por %p371, %p372
      %p374 = scmp.ne.s32.totalorder %s363, %s366
      %p375 = scmp.eq.s32.totalorder %s39, 3
      %p376 = por %p374, %p375
      %p377 = scmp.ne.s32.totalorder %s366, %s367
      %p378 = scmp.eq.s32.totalorder %s39, 0
      %p379 = por %p377, %p378
      %p380 = scmp.ne.s32.totalorder %s366, %s367
      %p381 = scmp.eq.s32.totalorder %s40, 3
      %p382 = por %p380, %p381
      %p384 = scmp.ne.s32.totalorder %s367, %s383
      %p385 = scmp.eq.s32.totalorder %s40, 0
      %p386 = por %p384, %p385
      %s387 = ssub.s32 %s42, %s49
      %p388 = scmp.eq.s32.totalorder %s387, 0
      %s390 = sadd.s32 %s389, 1
      %s391 = scalar_select %p388, %s389, %s390
      %p394 = pneg %p388
      %p395 = scmp.eq.s32.totalorder %s34, 3
      %p396 = por %p394, %p395
      %p397 = scmp.ne.s32.totalorder %s389, %s392
      %p398 = scmp.eq.s32.totalorder %s34, 0
      %p399 = por %p397, %p398
      %p400 = scmp.ne.s32.totalorder %s389, %s392
      %p401 = scmp.eq.s32.totalorder %s39, 3
      %p402 = por %p400, %p401
      %p403 = scmp.ne.s32.totalorder %s392, %s393
      %p404 = scmp.eq.s32.totalorder %s39, 0
      %p405 = por %p403, %p404
      %p406 = scmp.ne.s32.totalorder %s392, %s393
      %p407 = scmp.eq.s32.totalorder %s40, 3
      %p408 = por %p406, %p407
      %p410 = scmp.ne.s32.totalorder %s393, %s409
      %p411 = scmp.eq.s32.totalorder %s40, 0
      %p412 = por %p410, %p411
      %s413 = ssub.s32 %s42, %s49
      %p414 = scmp.eq.s32.totalorder %s413, 0
      %s416 = sadd.s32 %s415, 1
      %s417 = scalar_select %p414, %s415, %s416
      %p420 = pneg %p414
      %p421 = scmp.eq.s32.totalorder %s34, 3
      %p422 = por %p420, %p421
      %p423 = scmp.ne.s32.totalorder %s415, %s418
      %p424 = scmp.eq.s32.totalorder %s34, 0
      %p425 = por %p423, %p424
      %p426 = scmp.ne.s32.totalorder %s415, %s418
      %p427 = scmp.eq.s32.totalorder %s39, 3
      %p428 = por %p426, %p427
      %p429 = scmp.ne.s32.totalorder %s418, %s419
      %p430 = scmp.eq.s32.totalorder %s39, 0
      %p431 = por %p429, %p430
      %p432 = scmp.ne.s32.totalorder %s418, %s419
      %p433 = scmp.eq.s32.totalorder %s40, 3
      %p434 = por %p432, %p433
      %p436 = scmp.ne.s32.totalorder %s419, %s435
      %p437 = scmp.eq.s32.totalorder %s40, 0
      %p438 = por %p436, %p437
      %s439 = ssub.s32 %s42, %s49
      %p440 = scmp.eq.s32.totalorder %s439, 0
      %s442 = sadd.s32 %s441, 1
      %s443 = scalar_select %p440, %s441, %s442
      %p446 = pneg %p440
      %p447 = scmp.eq.s32.totalorder %s34, 3
      %p448 = por %p446, %p447
      %p449 = scmp.ne.s32.totalorder %s441, %s444
      %p450 = scmp.eq.s32.totalorder %s34, 0
      %p451 = por %p449, %p450
      %p452 = scmp.ne.s32.totalorder %s441, %s444
      %p453 = scmp.eq.s32.totalorder %s39, 3
      %p454 = por %p452, %p453
      %p455 = scmp.ne.s32.totalorder %s444, %s445
      %p456 = scmp.eq.s32.totalorder %s39, 0
      %p457 = por %p455, %p456
      %p458 = scmp.ne.s32.totalorder %s444, %s445
      %p459 = scmp.eq.s32.totalorder %s40, 3
      %p460 = por %p458, %p459
      %p462 = scmp.ne.s32.totalorder %s445, %s461
      %p463 = scmp.eq.s32.totalorder %s40, 0
      %p464 = por %p462, %p463
      %s465 = ssub.s32 %s42, %s49
      %p466 = scmp.eq.s32.totalorder %s465, 0
      %s468 = sadd.s32 %s467, 1
      %s469 = scalar_select %p466, %s467, %s468
      %p472 = pneg %p466
      %p473 = scmp.eq.s32.totalorder %s34, 3
      %p474 = por %p472, %p473
      %p475 = scmp.ne.s32.totalorder %s467, %s470
      %p476 = scmp.eq.s32.totalorder %s34, 0
      %p477 = por %p475, %p476
      %p478 = scmp.ne.s32.totalorder %s467, %s470
      %p479 = scmp.eq.s32.totalorder %s39, 3
      %p480 = por %p478, %p479
      %p481 = scmp.ne.s32.totalorder %s470, %s471
      %p482 = scmp.eq.s32.totalorder %s39, 0
      %p483 = por %p481, %p482
      %p484 = scmp.ne.s32.totalorder %s470, %s471
      %p485 = scmp.eq.s32.totalorder %s40, 3
      %p486 = por %p484, %p485
      %p488 = scmp.ne.s32.totalorder %s471, %s487
      %p489 = scmp.eq.s32.totalorder %s40, 0
      %p490 = por %p488, %p489
      %s491 = ssub.s32 %s42, %s49
      %p492 = scmp.eq.s32.totalorder %s491, 0
      %s494 = sadd.s32 %s493, 1
      %s495 = scalar_select %p492, %s493, %s494
      %p498 = pneg %p492
      %p499 = scmp.eq.s32.totalorder %s34, 3
      %p500 = por %p498, %p499
      %p501 = scmp.ne.s32.totalorder %s493, %s496
      %p502 = scmp.eq.s32.totalorder %s34, 0
      %p503 = por %p501, %p502
      %p504 = scmp.ne.s32.totalorder %s493, %s496
      %p505 = scmp.eq.s32.totalorder %s39, 3
      %p506 = por %p504, %p505
      %p507 = scmp.ne.s32.totalorder %s496, %s497
      %p508 = scmp.eq.s32.totalorder %s39, 0
      %p509 = por %p507, %p508
      %p510 = scmp.ne.s32.totalorder %s496, %s497
      %p511 = scmp.eq.s32.totalorder %s40, 3
      %p512 = por %p510, %p511
      %p514 = scmp.ne.s32.totalorder %s497, %s513
      %p515 = scmp.eq.s32.totalorder %s40, 0
      %p516 = por %p514, %p515
      %s517 = ssub.s32 %s42, %s49
      %p518 = scmp.eq.s32.totalorder %s517, 0
      %s520 = sadd.s32 %s519, 1
      %s521 = scalar_select %p518, %s519, %s520
      %p524 = pneg %p518
      %p525 = scmp.eq.s32.totalorder %s34, 3
      %p526 = por %p524, %p525
      %p527 = scmp.ne.s32.totalorder %s519, %s522
      %p528 = scmp.eq.s32.totalorder %s34, 0
      %p529 = por %p527, %p528
      %p530 = scmp.ne.s32.totalorder %s519, %s522
      %p531 = scmp.eq.s32.totalorder %s39, 3
      %p532 = por %p530, %p531
      %p533 = scmp.ne.s32.totalorder %s522, %s523
      %p534 = scmp.eq.s32.totalorder %s39, 0
      %p535 = por %p533, %p534
      %p536 = scmp.ne.s32.totalorder %s522, %s523
      %p537 = scmp.eq.s32.totalorder %s40, 3
      %p538 = por %p536, %p537
      %p540 = scmp.ne.s32.totalorder %s523, %s539
      %p541 = scmp.eq.s32.totalorder %s40, 0
      %p542 = por %p540, %p541
      %s543 = ssub.s32 %s42, %s49
      %p544 = scmp.eq.s32.totalorder %s543, 0
      %s546 = sadd.s32 %s545, 1
      %s547 = scalar_select %p544, %s545, %s546
      %p550 = pneg %p544
      %p551 = scmp.eq.s32.totalorder %s34, 3
      %p552 = por %p550, %p551
      %p553 = scmp.ne.s32.totalorder %s545, %s548
      %p554 = scmp.eq.s32.totalorder %s34, 0
      %p555 = por %p553, %p554
      %p556 = scmp.ne.s32.totalorder %s545, %s548
      %p557 = scmp.eq.s32.totalorder %s39, 3
      %p558 = por %p556, %p557
      %p559 = scmp.ne.s32.totalorder %s548, %s549
      %p560 = scmp.eq.s32.totalorder %s39, 0
      %p561 = por %p559, %p560
      %p562 = scmp.ne.s32.totalorder %s548, %s549
      %p563 = scmp.eq.s32.totalorder %s40, 3
      %p564 = por %p562, %p563
      %p566 = scmp.ne.s32.totalorder %s549, %s565
      %p567 = scmp.eq.s32.totalorder %s40, 0
      %p568 = por %p566, %p567
      %s569 = ssub.s32 %s42, %s49
      %p570 = scmp.eq.s32.totalorder %s569, 0
      %s572 = sadd.s32 %s571, 1
      %s573 = scalar_select %p570, %s571, %s572
      %p576 = pneg %p570
      %p577 = scmp.eq.s32.totalorder %s34, 3
      %p578 = por %p576, %p577
      %p579 = scmp.ne.s32.totalorder %s571, %s574
      %p580 = scmp.eq.s32.totalorder %s34, 0
      %p581 = por %p579, %p580
      %p582 = scmp.ne.s32.totalorder %s571, %s574
      %p583 = scmp.eq.s32.totalorder %s39, 3
      %p584 = por %p582, %p583
      %p585 = scmp.ne.s32.totalorder %s574, %s575
      %p586 = scmp.eq.s32.totalorder %s39, 0
      %p587 = por %p585, %p586
      %p588 = scmp.ne.s32.totalorder %s574, %s575
      %p589 = scmp.eq.s32.totalorder %s40, 3
      %p590 = por %p588, %p589
      %p592 = scmp.ne.s32.totalorder %s575, %s591
      %p593 = scmp.eq.s32.totalorder %s40, 0
      %p594 = por %p592, %p593
      %s595 = ssub.s32 %s42, %s49
      %p596 = scmp.eq.s32.totalorder %s595, 0
      %s598 = sadd.s32 %s597, 1
      %s599 = scalar_select %p596, %s597, %s598
      %p602 = pneg %p596
      %p603 = scmp.eq.s32.totalorder %s34, 3
      %p604 = por %p602, %p603
      %p605 = scmp.ne.s32.totalorder %s597, %s600
      %p606 = scmp.eq.s32.totalorder %s34, 0
      %p607 = por %p605, %p606
      %p608 = scmp.ne.s32.totalorder %s597, %s600
      %p609 = scmp.eq.s32.totalorder %s39, 3
      %p610 = por %p608, %p609
      %p611 = scmp.ne.s32.totalorder %s600, %s601
      %p612 = scmp.eq.s32.totalorder %s39, 0
      %p613 = por %p611, %p612
      %p614 = scmp.ne.s32.totalorder %s600, %s601
      %p615 = scmp.eq.s32.totalorder %s40, 3
      %p616 = por %p614, %p615
      %p618 = scmp.ne.s32.totalorder %s601, %s617
      %p619 = scmp.eq.s32.totalorder %s40, 0
      %p620 = por %p618, %p619
      %s621 = ssub.s32 %s42, %s49
      %p622 = scmp.eq.s32.totalorder %s621, 0
      %s624 = sadd.s32 %s623, 1
      %s625 = scalar_select %p622, %s623, %s624
      %p628 = pneg %p622
      %p629 = scmp.eq.s32.totalorder %s34, 3
      %p630 = por %p628, %p629
      %p631 = scmp.ne.s32.totalorder %s623, %s626
      %p632 = scmp.eq.s32.totalorder %s34, 0
      %p633 = por %p631, %p632
      %p634 = scmp.ne.s32.totalorder %s623, %s626
      %p635 = scmp.eq.s32.totalorder %s39, 3
      %p636 = por %p634, %p635
      %p637 = scmp.ne.s32.totalorder %s626, %s627
      %p638 = scmp.eq.s32.totalorder %s39, 0
      %p639 = por %p637, %p638
      %p640 = scmp.ne.s32.totalorder %s626, %s627
      %p641 = scmp.eq.s32.totalorder %s40, 3
      %p642 = por %p640, %p641
      %p644 = scmp.ne.s32.totalorder %s627, %s643
      %p645 = scmp.eq.s32.totalorder %s40, 0
      %p646 = por %p644, %p645
      %s647 = ssub.s32 %s42, %s49
      %p648 = scmp.eq.s32.totalorder %s647, 0
      %s650 = sadd.s32 %s649, 1
      %s651 = scalar_select %p648, %s649, %s650
      %p654 = pneg %p648
      %p655 = scmp.eq.s32.totalorder %s34, 3
      %p656 = por %p654, %p655
      %p657 = scmp.ne.s32.totalorder %s649, %s652
      %p658 = scmp.eq.s32.totalorder %s34, 0
      %p659 = por %p657, %p658
      %p660 = scmp.ne.s32.totalorder %s649, %s652
      %p661 = scmp.eq.s32.totalorder %s39, 3
      %p662 = por %p660, %p661
      %p663 = scmp.ne.s32.totalorder %s652, %s653
      %p664 = scmp.eq.s32.totalorder %s39, 0
      %p665 = por %p663, %p664
      %p666 = scmp.ne.s32.totalorder %s652, %s653
      %p667 = scmp.eq.s32.totalorder %s40, 3
      %p668 = por %p666, %p667
      %p670 = scmp.ne.s32.totalorder %s653, %s669
      %p671 = scmp.eq.s32.totalorder %s40, 0
      %p672 = por %p670, %p671
      %s673 = ssub.s32 %s42, %s49
      %p674 = scmp.eq.s32.totalorder %s673, 0
      %s676 = sadd.s32 %s675, 1
      %s677 = scalar_select %p674, %s675, %s676
      %p680 = pneg %p674
      %p681 = scmp.eq.s32.totalorder %s34, 3
      %p682 = por %p680, %p681
      %p683 = scmp.ne.s32.totalorder %s675, %s678
      %p684 = scmp.eq.s32.totalorder %s34, 0
      %p685 = por %p683, %p684
      %p686 = scmp.ne.s32.totalorder %s675, %s678
      %p687 = scmp.eq.s32.totalorder %s39, 3
      %p688 = por %p686, %p687
      %p689 = scmp.ne.s32.totalorder %s678, %s679
      %p690 = scmp.eq.s32.totalorder %s39, 0
      %p691 = por %p689, %p690
      %p692 = scmp.ne.s32.totalorder %s678, %s679
      %p693 = scmp.eq.s32.totalorder %s40, 3
      %p694 = por %p692, %p693
      %p696 = scmp.ne.s32.totalorder %s679, %s695
      %p697 = scmp.eq.s32.totalorder %s40, 0
      %p698 = por %p696, %p697
      %s699 = ssub.s32 %s41, %s53
      %p700 = scmp.eq.s32.totalorder %s699, 0
      %s702 = sadd.s32 %s701, 1
      %s703 = scalar_select %p700, %s701, %s702
      %p706 = pneg %p700
      %p707 = scmp.eq.s32.totalorder %s34, 3
      %p708 = por %p706, %p707
      %p709 = scmp.ne.s32.totalorder %s701, %s704
      %p710 = scmp.eq.s32.totalorder %s34, 0
      %p711 = por %p709, %p710
      %p712 = scmp.ne.s32.totalorder %s701, %s704
      %p713 = scmp.eq.s32.totalorder %s39, 3
      %p714 = por %p712, %p713
      %p715 = scmp.ne.s32.totalorder %s704, %s705
      %p716 = scmp.eq.s32.totalorder %s39, 0
      %p717 = por %p715, %p716
      %p718 = scmp.ne.s32.totalorder %s704, %s705
      %p719 = scmp.eq.s32.totalorder %s40, 3
      %p720 = por %p718, %p719
      %p722 = scmp.ne.s32.totalorder %s705, %s721
      %p723 = scmp.eq.s32.totalorder %s40, 0
      %p724 = por %p722, %p723
      %p725 = scmp.le.s32.totalorder 1, %s34
      %p726 = scmp.lt.s32.totalorder %s34, 5
      %p727 = pnand %p725, %p726
      %p728 = pneg %p727
      // Predicated region
      $region9: #{encoder_decoder_forward.3} parent=5 // pred_check
        _
      $region10: #{encoder_decoder_forward.3} parent=5 // pred_check_branch
        %730 = sbr.rel (%p727) target = $region12
      $region11: #{encoder_decoder_forward.3} parent=5 // pred_region
        %s731 = ssub.s32 %s34, 1
        // Predicated region
        $region13: #{encoder_decoder_forward.3} parent=11 // pred_check
          %p732 = pneg %p119
        $region14: #{encoder_decoder_forward.3} parent=11 // pred_check_branch
          %734 = sbr.rel (%p732) target = $region16
        $region15: #{encoder_decoder_forward.3} parent=11 // pred_region
          _
        $region16: #{encoder_decoder_forward.3} parent=11 // pred_fallthru
          _
      $region12: #{encoder_decoder_forward.3} parent=5 // pred_fallthru
        _
      %p735 = scmp.lt.s32.totalorder %s34, 4
      // Predicated region
      $region17: #{encoder_decoder_forward.3} parent=5 // pred_check
        %p736 = pneg %p735
      $region18: #{encoder_decoder_forward.3} parent=5 // pred_check_branch
        %738 = sbr.rel (%p736) target = $region20
      $region19: #{encoder_decoder_forward.3} parent=5 // pred_region
        // Predicated region
        $region21: #{encoder_decoder_forward.3} parent=19 // pred_check
          %p739 = pneg %p66
        $region22: #{encoder_decoder_forward.3} parent=19 // pred_check_branch
          %741 = sbr.rel (%p739) target = $region24
        $region23: #{encoder_decoder_forward.3} parent=19 // pred_region
          %p742 = scmp.lt.s32.totalorder %s41, 1
          %s743 = scalar_select %p742, %s41, 1
          %s744 = smul.addr %s743, 8
          %s745 = scalar_lea.vmem %s0, %s744
        $region24: #{encoder_decoder_forward.3} parent=19 // pred_fallthru
          _
        // Predicated region
        $region25: #{encoder_decoder_forward.3} parent=19 // pred_check
          %p746 = pneg %p92
        $region26: #{encoder_decoder_forward.3} parent=19 // pred_check_branch
          %748 = sbr.rel (%p746) target = $region28
        $region27: #{encoder_decoder_forward.3} parent=19 // pred_region
          %p749 = scmp.lt.s32.totalorder %s41, 1
          %s750 = scalar_select %p749, %s41, 1
          %s751 = smul.addr %s750, 8
          %s752 = scalar_lea.vmem %s1, %s751
        $region28: #{encoder_decoder_forward.3} parent=19 // pred_fallthru
          _
        // Predicated region
        $region29: #{encoder_decoder_forward.3} parent=19 // pred_check
          %p753 = pneg %p139
        $region30: #{encoder_decoder_forward.3} parent=19 // pred_check_branch
          %755 = sbr.rel (%p753) target = $region32
        $region31: #{encoder_decoder_forward.3} parent=19 // pred_region
          %p756 = scmp.lt.s32.totalorder %s42, 1
          %s757 = scalar_select %p756, %s42, 1
          %s758 = smul.addr %s757, 4
          %s759 = smul.addr %s758, 4
          %s760 = scalar_lea.vmem %s3, %s759
        $region32: #{encoder_decoder_forward.3} parent=19 // pred_fallthru
          _
        // Predicated region
        $region33: #{encoder_decoder_forward.3} parent=19 // pred_check
          %p761 = pneg %p165
        $region34: #{encoder_decoder_forward.3} parent=19 // pred_check_branch
          %763 = sbr.rel (%p761) target = $region36
        $region35: #{encoder_decoder_forward.3} parent=19 // pred_region
          %p764 = scmp.lt.s32.totalorder %s42, 1
          %s765 = scalar_select %p764, %s42, 1
          %s766 = scalar_lea.vmem %s4, %s765
        $region36: #{encoder_decoder_forward.3} parent=19 // pred_fallthru
          _
        // Predicated region
        $region37: #{encoder_decoder_forward.3} parent=19 // pred_check
          %p767 = pneg %p191
        $region38: #{encoder_decoder_forward.3} parent=19 // pred_check_branch
          %769 = sbr.rel (%p767) target = $region40
        $region39: #{encoder_decoder_forward.3} parent=19 // pred_region
          %p770 = scmp.lt.s32.totalorder %s42, 1
          %s771 = scalar_select %p770, %s42, 1
          %s772 = smul.addr %s771, 4
          %s773 = smul.addr %s772, 4
          %s774 = scalar_lea.vmem %s5, %s773
        $region40: #{encoder_decoder_forward.3} parent=19 // pred_fallthru
          _
        // Predicated region
        $region41: #{encoder_decoder_forward.3} parent=19 // pred_check
          %p775 = pneg %p217
        $region42: #{encoder_decoder_forward.3} parent=19 // pred_check_branch
          %777 = sbr.rel (%p775) target = $region44
        $region43: #{encoder_decoder_forward.3} parent=19 // pred_region
          %p778 = scmp.lt.s32.totalorder %s42, 1
          %s779 = scalar_select %p778, %s42, 1
          %s780 = scalar_lea.vmem %s6, %s779
        $region44: #{encoder_decoder_forward.3} parent=19 // pred_fallthru
          _
        // Predicated region
        $region45: #{encoder_decoder_forward.3} parent=19 // pred_check
          %p781 = pneg %p243
        $region46: #{encoder_decoder_forward.3} parent=19 // pred_check_branch
          %783 = sbr.rel (%p781) target = $region48
        $region47: #{encoder_decoder_forward.3} parent=19 // pred_region
          %p784 = scmp.lt.s32.totalorder %s42, 1
          %s785 = scalar_select %p784, %s42, 1
          %s786 = smul.addr %s785, 4
          %s787 = smul.addr %s786, 4
          %s788 = scalar_lea.vmem %s7, %s787
        $region48: #{encoder_decoder_forward.3} parent=19 // pred_fallthru
          _
        // Predicated region
        $region49: #{encoder_decoder_forward.3} parent=19 // pred_check
          %p789 = pneg %p269
        $region50: #{encoder_decoder_forward.3} parent=19 // pred_check_branch
          %791 = sbr.rel (%p789) target = $region52
        $region51: #{encoder_decoder_forward.3} parent=19 // pred_region
          %p792 = scmp.lt.s32.totalorder %s42, 1
          %s793 = scalar_select %p792, %s42, 1
          %s794 = scalar_lea.vmem %s8, %s793
        $region52: #{encoder_decoder_forward.3} parent=19 // pred_fallthru
          _
        // Predicated region
        $region53: #{encoder_decoder_forward.3} parent=19 // pred_check
          %p795 = pneg %p295
        $region54: #{encoder_decoder_forward.3} parent=19 // pred_check_branch
          %797 = sbr.rel (%p795) target = $region56
        $region55: #{encoder_decoder_forward.3} parent=19 // pred_region
          %p798 = scmp.lt.s32.totalorder %s42, 1
          %s799 = scalar_select %p798, %s42, 1
          %s800 = scalar_lea.vmem %s9, %s799
        $region56: #{encoder_decoder_forward.3} parent=19 // pred_fallthru
          _
        // Predicated region
        $region57: #{encoder_decoder_forward.3} parent=19 // pred_check
          %p801 = pneg %p321
        $region58: #{encoder_decoder_forward.3} parent=19 // pred_check_branch
          %803 = sbr.rel (%p801) target = $region60
        $region59: #{encoder_decoder_forward.3} parent=19 // pred_region
          %p804 = scmp.lt.s32.totalorder %s42, 1
          %s805 = scalar_select %p804, %s42, 1
          %s806 = scalar_lea.vmem %s10, %s805
        $region60: #{encoder_decoder_forward.3} parent=19 // pred_fallthru
          _
        // Predicated region
        $region61: #{encoder_decoder_forward.3} parent=19 // pred_check
          %p807 = pneg %p347
        $region62: #{encoder_decoder_forward.3} parent=19 // pred_check_branch
          %809 = sbr.rel (%p807) target = $region64
        $region63: #{encoder_decoder_forward.3} parent=19 // pred_region
          %p810 = scmp.lt.s32.totalorder %s42, 1
          %s811 = scalar_select %p810, %s42, 1
          %s812 = smul.addr %s811, 4
          %s813 = smul.addr %s812, 4
          %s814 = scalar_lea.vmem %s11, %s813
        $region64: #{encoder_decoder_forward.3} parent=19 // pred_fallthru
          _
        // Predicated region
        $region65: #{encoder_decoder_forward.3} parent=19 // pred_check
          %p815 = pneg %p373
        $region66: #{encoder_decoder_forward.3} parent=19 // pred_check_branch
          %817 = sbr.rel (%p815) target = $region68
        $region67: #{encoder_decoder_forward.3} parent=19 // pred_region
          %p818 = scmp.lt.s32.totalorder %s42, 1
          %s819 = scalar_select %p818, %s42, 1
          %s820 = scalar_lea.vmem %s12, %s819
        $region68: #{encoder_decoder_forward.3} parent=19 // pred_fallthru
          _
        // Predicated region
        $region69: #{encoder_decoder_forward.3} parent=19 // pred_check
          %p821 = pneg %p399
        $region70: #{encoder_decoder_forward.3} parent=19 // pred_check_branch
          %823 = sbr.rel (%p821) target = $region72
        $region71: #{encoder_decoder_forward.3} parent=19 // pred_region
          %p824 = scmp.lt.s32.totalorder %s42, 1
          %s825 = scalar_select %p824, %s42, 1
          %s826 = smul.addr %s825, 4
          %s827 = smul.addr %s826, 4
          %s828 = scalar_lea.vmem %s13, %s827
        $region72: #{encoder_decoder_forward.3} parent=19 // pred_fallthru
          _
        // Predicated region
        $region73: #{encoder_decoder_forward.3} parent=19 // pred_check
          %p829 = pneg %p425
        $region74: #{encoder_decoder_forward.3} parent=19 // pred_check_branch
          %831 = sbr.rel (%p829) target = $region76
        $region75: #{encoder_decoder_forward.3} parent=19 // pred_region
          %p832 = scmp.lt.s32.totalorder %s42, 1
          %s833 = scalar_select %p832, %s42, 1
          %s834 = scalar_lea.vmem %s14, %s833
        $region76: #{encoder_decoder_forward.3} parent=19 // pred_fallthru
          _
        // Predicated region
        $region77: #{encoder_decoder_forward.3} parent=19 // pred_check
          %p835 = pneg %p451
        $region78: #{encoder_decoder_forward.3} parent=19 // pred_check_branch
          %837 = sbr.rel (%p835) target = $region80
        $region79: #{encoder_decoder_forward.3} parent=19 // pred_region
          %p838 = scmp.lt.s32.totalorder %s42, 1
          %s839 = scalar_select %p838, %s42, 1
          %s840 = smul.addr %s839, 4
          %s841 = smul.addr %s840, 4
          %s842 = scalar_lea.vmem %s15, %s841
        $region80: #{encoder_decoder_forward.3} parent=19 // pred_fallthru
          _
        // Predicated region
        $region81: #{encoder_decoder_forward.3} parent=19 // pred_check
          %p843 = pneg %p477
        $region82: #{encoder_decoder_forward.3} parent=19 // pred_check_branch
          %845 = sbr.rel (%p843) target = $region84
        $region83: #{encoder_decoder_forward.3} parent=19 // pred_region
          %p846 = scmp.lt.s32.totalorder %s42, 1
          %s847 = scalar_select %p846, %s42, 1
          %s848 = scalar_lea.vmem %s16, %s847
        $region84: #{encoder_decoder_forward.3} parent=19 // pred_fallthru
          _
        // Predicated region
        $region85: #{encoder_decoder_forward.3} parent=19 // pred_check
          %p849 = pneg %p503
        $region86: #{encoder_decoder_forward.3} parent=19 // pred_check_branch
          %851 = sbr.rel (%p849) target = $region88
        $region87: #{encoder_decoder_forward.3} parent=19 // pred_region
          %p852 = scmp.lt.s32.totalorder %s42, 1
          %s853 = scalar_select %p852, %s42, 1
          %s854 = scalar_lea.vmem %s17, %s853
        $region88: #{encoder_decoder_forward.3} parent=19 // pred_fallthru
          _
        // Predicated region
        $region89: #{encoder_decoder_forward.3} parent=19 // pred_check
          %p855 = pneg %p529
        $region90: #{encoder_decoder_forward.3} parent=19 // pred_check_branch
          %857 = sbr.rel (%p855) target = $region92
        $region91: #{encoder_decoder_forward.3} parent=19 // pred_region
          %p858 = scmp.lt.s32.totalorder %s42, 1
          %s859 = scalar_select %p858, %s42, 1
          %s860 = scalar_lea.vmem %s18, %s859
        $region92: #{encoder_decoder_forward.3} parent=19 // pred_fallthru
          _
        // Predicated region
        $region93: #{encoder_decoder_forward.3} parent=19 // pred_check
          %p861 = pneg %p555
        $region94: #{encoder_decoder_forward.3} parent=19 // pred_check_branch
          %863 = sbr.rel (%p861) target = $region96
        $region95: #{encoder_decoder_forward.3} parent=19 // pred_region
          %p864 = scmp.lt.s32.totalorder %s42, 1
          %s865 = scalar_select %p864, %s42, 1
          %s866 = smul.addr %s865, 64
          %s867 = smul.addr %s866, 4
          %s868 = scalar_lea.vmem %s19, %s867
        $region96: #{encoder_decoder_forward.3} parent=19 // pred_fallthru
          _
        // Predicated region
        $region97: #{encoder_decoder_forward.3} parent=19 // pred_check
          %p869 = pneg %p581
        $region98: #{encoder_decoder_forward.3} parent=19 // pred_check_branch
          %871 = sbr.rel (%p869) target = $region100
        $region99: #{encoder_decoder_forward.3} parent=19 // pred_region
          %p872 = scmp.lt.s32.totalorder %s42, 1
          %s873 = scalar_select %p872, %s42, 1
          %s874 = smul.addr %s873, 16
          %s875 = scalar_lea.vmem %s20, %s874
        $region100: #{encoder_decoder_forward.3} parent=19 // pred_fallthru
          _
        // Predicated region
        $region101: #{encoder_decoder_forward.3} parent=19 // pred_check
          %p876 = pneg %p607
        $region102: #{encoder_decoder_forward.3} parent=19 // pred_check_branch
          %878 = sbr.rel (%p876) target = $region104
        $region103: #{encoder_decoder_forward.3} parent=19 // pred_region
          %p879 = scmp.lt.s32.totalorder %s42, 1
          %s880 = scalar_select %p879, %s42, 1
          %s881 = smul.addr %s880, 256
          %s882 = smul.addr %s881, 4
          %s883 = scalar_lea.vmem %s21, %s882
        $region104: #{encoder_decoder_forward.3} parent=19 // pred_fallthru
          _
        // Predicated region
        $region105: #{encoder_decoder_forward.3} parent=19 // pred_check
          %p884 = pneg %p633
        $region106: #{encoder_decoder_forward.3} parent=19 // pred_check_branch
          %886 = sbr.rel (%p884) target = $region108
        $region107: #{encoder_decoder_forward.3} parent=19 // pred_region
          %p887 = scmp.lt.s32.totalorder %s42, 1
          %s888 = scalar_select %p887, %s42, 1
          %s889 = scalar_lea.vmem %s22, %s888
        $region108: #{encoder_decoder_forward.3} parent=19 // pred_fallthru
          _
        // Predicated region
        $region109: #{encoder_decoder_forward.3} parent=19 // pred_check
          %p890 = pneg %p659
        $region110: #{encoder_decoder_forward.3} parent=19 // pred_check_branch
          %892 = sbr.rel (%p890) target = $region112
        $region111: #{encoder_decoder_forward.3} parent=19 // pred_region
          %p893 = scmp.lt.s32.totalorder %s42, 1
          %s894 = scalar_select %p893, %s42, 1
          %s895 = scalar_lea.vmem %s23, %s894
        $region112: #{encoder_decoder_forward.3} parent=19 // pred_fallthru
          _
        // Predicated region
        $region113: #{encoder_decoder_forward.3} parent=19 // pred_check
          %p896 = pneg %p685
        $region114: #{encoder_decoder_forward.3} parent=19 // pred_check_branch
          %898 = sbr.rel (%p896) target = $region116
        $region115: #{encoder_decoder_forward.3} parent=19 // pred_region
          %p899 = scmp.lt.s32.totalorder %s42, 1
          %s900 = scalar_select %p899, %s42, 1
          %s901 = scalar_lea.vmem %s24, %s900
        $region116: #{encoder_decoder_forward.3} parent=19 // pred_fallthru
          _
      $region20: #{encoder_decoder_forward.3} parent=5 // pred_fallthru
        _
      %p902 = scmp.le.s32.totalorder 1, %s34
      %p903 = scmp.lt.s32.totalorder %s34, 5
      %p904 = pnand %p902, %p903
      %p905 = pneg %p904
      // Predicated region
      $region117: #{encoder_decoder_forward.3} parent=5 // pred_check
        _
      $region118: #{encoder_decoder_forward.3} parent=5 // pred_check_branch
        %907 = sbr.rel (%p904) target = $region120
      $region119: #{encoder_decoder_forward.3} parent=5 // pred_region
        %s908 = ssub.s32 %s34, 1
        %p909 = scmp.lt.s32.totalorder %s43, 1
        %s910 = scalar_select %p909, %s43, 1
        %s911 = smul.addr %s910, 8
        %s912 = scalar_lea.vmem %s0, %s911
        %p913 = pneg %p72
        %p914 = pneg %p69
        %p915 = scmp.lt.s32.totalorder %s43, 1
        %s916 = scalar_select %p915, %s43, 1
        %s917 = smul.addr %s916, 8
        %s918 = scalar_lea.vmem %s1, %s917
        %p919 = pneg %p98
        %p920 = pneg %p95
        %p921 = pneg %p119
        %p922 = pneg %p116
        %p923 = scmp.lt.s32.totalorder %s44, 1
        %s924 = scalar_select %p923, %s44, 1
        %s925 = smul.addr %s924, 4
        %s926 = smul.addr %s925, 4
        %s927 = scalar_lea.vmem %s3, %s926
        %p928 = pneg %p145
        %p929 = pneg %p142
        %p930 = scmp.lt.s32.totalorder %s44, 1
        %s931 = scalar_select %p930, %s44, 1
        %s932 = scalar_lea.vmem %s4, %s931
        %p933 = pneg %p171
        %p934 = pneg %p168
        %p935 = scmp.lt.s32.totalorder %s44, 1
        %s936 = scalar_select %p935, %s44, 1
        %s937 = smul.addr %s936, 4
        %s938 = smul.addr %s937, 4
        %s939 = scalar_lea.vmem %s5, %s938
        %p940 = pneg %p197
        %p941 = pneg %p194
        %p942 = scmp.lt.s32.totalorder %s44, 1
        %s943 = scalar_select %p942, %s44, 1
        %s944 = scalar_lea.vmem %s6, %s943
        %p945 = pneg %p223
        %p946 = pneg %p220
        %p947 = scmp.lt.s32.totalorder %s44, 1
        %s948 = scalar_select %p947, %s44, 1
        %s949 = smul.addr %s948, 4
        %s950 = smul.addr %s949, 4
        %s951 = scalar_lea.vmem %s7, %s950
        %p952 = pneg %p249
        %p953 = pneg %p246
        %p954 = scmp.lt.s32.totalorder %s44, 1
        %s955 = scalar_select %p954, %s44, 1
        %s956 = scalar_lea.vmem %s8, %s955
        %p957 = pneg %p275
        %p958 = pneg %p272
        %p959 = scmp.lt.s32.totalorder %s44, 1
        %s960 = scalar_select %p959, %s44, 1
        %s961 = scalar_lea.vmem %s9, %s960
        %p962 = pneg %p301
        %p963 = pneg %p298
        %p964 = scmp.lt.s32.totalorder %s44, 1
        %s965 = scalar_select %p964, %s44, 1
        %s966 = scalar_lea.vmem %s10, %s965
        %p967 = pneg %p327
        %p968 = pneg %p324
        %p969 = scmp.lt.s32.totalorder %s44, 1
        %s970 = scalar_select %p969, %s44, 1
        %s971 = smul.addr %s970, 4
        %s972 = smul.addr %s971, 4
        %s973 = scalar_lea.vmem %s11, %s972
        %p974 = pneg %p353
        %p975 = pneg %p350
        %p976 = scmp.lt.s32.totalorder %s44, 1
        %s977 = scalar_select %p976, %s44, 1
        %s978 = scalar_lea.vmem %s12, %s977
        %p979 = pneg %p379
        %p980 = pneg %p376
        %p981 = scmp.lt.s32.totalorder %s44, 1
        %s982 = scalar_select %p981, %s44, 1
        %s983 = smul.addr %s982, 4
        %s984 = smul.addr %s983, 4
        %s985 = scalar_lea.vmem %s13, %s984
        %p986 = pneg %p405
        %p987 = pneg %p402
        %p988 = scmp.lt.s32.totalorder %s44, 1
        %s989 = scalar_select %p988, %s44, 1
        %s990 = scalar_lea.vmem %s14, %s989
        %p991 = pneg %p431
        %p992 = pneg %p428
        %p993 = scmp.lt.s32.totalorder %s44, 1
        %s994 = scalar_select %p993, %s44, 1
        %s995 = smul.addr %s994, 4
        %s996 = smul.addr %s995, 4
        %s997 = scalar_lea.vmem %s15, %s996
        %p998 = pneg %p457
        %p999 = pneg %p454
        %p1000 = scmp.lt.s32.totalorder %s44, 1
        %s1001 = scalar_select %p1000, %s44, 1
        %s1002 = scalar_lea.vmem %s16, %s1001
        %p1003 = pneg %p483
        %p1004 = pneg %p480
        %p1005 = scmp.lt.s32.totalorder %s44, 1
        %s1006 = scalar_select %p1005, %s44, 1
        %s1007 = scalar_lea.vmem %s17, %s1006
        %p1008 = pneg %p509
        %p1009 = pneg %p506
        %p1010 = scmp.lt.s32.totalorder %s44, 1
        %s1011 = scalar_select %p1010, %s44, 1
        %s1012 = scalar_lea.vmem %s18, %s1011
        %p1013 = pneg %p535
        %p1014 = pneg %p532
        %p1015 = scmp.lt.s32.totalorder %s44, 1
        %s1016 = scalar_select %p1015, %s44, 1
        %s1017 = smul.addr %s1016, 64
        %s1018 = smul.addr %s1017, 4
        %s1019 = scalar_lea.vmem %s19, %s1018
        %p1020 = pneg %p561
        %p1021 = pneg %p558
        %p1022 = scmp.lt.s32.totalorder %s44, 1
        %s1023 = scalar_select %p1022, %s44, 1
        %s1024 = smul.addr %s1023, 16
        %s1025 = scalar_lea.vmem %s20, %s1024
        %p1026 = pneg %p587
        %p1027 = pneg %p584
        %p1028 = scmp.lt.s32.totalorder %s44, 1
        %s1029 = scalar_select %p1028, %s44, 1
        %s1030 = smul.addr %s1029, 256
        %s1031 = smul.addr %s1030, 4
        %s1032 = scalar_lea.vmem %s21, %s1031
        %p1033 = pneg %p613
        %p1034 = pneg %p610
        %p1035 = scmp.lt.s32.totalorder %s44, 1
        %s1036 = scalar_select %p1035, %s44, 1
        %s1037 = scalar_lea.vmem %s22, %s1036
        %p1038 = pneg %p639
        %p1039 = pneg %p636
        %p1040 = scmp.lt.s32.totalorder %s44, 1
        %s1041 = scalar_select %p1040, %s44, 1
        %s1042 = scalar_lea.vmem %s23, %s1041
        %p1043 = pneg %p665
        %p1044 = pneg %p662
        %p1045 = scmp.lt.s32.totalorder %s44, 1
        %s1046 = scalar_select %p1045, %s44, 1
        %s1047 = scalar_lea.vmem %s24, %s1046
        %p1048 = pneg %p691
        %p1049 = pneg %p688
        %p1050 = pneg %p717
        %p1051 = pneg %p714
        %s1052 = sand.u32 %s704, 1
        %s1053 = scalar_lea.sflag [#allocation3], %s1052
        %s1054 = sand.u32 %s704, 1
        %s1055 = smul.addr %s1054, 8
        %s1056 = scalar_lea.vmem [#allocation2], %s1055
        %p1057 = scmp.lt.s32.totalorder %s43, 1
        %s1058 = scalar_select %p1057, %s43, 1
        %s1059 = smul.addr %s1058, 8
        %s1060 = scalar_lea.vmem %s0, %s1059
        %p1061 = scmp.lt.s32.totalorder %s43, 1
        %s1062 = scalar_select %p1061, %s43, 1
        %s1063 = smul.addr %s1062, 8
        %s1064 = scalar_lea.vmem %s1, %s1063
        %p1065 = scmp.lt.s32.totalorder %s44, 1
        %s1066 = scalar_select %p1065, %s44, 1
        %s1067 = smul.addr %s1066, 4
        %s1068 = smul.addr %s1067, 4
        %s1069 = scalar_lea.vmem %s3, %s1068
        %p1070 = scmp.lt.s32.totalorder %s44, 1
        %s1071 = scalar_select %p1070, %s44, 1
        %s1072 = scalar_lea.vmem %s4, %s1071
        %p1073 = scmp.lt.s32.totalorder %s44, 1
        %s1074 = scalar_select %p1073, %s44, 1
        %s1075 = smul.addr %s1074, 4
        %s1076 = smul.addr %s1075, 4
        %s1077 = scalar_lea.vmem %s5, %s1076
        %p1078 = scmp.lt.s32.totalorder %s44, 1
        %s1079 = scalar_select %p1078, %s44, 1
        %s1080 = scalar_lea.vmem %s6, %s1079
        %p1081 = scmp.lt.s32.totalorder %s44, 1
        %s1082 = scalar_select %p1081, %s44, 1
        %s1083 = smul.addr %s1082, 4
        %s1084 = smul.addr %s1083, 4
        %s1085 = scalar_lea.vmem %s7, %s1084
        %p1086 = scmp.lt.s32.totalorder %s44, 1
        %s1087 = scalar_select %p1086, %s44, 1
        %s1088 = scalar_lea.vmem %s8, %s1087
        %p1089 = scmp.lt.s32.totalorder %s44, 1
        %s1090 = scalar_select %p1089, %s44, 1
        %s1091 = scalar_lea.vmem %s9, %s1090
        %p1092 = scmp.lt.s32.totalorder %s44, 1
        %s1093 = scalar_select %p1092, %s44, 1
        %s1094 = scalar_lea.vmem %s10, %s1093
        %p1095 = scmp.lt.s32.totalorder %s44, 1
        %s1096 = scalar_select %p1095, %s44, 1
        %s1097 = smul.addr %s1096, 4
        %s1098 = smul.addr %s1097, 4
        %s1099 = scalar_lea.vmem %s11, %s1098
        %p1100 = scmp.lt.s32.totalorder %s44, 1
        %s1101 = scalar_select %p1100, %s44, 1
        %s1102 = scalar_lea.vmem %s12, %s1101
        %p1103 = scmp.lt.s32.totalorder %s44, 1
        %s1104 = scalar_select %p1103, %s44, 1
        %s1105 = smul.addr %s1104, 4
        %s1106 = smul.addr %s1105, 4
        %s1107 = scalar_lea.vmem %s13, %s1106
        %p1108 = scmp.lt.s32.totalorder %s44, 1
        %s1109 = scalar_select %p1108, %s44, 1
        %s1110 = scalar_lea.vmem %s14, %s1109
        %p1111 = scmp.lt.s32.totalorder %s44, 1
        %s1112 = scalar_select %p1111, %s44, 1
        %s1113 = smul.addr %s1112, 4
        %s1114 = smul.addr %s1113, 4
        %s1115 = scalar_lea.vmem %s15, %s1114
        %p1116 = scmp.lt.s32.totalorder %s44, 1
        %s1117 = scalar_select %p1116, %s44, 1
        %s1118 = scalar_lea.vmem %s16, %s1117
        %p1119 = scmp.lt.s32.totalorder %s44, 1
        %s1120 = scalar_select %p1119, %s44, 1
        %s1121 = scalar_lea.vmem %s17, %s1120
        %p1122 = scmp.lt.s32.totalorder %s44, 1
        %s1123 = scalar_select %p1122, %s44, 1
        %s1124 = scalar_lea.vmem %s18, %s1123
        %p1125 = scmp.lt.s32.totalorder %s44, 1
        %s1126 = scalar_select %p1125, %s44, 1
        %s1127 = smul.addr %s1126, 64
        %s1128 = smul.addr %s1127, 4
        %s1129 = scalar_lea.vmem %s19, %s1128
        %p1130 = scmp.lt.s32.totalorder %s44, 1
        %s1131 = scalar_select %p1130, %s44, 1
        %s1132 = smul.addr %s1131, 16
        %s1133 = scalar_lea.vmem %s20, %s1132
        %p1134 = scmp.lt.s32.totalorder %s44, 1
        %s1135 = scalar_select %p1134, %s44, 1
        %s1136 = smul.addr %s1135, 256
        %s1137 = smul.addr %s1136, 4
        %s1138 = scalar_lea.vmem %s21, %s1137
        %p1139 = scmp.lt.s32.totalorder %s44, 1
        %s1140 = scalar_select %p1139, %s44, 1
        %s1141 = scalar_lea.vmem %s22, %s1140
        %p1142 = scmp.lt.s32.totalorder %s44, 1
        %s1143 = scalar_select %p1142, %s44, 1
        %s1144 = scalar_lea.vmem %s23, %s1143
        %p1145 = scmp.lt.s32.totalorder %s44, 1
        %s1146 = scalar_select %p1145, %s44, 1
        %s1147 = scalar_lea.vmem %s24, %s1146
        %p1149 = scmp.eq.s32.totalorder %s44, 0
        // Predicated region
        $region121: #{encoder_decoder_forward.3} parent=119 // pred_check
          %p1150 = pneg %p1149
        $region122: #{encoder_decoder_forward.3} parent=119 // pred_check_branch
          %1152 = sbr.rel (%p1150) target = $region124
        $region123: #{encoder_decoder_forward.3} parent=119 // pred_region
          %v1153 = vld [vmem:[%s1060] sm:$0xff]
          %vm1154 = vcmask 261120
          %1155 = vst.msk [vmem:[%s1056] sm:$0xff] %vm1154, %v1153
        $region124: #{encoder_decoder_forward.3} parent=119 // pred_fallthru
          _
        %v1156 = vld [vmem:[%s1056] sm:$0xff]
        %v1157 = vld [vmem:[%s1064] sm:$0xff]
        %v1158 = vld [vmem:[%s2] sm:$0xff]
        %v1159 = vld [vmem:[%s1069] sm:$0xf]
        %v1160 = vld [vmem:[%s1069 + $0x4] sm:$0xf]
        %v1161 = vld [vmem:[%s1069 + $0x8] sm:$0xf]
        %v1162 = vld [vmem:[%s1069 + $0xc] sm:$0xf]
        %v1163 = vld [vmem:[%s1072] sm:$0x1]
        %v1164 = vld [vmem:[%s1077] sm:$0xf]
        %v1165 = vld [vmem:[%s1077 + $0x4] sm:$0xf]
        %v1166 = vld [vmem:[%s1077 + $0x8] sm:$0xf]
        %v1167 = vld [vmem:[%s1077 + $0xc] sm:$0xf]
        %v1168 = vld [vmem:[%s1080] sm:$0x1]
        %v1169 = vld [vmem:[%s1085] sm:$0xf]
        %v1170 = vld [vmem:[%s1085 + $0x4] sm:$0xf]
        %v1171 = vld [vmem:[%s1085 + $0x8] sm:$0xf]
        %v1172 = vld [vmem:[%s1085 + $0xc] sm:$0xf]
        %v1173 = vld [vmem:[%s1088] sm:$0x1]
        %v1174 = vpack.c.bf16 %v1156, %v1156
        %v1176 = vperm.slane %v1163, 0
        %v1182 = vunpack.c.l.b16 %v1159
        %v1183 = vunpack.c.l.b16 %v1160
        %v1184 = vunpack.c.l.b16 %v1161
        %v1185 = vunpack.c.l.b16 %v1162
        %v1186 = vpack.c.b16 %v1183, %v1182
        %v1187 = vpack.c.b16 %v1185, %v1184
        %vm1190 = vcmask 261120
        %v1192 = vsel %vm1190, %v1174, 0
        %1194 = vmatpush.bf16.msra.mxu0 0
        %1195 = vmatpush.bf16.msra.mxu0 0
        %1196 = vmatpush.bf16.msra.mxu0 0
        %1197 = vmatpush.bf16.msra.mxu0 0
        %1198 = vmatpush.bf16.msra.mxu0 0
        %1199 = vmatpush.bf16.msra.mxu0 0
        %1200 = vmatpush.bf16.msra.mxu0 %v1187
        %1201 = vmatpush.bf16.msra.mxu0 %v1186
        %1202 = vmatmul.bf16.gmra.mxu0 %v1192
        %v1203 = vpop.f32.mrf.mxu0
        %v1204 = vadd.f32 %v1176, %v1203
        %v1205 = vpop.f32.mrf.mxu0
        %1206 = vdwg.mxu0
        %v1207 = vmul.f32 %v1204, 0.35355338
        %v1209 = vperm.slane %v1168, 0
        %v1215 = vunpack.c.l.b16 %v1164
        %v1216 = vunpack.c.l.b16 %v1165
        %v1217 = vunpack.c.l.b16 %v1166
        %v1218 = vunpack.c.l.b16 %v1167
        %v1219 = vpack.c.b16 %v1216, %v1215
        %v1220 = vpack.c.b16 %v1218, %v1217
        %1223 = vmatpush.bf16.msra.mxu0 0
        %1224 = vmatpush.bf16.msra.mxu0 0
        %1225 = vmatpush.bf16.msra.mxu0 0
        %1226 = vmatpush.bf16.msra.mxu0 0
        %1227 = vmatpush.bf16.msra.mxu0 0
        %1228 = vmatpush.bf16.msra.mxu0 0
        %1229 = vmatpush.bf16.msra.mxu0 %v1220
        %1230 = vmatpush.bf16.msra.mxu0 %v1219
        %1231 = vmatmul.bf16.gmra.mxu0 %v1192
        %v1232 = vpop.f32.mrf.mxu0
        %v1233 = vadd.f32 %v1209, %v1232
        %v1234 = vpop.f32.mrf.mxu0
        %1235 = vdwg.mxu0
        %v1236 = vpack.c.bf16 %v1207, %v1207
        %v1237 = vpack.c.bf16 %v1233, %v1233
        %vm1238 = vcmask 64512
        %v1240 = vsel %vm1238, %v1236, 0
        %v1243 = vsel %vm1238, %v1237, 0
        %1245 = vmatpush.bf16.xpose.msra.mxu0 0
        %1246 = vmatpush.bf16.xpose.msra.mxu0 0
        %1247 = vmatpush.bf16.xpose.msra.mxu0 0
        %1248 = vmatpush.bf16.xpose.msra.mxu0 0
        %1249 = vmatpush.bf16.xpose.msra.mxu0 0
        %1250 = vmatpush.bf16.xpose.msra.mxu0 0
        %1251 = vmatpush.bf16.xpose.msra.mxu0 0
        %1252 = vmatpush.bf16.xpose.msra.mxu0 %v1243
        %1253 = vmatmul.bf16.gmra.mxu0 %v1240
        %v1254 = vpop.f32.mrf.mxu0
        %v1255 = vadd.f32 0.0, %v1254
        %v1256 = vpop.f32.mrf.mxu0
        %1257 = vdwg.mxu0
        %vm1258 = vcmp.eq.f32.partialorder %v1158, 0.0
        %v1259 = vsel %vm1258, -1e+09, %v1255
        %v1260 = vsel %vm1238, %v1259, -inf
        %1261 = vmax.xlane.f32.xlu0 %v1260
        %v1262 = vpop.xlane.xlu0 %1261
        %v1263 = vsub.f32 %v1259, %v1262
        %v1264 = vmul.f32 %v1263, 1.442695
        %v1265 = vpow.pop %v1264
        %v1266 = vsel %vm1238, %v1265, 0.0
        %1267 = vadd.xlane.f32.xlu0 %v1266
        %v1268 = vpop.xlane.xlu0 %1267
        %v1269 = vrcp.pop %v1268
        %v1270 = vmul.f32 %v1265, %v1269
        %v1271 = vpack.c.bf16 %v1270, %v1270
        %1273 = vrot.lane.b32.xlu0 %v1237, 96
        %v1274 = vpop.permute.xlu0 %1273
        %v1276 = vsel %vm1238, %v1271, 0
        %vm1278 = vcmask 1043456
        %v1280 = vsel %vm1278, %v1274, 0
        %1282 = vmatpush.bf16.msra.mxu0 0
        %1283 = vmatpush.bf16.msra.mxu0 0
        %1284 = vmatpush.bf16.msra.mxu0 0
        %1285 = vmatpush.bf16.msra.mxu0 0
        %1286 = vmatpush.bf16.msra.mxu0 0
        %1287 = vmatpush.bf16.msra.mxu0 0
        %1288 = vmatpush.bf16.msra.mxu0 0
        %1289 = vmatpush.bf16.msra.mxu0 %v1280
        %1290 = vmatmul.bf16.gmra.mxu0 %v1276
        %v1291 = vpop.f32.mrf.mxu0
        %v1292 = vadd.f32 0.0, %v1291
        %v1293 = vpop.f32.mrf.mxu0
        %1294 = vdwg.mxu0
        %1296 = vrot.lane.b32.xlu0 %v1236, 120
        %v1297 = vpop.permute.xlu0 %1296
        %1298 = vrot.lane.b32.xlu0 %v1237, 120
        %v1299 = vpop.permute.xlu0 %1298
        %v1301 = vsel %vm1238, %v1297, 0
        %v1304 = vsel %vm1238, %v1299, 0
        %1306 = vmatpush.bf16.xpose.msra.mxu0 0
        %1307 = vmatpush.bf16.xpose.msra.mxu0 0
        %1308 = vmatpush.bf16.xpose.msra.mxu0 0
        %1309 = vmatpush.bf16.xpose.msra.mxu0 0
        %1310 = vmatpush.bf16.xpose.msra.mxu0 0
        %1311 = vmatpush.bf16.xpose.msra.mxu0 0
        %1312 = vmatpush.bf16.xpose.msra.mxu0 0
        %1313 = vmatpush.bf16.xpose.msra.mxu0 %v1304
        %1314 = vmatmul.bf16.gmra.mxu0 %v1301
        %v1315 = vpop.f32.mrf.mxu0
        %v1316 = vadd.f32 0.0, %v1315
        %v1317 = vpop.f32.mrf.mxu0
        %1318 = vdwg.mxu0
        %v1319 = vsel %vm1258, -1e+09, %v1316
        %v1320 = vsel %vm1238, %v1319, -inf
        %1321 = vmax.xlane.f32.xlu0 %v1320
        %v1322 = vpop.xlane.xlu0 %1321
        %v1323 = vsub.f32 %v1319, %v1322
        %v1324 = vmul.f32 %v1323, 1.442695
        %v1325 = vpow.pop %v1324
        %v1326 = vsel %vm1238, %v1325, 0.0
        %1327 = vadd.xlane.f32.xlu0 %v1326
        %v1328 = vpop.xlane.xlu0 %1327
        %v1329 = vrcp.pop %v1328
        %v1330 = vmul.f32 %v1325, %v1329
        %v1331 = vpack.c.bf16 %v1330, %v1330
        %1332 = vrot.lane.b32.xlu0 %v1237, 88
        %v1333 = vpop.permute.xlu0 %1332
        %v1335 = vsel %vm1238, %v1331, 0
        %v1338 = vsel %vm1278, %v1333, 0
        %1340 = vmatpush.bf16.msra.mxu0 0
        %1341 = vmatpush.bf16.msra.mxu0 0
        %1342 = vmatpush.bf16.msra.mxu0 0
        %1343 = vmatpush.bf16.msra.mxu0 0
        %1344 = vmatpush.bf16.msra.mxu0 0
        %1345 = vmatpush.bf16.msra.mxu0 0
        %1346 = vmatpush.bf16.msra.mxu0 0
        %1347 = vmatpush.bf16.msra.mxu0 %v1338
        %1348 = vmatmul.bf16.gmra.mxu0 %v1335
        %v1349 = vpop.f32.mrf.mxu0
        %v1350 = vadd.f32 0.0, %v1349
        %v1351 = vpop.f32.mrf.mxu0
        %1352 = vdwg.mxu0
        %1353 = vrot.lane.b32.xlu0 %v1236, 112
        %v1354 = vpop.permute.xlu0 %1353
        %1355 = vrot.lane.b32.xlu0 %v1237, 112
        %v1356 = vpop.permute.xlu0 %1355
        %v1358 = vsel %vm1238, %v1354, 0
        %v1361 = vsel %vm1238, %v1356, 0
        %1363 = vmatpush.bf16.xpose.msra.mxu0 0
        %1364 = vmatpush.bf16.xpose.msra.mxu0 0
        %1365 = vmatpush.bf16.xpose.msra.mxu0 0
        %1366 = vmatpush.bf16.xpose.msra.mxu0 0
        %1367 = vmatpush.bf16.xpose.msra.mxu0 0
        %1368 = vmatpush.bf16.xpose.msra.mxu0 0
        %1369 = vmatpush.bf16.xpose.msra.mxu0 0
        %1370 = vmatpush.bf16.xpose.msra.mxu0 %v1361
        %1371 = vmatmul.bf16.gmra.mxu0 %v1358
        %v1372 = vpop.f32.mrf.mxu0
        %v1373 = vadd.f32 0.0, %v1372
        %v1374 = vpop.f32.mrf.mxu0
        %1375 = vdwg.mxu0
        %v1376 = vsel %vm1258, -1e+09, %v1373
        %v1377 = vsel %vm1238, %v1376, -inf
        %1378 = vmax.xlane.f32.xlu0 %v1377
        %v1379 = vpop.xlane.xlu0 %1378
        %v1380 = vsub.f32 %v1376, %v1379
        %v1381 = vmul.f32 %v1380, 1.442695
        %v1382 = vpow.pop %v1381
        %v1383 = vsel %vm1238, %v1382, 0.0
        %1384 = vadd.xlane.f32.xlu0 %v1383
        %v1385 = vpop.xlane.xlu0 %1384
        %v1386 = vrcp.pop %v1385
        %v1387 = vmul.f32 %v1382, %v1386
        %v1388 = vpack.c.bf16 %v1387, %v1387
        %1389 = vrot.lane.b32.xlu0 %v1237, 80
        %v1390 = vpop.permute.xlu0 %1389
        %v1392 = vsel %vm1238, %v1388, 0
        %v1395 = vsel %vm1278, %v1390, 0
        %1397 = vmatpush.bf16.msra.mxu0 0
        %1398 = vmatpush.bf16.msra.mxu0 0
        %1399 = vmatpush.bf16.msra.mxu0 0
        %1400 = vmatpush.bf16.msra.mxu0 0
        %1401 = vmatpush.bf16.msra.mxu0 0
        %1402 = vmatpush.bf16.msra.mxu0 0
        %1403 = vmatpush.bf16.msra.mxu0 0
        %1404 = vmatpush.bf16.msra.mxu0 %v1395
        %1405 = vmatmul.bf16.gmra.mxu0 %v1392
        %v1406 = vpop.f32.mrf.mxu0
        %v1407 = vadd.f32 0.0, %v1406
        %v1408 = vpop.f32.mrf.mxu0
        %1409 = vdwg.mxu0
        %1410 = vrot.lane.b32.xlu0 %v1236, 104
        %v1411 = vpop.permute.xlu0 %1410
        %1412 = vrot.lane.b32.xlu0 %v1237, 104
        %v1413 = vpop.permute.xlu0 %1412
        %v1415 = vsel %vm1238, %v1411, 0
        %v1418 = vsel %vm1238, %v1413, 0
        %1420 = vmatpush.bf16.xpose.msra.mxu0 0
        %1421 = vmatpush.bf16.xpose.msra.mxu0 0
        %1422 = vmatpush.bf16.xpose.msra.mxu0 0
        %1423 = vmatpush.bf16.xpose.msra.mxu0 0
        %1424 = vmatpush.bf16.xpose.msra.mxu0 0
        %1425 = vmatpush.bf16.xpose.msra.mxu0 0
        %1426 = vmatpush.bf16.xpose.msra.mxu0 0
        %1427 = vmatpush.bf16.xpose.msra.mxu0 %v1418
        %1428 = vmatmul.bf16.gmra.mxu0 %v1415
        %v1429 = vpop.f32.mrf.mxu0
        %v1430 = vadd.f32 0.0, %v1429
        %v1431 = vpop.f32.mrf.mxu0
        %1432 = vdwg.mxu0
        %v1433 = vsel %vm1258, -1e+09, %v1430
        %v1434 = vsel %vm1238, %v1433, -inf
        %1435 = vmax.xlane.f32.xlu0 %v1434
        %v1436 = vpop.xlane.xlu0 %1435
        %v1437 = vsub.f32 %v1433, %v1436
        %v1438 = vmul.f32 %v1437, 1.442695
        %v1439 = vpow.pop %v1438
        %v1440 = vsel %vm1238, %v1439, 0.0
        %1441 = vadd.xlane.f32.xlu0 %v1440
        %v1442 = vpop.xlane.xlu0 %1441
        %v1443 = vrcp.pop %v1442
        %v1444 = vmul.f32 %v1439, %v1443
        %v1445 = vpack.c.bf16 %v1444, %v1444
        %1446 = vrot.lane.b32.xlu0 %v1237, 72
        %v1447 = vpop.permute.xlu0 %1446
        %v1449 = vsel %vm1238, %v1445, 0
        %v1452 = vsel %vm1278, %v1447, 0
        %1454 = vmatpush.bf16.msra.mxu0 0
        %1455 = vmatpush.bf16.msra.mxu0 0
        %1456 = vmatpush.bf16.msra.mxu0 0
        %1457 = vmatpush.bf16.msra.mxu0 0
        %1458 = vmatpush.bf16.msra.mxu0 0
        %1459 = vmatpush.bf16.msra.mxu0 0
        %1460 = vmatpush.bf16.msra.mxu0 0
        %1461 = vmatpush.bf16.msra.mxu0 %v1452
        %1462 = vmatmul.bf16.gmra.mxu0 %v1449
        %v1463 = vpop.f32.mrf.mxu0
        %v1464 = vadd.f32 0.0, %v1463
        %v1465 = vpop.f32.mrf.mxu0
        %1466 = vdwg.mxu0
        %1468 = vrot.lane.b32.xlu0 %v1350, 8
        %v1469 = vpop.permute.xlu0 %1468
        %1472 = vrot.lane.b32.xlu0 %v1407, 16
        %v1473 = vpop.permute.xlu0 %1472
        %1476 = vrot.lane.b32.xlu0 %v1464, 24
        %v1477 = vpop.permute.xlu0 %1476
        %v1479 = vsel %vm1238, %v1292, %v1469
        %vm1480 = vcmask 130048
        %v1481 = vsel %vm1480, %v1479, %v1473
        %vm1482 = vcmask 195584
        %v1483 = vsel %vm1482, %v1481, %v1477
        %v1484 = vpack.c.bf16 %v1483, %v1483
        %v1486 = vperm.slane %v1173, 0
        %v1492 = vunpack.c.l.b16 %v1169
        %v1493 = vunpack.c.l.b16 %v1170
        %v1494 = vunpack.c.l.b16 %v1171
        %v1495 = vunpack.c.l.b16 %v1172
        %v1496 = vpack.c.b16 %v1493, %v1492
        %v1497 = vpack.c.b16 %v1495, %v1494
        %v1501 = vsel %vm1190, %v1484, 0
        %1503 = vmatpush.bf16.msra.mxu0 0
        %1504 = vmatpush.bf16.msra.mxu0 0
        %1505 = vmatpush.bf16.msra.mxu0 0
        %1506 = vmatpush.bf16.msra.mxu0 0
        %1507 = vmatpush.bf16.msra.mxu0 0
        %1508 = vmatpush.bf16.msra.mxu0 0
        %1509 = vmatpush.bf16.msra.mxu0 %v1497
        %1510 = vmatpush.bf16.msra.mxu0 %v1496
        %1511 = vmatmul.bf16.gmra.mxu0 %v1501
        %v1512 = vpop.f32.mrf.mxu0
        %v1513 = vadd.f32 %v1486, %v1512
        %v1514 = vpop.f32.mrf.mxu0
        %1515 = vdwg.mxu0
        %v1516 = vld [vmem:[%s1091] sm:$0x1]
        %v1517 = vld [vmem:[%s1094] sm:$0x1]
        %v1518 = vadd.f32 %v1156, %v1513
        %v1519 = vsel %vm1190, %v1518, 0.0
        %1520 = vadd.xlane.f32.xlu0 %v1519
        %v1521 = vpop.xlane.xlu0 %1520
        %v1522 = vrcp.pop 32.0
        %v1523 = vmul.f32 32.0, %v1522
        %v1524 = vsub.f32 1.0, %v1523
        %v1525 = vmul.f32 %v1522, %v1524
        %v1526 = vadd.f32 %v1522, %v1525
        %vm1527 = vweird.f32 %v1522
        %v1528 = vsel %vm1527, %v1522, %v1526
        %v1529 = vmul.f32 %v1521, %v1528
        %v1530 = vsub.f32 %v1518, %v1529
        %v1531 = vmul.f32 %v1530, %v1530
        %v1532 = vsel %vm1190, %v1531, 0.0
        %1533 = vadd.xlane.f32.xlu0 %v1532
        %v1534 = vpop.xlane.xlu0 %1533
        %v1535 = vmul.f32 %v1534, 0.032258064
        %v1537 = vperm.slane %v1516, 0
        %v1539 = vmul.f32 %v1537, %v1530
        %v1540 = vrsqrt.pop %v1535
        %v1541 = vmul.f32 %v1540, %v1535
        %v1542 = vmul.f32 %v1541, %v1540
        %v1543 = vmul.f32 0.5, %v1542
        %v1544 = vsub.f32 1.5, %v1543
        %v1545 = vmul.f32 %v1540, %v1544
        %v1546 = vmul.f32 %v1535, %v1545
        %vm1547 = vcmp.eq.f32.partialorder %v1535, inf
        %v1548 = vsel %vm1547, %v1535, %v1546
        %vm1549 = vcmp.eq.f32.partialorder %v1535, 0.0
        %v1550 = vand.u32 %v1535, 2147483648
        %v1551 = vsel %vm1549, %v1550, %v1548
        %v1552 = vadd.f32 %v1551, 1e-06
        %v1553 = vrcp.pop %v1552
        %v1554 = vmul.f32 %v1552, %v1553
        %v1555 = vsub.f32 1.0, %v1554
        %v1556 = vmul.f32 %v1553, %v1555
        %v1557 = vadd.f32 %v1553, %v1556
        %vm1558 = vweird.f32 %v1552
        %vm1559 = vweird.f32 %v1553
        %vm1560 = vmor %vm1558, %vm1559
        %v1561 = vsel %vm1560, %v1553, %v1557
        %v1562 = vand.u32 2147483647, %v1552
        %vm1563 = vcmp.eq.f32.partialorder %v1562, 8.507059e+37
        %v1564 = vand.u32 %v1552, 2147483648
        %v1565 = vor.u32 1.1754944e-38, %v1564
        %v1566 = vsel %vm1563, %v1565, %v1561
        %v1567 = vmul.f32 %v1539, %v1566
        %v1569 = vperm.slane %v1517, 0
        %v1571 = vadd.f32 %v1567, %v1569
        %v1572 = vld [vmem:[%s1099] sm:$0xf]
        %v1573 = vld [vmem:[%s1099 + $0x4] sm:$0xf]
        %v1574 = vld [vmem:[%s1099 + $0x8] sm:$0xf]
        %v1575 = vld [vmem:[%s1099 + $0xc] sm:$0xf]
        %v1576 = vld [vmem:[%s1102] sm:$0x1]
        %v1577 = vld [vmem:[%s1107] sm:$0xf]
        %v1578 = vld [vmem:[%s1107 + $0x4] sm:$0xf]
        %v1579 = vld [vmem:[%s1107 + $0x8] sm:$0xf]
        %v1580 = vld [vmem:[%s1107 + $0xc] sm:$0xf]
        %v1581 = vld [vmem:[%s1110] sm:$0x1]
        %v1582 = vld [vmem:[%s1115] sm:$0xf]
        %v1583 = vld [vmem:[%s1115 + $0x4] sm:$0xf]
        %v1584 = vld [vmem:[%s1115 + $0x8] sm:$0xf]
        %v1585 = vld [vmem:[%s1115 + $0xc] sm:$0xf]
        %v1586 = vld [vmem:[%s1118] sm:$0x1]
        %v1587 = vpack.c.bf16 %v1571, %v1571
        %v1589 = vperm.slane %v1576, 0
        %v1595 = vunpack.c.l.b16 %v1572
        %v1596 = vunpack.c.l.b16 %v1573
        %v1597 = vunpack.c.l.b16 %v1574
        %v1598 = vunpack.c.l.b16 %v1575
        %v1599 = vpack.c.b16 %v1596, %v1595
        %v1600 = vpack.c.b16 %v1598, %v1597
        %v1604 = vsel %vm1190, %v1587, 0
        %1606 = vmatpush.bf16.msra.mxu0 0
        %1607 = vmatpush.bf16.msra.mxu0 0
        %1608 = vmatpush.bf16.msra.mxu0 0
        %1609 = vmatpush.bf16.msra.mxu0 0
        %1610 = vmatpush.bf16.msra.mxu0 0
        %1611 = vmatpush.bf16.msra.mxu0 0
        %1612 = vmatpush.bf16.msra.mxu0 %v1600
        %1613 = vmatpush.bf16.msra.mxu0 %v1599
        %1614 = vmatmul.bf16.gmra.mxu0 %v1604
        %v1615 = vpop.f32.mrf.mxu0
        %v1616 = vadd.f32 %v1589, %v1615
        %v1617 = vpop.f32.mrf.mxu0
        %1618 = vdwg.mxu0
        %v1619 = vmul.f32 %v1616, 0.35355338
        %v1620 = vpack.c.bf16 %v1157, %v1157
        %v1622 = vperm.slane %v1581, 0
        %v1628 = vunpack.c.l.b16 %v1577
        %v1629 = vunpack.c.l.b16 %v1578
        %v1630 = vunpack.c.l.b16 %v1579
        %v1631 = vunpack.c.l.b16 %v1580
        %v1632 = vpack.c.b16 %v1629, %v1628
        %v1633 = vpack.c.b16 %v1631, %v1630
        %v1637 = vsel %vm1190, %v1620, 0
        %1639 = vmatpush.bf16.msra.mxu0 0
        %1640 = vmatpush.bf16.msra.mxu0 0
        %1641 = vmatpush.bf16.msra.mxu0 0
        %1642 = vmatpush.bf16.msra.mxu0 0
        %1643 = vmatpush.bf16.msra.mxu0 0
        %1644 = vmatpush.bf16.msra.mxu0 0
        %1645 = vmatpush.bf16.msra.mxu0 %v1633
        %1646 = vmatpush.bf16.msra.mxu0 %v1632
        %1647 = vmatmul.bf16.gmra.mxu0 %v1637
        %v1648 = vpop.f32.mrf.mxu0
        %v1649 = vadd.f32 %v1622, %v1648
        %v1650 = vpop.f32.mrf.mxu0
        %1651 = vdwg.mxu0
        %v1652 = vpack.c.bf16 %v1619, %v1619
        %v1653 = vpack.c.bf16 %v1649, %v1649
        %v1655 = vsel %vm1238, %v1652, 0
        %v1658 = vsel %vm1238, %v1653, 0
        %1660 = vmatpush.bf16.xpose.msra.mxu0 0
        %1661 = vmatpush.bf16.xpose.msra.mxu0 0
        %1662 = vmatpush.bf16.xpose.msra.mxu0 0
        %1663 = vmatpush.bf16.xpose.msra.mxu0 0
        %1664 = vmatpush.bf16.xpose.msra.mxu0 0
        %1665 = vmatpush.bf16.xpose.msra.mxu0 0
        %1666 = vmatpush.bf16.xpose.msra.mxu0 0
        %1667 = vmatpush.bf16.xpose.msra.mxu0 %v1658
        %1668 = vmatmul.bf16.gmra.mxu0 %v1655
        %v1669 = vpop.f32.mrf.mxu0
        %v1670 = vadd.f32 0.0, %v1669
        %v1671 = vpop.f32.mrf.mxu0
        %1672 = vdwg.mxu0
        %v1673 = vsel %vm1238, %v1670, -inf
        %1674 = vmax.xlane.f32.xlu0 %v1673
        %v1675 = vpop.xlane.xlu0 %1674
        %v1676 = vsub.f32 %v1670, %v1675
        %v1677 = vmul.f32 %v1676, 1.442695
        %v1678 = vpow.pop %v1677
        %v1679 = vsel %vm1238, %v1678, 0.0
        %1680 = vadd.xlane.f32.xlu0 %v1679
        %v1681 = vpop.xlane.xlu0 %1680
        %v1682 = vrcp.pop %v1681
        %v1683 = vmul.f32 %v1678, %v1682
        %v1684 = vpack.c.bf16 %v1683, %v1683
        %1686 = vrot.lane.b32.xlu0 %v1653, 96
        %v1687 = vpop.permute.xlu0 %1686
        %v1689 = vsel %vm1238, %v1684, 0
        %v1692 = vsel %vm1278, %v1687, 0
        %1694 = vmatpush.bf16.msra.mxu0 0
        %1695 = vmatpush.bf16.msra.mxu0 0
        %1696 = vmatpush.bf16.msra.mxu0 0
        %1697 = vmatpush.bf16.msra.mxu0 0
        %1698 = vmatpush.bf16.msra.mxu0 0
        %1699 = vmatpush.bf16.msra.mxu0 0
        %1700 = vmatpush.bf16.msra.mxu0 0
        %1701 = vmatpush.bf16.msra.mxu0 %v1692
        %1702 = vmatmul.bf16.gmra.mxu0 %v1689
        %v1703 = vpop.f32.mrf.mxu0
        %v1704 = vadd.f32 0.0, %v1703
        %v1705 = vpop.f32.mrf.mxu0
        %1706 = vdwg.mxu0
        %1708 = vrot.lane.b32.xlu0 %v1652, 120
        %v1709 = vpop.permute.xlu0 %1708
        %1710 = vrot.lane.b32.xlu0 %v1653, 120
        %v1711 = vpop.permute.xlu0 %1710
        %v1713 = vsel %vm1238, %v1709, 0
        %v1716 = vsel %vm1238, %v1711, 0
        %1718 = vmatpush.bf16.xpose.msra.mxu0 0
        %1719 = vmatpush.bf16.xpose.msra.mxu0 0
        %1720 = vmatpush.bf16.xpose.msra.mxu0 0
        %1721 = vmatpush.bf16.xpose.msra.mxu0 0
        %1722 = vmatpush.bf16.xpose.msra.mxu0 0
        %1723 = vmatpush.bf16.xpose.msra.mxu0 0
        %1724 = vmatpush.bf16.xpose.msra.mxu0 0
        %1725 = vmatpush.bf16.xpose.msra.mxu0 %v1716
        %1726 = vmatmul.bf16.gmra.mxu0 %v1713
        %v1727 = vpop.f32.mrf.mxu0
        %v1728 = vadd.f32 0.0, %v1727
        %v1729 = vpop.f32.mrf.mxu0
        %1730 = vdwg.mxu0
        %v1731 = vsel %vm1238, %v1728, -inf
        %1732 = vmax.xlane.f32.xlu0 %v1731
        %v1733 = vpop.xlane.xlu0 %1732
        %v1734 = vsub.f32 %v1728, %v1733
        %v1735 = vmul.f32 %v1734, 1.442695
        %v1736 = vpow.pop %v1735
        %v1737 = vsel %vm1238, %v1736, 0.0
        %1738 = vadd.xlane.f32.xlu0 %v1737
        %v1739 = vpop.xlane.xlu0 %1738
        %v1740 = vrcp.pop %v1739
        %v1741 = vmul.f32 %v1736, %v1740
        %v1742 = vpack.c.bf16 %v1741, %v1741
        %1743 = vrot.lane.b32.xlu0 %v1653, 88
        %v1744 = vpop.permute.xlu0 %1743
        %v1746 = vsel %vm1238, %v1742, 0
        %v1749 = vsel %vm1278, %v1744, 0
        %1751 = vmatpush.bf16.msra.mxu0 0
        %1752 = vmatpush.bf16.msra.mxu0 0
        %1753 = vmatpush.bf16.msra.mxu0 0
        %1754 = vmatpush.bf16.msra.mxu0 0
        %1755 = vmatpush.bf16.msra.mxu0 0
        %1756 = vmatpush.bf16.msra.mxu0 0
        %1757 = vmatpush.bf16.msra.mxu0 0
        %1758 = vmatpush.bf16.msra.mxu0 %v1749
        %1759 = vmatmul.bf16.gmra.mxu0 %v1746
        %v1760 = vpop.f32.mrf.mxu0
        %v1761 = vadd.f32 0.0, %v1760
        %v1762 = vpop.f32.mrf.mxu0
        %1763 = vdwg.mxu0
        %1764 = vrot.lane.b32.xlu0 %v1652, 112
        %v1765 = vpop.permute.xlu0 %1764
        %1766 = vrot.lane.b32.xlu0 %v1653, 112
        %v1767 = vpop.permute.xlu0 %1766
        %v1769 = vsel %vm1238, %v1765, 0
        %v1772 = vsel %vm1238, %v1767, 0
        %1774 = vmatpush.bf16.xpose.msra.mxu0 0
        %1775 = vmatpush.bf16.xpose.msra.mxu0 0
        %1776 = vmatpush.bf16.xpose.msra.mxu0 0
        %1777 = vmatpush.bf16.xpose.msra.mxu0 0
        %1778 = vmatpush.bf16.xpose.msra.mxu0 0
        %1779 = vmatpush.bf16.xpose.msra.mxu0 0
        %1780 = vmatpush.bf16.xpose.msra.mxu0 0
        %1781 = vmatpush.bf16.xpose.msra.mxu0 %v1772
        %1782 = vmatmul.bf16.gmra.mxu0 %v1769
        %v1783 = vpop.f32.mrf.mxu0
        %v1784 = vadd.f32 0.0, %v1783
        %v1785 = vpop.f32.mrf.mxu0
        %1786 = vdwg.mxu0
        %v1787 = vsel %vm1238, %v1784, -inf
        %1788 = vmax.xlane.f32.xlu0 %v1787
        %v1789 = vpop.xlane.xlu0 %1788
        %v1790 = vsub.f32 %v1784, %v1789
        %v1791 = vmul.f32 %v1790, 1.442695
        %v1792 = vpow.pop %v1791
        %v1793 = vsel %vm1238, %v1792, 0.0
        %1794 = vadd.xlane.f32.xlu0 %v1793
        %v1795 = vpop.xlane.xlu0 %1794
        %v1796 = vrcp.pop %v1795
        %v1797 = vmul.f32 %v1792, %v1796
        %v1798 = vpack.c.bf16 %v1797, %v1797
        %1799 = vrot.lane.b32.xlu0 %v1653, 80
        %v1800 = vpop.permute.xlu0 %1799
        %v1802 = vsel %vm1238, %v1798, 0
        %v1805 = vsel %vm1278, %v1800, 0
        %1807 = vmatpush.bf16.msra.mxu0 0
        %1808 = vmatpush.bf16.msra.mxu0 0
        %1809 = vmatpush.bf16.msra.mxu0 0
        %1810 = vmatpush.bf16.msra.mxu0 0
        %1811 = vmatpush.bf16.msra.mxu0 0
        %1812 = vmatpush.bf16.msra.mxu0 0
        %1813 = vmatpush.bf16.msra.mxu0 0
        %1814 = vmatpush.bf16.msra.mxu0 %v1805
        %1815 = vmatmul.bf16.gmra.mxu0 %v1802
        %v1816 = vpop.f32.mrf.mxu0
        %v1817 = vadd.f32 0.0, %v1816
        %v1818 = vpop.f32.mrf.mxu0
        %1819 = vdwg.mxu0
        %1820 = vrot.lane.b32.xlu0 %v1652, 104
        %v1821 = vpop.permute.xlu0 %1820
        %1822 = vrot.lane.b32.xlu0 %v1653, 104
        %v1823 = vpop.permute.xlu0 %1822
        %v1825 = vsel %vm1238, %v1821, 0
        %v1828 = vsel %vm1238, %v1823, 0
        %1830 = vmatpush.bf16.xpose.msra.mxu0 0
        %1831 = vmatpush.bf16.xpose.msra.mxu0 0
        %1832 = vmatpush.bf16.xpose.msra.mxu0 0
        %1833 = vmatpush.bf16.xpose.msra.mxu0 0
        %1834 = vmatpush.bf16.xpose.msra.mxu0 0
        %1835 = vmatpush.bf16.xpose.msra.mxu0 0
        %1836 = vmatpush.bf16.xpose.msra.mxu0 0
        %1837 = vmatpush.bf16.xpose.msra.mxu0 %v1828
        %1838 = vmatmul.bf16.gmra.mxu0 %v1825
        %v1839 = vpop.f32.mrf.mxu0
        %v1840 = vadd.f32 0.0, %v1839
        %v1841 = vpop.f32.mrf.mxu0
        %1842 = vdwg.mxu0
        %v1843 = vsel %vm1238, %v1840, -inf
        %1844 = vmax.xlane.f32.xlu0 %v1843
        %v1845 = vpop.xlane.xlu0 %1844
        %v1846 = vsub.f32 %v1840, %v1845
        %v1847 = vmul.f32 %v1846, 1.442695
        %v1848 = vpow.pop %v1847
        %v1849 = vsel %vm1238, %v1848, 0.0
        %1850 = vadd.xlane.f32.xlu0 %v1849
        %v1851 = vpop.xlane.xlu0 %1850
        %v1852 = vrcp.pop %v1851
        %v1853 = vmul.f32 %v1848, %v1852
        %v1854 = vpack.c.bf16 %v1853, %v1853
        %1855 = vrot.lane.b32.xlu0 %v1653, 72
        %v1856 = vpop.permute.xlu0 %1855
        %v1858 = vsel %vm1238, %v1854, 0
        %v1861 = vsel %vm1278, %v1856, 0
        %1863 = vmatpush.bf16.msra.mxu0 0
        %1864 = vmatpush.bf16.msra.mxu0 0
        %1865 = vmatpush.bf16.msra.mxu0 0
        %1866 = vmatpush.bf16.msra.mxu0 0
        %1867 = vmatpush.bf16.msra.mxu0 0
        %1868 = vmatpush.bf16.msra.mxu0 0
        %1869 = vmatpush.bf16.msra.mxu0 0
        %1870 = vmatpush.bf16.msra.mxu0 %v1861
        %1871 = vmatmul.bf16.gmra.mxu0 %v1858
        %v1872 = vpop.f32.mrf.mxu0
        %v1873 = vadd.f32 0.0, %v1872
        %v1874 = vpop.f32.mrf.mxu0
        %1875 = vdwg.mxu0
        %1877 = vrot.lane.b32.xlu0 %v1761, 8
        %v1878 = vpop.permute.xlu0 %1877
        %1881 = vrot.lane.b32.xlu0 %v1817, 16
        %v1882 = vpop.permute.xlu0 %1881
        %1885 = vrot.lane.b32.xlu0 %v1873, 24
        %v1886 = vpop.permute.xlu0 %1885
        %v1888 = vsel %vm1238, %v1704, %v1878
        %v1889 = vsel %vm1480, %v1888, %v1882
        %v1890 = vsel %vm1482, %v1889, %v1886
        %v1891 = vpack.c.bf16 %v1890, %v1890
        %v1893 = vperm.slane %v1586, 0
        %v1899 = vunpack.c.l.b16 %v1582
        %v1900 = vunpack.c.l.b16 %v1583
        %v1901 = vunpack.c.l.b16 %v1584
        %v1902 = vunpack.c.l.b16 %v1585
        %v1903 = vpack.c.b16 %v1900, %v1899
        %v1904 = vpack.c.b16 %v1902, %v1901
        %v1908 = vsel %vm1190, %v1891, 0
        %1910 = vmatpush.bf16.msra.mxu0 0
        %1911 = vmatpush.bf16.msra.mxu0 0
        %1912 = vmatpush.bf16.msra.mxu0 0
        %1913 = vmatpush.bf16.msra.mxu0 0
        %1914 = vmatpush.bf16.msra.mxu0 0
        %1915 = vmatpush.bf16.msra.mxu0 0
        %1916 = vmatpush.bf16.msra.mxu0 %v1904
        %1917 = vmatpush.bf16.msra.mxu0 %v1903
        %1918 = vmatmul.bf16.gmra.mxu0 %v1908
        %v1919 = vpop.f32.mrf.mxu0
        %v1920 = vadd.f32 %v1893, %v1919
        %v1921 = vpop.f32.mrf.mxu0
        %1922 = vdwg.mxu0
        %v1923 = vld [vmem:[%s1121] sm:$0x1]
        %v1924 = vld [vmem:[%s1124] sm:$0x1]
        %v1925 = vadd.f32 %v1571, %v1920
        %v1926 = vsel %vm1190, %v1925, 0.0
        %1927 = vadd.xlane.f32.xlu0 %v1926
        %v1928 = vpop.xlane.xlu0 %1927
        %v1929 = vmul.f32 %v1928, %v1528
        %v1930 = vsub.f32 %v1925, %v1929
        %v1931 = vmul.f32 %v1930, %v1930
        %v1932 = vsel %vm1190, %v1931, 0.0
        %1933 = vadd.xlane.f32.xlu0 %v1932
        %v1934 = vpop.xlane.xlu0 %1933
        %v1935 = vmul.f32 %v1934, 0.032258064
        %v1937 = vperm.slane %v1923, 0
        %v1939 = vmul.f32 %v1937, %v1930
        %v1940 = vrsqrt.pop %v1935
        %v1941 = vmul.f32 %v1940, %v1935
        %v1942 = vmul.f32 %v1941, %v1940
        %v1943 = vmul.f32 0.5, %v1942
        %v1944 = vsub.f32 1.5, %v1943
        %v1945 = vmul.f32 %v1940, %v1944
        %v1946 = vmul.f32 %v1935, %v1945
        %vm1947 = vcmp.eq.f32.partialorder %v1935, inf
        %v1948 = vsel %vm1947, %v1935, %v1946
        %vm1949 = vcmp.eq.f32.partialorder %v1935, 0.0
        %v1950 = vand.u32 %v1935, 2147483648
        %v1951 = vsel %vm1949, %v1950, %v1948
        %v1952 = vadd.f32 %v1951, 1e-06
        %v1953 = vrcp.pop %v1952
        %v1954 = vmul.f32 %v1952, %v1953
        %v1955 = vsub.f32 1.0, %v1954
        %v1956 = vmul.f32 %v1953, %v1955
        %v1957 = vadd.f32 %v1953, %v1956
        %vm1958 = vweird.f32 %v1952
        %vm1959 = vweird.f32 %v1953
        %vm1960 = vmor %vm1958, %vm1959
        %v1961 = vsel %vm1960, %v1953, %v1957
        %v1962 = vand.u32 2147483647, %v1952
        %vm1963 = vcmp.eq.f32.partialorder %v1962, 8.507059e+37
        %v1964 = vand.u32 %v1952, 2147483648
        %v1965 = vor.u32 1.1754944e-38, %v1964
        %v1966 = vsel %vm1963, %v1965, %v1961
        %v1967 = vmul.f32 %v1939, %v1966
        %v1969 = vperm.slane %v1924, 0
        %v1971 = vadd.f32 %v1967, %v1969
        %v1972 = vld [vmem:[%s1129] sm:$0xff]
        %v1973 = vld [vmem:[%s1129 + $0x8] sm:$0xff]
        %v1974 = vld [vmem:[%s1129 + $0x10] sm:$0xff]
        %v1975 = vld [vmem:[%s1129 + $0x18] sm:$0xff]
        %v1976 = vld [vmem:[%s1129 + $0x20] sm:$0xff]
        %v1977 = vld [vmem:[%s1129 + $0x28] sm:$0xff]
        %v1978 = vld [vmem:[%s1129 + $0x30] sm:$0xff]
        %v1979 = vld [vmem:[%s1129 + $0x38] sm:$0xff]
        %v1980 = vld [vmem:[%s1129 + $0x40] sm:$0xff]
        %v1981 = vld [vmem:[%s1129 + $0x48] sm:$0xff]
        %v1982 = vld [vmem:[%s1129 + $0x50] sm:$0xff]
        %v1983 = vld [vmem:[%s1129 + $0x58] sm:$0xff]
        %v1984 = vld [vmem:[%s1129 + $0x60] sm:$0xff]
        %v1985 = vld [vmem:[%s1129 + $0x68] sm:$0xff]
        %v1986 = vld [vmem:[%s1129 + $0x70] sm:$0xff]
        %v1987 = vld [vmem:[%s1129 + $0x78] sm:$0xff]
        %v1988 = vld [vmem:[%s1129 + $0x80] sm:$0xff]
        %v1989 = vld [vmem:[%s1129 + $0x88] sm:$0xff]
        %v1990 = vld [vmem:[%s1129 + $0x90] sm:$0xff]
        %v1991 = vld [vmem:[%s1129 + $0x98] sm:$0xff]
        %v1992 = vld [vmem:[%s1129 + $0xa0] sm:$0xff]
        %v1993 = vld [vmem:[%s1129 + $0xa8] sm:$0xff]
        %v1994 = vld [vmem:[%s1129 + $0xb0] sm:$0xff]
        %v1995 = vld [vmem:[%s1129 + $0xb8] sm:$0xff]
        %v1996 = vld [vmem:[%s1129 + $0xc0] sm:$0xff]
        %v1997 = vld [vmem:[%s1129 + $0xc8] sm:$0xff]
        %v1998 = vld [vmem:[%s1129 + $0xd0] sm:$0xff]
        %v1999 = vld [vmem:[%s1129 + $0xd8] sm:$0xff]
        %v2000 = vld [vmem:[%s1129 + $0xe0] sm:$0xff]
        %v2001 = vld [vmem:[%s1129 + $0xe8] sm:$0xff]
        %v2002 = vld [vmem:[%s1129 + $0xf0] sm:$0xff]
        %v2003 = vld [vmem:[%s1129 + $0xf8] sm:$0xff]
        %v2004 = vld [vmem:[%s1133] sm:$0xff]
        %v2005 = vld [vmem:[%s1133 + $0x8] sm:$0xff]
        %v2006 = vld [vmem:[%s1138] sm:$0xf]
        %v2007 = vld [vmem:[%s1138 + $0x4] sm:$0xf]
        %v2008 = vld [vmem:[%s1138 + $0x8] sm:$0xf]
        %v2009 = vld [vmem:[%s1138 + $0xc] sm:$0xf]
        %v2010 = vld [vmem:[%s1138 + $0x10] sm:$0xf]
        %v2011 = vld [vmem:[%s1138 + $0x14] sm:$0xf]
        %v2012 = vld [vmem:[%s1138 + $0x18] sm:$0xf]
        %v2013 = vld [vmem:[%s1138 + $0x1c] sm:$0xf]
        %v2014 = vld [vmem:[%s1138 + $0x20] sm:$0xf]
        %v2015 = vld [vmem:[%s1138 + $0x24] sm:$0xf]
        %v2016 = vld [vmem:[%s1138 + $0x28] sm:$0xf]
        %v2017 = vld [vmem:[%s1138 + $0x2c] sm:$0xf]
        %v2018 = vld [vmem:[%s1138 + $0x30] sm:$0xf]
        %v2019 = vld [vmem:[%s1138 + $0x34] sm:$0xf]
        %v2020 = vld [vmem:[%s1138 + $0x38] sm:$0xf]
        %v2021 = vld [vmem:[%s1138 + $0x3c] sm:$0xf]
        %v2022 = vld [vmem:[%s1138 + $0x40] sm:$0xf]
        %v2023 = vld [vmem:[%s1138 + $0x44] sm:$0xf]
        %v2024 = vld [vmem:[%s1138 + $0x48] sm:$0xf]
        %v2025 = vld [vmem:[%s1138 + $0x4c] sm:$0xf]
        %v2026 = vld [vmem:[%s1138 + $0x50] sm:$0xf]
        %v2027 = vld [vmem:[%s1138 + $0x54] sm:$0xf]
        %v2028 = vld [vmem:[%s1138 + $0x58] sm:$0xf]
        %v2029 = vld [vmem:[%s1138 + $0x5c] sm:$0xf]
        %v2030 = vld [vmem:[%s1138 + $0x60] sm:$0xf]
        %v2031 = vld [vmem:[%s1138 + $0x64] sm:$0xf]
        %v2032 = vld [vmem:[%s1138 + $0x68] sm:$0xf]
        %v2033 = vld [vmem:[%s1138 + $0x6c] sm:$0xf]
        %v2034 = vld [vmem:[%s1138 + $0x70] sm:$0xf]
        %v2035 = vld [vmem:[%s1138 + $0x74] sm:$0xf]
        %v2036 = vld [vmem:[%s1138 + $0x78] sm:$0xf]
        %v2037 = vld [vmem:[%s1138 + $0x7c] sm:$0xf]
        %v2038 = vld [vmem:[%s1138 + $0x80] sm:$0xf]
        %v2039 = vld [vmem:[%s1138 + $0x84] sm:$0xf]
        %v2040 = vld [vmem:[%s1138 + $0x88] sm:$0xf]
        %v2041 = vld [vmem:[%s1138 + $0x8c] sm:$0xf]
        %v2042 = vld [vmem:[%s1138 + $0x90] sm:$0xf]
        %v2043 = vld [vmem:[%s1138 + $0x94] sm:$0xf]
        %v2044 = vld [vmem:[%s1138 + $0x98] sm:$0xf]
        %v2045 = vld [vmem:[%s1138 + $0x9c] sm:$0xf]
        %v2046 = vld [vmem:[%s1138 + $0xa0] sm:$0xf]
        %v2047 = vld [vmem:[%s1138 + $0xa4] sm:$0xf]
        %v2048 = vld [vmem:[%s1138 + $0xa8] sm:$0xf]
        %v2049 = vld [vmem:[%s1138 + $0xac] sm:$0xf]
        %v2050 = vld [vmem:[%s1138 + $0xb0] sm:$0xf]
        %v2051 = vld [vmem:[%s1138 + $0xb4] sm:$0xf]
        %v2052 = vld [vmem:[%s1138 + $0xb8] sm:$0xf]
        %v2053 = vld [vmem:[%s1138 + $0xbc] sm:$0xf]
        %v2054 = vld [vmem:[%s1138 + $0xc0] sm:$0xf]
        %v2055 = vld [vmem:[%s1138 + $0xc4] sm:$0xf]
        %v2056 = vld [vmem:[%s1138 + $0xc8] sm:$0xf]
        %v2057 = vld [vmem:[%s1138 + $0xcc] sm:$0xf]
        %v2058 = vld [vmem:[%s1138 + $0xd0] sm:$0xf]
        %v2059 = vld [vmem:[%s1138 + $0xd4] sm:$0xf]
        %v2060 = vld [vmem:[%s1138 + $0xd8] sm:$0xf]
        %v2061 = vld [vmem:[%s1138 + $0xdc] sm:$0xf]
        %v2062 = vld [vmem:[%s1138 + $0xe0] sm:$0xf]
        %v2063 = vld [vmem:[%s1138 + $0xe4] sm:$0xf]
        %v2064 = vld [vmem:[%s1138 + $0xe8] sm:$0xf]
        %v2065 = vld [vmem:[%s1138 + $0xec] sm:$0xf]
        %v2066 = vld [vmem:[%s1138 + $0xf0] sm:$0xf]
        %v2067 = vld [vmem:[%s1138 + $0xf4] sm:$0xf]
        %v2068 = vld [vmem:[%s1138 + $0xf8] sm:$0xf]
        %v2069 = vld [vmem:[%s1138 + $0xfc] sm:$0xf]
        %v2070 = vld [vmem:[%s1138 + $0x100] sm:$0xf]
        %v2071 = vld [vmem:[%s1138 + $0x104] sm:$0xf]
        %v2072 = vld [vmem:[%s1138 + $0x108] sm:$0xf]
        %v2073 = vld [vmem:[%s1138 + $0x10c] sm:$0xf]
        %v2074 = vld [vmem:[%s1138 + $0x110] sm:$0xf]
        %v2075 = vld [vmem:[%s1138 + $0x114] sm:$0xf]
        %v2076 = vld [vmem:[%s1138 + $0x118] sm:$0xf]
        %v2077 = vld [vmem:[%s1138 + $0x11c] sm:$0xf]
        %v2078 = vld [vmem:[%s1138 + $0x120] sm:$0xf]
        %v2079 = vld [vmem:[%s1138 + $0x124] sm:$0xf]
        %v2080 = vld [vmem:[%s1138 + $0x128] sm:$0xf]
        %v2081 = vld [vmem:[%s1138 + $0x12c] sm:$0xf]
        %v2082 = vld [vmem:[%s1138 + $0x130] sm:$0xf]
        %v2083 = vld [vmem:[%s1138 + $0x134] sm:$0xf]
        %v2084 = vld [vmem:[%s1138 + $0x138] sm:$0xf]
        %v2085 = vld [vmem:[%s1138 + $0x13c] sm:$0xf]
        %v2086 = vld [vmem:[%s1138 + $0x140] sm:$0xf]
        %v2087 = vld [vmem:[%s1138 + $0x144] sm:$0xf]
        %v2088 = vld [vmem:[%s1138 + $0x148] sm:$0xf]
        %v2089 = vld [vmem:[%s1138 + $0x14c] sm:$0xf]
        %v2090 = vld [vmem:[%s1138 + $0x150] sm:$0xf]
        %v2091 = vld [vmem:[%s1138 + $0x154] sm:$0xf]
        %v2092 = vld [vmem:[%s1138 + $0x158] sm:$0xf]
        %v2093 = vld [vmem:[%s1138 + $0x15c] sm:$0xf]
        %v2094 = vld [vmem:[%s1138 + $0x160] sm:$0xf]
        %v2095 = vld [vmem:[%s1138 + $0x164] sm:$0xf]
        %v2096 = vld [vmem:[%s1138 + $0x168] sm:$0xf]
        %v2097 = vld [vmem:[%s1138 + $0x16c] sm:$0xf]
        %v2098 = vld [vmem:[%s1138 + $0x170] sm:$0xf]
        %v2099 = vld [vmem:[%s1138 + $0x174] sm:$0xf]
        %v2100 = vld [vmem:[%s1138 + $0x178] sm:$0xf]
        %v2101 = vld [vmem:[%s1138 + $0x17c] sm:$0xf]
        %v2102 = vld [vmem:[%s1138 + $0x180] sm:$0xf]
        %v2103 = vld [vmem:[%s1138 + $0x184] sm:$0xf]
        %v2104 = vld [vmem:[%s1138 + $0x188] sm:$0xf]
        %v2105 = vld [vmem:[%s1138 + $0x18c] sm:$0xf]
        %v2106 = vld [vmem:[%s1138 + $0x190] sm:$0xf]
        %v2107 = vld [vmem:[%s1138 + $0x194] sm:$0xf]
        %v2108 = vld [vmem:[%s1138 + $0x198] sm:$0xf]
        %v2109 = vld [vmem:[%s1138 + $0x19c] sm:$0xf]
        %v2110 = vld [vmem:[%s1138 + $0x1a0] sm:$0xf]
        %v2111 = vld [vmem:[%s1138 + $0x1a4] sm:$0xf]
        %v2112 = vld [vmem:[%s1138 + $0x1a8] sm:$0xf]
        %v2113 = vld [vmem:[%s1138 + $0x1ac] sm:$0xf]
        %v2114 = vld [vmem:[%s1138 + $0x1b0] sm:$0xf]
        %v2115 = vld [vmem:[%s1138 + $0x1b4] sm:$0xf]
        %v2116 = vld [vmem:[%s1138 + $0x1b8] sm:$0xf]
        %v2117 = vld [vmem:[%s1138 + $0x1bc] sm:$0xf]
        %v2118 = vld [vmem:[%s1138 + $0x1c0] sm:$0xf]
        %v2119 = vld [vmem:[%s1138 + $0x1c4] sm:$0xf]
        %v2120 = vld [vmem:[%s1138 + $0x1c8] sm:$0xf]
        %v2121 = vld [vmem:[%s1138 + $0x1cc] sm:$0xf]
        %v2122 = vld [vmem:[%s1138 + $0x1d0] sm:$0xf]
        %v2123 = vld [vmem:[%s1138 + $0x1d4] sm:$0xf]
        %v2124 = vld [vmem:[%s1138 + $0x1d8] sm:$0xf]
        %v2125 = vld [vmem:[%s1138 + $0x1dc] sm:$0xf]
        %v2126 = vld [vmem:[%s1138 + $0x1e0] sm:$0xf]
        %v2127 = vld [vmem:[%s1138 + $0x1e4] sm:$0xf]
        %v2128 = vld [vmem:[%s1138 + $0x1e8] sm:$0xf]
        %v2129 = vld [vmem:[%s1138 + $0x1ec] sm:$0xf]
        %v2130 = vld [vmem:[%s1138 + $0x1f0] sm:$0xf]
        %v2131 = vld [vmem:[%s1138 + $0x1f4] sm:$0xf]
        %v2132 = vld [vmem:[%s1138 + $0x1f8] sm:$0xf]
        %v2133 = vld [vmem:[%s1138 + $0x1fc] sm:$0xf]
        %v2134 = vld [vmem:[%s1138 + $0x200] sm:$0xf]
        %v2135 = vld [vmem:[%s1138 + $0x204] sm:$0xf]
        %v2136 = vld [vmem:[%s1138 + $0x208] sm:$0xf]
        %v2137 = vld [vmem:[%s1138 + $0x20c] sm:$0xf]
        %v2138 = vld [vmem:[%s1138 + $0x210] sm:$0xf]
        %v2139 = vld [vmem:[%s1138 + $0x214] sm:$0xf]
        %v2140 = vld [vmem:[%s1138 + $0x218] sm:$0xf]
        %v2141 = vld [vmem:[%s1138 + $0x21c] sm:$0xf]
        %v2142 = vld [vmem:[%s1138 + $0x220] sm:$0xf]
        %v2143 = vld [vmem:[%s1138 + $0x224] sm:$0xf]
        %v2144 = vld [vmem:[%s1138 + $0x228] sm:$0xf]
        %v2145 = vld [vmem:[%s1138 + $0x22c] sm:$0xf]
        %v2146 = vld [vmem:[%s1138 + $0x230] sm:$0xf]
        %v2147 = vld [vmem:[%s1138 + $0x234] sm:$0xf]
        %v2148 = vld [vmem:[%s1138 + $0x238] sm:$0xf]
        %v2149 = vld [vmem:[%s1138 + $0x23c] sm:$0xf]
        %v2150 = vld [vmem:[%s1138 + $0x240] sm:$0xf]
        %v2151 = vld [vmem:[%s1138 + $0x244] sm:$0xf]
        %v2152 = vld [vmem:[%s1138 + $0x248] sm:$0xf]
        %v2153 = vld [vmem:[%s1138 + $0x24c] sm:$0xf]
        %v2154 = vld [vmem:[%s1138 + $0x250] sm:$0xf]
        %v2155 = vld [vmem:[%s1138 + $0x254] sm:$0xf]
        %v2156 = vld [vmem:[%s1138 + $0x258] sm:$0xf]
        %v2157 = vld [vmem:[%s1138 + $0x25c] sm:$0xf]
        %v2158 = vld [vmem:[%s1138 + $0x260] sm:$0xf]
        %v2159 = vld [vmem:[%s1138 + $0x264] sm:$0xf]
        %v2160 = vld [vmem:[%s1138 + $0x268] sm:$0xf]
        %v2161 = vld [vmem:[%s1138 + $0x26c] sm:$0xf]
        %v2162 = vld [vmem:[%s1138 + $0x270] sm:$0xf]
        %v2163 = vld [vmem:[%s1138 + $0x274] sm:$0xf]
        %v2164 = vld [vmem:[%s1138 + $0x278] sm:$0xf]
        %v2165 = vld [vmem:[%s1138 + $0x27c] sm:$0xf]
        %v2166 = vld [vmem:[%s1138 + $0x280] sm:$0xf]
        %v2167 = vld [vmem:[%s1138 + $0x284] sm:$0xf]
        %v2168 = vld [vmem:[%s1138 + $0x288] sm:$0xf]
        %v2169 = vld [vmem:[%s1138 + $0x28c] sm:$0xf]
        %v2170 = vld [vmem:[%s1138 + $0x290] sm:$0xf]
        %v2171 = vld [vmem:[%s1138 + $0x294] sm:$0xf]
        %v2172 = vld [vmem:[%s1138 + $0x298] sm:$0xf]
        %v2173 = vld [vmem:[%s1138 + $0x29c] sm:$0xf]
        %v2174 = vld [vmem:[%s1138 + $0x2a0] sm:$0xf]
        %v2175 = vld [vmem:[%s1138 + $0x2a4] sm:$0xf]
        %v2176 = vld [vmem:[%s1138 + $0x2a8] sm:$0xf]
        %v2177 = vld [vmem:[%s1138 + $0x2ac] sm:$0xf]
        %v2178 = vld [vmem:[%s1138 + $0x2b0] sm:$0xf]
        %v2179 = vld [vmem:[%s1138 + $0x2b4] sm:$0xf]
        %v2180 = vld [vmem:[%s1138 + $0x2b8] sm:$0xf]
        %v2181 = vld [vmem:[%s1138 + $0x2bc] sm:$0xf]
        %v2182 = vld [vmem:[%s1138 + $0x2c0] sm:$0xf]
        %v2183 = vld [vmem:[%s1138 + $0x2c4] sm:$0xf]
        %v2184 = vld [vmem:[%s1138 + $0x2c8] sm:$0xf]
        %v2185 = vld [vmem:[%s1138 + $0x2cc] sm:$0xf]
        %v2186 = vld [vmem:[%s1138 + $0x2d0] sm:$0xf]
        %v2187 = vld [vmem:[%s1138 + $0x2d4] sm:$0xf]
        %v2188 = vld [vmem:[%s1138 + $0x2d8] sm:$0xf]
        %v2189 = vld [vmem:[%s1138 + $0x2dc] sm:$0xf]
        %v2190 = vld [vmem:[%s1138 + $0x2e0] sm:$0xf]
        %v2191 = vld [vmem:[%s1138 + $0x2e4] sm:$0xf]
        %v2192 = vld [vmem:[%s1138 + $0x2e8] sm:$0xf]
        %v2193 = vld [vmem:[%s1138 + $0x2ec] sm:$0xf]
        %v2194 = vld [vmem:[%s1138 + $0x2f0] sm:$0xf]
        %v2195 = vld [vmem:[%s1138 + $0x2f4] sm:$0xf]
        %v2196 = vld [vmem:[%s1138 + $0x2f8] sm:$0xf]
        %v2197 = vld [vmem:[%s1138 + $0x2fc] sm:$0xf]
        %v2198 = vld [vmem:[%s1138 + $0x300] sm:$0xf]
        %v2199 = vld [vmem:[%s1138 + $0x304] sm:$0xf]
        %v2200 = vld [vmem:[%s1138 + $0x308] sm:$0xf]
        %v2201 = vld [vmem:[%s1138 + $0x30c] sm:$0xf]
        %v2202 = vld [vmem:[%s1138 + $0x310] sm:$0xf]
        %v2203 = vld [vmem:[%s1138 + $0x314] sm:$0xf]
        %v2204 = vld [vmem:[%s1138 + $0x318] sm:$0xf]
        %v2205 = vld [vmem:[%s1138 + $0x31c] sm:$0xf]
        %v2206 = vld [vmem:[%s1138 + $0x320] sm:$0xf]
        %v2207 = vld [vmem:[%s1138 + $0x324] sm:$0xf]
        %v2208 = vld [vmem:[%s1138 + $0x328] sm:$0xf]
        %v2209 = vld [vmem:[%s1138 + $0x32c] sm:$0xf]
        %v2210 = vld [vmem:[%s1138 + $0x330] sm:$0xf]
        %v2211 = vld [vmem:[%s1138 + $0x334] sm:$0xf]
        %v2212 = vld [vmem:[%s1138 + $0x338] sm:$0xf]
        %v2213 = vld [vmem:[%s1138 + $0x33c] sm:$0xf]
        %v2214 = vld [vmem:[%s1138 + $0x340] sm:$0xf]
        %v2215 = vld [vmem:[%s1138 + $0x344] sm:$0xf]
        %v2216 = vld [vmem:[%s1138 + $0x348] sm:$0xf]
        %v2217 = vld [vmem:[%s1138 + $0x34c] sm:$0xf]
        %v2218 = vld [vmem:[%s1138 + $0x350] sm:$0xf]
        %v2219 = vld [vmem:[%s1138 + $0x354] sm:$0xf]
        %v2220 = vld [vmem:[%s1138 + $0x358] sm:$0xf]
        %v2221 = vld [vmem:[%s1138 + $0x35c] sm:$0xf]
        %v2222 = vld [vmem:[%s1138 + $0x360] sm:$0xf]
        %v2223 = vld [vmem:[%s1138 + $0x364] sm:$0xf]
        %v2224 = vld [vmem:[%s1138 + $0x368] sm:$0xf]
        %v2225 = vld [vmem:[%s1138 + $0x36c] sm:$0xf]
        %v2226 = vld [vmem:[%s1138 + $0x370] sm:$0xf]
        %v2227 = vld [vmem:[%s1138 + $0x374] sm:$0xf]
        %v2228 = vld [vmem:[%s1138 + $0x378] sm:$0xf]
        %v2229 = vld [vmem:[%s1138 + $0x37c] sm:$0xf]
        %v2230 = vld [vmem:[%s1138 + $0x380] sm:$0xf]
        %v2231 = vld [vmem:[%s1138 + $0x384] sm:$0xf]
        %v2232 = vld [vmem:[%s1138 + $0x388] sm:$0xf]
        %v2233 = vld [vmem:[%s1138 + $0x38c] sm:$0xf]
        %v2234 = vld [vmem:[%s1138 + $0x390] sm:$0xf]
        %v2235 = vld [vmem:[%s1138 + $0x394] sm:$0xf]
        %v2236 = vld [vmem:[%s1138 + $0x398] sm:$0xf]
        %v2237 = vld [vmem:[%s1138 + $0x39c] sm:$0xf]
        %v2238 = vld [vmem:[%s1138 + $0x3a0] sm:$0xf]
        %v2239 = vld [vmem:[%s1138 + $0x3a4] sm:$0xf]
        %v2240 = vld [vmem:[%s1138 + $0x3a8] sm:$0xf]
        %v2241 = vld [vmem:[%s1138 + $0x3ac] sm:$0xf]
        %v2242 = vld [vmem:[%s1138 + $0x3b0] sm:$0xf]
        %v2243 = vld [vmem:[%s1138 + $0x3b4] sm:$0xf]
        %v2244 = vld [vmem:[%s1138 + $0x3b8] sm:$0xf]
        %v2245 = vld [vmem:[%s1138 + $0x3bc] sm:$0xf]
        %v2246 = vld [vmem:[%s1138 + $0x3c0] sm:$0xf]
        %v2247 = vld [vmem:[%s1138 + $0x3c4] sm:$0xf]
        %v2248 = vld [vmem:[%s1138 + $0x3c8] sm:$0xf]
        %v2249 = vld [vmem:[%s1138 + $0x3cc] sm:$0xf]
        %v2250 = vld [vmem:[%s1138 + $0x3d0] sm:$0xf]
        %v2251 = vld [vmem:[%s1138 + $0x3d4] sm:$0xf]
        %v2252 = vld [vmem:[%s1138 + $0x3d8] sm:$0xf]
        %v2253 = vld [vmem:[%s1138 + $0x3dc] sm:$0xf]
        %v2254 = vld [vmem:[%s1138 + $0x3e0] sm:$0xf]
        %v2255 = vld [vmem:[%s1138 + $0x3e4] sm:$0xf]
        %v2256 = vld [vmem:[%s1138 + $0x3e8] sm:$0xf]
        %v2257 = vld [vmem:[%s1138 + $0x3ec] sm:$0xf]
        %v2258 = vld [vmem:[%s1138 + $0x3f0] sm:$0xf]
        %v2259 = vld [vmem:[%s1138 + $0x3f4] sm:$0xf]
        %v2260 = vld [vmem:[%s1138 + $0x3f8] sm:$0xf]
        %v2261 = vld [vmem:[%s1138 + $0x3fc] sm:$0xf]
        %v2262 = vld [vmem:[%s1141] sm:$0x1]
        %v2263 = vpack.c.bf16 %v1971, %v1971
        %v2266 = vperm.slane %v2004, 0
        %v2267 = vperm.slane %v2004, 1
        %v2268 = vperm.slane %v2004, 2
        %v2269 = vperm.slane %v2004, 3
        %v2270 = vperm.slane %v2004, 4
        %v2271 = vperm.slane %v2004, 5
        %v2272 = vperm.slane %v2004, 6
        %v2273 = vperm.slane %v2004, 7
        %v2274 = vperm.slane %v2005, 0
        %v2275 = vperm.slane %v2005, 1
        %v2276 = vperm.slane %v2005, 2
        %v2277 = vperm.slane %v2005, 3
        %v2278 = vperm.slane %v2005, 4
        %v2279 = vperm.slane %v2005, 5
        %v2280 = vperm.slane %v2005, 6
        %v2281 = vperm.slane %v2005, 7
        %v2330 = vunpack.c.l.b16 %v1972
        %v2331 = vunpack.c.h.b16 %v1972
        %v2332 = vunpack.c.l.b16 %v1973
        %v2333 = vunpack.c.h.b16 %v1973
        %v2334 = vunpack.c.l.b16 %v1974
        %v2335 = vunpack.c.h.b16 %v1974
        %v2336 = vunpack.c.l.b16 %v1975
        %v2337 = vunpack.c.h.b16 %v1975
        %v2338 = vunpack.c.l.b16 %v1976
        %v2339 = vunpack.c.h.b16 %v1976
        %v2340 = vunpack.c.l.b16 %v1977
        %v2341 = vunpack.c.h.b16 %v1977
        %v2342 = vunpack.c.l.b16 %v1978
        %v2343 = vunpack.c.h.b16 %v1978
        %v2344 = vunpack.c.l.b16 %v1979
        %v2345 = vunpack.c.h.b16 %v1979
        %v2346 = vunpack.c.l.b16 %v1980
        %v2347 = vunpack.c.h.b16 %v1980
        %v2348 = vunpack.c.l.b16 %v1981
        %v2349 = vunpack.c.h.b16 %v1981
        %v2350 = vunpack.c.l.b16 %v1982
        %v2351 = vunpack.c.h.b16 %v1982
        %v2352 = vunpack.c.l.b16 %v1983
        %v2353 = vunpack.c.h.b16 %v1983
        %v2354 = vunpack.c.l.b16 %v1984
        %v2355 = vunpack.c.h.b16 %v1984
        %v2356 = vunpack.c.l.b16 %v1985
        %v2357 = vunpack.c.h.b16 %v1985
        %v2358 = vunpack.c.l.b16 %v1986
        %v2359 = vunpack.c.h.b16 %v1986
        %v2360 = vunpack.c.l.b16 %v1987
        %v2361 = vunpack.c.h.b16 %v1987
        %v2362 = vunpack.c.l.b16 %v1988
        %v2363 = vunpack.c.h.b16 %v1988
        %v2364 = vunpack.c.l.b16 %v1989
        %v2365 = vunpack.c.h.b16 %v1989
        %v2366 = vunpack.c.l.b16 %v1990
        %v2367 = vunpack.c.h.b16 %v1990
        %v2368 = vunpack.c.l.b16 %v1991
        %v2369 = vunpack.c.h.b16 %v1991
        %v2370 = vunpack.c.l.b16 %v1992
        %v2371 = vunpack.c.h.b16 %v1992
        %v2372 = vunpack.c.l.b16 %v1993
        %v2373 = vunpack.c.h.b16 %v1993
        %v2374 = vunpack.c.l.b16 %v1994
        %v2375 = vunpack.c.h.b16 %v1994
        %v2376 = vunpack.c.l.b16 %v1995
        %v2377 = vunpack.c.h.b16 %v1995
        %v2378 = vunpack.c.l.b16 %v1996
        %v2379 = vunpack.c.h.b16 %v1996
        %v2380 = vunpack.c.l.b16 %v1997
        %v2381 = vunpack.c.h.b16 %v1997
        %v2382 = vunpack.c.l.b16 %v1998
        %v2383 = vunpack.c.h.b16 %v1998
        %v2384 = vunpack.c.l.b16 %v1999
        %v2385 = vunpack.c.h.b16 %v1999
        %v2386 = vunpack.c.l.b16 %v2000
        %v2387 = vunpack.c.h.b16 %v2000
        %v2388 = vunpack.c.l.b16 %v2001
        %v2389 = vunpack.c.h.b16 %v2001
        %v2390 = vunpack.c.l.b16 %v2002
        %v2391 = vunpack.c.h.b16 %v2002
        %v2392 = vunpack.c.l.b16 %v2003
        %v2393 = vunpack.c.h.b16 %v2003
        %v2394 = vpack.c.b16 %v2346, %v2330
        %v2395 = vpack.c.b16 %v2347, %v2331
        %v2396 = vpack.c.b16 %v2348, %v2332
        %v2397 = vpack.c.b16 %v2349, %v2333
        %v2398 = vpack.c.b16 %v2350, %v2334
        %v2399 = vpack.c.b16 %v2351, %v2335
        %v2400 = vpack.c.b16 %v2352, %v2336
        %v2401 = vpack.c.b16 %v2353, %v2337
        %v2402 = vpack.c.b16 %v2354, %v2338
        %v2403 = vpack.c.b16 %v2355, %v2339
        %v2404 = vpack.c.b16 %v2356, %v2340
        %v2405 = vpack.c.b16 %v2357, %v2341
        %v2406 = vpack.c.b16 %v2358, %v2342
        %v2407 = vpack.c.b16 %v2359, %v2343
        %v2408 = vpack.c.b16 %v2360, %v2344
        %v2409 = vpack.c.b16 %v2361, %v2345
        %v2410 = vpack.c.b16 %v2378, %v2362
        %v2411 = vpack.c.b16 %v2379, %v2363
        %v2412 = vpack.c.b16 %v2380, %v2364
        %v2413 = vpack.c.b16 %v2381, %v2365
        %v2414 = vpack.c.b16 %v2382, %v2366
        %v2415 = vpack.c.b16 %v2383, %v2367
        %v2416 = vpack.c.b16 %v2384, %v2368
        %v2417 = vpack.c.b16 %v2385, %v2369
        %v2418 = vpack.c.b16 %v2386, %v2370
        %v2419 = vpack.c.b16 %v2387, %v2371
        %v2420 = vpack.c.b16 %v2388, %v2372
        %v2421 = vpack.c.b16 %v2389, %v2373
        %v2422 = vpack.c.b16 %v2390, %v2374
        %v2423 = vpack.c.b16 %v2391, %v2375
        %v2424 = vpack.c.b16 %v2392, %v2376
        %v2425 = vpack.c.b16 %v2393, %v2377
        %v2459 = vsel %vm1190, %v2263, 0
        %2461 = vmatpush.bf16.msra.mxu0 0
        %2462 = vmatpush.bf16.msra.mxu0 0
        %2463 = vmatpush.bf16.msra.mxu0 0
        %2464 = vmatpush.bf16.msra.mxu0 0
        %2465 = vmatpush.bf16.msra.mxu0 0
        %2466 = vmatpush.bf16.msra.mxu0 0
        %2467 = vmatpush.bf16.msra.mxu0 %v2410
        %2468 = vmatpush.bf16.msra.mxu0 %v2394
        %2469 = vmatmul.bf16.gmra.mxu0 %v2459
        %v2470 = vpop.f32.mrf.mxu0
        %v2471 = vadd.f32 %v2266, %v2470
        %v2472 = vpop.f32.mrf.mxu0
        %2473 = vdwg.mxu0
        %2474 = vmatpush.bf16.msra.mxu0 0
        %2475 = vmatpush.bf16.msra.mxu0 0
        %2476 = vmatpush.bf16.msra.mxu0 0
        %2477 = vmatpush.bf16.msra.mxu0 0
        %2478 = vmatpush.bf16.msra.mxu0 0
        %2479 = vmatpush.bf16.msra.mxu0 0
        %2480 = vmatpush.bf16.msra.mxu0 %v2411
        %2481 = vmatpush.bf16.msra.mxu0 %v2395
        %2482 = vmatmul.bf16.gmra.mxu0 %v2459
        %v2483 = vpop.f32.mrf.mxu0
        %v2484 = vadd.f32 %v2267, %v2483
        %v2485 = vpop.f32.mrf.mxu0
        %2486 = vdwg.mxu0
        %2487 = vmatpush.bf16.msra.mxu0 0
        %2488 = vmatpush.bf16.msra.mxu0 0
        %2489 = vmatpush.bf16.msra.mxu0 0
        %2490 = vmatpush.bf16.msra.mxu0 0
        %2491 = vmatpush.bf16.msra.mxu0 0
        %2492 = vmatpush.bf16.msra.mxu0 0
        %2493 = vmatpush.bf16.msra.mxu0 %v2412
        %2494 = vmatpush.bf16.msra.mxu0 %v2396
        %2495 = vmatmul.bf16.gmra.mxu0 %v2459
        %v2496 = vpop.f32.mrf.mxu0
        %v2497 = vadd.f32 %v2268, %v2496
        %v2498 = vpop.f32.mrf.mxu0
        %2499 = vdwg.mxu0
        %2500 = vmatpush.bf16.msra.mxu0 0
        %2501 = vmatpush.bf16.msra.mxu0 0
        %2502 = vmatpush.bf16.msra.mxu0 0
        %2503 = vmatpush.bf16.msra.mxu0 0
        %2504 = vmatpush.bf16.msra.mxu0 0
        %2505 = vmatpush.bf16.msra.mxu0 0
        %2506 = vmatpush.bf16.msra.mxu0 %v2413
        %2507 = vmatpush.bf16.msra.mxu0 %v2397
        %2508 = vmatmul.bf16.gmra.mxu0 %v2459
        %v2509 = vpop.f32.mrf.mxu0
        %v2510 = vadd.f32 %v2269, %v2509
        %v2511 = vpop.f32.mrf.mxu0
        %2512 = vdwg.mxu0
        %2513 = vmatpush.bf16.msra.mxu0 0
        %2514 = vmatpush.bf16.msra.mxu0 0
        %2515 = vmatpush.bf16.msra.mxu0 0
        %2516 = vmatpush.bf16.msra.mxu0 0
        %2517 = vmatpush.bf16.msra.mxu0 0
        %2518 = vmatpush.bf16.msra.mxu0 0
        %2519 = vmatpush.bf16.msra.mxu0 %v2414
        %2520 = vmatpush.bf16.msra.mxu0 %v2398
        %2521 = vmatmul.bf16.gmra.mxu0 %v2459
        %v2522 = vpop.f32.mrf.mxu0
        %v2523 = vadd.f32 %v2270, %v2522
        %v2524 = vpop.f32.mrf.mxu0
        %2525 = vdwg.mxu0
        %2526 = vmatpush.bf16.msra.mxu0 0
        %2527 = vmatpush.bf16.msra.mxu0 0
        %2528 = vmatpush.bf16.msra.mxu0 0
        %2529 = vmatpush.bf16.msra.mxu0 0
        %2530 = vmatpush.bf16.msra.mxu0 0
        %2531 = vmatpush.bf16.msra.mxu0 0
        %2532 = vmatpush.bf16.msra.mxu0 %v2415
        %2533 = vmatpush.bf16.msra.mxu0 %v2399
        %2534 = vmatmul.bf16.gmra.mxu0 %v2459
        %v2535 = vpop.f32.mrf.mxu0
        %v2536 = vadd.f32 %v2271, %v2535
        %v2537 = vpop.f32.mrf.mxu0
        %2538 = vdwg.mxu0
        %2539 = vmatpush.bf16.msra.mxu0 0
        %2540 = vmatpush.bf16.msra.mxu0 0
        %2541 = vmatpush.bf16.msra.mxu0 0
        %2542 = vmatpush.bf16.msra.mxu0 0
        %2543 = vmatpush.bf16.msra.mxu0 0
        %2544 = vmatpush.bf16.msra.mxu0 0
        %2545 = vmatpush.bf16.msra.mxu0 %v2416
        %2546 = vmatpush.bf16.msra.mxu0 %v2400
        %2547 = vmatmul.bf16.gmra.mxu0 %v2459
        %v2548 = vpop.f32.mrf.mxu0
        %v2549 = vadd.f32 %v2272, %v2548
        %v2550 = vpop.f32.mrf.mxu0
        %2551 = vdwg.mxu0
        %2552 = vmatpush.bf16.msra.mxu0 0
        %2553 = vmatpush.bf16.msra.mxu0 0
        %2554 = vmatpush.bf16.msra.mxu0 0
        %2555 = vmatpush.bf16.msra.mxu0 0
        %2556 = vmatpush.bf16.msra.mxu0 0
        %2557 = vmatpush.bf16.msra.mxu0 0
        %2558 = vmatpush.bf16.msra.mxu0 %v2417
        %2559 = vmatpush.bf16.msra.mxu0 %v2401
        %2560 = vmatmul.bf16.gmra.mxu0 %v2459
        %v2561 = vpop.f32.mrf.mxu0
        %v2562 = vadd.f32 %v2273, %v2561
        %v2563 = vpop.f32.mrf.mxu0
        %2564 = vdwg.mxu0
        %2565 = vmatpush.bf16.msra.mxu0 0
        %2566 = vmatpush.bf16.msra.mxu0 0
        %2567 = vmatpush.bf16.msra.mxu0 0
        %2568 = vmatpush.bf16.msra.mxu0 0
        %2569 = vmatpush.bf16.msra.mxu0 0
        %2570 = vmatpush.bf16.msra.mxu0 0
        %2571 = vmatpush.bf16.msra.mxu0 %v2418
        %2572 = vmatpush.bf16.msra.mxu0 %v2402
        %2573 = vmatmul.bf16.gmra.mxu0 %v2459
        %v2574 = vpop.f32.mrf.mxu0
        %v2575 = vadd.f32 %v2274, %v2574
        %v2576 = vpop.f32.mrf.mxu0
        %2577 = vdwg.mxu0
        %2578 = vmatpush.bf16.msra.mxu0 0
        %2579 = vmatpush.bf16.msra.mxu0 0
        %2580 = vmatpush.bf16.msra.mxu0 0
        %2581 = vmatpush.bf16.msra.mxu0 0
        %2582 = vmatpush.bf16.msra.mxu0 0
        %2583 = vmatpush.bf16.msra.mxu0 0
        %2584 = vmatpush.bf16.msra.mxu0 %v2419
        %2585 = vmatpush.bf16.msra.mxu0 %v2403
        %2586 = vmatmul.bf16.gmra.mxu0 %v2459
        %v2587 = vpop.f32.mrf.mxu0
        %v2588 = vadd.f32 %v2275, %v2587
        %v2589 = vpop.f32.mrf.mxu0
        %2590 = vdwg.mxu0
        %2591 = vmatpush.bf16.msra.mxu0 0
        %2592 = vmatpush.bf16.msra.mxu0 0
        %2593 = vmatpush.bf16.msra.mxu0 0
        %2594 = vmatpush.bf16.msra.mxu0 0
        %2595 = vmatpush.bf16.msra.mxu0 0
        %2596 = vmatpush.bf16.msra.mxu0 0
        %2597 = vmatpush.bf16.msra.mxu0 %v2420
        %2598 = vmatpush.bf16.msra.mxu0 %v2404
        %2599 = vmatmul.bf16.gmra.mxu0 %v2459
        %v2600 = vpop.f32.mrf.mxu0
        %v2601 = vadd.f32 %v2276, %v2600
        %v2602 = vpop.f32.mrf.mxu0
        %2603 = vdwg.mxu0
        %2604 = vmatpush.bf16.msra.mxu0 0
        %2605 = vmatpush.bf16.msra.mxu0 0
        %2606 = vmatpush.bf16.msra.mxu0 0
        %2607 = vmatpush.bf16.msra.mxu0 0
        %2608 = vmatpush.bf16.msra.mxu0 0
        %2609 = vmatpush.bf16.msra.mxu0 0
        %2610 = vmatpush.bf16.msra.mxu0 %v2421
        %2611 = vmatpush.bf16.msra.mxu0 %v2405
        %2612 = vmatmul.bf16.gmra.mxu0 %v2459
        %v2613 = vpop.f32.mrf.mxu0
        %v2614 = vadd.f32 %v2277, %v2613
        %v2615 = vpop.f32.mrf.mxu0
        %2616 = vdwg.mxu0
        %2617 = vmatpush.bf16.msra.mxu0 0
        %2618 = vmatpush.bf16.msra.mxu0 0
        %2619 = vmatpush.bf16.msra.mxu0 0
        %2620 = vmatpush.bf16.msra.mxu0 0
        %2621 = vmatpush.bf16.msra.mxu0 0
        %2622 = vmatpush.bf16.msra.mxu0 0
        %2623 = vmatpush.bf16.msra.mxu0 %v2422
        %2624 = vmatpush.bf16.msra.mxu0 %v2406
        %2625 = vmatmul.bf16.gmra.mxu0 %v2459
        %v2626 = vpop.f32.mrf.mxu0
        %v2627 = vadd.f32 %v2278, %v2626
        %v2628 = vpop.f32.mrf.mxu0
        %2629 = vdwg.mxu0
        %2630 = vmatpush.bf16.msra.mxu0 0
        %2631 = vmatpush.bf16.msra.mxu0 0
        %2632 = vmatpush.bf16.msra.mxu0 0
        %2633 = vmatpush.bf16.msra.mxu0 0
        %2634 = vmatpush.bf16.msra.mxu0 0
        %2635 = vmatpush.bf16.msra.mxu0 0
        %2636 = vmatpush.bf16.msra.mxu0 %v2423
        %2637 = vmatpush.bf16.msra.mxu0 %v2407
        %2638 = vmatmul.bf16.gmra.mxu0 %v2459
        %v2639 = vpop.f32.mrf.mxu0
        %v2640 = vadd.f32 %v2279, %v2639
        %v2641 = vpop.f32.mrf.mxu0
        %2642 = vdwg.mxu0
        %2643 = vmatpush.bf16.msra.mxu0 0
        %2644 = vmatpush.bf16.msra.mxu0 0
        %2645 = vmatpush.bf16.msra.mxu0 0
        %2646 = vmatpush.bf16.msra.mxu0 0
        %2647 = vmatpush.bf16.msra.mxu0 0
        %2648 = vmatpush.bf16.msra.mxu0 0
        %2649 = vmatpush.bf16.msra.mxu0 %v2424
        %2650 = vmatpush.bf16.msra.mxu0 %v2408
        %2651 = vmatmul.bf16.gmra.mxu0 %v2459
        %v2652 = vpop.f32.mrf.mxu0
        %v2653 = vadd.f32 %v2280, %v2652
        %v2654 = vpop.f32.mrf.mxu0
        %2655 = vdwg.mxu0
        %2656 = vmatpush.bf16.msra.mxu0 0
        %2657 = vmatpush.bf16.msra.mxu0 0
        %2658 = vmatpush.bf16.msra.mxu0 0
        %2659 = vmatpush.bf16.msra.mxu0 0
        %2660 = vmatpush.bf16.msra.mxu0 0
        %2661 = vmatpush.bf16.msra.mxu0 0
        %2662 = vmatpush.bf16.msra.mxu0 %v2425
        %2663 = vmatpush.bf16.msra.mxu0 %v2409
        %2664 = vmatmul.bf16.gmra.mxu0 %v2459
        %v2665 = vpop.f32.mrf.mxu0
        %v2666 = vadd.f32 %v2281, %v2665
        %v2667 = vpop.f32.mrf.mxu0
        %2668 = vdwg.mxu0
        %v2669 = vmax.f32 %v2471, 0.0
        %v2670 = vmax.f32 %v2484, 0.0
        %v2671 = vmax.f32 %v2497, 0.0
        %v2672 = vmax.f32 %v2510, 0.0
        %v2673 = vmax.f32 %v2523, 0.0
        %v2674 = vmax.f32 %v2536, 0.0
        %v2675 = vmax.f32 %v2549, 0.0
        %v2676 = vmax.f32 %v2562, 0.0
        %v2677 = vmax.f32 %v2575, 0.0
        %v2678 = vmax.f32 %v2588, 0.0
        %v2679 = vmax.f32 %v2601, 0.0
        %v2680 = vmax.f32 %v2614, 0.0
        %v2681 = vmax.f32 %v2627, 0.0
        %v2682 = vmax.f32 %v2640, 0.0
        %v2683 = vmax.f32 %v2653, 0.0
        %v2684 = vmax.f32 %v2666, 0.0
        %v2685 = vpack.c.bf16 %v2669, %v2669
        %v2686 = vpack.c.bf16 %v2670, %v2670
        %v2687 = vpack.c.bf16 %v2671, %v2671
        %v2688 = vpack.c.bf16 %v2672, %v2672
        %v2689 = vpack.c.bf16 %v2673, %v2673
        %v2690 = vpack.c.bf16 %v2674, %v2674
        %v2691 = vpack.c.bf16 %v2675, %v2675
        %v2692 = vpack.c.bf16 %v2676, %v2676
        %v2693 = vpack.c.bf16 %v2677, %v2677
        %v2694 = vpack.c.bf16 %v2678, %v2678
        %v2695 = vpack.c.bf16 %v2679, %v2679
        %v2696 = vpack.c.bf16 %v2680, %v2680
        %v2697 = vpack.c.bf16 %v2681, %v2681
        %v2698 = vpack.c.bf16 %v2682, %v2682
        %v2699 = vpack.c.bf16 %v2683, %v2683
        %v2700 = vpack.c.bf16 %v2684, %v2684
        %v2702 = vperm.slane %v2262, 0
        %v2960 = vunpack.c.l.b16 %v2006
        %v2961 = vunpack.c.l.b16 %v2007
        %v2962 = vunpack.c.l.b16 %v2008
        %v2963 = vunpack.c.l.b16 %v2009
        %v2964 = vunpack.c.l.b16 %v2010
        %v2965 = vunpack.c.l.b16 %v2011
        %v2966 = vunpack.c.l.b16 %v2012
        %v2967 = vunpack.c.l.b16 %v2013
        %v2968 = vunpack.c.l.b16 %v2014
        %v2969 = vunpack.c.l.b16 %v2015
        %v2970 = vunpack.c.l.b16 %v2016
        %v2971 = vunpack.c.l.b16 %v2017
        %v2972 = vunpack.c.l.b16 %v2018
        %v2973 = vunpack.c.l.b16 %v2019
        %v2974 = vunpack.c.l.b16 %v2020
        %v2975 = vunpack.c.l.b16 %v2021
        %v2976 = vunpack.c.l.b16 %v2022
        %v2977 = vunpack.c.l.b16 %v2023
        %v2978 = vunpack.c.l.b16 %v2024
        %v2979 = vunpack.c.l.b16 %v2025
        %v2980 = vunpack.c.l.b16 %v2026
        %v2981 = vunpack.c.l.b16 %v2027
        %v2982 = vunpack.c.l.b16 %v2028
        %v2983 = vunpack.c.l.b16 %v2029
        %v2984 = vunpack.c.l.b16 %v2030
        %v2985 = vunpack.c.l.b16 %v2031
        %v2986 = vunpack.c.l.b16 %v2032
        %v2987 = vunpack.c.l.b16 %v2033
        %v2988 = vunpack.c.l.b16 %v2034
        %v2989 = vunpack.c.l.b16 %v2035
        %v2990 = vunpack.c.l.b16 %v2036
        %v2991 = vunpack.c.l.b16 %v2037
        %v2992 = vunpack.c.l.b16 %v2038
        %v2993 = vunpack.c.l.b16 %v2039
        %v2994 = vunpack.c.l.b16 %v2040
        %v2995 = vunpack.c.l.b16 %v2041
        %v2996 = vunpack.c.l.b16 %v2042
        %v2997 = vunpack.c.l.b16 %v2043
        %v2998 = vunpack.c.l.b16 %v2044
        %v2999 = vunpack.c.l.b16 %v2045
        %v3000 = vunpack.c.l.b16 %v2046
        %v3001 = vunpack.c.l.b16 %v2047
        %v3002 = vunpack.c.l.b16 %v2048
        %v3003 = vunpack.c.l.b16 %v2049
        %v3004 = vunpack.c.l.b16 %v2050
        %v3005 = vunpack.c.l.b16 %v2051
        %v3006 = vunpack.c.l.b16 %v2052
        %v3007 = vunpack.c.l.b16 %v2053
        %v3008 = vunpack.c.l.b16 %v2054
        %v3009 = vunpack.c.l.b16 %v2055
        %v3010 = vunpack.c.l.b16 %v2056
        %v3011 = vunpack.c.l.b16 %v2057
        %v3012 = vunpack.c.l.b16 %v2058
        %v3013 = vunpack.c.l.b16 %v2059
        %v3014 = vunpack.c.l.b16 %v2060
        %v3015 = vunpack.c.l.b16 %v2061
        %v3016 = vunpack.c.l.b16 %v2062
        %v3017 = vunpack.c.l.b16 %v2063
        %v3018 = vunpack.c.l.b16 %v2064
        %v3019 = vunpack.c.l.b16 %v2065
        %v3020 = vunpack.c.l.b16 %v2066
        %v3021 = vunpack.c.l.b16 %v2067
        %v3022 = vunpack.c.l.b16 %v2068
        %v3023 = vunpack.c.l.b16 %v2069
        %v3024 = vunpack.c.l.b16 %v2070
        %v3025 = vunpack.c.l.b16 %v2071
        %v3026 = vunpack.c.l.b16 %v2072
        %v3027 = vunpack.c.l.b16 %v2073
        %v3028 = vunpack.c.l.b16 %v2074
        %v3029 = vunpack.c.l.b16 %v2075
        %v3030 = vunpack.c.l.b16 %v2076
        %v3031 = vunpack.c.l.b16 %v2077
        %v3032 = vunpack.c.l.b16 %v2078
        %v3033 = vunpack.c.l.b16 %v2079
        %v3034 = vunpack.c.l.b16 %v2080
        %v3035 = vunpack.c.l.b16 %v2081
        %v3036 = vunpack.c.l.b16 %v2082
        %v3037 = vunpack.c.l.b16 %v2083
        %v3038 = vunpack.c.l.b16 %v2084
        %v3039 = vunpack.c.l.b16 %v2085
        %v3040 = vunpack.c.l.b16 %v2086
        %v3041 = vunpack.c.l.b16 %v2087
        %v3042 = vunpack.c.l.b16 %v2088
        %v3043 = vunpack.c.l.b16 %v2089
        %v3044 = vunpack.c.l.b16 %v2090
        %v3045 = vunpack.c.l.b16 %v2091
        %v3046 = vunpack.c.l.b16 %v2092
        %v3047 = vunpack.c.l.b16 %v2093
        %v3048 = vunpack.c.l.b16 %v2094
        %v3049 = vunpack.c.l.b16 %v2095
        %v3050 = vunpack.c.l.b16 %v2096
        %v3051 = vunpack.c.l.b16 %v2097
        %v3052 = vunpack.c.l.b16 %v2098
        %v3053 = vunpack.c.l.b16 %v2099
        %v3054 = vunpack.c.l.b16 %v2100
        %v3055 = vunpack.c.l.b16 %v2101
        %v3056 = vunpack.c.l.b16 %v2102
        %v3057 = vunpack.c.l.b16 %v2103
        %v3058 = vunpack.c.l.b16 %v2104
        %v3059 = vunpack.c.l.b16 %v2105
        %v3060 = vunpack.c.l.b16 %v2106
        %v3061 = vunpack.c.l.b16 %v2107
        %v3062 = vunpack.c.l.b16 %v2108
        %v3063 = vunpack.c.l.b16 %v2109
        %v3064 = vunpack.c.l.b16 %v2110
        %v3065 = vunpack.c.l.b16 %v2111
        %v3066 = vunpack.c.l.b16 %v2112
        %v3067 = vunpack.c.l.b16 %v2113
        %v3068 = vunpack.c.l.b16 %v2114
        %v3069 = vunpack.c.l.b16 %v2115
        %v3070 = vunpack.c.l.b16 %v2116
        %v3071 = vunpack.c.l.b16 %v2117
        %v3072 = vunpack.c.l.b16 %v2118
        %v3073 = vunpack.c.l.b16 %v2119
        %v3074 = vunpack.c.l.b16 %v2120
        %v3075 = vunpack.c.l.b16 %v2121
        %v3076 = vunpack.c.l.b16 %v2122
        %v3077 = vunpack.c.l.b16 %v2123
        %v3078 = vunpack.c.l.b16 %v2124
        %v3079 = vunpack.c.l.b16 %v2125
        %v3080 = vunpack.c.l.b16 %v2126
        %v3081 = vunpack.c.l.b16 %v2127
        %v3082 = vunpack.c.l.b16 %v2128
        %v3083 = vunpack.c.l.b16 %v2129
        %v3084 = vunpack.c.l.b16 %v2130
        %v3085 = vunpack.c.l.b16 %v2131
        %v3086 = vunpack.c.l.b16 %v2132
        %v3087 = vunpack.c.l.b16 %v2133
        %v3088 = vunpack.c.l.b16 %v2134
        %v3089 = vunpack.c.l.b16 %v2135
        %v3090 = vunpack.c.l.b16 %v2136
        %v3091 = vunpack.c.l.b16 %v2137
        %v3092 = vunpack.c.l.b16 %v2138
        %v3093 = vunpack.c.l.b16 %v2139
        %v3094 = vunpack.c.l.b16 %v2140
        %v3095 = vunpack.c.l.b16 %v2141
        %v3096 = vunpack.c.l.b16 %v2142
        %v3097 = vunpack.c.l.b16 %v2143
        %v3098 = vunpack.c.l.b16 %v2144
        %v3099 = vunpack.c.l.b16 %v2145
        %v3100 = vunpack.c.l.b16 %v2146
        %v3101 = vunpack.c.l.b16 %v2147
        %v3102 = vunpack.c.l.b16 %v2148
        %v3103 = vunpack.c.l.b16 %v2149
        %v3104 = vunpack.c.l.b16 %v2150
        %v3105 = vunpack.c.l.b16 %v2151
        %v3106 = vunpack.c.l.b16 %v2152
        %v3107 = vunpack.c.l.b16 %v2153
        %v3108 = vunpack.c.l.b16 %v2154
        %v3109 = vunpack.c.l.b16 %v2155
        %v3110 = vunpack.c.l.b16 %v2156
        %v3111 = vunpack.c.l.b16 %v2157
        %v3112 = vunpack.c.l.b16 %v2158
        %v3113 = vunpack.c.l.b16 %v2159
        %v3114 = vunpack.c.l.b16 %v2160
        %v3115 = vunpack.c.l.b16 %v2161
        %v3116 = vunpack.c.l.b16 %v2162
        %v3117 = vunpack.c.l.b16 %v2163
        %v3118 = vunpack.c.l.b16 %v2164
        %v3119 = vunpack.c.l.b16 %v2165
        %v3120 = vunpack.c.l.b16 %v2166
        %v3121 = vunpack.c.l.b16 %v2167
        %v3122 = vunpack.c.l.b16 %v2168
        %v3123 = vunpack.c.l.b16 %v2169
        %v3124 = vunpack.c.l.b16 %v2170
        %v3125 = vunpack.c.l.b16 %v2171
        %v3126 = vunpack.c.l.b16 %v2172
        %v3127 = vunpack.c.l.b16 %v2173
        %v3128 = vunpack.c.l.b16 %v2174
        %v3129 = vunpack.c.l.b16 %v2175
        %v3130 = vunpack.c.l.b16 %v2176
        %v3131 = vunpack.c.l.b16 %v2177
        %v3132 = vunpack.c.l.b16 %v2178
        %v3133 = vunpack.c.l.b16 %v2179
        %v3134 = vunpack.c.l.b16 %v2180
        %v3135 = vunpack.c.l.b16 %v2181
        %v3136 = vunpack.c.l.b16 %v2182
        %v3137 = vunpack.c.l.b16 %v2183
        %v3138 = vunpack.c.l.b16 %v2184
        %v3139 = vunpack.c.l.b16 %v2185
        %v3140 = vunpack.c.l.b16 %v2186
        %v3141 = vunpack.c.l.b16 %v2187
        %v3142 = vunpack.c.l.b16 %v2188
        %v3143 = vunpack.c.l.b16 %v2189
        %v3144 = vunpack.c.l.b16 %v2190
        %v3145 = vunpack.c.l.b16 %v2191
        %v3146 = vunpack.c.l.b16 %v2192
        %v3147 = vunpack.c.l.b16 %v2193
        %v3148 = vunpack.c.l.b16 %v2194
        %v3149 = vunpack.c.l.b16 %v2195
        %v3150 = vunpack.c.l.b16 %v2196
        %v3151 = vunpack.c.l.b16 %v2197
        %v3152 = vunpack.c.l.b16 %v2198
        %v3153 = vunpack.c.l.b16 %v2199
        %v3154 = vunpack.c.l.b16 %v2200
        %v3155 = vunpack.c.l.b16 %v2201
        %v3156 = vunpack.c.l.b16 %v2202
        %v3157 = vunpack.c.l.b16 %v2203
        %v3158 = vunpack.c.l.b16 %v2204
        %v3159 = vunpack.c.l.b16 %v2205
        %v3160 = vunpack.c.l.b16 %v2206
        %v3161 = vunpack.c.l.b16 %v2207
        %v3162 = vunpack.c.l.b16 %v2208
        %v3163 = vunpack.c.l.b16 %v2209
        %v3164 = vunpack.c.l.b16 %v2210
        %v3165 = vunpack.c.l.b16 %v2211
        %v3166 = vunpack.c.l.b16 %v2212
        %v3167 = vunpack.c.l.b16 %v2213
        %v3168 = vunpack.c.l.b16 %v2214
        %v3169 = vunpack.c.l.b16 %v2215
        %v3170 = vunpack.c.l.b16 %v2216
        %v3171 = vunpack.c.l.b16 %v2217
        %v3172 = vunpack.c.l.b16 %v2218
        %v3173 = vunpack.c.l.b16 %v2219
        %v3174 = vunpack.c.l.b16 %v2220
        %v3175 = vunpack.c.l.b16 %v2221
        %v3176 = vunpack.c.l.b16 %v2222
        %v3177 = vunpack.c.l.b16 %v2223
        %v3178 = vunpack.c.l.b16 %v2224
        %v3179 = vunpack.c.l.b16 %v2225
        %v3180 = vunpack.c.l.b16 %v2226
        %v3181 = vunpack.c.l.b16 %v2227
        %v3182 = vunpack.c.l.b16 %v2228
        %v3183 = vunpack.c.l.b16 %v2229
        %v3184 = vunpack.c.l.b16 %v2230
        %v3185 = vunpack.c.l.b16 %v2231
        %v3186 = vunpack.c.l.b16 %v2232
        %v3187 = vunpack.c.l.b16 %v2233
        %v3188 = vunpack.c.l.b16 %v2234
        %v3189 = vunpack.c.l.b16 %v2235
        %v3190 = vunpack.c.l.b16 %v2236
        %v3191 = vunpack.c.l.b16 %v2237
        %v3192 = vunpack.c.l.b16 %v2238
        %v3193 = vunpack.c.l.b16 %v2239
        %v3194 = vunpack.c.l.b16 %v2240
        %v3195 = vunpack.c.l.b16 %v2241
        %v3196 = vunpack.c.l.b16 %v2242
        %v3197 = vunpack.c.l.b16 %v2243
        %v3198 = vunpack.c.l.b16 %v2244
        %v3199 = vunpack.c.l.b16 %v2245
        %v3200 = vunpack.c.l.b16 %v2246
        %v3201 = vunpack.c.l.b16 %v2247
        %v3202 = vunpack.c.l.b16 %v2248
        %v3203 = vunpack.c.l.b16 %v2249
        %v3204 = vunpack.c.l.b16 %v2250
        %v3205 = vunpack.c.l.b16 %v2251
        %v3206 = vunpack.c.l.b16 %v2252
        %v3207 = vunpack.c.l.b16 %v2253
        %v3208 = vunpack.c.l.b16 %v2254
        %v3209 = vunpack.c.l.b16 %v2255
        %v3210 = vunpack.c.l.b16 %v2256
        %v3211 = vunpack.c.l.b16 %v2257
        %v3212 = vunpack.c.l.b16 %v2258
        %v3213 = vunpack.c.l.b16 %v2259
        %v3214 = vunpack.c.l.b16 %v2260
        %v3215 = vunpack.c.l.b16 %v2261
        %v3216 = vpack.c.b16 %v2961, %v2960
        %v3217 = vpack.c.b16 %v2963, %v2962
        %v3218 = vpack.c.b16 %v2965, %v2964
        %v3219 = vpack.c.b16 %v2967, %v2966
        %v3220 = vpack.c.b16 %v2969, %v2968
        %v3221 = vpack.c.b16 %v2971, %v2970
        %v3222 = vpack.c.b16 %v2973, %v2972
        %v3223 = vpack.c.b16 %v2975, %v2974
        %v3224 = vpack.c.b16 %v2977, %v2976
        %v3225 = vpack.c.b16 %v2979, %v2978
        %v3226 = vpack.c.b16 %v2981, %v2980
        %v3227 = vpack.c.b16 %v2983, %v2982
        %v3228 = vpack.c.b16 %v2985, %v2984
        %v3229 = vpack.c.b16 %v2987, %v2986
        %v3230 = vpack.c.b16 %v2989, %v2988
        %v3231 = vpack.c.b16 %v2991, %v2990
        %v3232 = vpack.c.b16 %v2993, %v2992
        %v3233 = vpack.c.b16 %v2995, %v2994
        %v3234 = vpack.c.b16 %v2997, %v2996
        %v3235 = vpack.c.b16 %v2999, %v2998
        %v3236 = vpack.c.b16 %v3001, %v3000
        %v3237 = vpack.c.b16 %v3003, %v3002
        %v3238 = vpack.c.b16 %v3005, %v3004
        %v3239 = vpack.c.b16 %v3007, %v3006
        %v3240 = vpack.c.b16 %v3009, %v3008
        %v3241 = vpack.c.b16 %v3011, %v3010
        %v3242 = vpack.c.b16 %v3013, %v3012
        %v3243 = vpack.c.b16 %v3015, %v3014
        %v3244 = vpack.c.b16 %v3017, %v3016
        %v3245 = vpack.c.b16 %v3019, %v3018
        %v3246 = vpack.c.b16 %v3021, %v3020
        %v3247 = vpack.c.b16 %v3023, %v3022
        %v3248 = vpack.c.b16 %v3025, %v3024
        %v3249 = vpack.c.b16 %v3027, %v3026
        %v3250 = vpack.c.b16 %v3029, %v3028
        %v3251 = vpack.c.b16 %v3031, %v3030
        %v3252 = vpack.c.b16 %v3033, %v3032
        %v3253 = vpack.c.b16 %v3035, %v3034
        %v3254 = vpack.c.b16 %v3037, %v3036
        %v3255 = vpack.c.b16 %v3039, %v3038
        %v3256 = vpack.c.b16 %v3041, %v3040
        %v3257 = vpack.c.b16 %v3043, %v3042
        %v3258 = vpack.c.b16 %v3045, %v3044
        %v3259 = vpack.c.b16 %v3047, %v3046
        %v3260 = vpack.c.b16 %v3049, %v3048
        %v3261 = vpack.c.b16 %v3051, %v3050
        %v3262 = vpack.c.b16 %v3053, %v3052
        %v3263 = vpack.c.b16 %v3055, %v3054
        %v3264 = vpack.c.b16 %v3057, %v3056
        %v3265 = vpack.c.b16 %v3059, %v3058
        %v3266 = vpack.c.b16 %v3061, %v3060
        %v3267 = vpack.c.b16 %v3063, %v3062
        %v3268 = vpack.c.b16 %v3065, %v3064
        %v3269 = vpack.c.b16 %v3067, %v3066
        %v3270 = vpack.c.b16 %v3069, %v3068
        %v3271 = vpack.c.b16 %v3071, %v3070
        %v3272 = vpack.c.b16 %v3073, %v3072
        %v3273 = vpack.c.b16 %v3075, %v3074
        %v3274 = vpack.c.b16 %v3077, %v3076
        %v3275 = vpack.c.b16 %v3079, %v3078
        %v3276 = vpack.c.b16 %v3081, %v3080
        %v3277 = vpack.c.b16 %v3083, %v3082
        %v3278 = vpack.c.b16 %v3085, %v3084
        %v3279 = vpack.c.b16 %v3087, %v3086
        %v3280 = vpack.c.b16 %v3089, %v3088
        %v3281 = vpack.c.b16 %v3091, %v3090
        %v3282 = vpack.c.b16 %v3093, %v3092
        %v3283 = vpack.c.b16 %v3095, %v3094
        %v3284 = vpack.c.b16 %v3097, %v3096
        %v3285 = vpack.c.b16 %v3099, %v3098
        %v3286 = vpack.c.b16 %v3101, %v3100
        %v3287 = vpack.c.b16 %v3103, %v3102
        %v3288 = vpack.c.b16 %v3105, %v3104
        %v3289 = vpack.c.b16 %v3107, %v3106
        %v3290 = vpack.c.b16 %v3109, %v3108
        %v3291 = vpack.c.b16 %v3111, %v3110
        %v3292 = vpack.c.b16 %v3113, %v3112
        %v3293 = vpack.c.b16 %v3115, %v3114
        %v3294 = vpack.c.b16 %v3117, %v3116
        %v3295 = vpack.c.b16 %v3119, %v3118
        %v3296 = vpack.c.b16 %v3121, %v3120
        %v3297 = vpack.c.b16 %v3123, %v3122
        %v3298 = vpack.c.b16 %v3125, %v3124
        %v3299 = vpack.c.b16 %v3127, %v3126
        %v3300 = vpack.c.b16 %v3129, %v3128
        %v3301 = vpack.c.b16 %v3131, %v3130
        %v3302 = vpack.c.b16 %v3133, %v3132
        %v3303 = vpack.c.b16 %v3135, %v3134
        %v3304 = vpack.c.b16 %v3137, %v3136
        %v3305 = vpack.c.b16 %v3139, %v3138
        %v3306 = vpack.c.b16 %v3141, %v3140
        %v3307 = vpack.c.b16 %v3143, %v3142
        %v3308 = vpack.c.b16 %v3145, %v3144
        %v3309 = vpack.c.b16 %v3147, %v3146
        %v3310 = vpack.c.b16 %v3149, %v3148
        %v3311 = vpack.c.b16 %v3151, %v3150
        %v3312 = vpack.c.b16 %v3153, %v3152
        %v3313 = vpack.c.b16 %v3155, %v3154
        %v3314 = vpack.c.b16 %v3157, %v3156
        %v3315 = vpack.c.b16 %v3159, %v3158
        %v3316 = vpack.c.b16 %v3161, %v3160
        %v3317 = vpack.c.b16 %v3163, %v3162
        %v3318 = vpack.c.b16 %v3165, %v3164
        %v3319 = vpack.c.b16 %v3167, %v3166
        %v3320 = vpack.c.b16 %v3169, %v3168
        %v3321 = vpack.c.b16 %v3171, %v3170
        %v3322 = vpack.c.b16 %v3173, %v3172
        %v3323 = vpack.c.b16 %v3175, %v3174
        %v3324 = vpack.c.b16 %v3177, %v3176
        %v3325 = vpack.c.b16 %v3179, %v3178
        %v3326 = vpack.c.b16 %v3181, %v3180
        %v3327 = vpack.c.b16 %v3183, %v3182
        %v3328 = vpack.c.b16 %v3185, %v3184
        %v3329 = vpack.c.b16 %v3187, %v3186
        %v3330 = vpack.c.b16 %v3189, %v3188
        %v3331 = vpack.c.b16 %v3191, %v3190
        %v3332 = vpack.c.b16 %v3193, %v3192
        %v3333 = vpack.c.b16 %v3195, %v3194
        %v3334 = vpack.c.b16 %v3197, %v3196
        %v3335 = vpack.c.b16 %v3199, %v3198
        %v3336 = vpack.c.b16 %v3201, %v3200
        %v3337 = vpack.c.b16 %v3203, %v3202
        %v3338 = vpack.c.b16 %v3205, %v3204
        %v3339 = vpack.c.b16 %v3207, %v3206
        %v3340 = vpack.c.b16 %v3209, %v3208
        %v3341 = vpack.c.b16 %v3211, %v3210
        %v3342 = vpack.c.b16 %v3213, %v3212
        %v3343 = vpack.c.b16 %v3215, %v3214
        %3472 = vmatpush.bf16.msra.mxu0 %v3223
        %3473 = vmatpush.bf16.msra.mxu0 %v3222
        %3474 = vmatpush.bf16.msra.mxu0 %v3221
        %3475 = vmatpush.bf16.msra.mxu0 %v3220
        %3476 = vmatpush.bf16.msra.mxu0 %v3219
        %3477 = vmatpush.bf16.msra.mxu0 %v3218
        %3478 = vmatpush.bf16.msra.mxu0 %v3217
        %3479 = vmatpush.bf16.msra.mxu0 %v3216
        %3480 = vmatmul.bf16.gmra.mxu0 %v2685
        %v3481 = vpop.f32.mrf.mxu0
        %v3482 = vadd.f32 %v2702, %v3481
        %v3483 = vpop.f32.mrf.mxu0
        %3484 = vdwg.mxu0
        %3485 = vmatpush.bf16.msra.mxu0 %v3231
        %3486 = vmatpush.bf16.msra.mxu0 %v3230
        %3487 = vmatpush.bf16.msra.mxu0 %v3229
        %3488 = vmatpush.bf16.msra.mxu0 %v3228
        %3489 = vmatpush.bf16.msra.mxu0 %v3227
        %3490 = vmatpush.bf16.msra.mxu0 %v3226
        %3491 = vmatpush.bf16.msra.mxu0 %v3225
        %3492 = vmatpush.bf16.msra.mxu0 %v3224
        %3493 = vmatmul.bf16.gmra.mxu0 %v2686
        %v3494 = vpop.f32.mrf.mxu0
        %v3495 = vadd.f32 %v3482, %v3494
        %v3496 = vpop.f32.mrf.mxu0
        %3497 = vdwg.mxu0
        %3498 = vmatpush.bf16.msra.mxu0 %v3239
        %3499 = vmatpush.bf16.msra.mxu0 %v3238
        %3500 = vmatpush.bf16.msra.mxu0 %v3237
        %3501 = vmatpush.bf16.msra.mxu0 %v3236
        %3502 = vmatpush.bf16.msra.mxu0 %v3235
        %3503 = vmatpush.bf16.msra.mxu0 %v3234
        %3504 = vmatpush.bf16.msra.mxu0 %v3233
        %3505 = vmatpush.bf16.msra.mxu0 %v3232
        %3506 = vmatmul.bf16.gmra.mxu0 %v2687
        %v3507 = vpop.f32.mrf.mxu0
        %v3508 = vadd.f32 %v3495, %v3507
        %v3509 = vpop.f32.mrf.mxu0
        %3510 = vdwg.mxu0
        %3511 = vmatpush.bf16.msra.mxu0 %v3247
        %3512 = vmatpush.bf16.msra.mxu0 %v3246
        %3513 = vmatpush.bf16.msra.mxu0 %v3245
        %3514 = vmatpush.bf16.msra.mxu0 %v3244
        %3515 = vmatpush.bf16.msra.mxu0 %v3243
        %3516 = vmatpush.bf16.msra.mxu0 %v3242
        %3517 = vmatpush.bf16.msra.mxu0 %v3241
        %3518 = vmatpush.bf16.msra.mxu0 %v3240
        %3519 = vmatmul.bf16.gmra.mxu0 %v2688
        %v3520 = vpop.f32.mrf.mxu0
        %v3521 = vadd.f32 %v3508, %v3520
        %v3522 = vpop.f32.mrf.mxu0
        %3523 = vdwg.mxu0
        %3524 = vmatpush.bf16.msra.mxu0 %v3255
        %3525 = vmatpush.bf16.msra.mxu0 %v3254
        %3526 = vmatpush.bf16.msra.mxu0 %v3253
        %3527 = vmatpush.bf16.msra.mxu0 %v3252
        %3528 = vmatpush.bf16.msra.mxu0 %v3251
        %3529 = vmatpush.bf16.msra.mxu0 %v3250
        %3530 = vmatpush.bf16.msra.mxu0 %v3249
        %3531 = vmatpush.bf16.msra.mxu0 %v3248
        %3532 = vmatmul.bf16.gmra.mxu0 %v2689
        %v3533 = vpop.f32.mrf.mxu0
        %v3534 = vadd.f32 %v3521, %v3533
        %v3535 = vpop.f32.mrf.mxu0
        %3536 = vdwg.mxu0
        %3537 = vmatpush.bf16.msra.mxu0 %v3263
        %3538 = vmatpush.bf16.msra.mxu0 %v3262
        %3539 = vmatpush.bf16.msra.mxu0 %v3261
        %3540 = vmatpush.bf16.msra.mxu0 %v3260
        %3541 = vmatpush.bf16.msra.mxu0 %v3259
        %3542 = vmatpush.bf16.msra.mxu0 %v3258
        %3543 = vmatpush.bf16.msra.mxu0 %v3257
        %3544 = vmatpush.bf16.msra.mxu0 %v3256
        %3545 = vmatmul.bf16.gmra.mxu0 %v2690
        %v3546 = vpop.f32.mrf.mxu0
        %v3547 = vadd.f32 %v3534, %v3546
        %v3548 = vpop.f32.mrf.mxu0
        %3549 = vdwg.mxu0
        %3550 = vmatpush.bf16.msra.mxu0 %v3271
        %3551 = vmatpush.bf16.msra.mxu0 %v3270
        %3552 = vmatpush.bf16.msra.mxu0 %v3269
        %3553 = vmatpush.bf16.msra.mxu0 %v3268
        %3554 = vmatpush.bf16.msra.mxu0 %v3267
        %3555 = vmatpush.bf16.msra.mxu0 %v3266
        %3556 = vmatpush.bf16.msra.mxu0 %v3265
        %3557 = vmatpush.bf16.msra.mxu0 %v3264
        %3558 = vmatmul.bf16.gmra.mxu0 %v2691
        %v3559 = vpop.f32.mrf.mxu0
        %v3560 = vadd.f32 %v3547, %v3559
        %v3561 = vpop.f32.mrf.mxu0
        %3562 = vdwg.mxu0
        %3563 = vmatpush.bf16.msra.mxu0 %v3279
        %3564 = vmatpush.bf16.msra.mxu0 %v3278
        %3565 = vmatpush.bf16.msra.mxu0 %v3277
        %3566 = vmatpush.bf16.msra.mxu0 %v3276
        %3567 = vmatpush.bf16.msra.mxu0 %v3275
        %3568 = vmatpush.bf16.msra.mxu0 %v3274
        %3569 = vmatpush.bf16.msra.mxu0 %v3273
        %3570 = vmatpush.bf16.msra.mxu0 %v3272
        %3571 = vmatmul.bf16.gmra.mxu0 %v2692
        %v3572 = vpop.f32.mrf.mxu0
        %v3573 = vadd.f32 %v3560, %v3572
        %v3574 = vpop.f32.mrf.mxu0
        %3575 = vdwg.mxu0
        %3576 = vmatpush.bf16.msra.mxu0 %v3287
        %3577 = vmatpush.bf16.msra.mxu0 %v3286
        %3578 = vmatpush.bf16.msra.mxu0 %v3285
        %3579 = vmatpush.bf16.msra.mxu0 %v3284
        %3580 = vmatpush.bf16.msra.mxu0 %v3283
        %3581 = vmatpush.bf16.msra.mxu0 %v3282
        %3582 = vmatpush.bf16.msra.mxu0 %v3281
        %3583 = vmatpush.bf16.msra.mxu0 %v3280
        %3584 = vmatmul.bf16.gmra.mxu0 %v2693
        %v3585 = vpop.f32.mrf.mxu0
        %v3586 = vadd.f32 %v3573, %v3585
        %v3587 = vpop.f32.mrf.mxu0
        %3588 = vdwg.mxu0
        %3589 = vmatpush.bf16.msra.mxu0 %v3295
        %3590 = vmatpush.bf16.msra.mxu0 %v3294
        %3591 = vmatpush.bf16.msra.mxu0 %v3293
        %3592 = vmatpush.bf16.msra.mxu0 %v3292
        %3593 = vmatpush.bf16.msra.mxu0 %v3291
        %3594 = vmatpush.bf16.msra.mxu0 %v3290
        %3595 = vmatpush.bf16.msra.mxu0 %v3289
        %3596 = vmatpush.bf16.msra.mxu0 %v3288
        %3597 = vmatmul.bf16.gmra.mxu0 %v2694
        %v3598 = vpop.f32.mrf.mxu0
        %v3599 = vadd.f32 %v3586, %v3598
        %v3600 = vpop.f32.mrf.mxu0
        %3601 = vdwg.mxu0
        %3602 = vmatpush.bf16.msra.mxu0 %v3303
        %3603 = vmatpush.bf16.msra.mxu0 %v3302
        %3604 = vmatpush.bf16.msra.mxu0 %v3301
        %3605 = vmatpush.bf16.msra.mxu0 %v3300
        %3606 = vmatpush.bf16.msra.mxu0 %v3299
        %3607 = vmatpush.bf16.msra.mxu0 %v3298
        %3608 = vmatpush.bf16.msra.mxu0 %v3297
        %3609 = vmatpush.bf16.msra.mxu0 %v3296
        %3610 = vmatmul.bf16.gmra.mxu0 %v2695
        %v3611 = vpop.f32.mrf.mxu0
        %v3612 = vadd.f32 %v3599, %v3611
        %v3613 = vpop.f32.mrf.mxu0
        %3614 = vdwg.mxu0
        %3615 = vmatpush.bf16.msra.mxu0 %v3311
        %3616 = vmatpush.bf16.msra.mxu0 %v3310
        %3617 = vmatpush.bf16.msra.mxu0 %v3309
        %3618 = vmatpush.bf16.msra.mxu0 %v3308
        %3619 = vmatpush.bf16.msra.mxu0 %v3307
        %3620 = vmatpush.bf16.msra.mxu0 %v3306
        %3621 = vmatpush.bf16.msra.mxu0 %v3305
        %3622 = vmatpush.bf16.msra.mxu0 %v3304
        %3623 = vmatmul.bf16.gmra.mxu0 %v2696
        %v3624 = vpop.f32.mrf.mxu0
        %v3625 = vadd.f32 %v3612, %v3624
        %v3626 = vpop.f32.mrf.mxu0
        %3627 = vdwg.mxu0
        %3628 = vmatpush.bf16.msra.mxu0 %v3319
        %3629 = vmatpush.bf16.msra.mxu0 %v3318
        %3630 = vmatpush.bf16.msra.mxu0 %v3317
        %3631 = vmatpush.bf16.msra.mxu0 %v3316
        %3632 = vmatpush.bf16.msra.mxu0 %v3315
        %3633 = vmatpush.bf16.msra.mxu0 %v3314
        %3634 = vmatpush.bf16.msra.mxu0 %v3313
        %3635 = vmatpush.bf16.msra.mxu0 %v3312
        %3636 = vmatmul.bf16.gmra.mxu0 %v2697
        %v3637 = vpop.f32.mrf.mxu0
        %v3638 = vadd.f32 %v3625, %v3637
        %v3639 = vpop.f32.mrf.mxu0
        %3640 = vdwg.mxu0
        %3641 = vmatpush.bf16.msra.mxu0 %v3327
        %3642 = vmatpush.bf16.msra.mxu0 %v3326
        %3643 = vmatpush.bf16.msra.mxu0 %v3325
        %3644 = vmatpush.bf16.msra.mxu0 %v3324
        %3645 = vmatpush.bf16.msra.mxu0 %v3323
        %3646 = vmatpush.bf16.msra.mxu0 %v3322
        %3647 = vmatpush.bf16.msra.mxu0 %v3321
        %3648 = vmatpush.bf16.msra.mxu0 %v3320
        %3649 = vmatmul.bf16.gmra.mxu0 %v2698
        %v3650 = vpop.f32.mrf.mxu0
        %v3651 = vadd.f32 %v3638, %v3650
        %v3652 = vpop.f32.mrf.mxu0
        %3653 = vdwg.mxu0
        %3654 = vmatpush.bf16.msra.mxu0 %v3335
        %3655 = vmatpush.bf16.msra.mxu0 %v3334
        %3656 = vmatpush.bf16.msra.mxu0 %v3333
        %3657 = vmatpush.bf16.msra.mxu0 %v3332
        %3658 = vmatpush.bf16.msra.mxu0 %v3331
        %3659 = vmatpush.bf16.msra.mxu0 %v3330
        %3660 = vmatpush.bf16.msra.mxu0 %v3329
        %3661 = vmatpush.bf16.msra.mxu0 %v3328
        %3662 = vmatmul.bf16.gmra.mxu0 %v2699
        %v3663 = vpop.f32.mrf.mxu0
        %v3664 = vadd.f32 %v3651, %v3663
        %v3665 = vpop.f32.mrf.mxu0
        %3666 = vdwg.mxu0
        %3667 = vmatpush.bf16.msra.mxu0 %v3343
        %3668 = vmatpush.bf16.msra.mxu0 %v3342
        %3669 = vmatpush.bf16.msra.mxu0 %v3341
        %3670 = vmatpush.bf16.msra.mxu0 %v3340
        %3671 = vmatpush.bf16.msra.mxu0 %v3339
        %3672 = vmatpush.bf16.msra.mxu0 %v3338
        %3673 = vmatpush.bf16.msra.mxu0 %v3337
        %3674 = vmatpush.bf16.msra.mxu0 %v3336
        %3675 = vmatmul.bf16.gmra.mxu0 %v2700
        %v3676 = vpop.f32.mrf.mxu0
        %v3677 = vadd.f32 %v3664, %v3676
        %v3678 = vpop.f32.mrf.mxu0
        %3679 = vdwg.mxu0
        %v3680 = vld [vmem:[%s1144] sm:$0x1]
        %v3681 = vld [vmem:[%s1147] sm:$0x1]
        %v3682 = vadd.f32 %v1971, %v3677
        %v3683 = vsel %vm1190, %v3682, 0.0
        %3684 = vadd.xlane.f32.xlu0 %v3683
        %v3685 = vpop.xlane.xlu0 %3684
        %v3686 = vmul.f32 %v3685, %v1528
        %v3687 = vsub.f32 %v3682, %v3686
        %v3688 = vmul.f32 %v3687, %v3687
        %v3689 = vsel %vm1190, %v3688, 0.0
        %3690 = vadd.xlane.f32.xlu0 %v3689
        %v3691 = vpop.xlane.xlu0 %3690
        %v3692 = vmul.f32 %v3691, 0.032258064
        %v3694 = vperm.slane %v3680, 0
        %v3696 = vmul.f32 %v3694, %v3687
        %v3697 = vrsqrt.pop %v3692
        %v3698 = vmul.f32 %v3697, %v3692
        %v3699 = vmul.f32 %v3698, %v3697
        %v3700 = vmul.f32 0.5, %v3699
        %v3701 = vsub.f32 1.5, %v3700
        %v3702 = vmul.f32 %v3697, %v3701
        %v3703 = vmul.f32 %v3692, %v3702
        %vm3704 = vcmp.eq.f32.partialorder %v3692, inf
        %v3705 = vsel %vm3704, %v3692, %v3703
        %vm3706 = vcmp.eq.f32.partialorder %v3692, 0.0
        %v3707 = vand.u32 %v3692, 2147483648
        %v3708 = vsel %vm3706, %v3707, %v3705
        %v3709 = vadd.f32 %v3708, 1e-06
        %v3710 = vrcp.pop %v3709
        %v3711 = vmul.f32 %v3709, %v3710
        %v3712 = vsub.f32 1.0, %v3711
        %v3713 = vmul.f32 %v3710, %v3712
        %v3714 = vadd.f32 %v3710, %v3713
        %vm3715 = vweird.f32 %v3709
        %vm3716 = vweird.f32 %v3710
        %vm3717 = vmor %vm3715, %vm3716
        %v3718 = vsel %vm3717, %v3710, %v3714
        %v3719 = vand.u32 2147483647, %v3709
        %vm3720 = vcmp.eq.f32.partialorder %v3719, 8.507059e+37
        %v3721 = vand.u32 %v3709, 2147483648
        %v3722 = vor.u32 1.1754944e-38, %v3721
        %v3723 = vsel %vm3720, %v3722, %v3718
        %v3724 = vmul.f32 %v3696, %v3723
        %v3726 = vperm.slane %v3681, 0
        %v3728 = vadd.f32 %v3724, %v3726
        %3729 = vst.msk [vmem:[%s1056] sm:$0xff] %vm1190, %v3728
        %s3730 = sand.u32 %s704, 1
        %s3731 = scalar_lea.sflag [#allocation3], %s3730
        %s3732 = sand.u32 %s704, 1
        %s3733 = smul.addr %s3732, 8
        %s3734 = scalar_lea.vmem [#allocation2], %s3733
        // Predicated region
        $region125: #{encoder_decoder_forward.3} parent=119 // pred_check
          %p3735 = pneg %p714
        $region126: #{encoder_decoder_forward.3} parent=119 // pred_check_branch
          %3737 = sbr.rel (%p3735) target = $region128
        $region127: #{encoder_decoder_forward.3} parent=119 // pred_region
          %3739 = vsyncadd %s3731, 0
          %s3740 = smul.addr %s43, 8
          %s3741 = scalar_lea.hbm %s25, %s3740
          %s3743 = sshll.u32 %s3734, 4
          %s3744 = int_to_ptr.vmem [resolvable:$true] %s3743
          %s3745 = sshll.u32 %s3741, 4
          %s3746 = int_to_ptr.hbm [resolvable:$true] %s3745
          %3748 = dma.vmem_to_hbm [thread:$0]  %s3744, 128, %s3746, %s3731
        $region128: #{encoder_decoder_forward.3} parent=119 // pred_fallthru
          _
      $region120: #{encoder_decoder_forward.3} parent=5 // pred_fallthru
        _
      %p3749 = scmp.le.s32.totalorder 2, %s34
      // Predicated region
      $region129: #{encoder_decoder_forward.3} parent=5 // pred_check
        %p3750 = pneg %p3749
      $region130: #{encoder_decoder_forward.3} parent=5 // pred_check_branch
        %3752 = sbr.rel (%p3750) target = $region132
      $region131: #{encoder_decoder_forward.3} parent=5 // pred_region
        %s3753 = ssub.s32 %s34, 2
        // Predicated region
        $region133: #{encoder_decoder_forward.3} parent=131 // pred_check
          %p3754 = pneg %p720
        $region134: #{encoder_decoder_forward.3} parent=131 // pred_check_branch
          %3756 = sbr.rel (%p3754) target = $region136
        $region135: #{encoder_decoder_forward.3} parent=131 // pred_region
          %s3757 = sand.u32 %s705, 1
          %s3758 = scalar_lea.sflag [#allocation3], %s3757
          %s3759 = sand.u32 %s705, 1
          %s3760 = smul.addr %s3759, 8
          %s3761 = scalar_lea.vmem [#allocation2], %s3760
          %3763 = dma.done %s3758, 128
        $region136: #{encoder_decoder_forward.3} parent=131 // pred_fallthru
          _
      $region132: #{encoder_decoder_forward.3} parent=5 // pred_fallthru
        _
    $region6: #{encoder_decoder_forward.3} parent=1 // loop_footer
      %s38 = sadd.s32 1, %s34
    $region7: #{encoder_decoder_forward.3} parent=1 // loop_footer_branch
      %33 = sbr.rel target = $region3
    $region8: #{encoder_decoder_forward.3} parent=1 // loop_exit
      _
    %3764 = vsyncpa [#allocation3], 1
    %s3765 = scalar_lea.sflag [#allocation3], 1
    %3766 = vsyncpa %s3765, 1

</llo_original>
